<compile_context>
chip_gen: v7x
topology: tpu7x:2x2x1
jax: 0.10.0
libtpu: 0.0.40
codegen_flags: <defaults>
</compile_context>

<pallas_src>
import functools

import jax
import jax.numpy as jnp
from jax.experimental import pallas as pl
from jax.experimental.pallas import tpu as pltpu

LANE = 128


def _round_up(v, m):
    return (v + m - 1) // m * m


# ------------------------------ in-kernel helpers -----------------------------


def _load_halo(x_hbm, halo_ref, sem, n, t, nt, r0, rows):
    """Fetch the conv halo rows (`halo` above and below the current row tile)
    from HBM into `halo_ref` ((2*halo, W, C) VMEM scratch). Rows outside the
    image are zeroed (conv zero padding)."""
    halo = halo_ref.shape[0] // 2
    W, C = halo_ref.shape[1], halo_ref.shape[2]
    zeros = jnp.zeros((halo, W, C), halo_ref.dtype)

    @pl.when(t > 0)
    def _():
        pltpu.make_async_copy(x_hbm.at[n, pl.ds(r0 - halo, halo)],
                              halo_ref.at[pl.ds(0, halo)], sem.at[0]).start()

    @pl.when(t == 0)
    def _():
        halo_ref[0:halo] = zeros

    @pl.when(t < nt - 1)
    def _():
        pltpu.make_async_copy(x_hbm.at[n, pl.ds(r0 + rows, halo)],
                              halo_ref.at[pl.ds(halo, halo)], sem.at[1]).start()

    @pl.when(t == nt - 1)
    def _():
        halo_ref[halo:2 * halo] = zeros

    @pl.when(t > 0)
    def _():
        pltpu.make_async_copy(x_hbm.at[n, pl.ds(r0 - halo, halo)],
                              halo_ref.at[pl.ds(0, halo)], sem.at[0]).wait()

    @pl.when(t < nt - 1)
    def _():
        pltpu.make_async_copy(x_hbm.at[n, pl.ds(r0 + rows, halo)],
                              halo_ref.at[pl.ds(halo, halo)], sem.at[1]).wait()


def _conv3x3_acc(xs, w_ref, b_ref, out_rows, W):
    """3x3 conv, zero padding along W handled here (mask), rows supplied by the
    caller with a 1-row halo: xs is (out_rows + 2, W, Cin) bf16 where xs[j]
    holds input row (first_output_row - 1 + j).  Computed as 3 MXU matmuls
    (one per kernel row dy) with K = 3*Cin, f32 accumulation.
    Returns f32 (out_rows, W, Cout) including bias."""
    total_rows, _, Cin = xs.shape
    Cout = w_ref.shape[-1]

    # dx = -1 / +1 neighbours of every pixel via a sublane rotation (XLU) of
    # the flattened (rows*W, C) raster; the wrapped boundary column is masked
    # to zero (conv padding along W).  Keeps every slice aligned.
    flat = xs.reshape(total_rows * W, Cin)
    flat32 = flat.astype(jnp.float32)
    left = pltpu.roll(flat32, 1, 0).reshape(total_rows, W, Cin)
    right = pltpu.roll(flat32, total_rows * W - 1, 0).reshape(total_rows, W, Cin)
    col = jax.lax.broadcasted_iota(jnp.int32, (1, W, 1), 1)
    left = jnp.where(col == 0, 0.0, left).astype(xs.dtype)
    right = jnp.where(col == W - 1, 0.0, right).astype(xs.dtype)

    acc = jnp.zeros((out_rows * W, Cout), jnp.float32)
    for dy in range(3):                      # one K = 3*Cin matmul per dy group
        grp = jnp.concatenate(
            [left[dy:dy + out_rows], xs[dy:dy + out_rows],
             right[dy:dy + out_rows]], axis=-1).reshape(out_rows * W, 3 * Cin)
        acc = acc + jnp.dot(grp, w_ref[dy], preferred_element_type=jnp.float32)
    return acc.reshape(out_rows, W, Cout) + b_ref[...]


def _conv_kernel(xblk_ref, x_hbm, w_ref, b_ref, *rest, apply_sigmoid,
                 has_residual):
    if has_residual:
        res_ref, o_ref, halo_ref, sem = rest
    else:
        res_ref = None
        o_ref, halo_ref, sem = rest
    rows, W = xblk_ref.shape[1], xblk_ref.shape[2]
    n, t, nt = pl.program_id(0), pl.program_id(1), pl.num_programs(1)

    _load_halo(x_hbm, halo_ref, sem, n, t, nt, t * rows, rows)
    xs = jnp.concatenate([halo_ref[0:1], xblk_ref[0], halo_ref[1:2]], axis=0)

    out = _conv3x3_acc(xs, w_ref, b_ref, rows, W)
    if has_residual:
        out = out + res_ref[0].astype(jnp.float32)
    if apply_sigmoid:
        out = 1.0 / (1.0 + jnp.exp(-out))
    o_ref[0] = out.astype(o_ref.dtype)


def _resblock_kernel(xblk_ref, x_hbm, w1_ref, b1_ref, w2_ref, b2_ref, o_ref,
                     halo_ref, sem):
    """Fused ResidualBlock: conv3x3 -> ReLU -> conv3x3 -> + input (2-row halo;
    hidden activation never leaves VMEM)."""
    rows, W = xblk_ref.shape[1], xblk_ref.shape[2]
    n, t, nt = pl.program_id(0), pl.program_id(1), pl.num_programs(1)

    _load_halo(x_hbm, halo_ref, sem, n, t, nt, t * rows, rows)
    xs = jnp.concatenate([halo_ref[0:2], xblk_ref[0], halo_ref[2:4]], axis=0)

    hid = jnp.maximum(_conv3x3_acc(xs, w1_ref, b1_ref, rows + 2, W), 0.0)

    # Hidden rows that fall outside the image are conv2's zero padding, not
    # conv1-of-zero-padded-input: mask them at the first / last row tile.
    row = jax.lax.broadcasted_iota(jnp.int32, (rows + 2, 1, 1), 0)
    kill = ((row == 0) & (t == 0)) | ((row == rows + 1) & (t == nt - 1))
    hid = jnp.where(kill, 0.0, hid)

    out = _conv3x3_acc(hid.astype(jnp.bfloat16), w2_ref, b2_ref, rows, W)
    out = out + xblk_ref[0].astype(jnp.float32)          # residual skip
    o_ref[0] = out.astype(o_ref.dtype)


# --------------------------------- wrappers -----------------------------------


def _conv3x3_lane(x, w_k, b_k, *, row_tile, apply_sigmoid=False, residual=None):
    """One 3x3 conv layer over an NHWC lane-padded bf16 activation."""
    N, H, W, Cin = x.shape
    Cout = w_k.shape[-1]
    nt = H // row_tile

    kernel = functools.partial(_conv_kernel, apply_sigmoid=apply_sigmoid,
                               has_residual=residual is not None)
    in_specs = [
        pl.BlockSpec((1, row_tile, W, Cin), lambda n, t: (n, t, 0, 0)),
        pl.BlockSpec(memory_space=pl.ANY),             # same tensor: halo DMA
        pl.BlockSpec((3, 3 * Cin, Cout), lambda n, t: (0, 0, 0)),
        pl.BlockSpec((1, Cout), lambda n, t: (0, 0)),
    ]
    args = [x, x, w_k, b_k]
    if residual is not None:
        in_specs.append(
            pl.BlockSpec((1, row_tile, W, Cout), lambda n, t: (n, t, 0, 0)))
        args.append(residual)

    grid_spec = pltpu.PrefetchScalarGridSpec(
        num_scalar_prefetch=0,
        grid=(N, nt),
        in_specs=in_specs,
        out_specs=pl.BlockSpec((1, row_tile, W, Cout),
                               lambda n, t: (n, t, 0, 0)),
        scratch_shapes=[pltpu.VMEM((2, W, Cin), jnp.bfloat16),
                        pltpu.SemaphoreType.DMA((2,))],
    )
    return pl.pallas_call(
        kernel,
        out_shape=jax.ShapeDtypeStruct((N, H, W, Cout), jnp.bfloat16),
        grid_spec=grid_spec,
        compiler_params=pltpu.CompilerParams(
            dimension_semantics=("parallel", "parallel"),
            vmem_limit_bytes=64 * 1024 * 1024),
    )(*args)


def _residual_block_lane(x, w1_k, b1_k, w2_k, b2_k, *, row_tile):
    N, H, W, C = x.shape
    nt = H // row_tile
    grid_spec = pltpu.PrefetchScalarGridSpec(
        num_scalar_prefetch=0,
        grid=(N, nt),
        in_specs=[
            pl.BlockSpec((1, row_tile, W, C), lambda n, t: (n, t, 0, 0)),
            pl.BlockSpec(memory_space=pl.ANY),
            pl.BlockSpec((3, 3 * C, C), lambda n, t: (0, 0, 0)),
            pl.BlockSpec((1, C), lambda n, t: (0, 0)),
            pl.BlockSpec((3, 3 * C, C), lambda n, t: (0, 0, 0)),
            pl.BlockSpec((1, C), lambda n, t: (0, 0)),
        ],
        out_specs=pl.BlockSpec((1, row_tile, W, C), lambda n, t: (n, t, 0, 0)),
        scratch_shapes=[pltpu.VMEM((4, W, C), jnp.bfloat16),
                        pltpu.SemaphoreType.DMA((2,))],
    )
    return pl.pallas_call(
        _resblock_kernel,
        out_shape=jax.ShapeDtypeStruct((N, H, W, C), jnp.bfloat16),
        grid_spec=grid_spec,
        compiler_params=pltpu.CompilerParams(
            dimension_semantics=("parallel", "parallel"),
            vmem_limit_bytes=64 * 1024 * 1024),
    )(x, x, w1_k, b1_k, w2_k, b2_k)


# --------------------------- parameter preparation ----------------------------


def _prep_w(w, cin_pad, cout_pad):
    """torch (Cout, Cin, 3, 3) -> (3, 3*cin_pad, cout_pad) bf16, grouped by
    kernel row dy; rows within a group ordered (dx, cin)."""
    cout, cin, kh, kw = w.shape
    wk = jnp.transpose(w, (2, 3, 1, 0))                   # (kh, kw, Cin, Cout)
    wk = jnp.pad(wk, ((0, 0), (0, 0), (0, cin_pad - cin), (0, cout_pad - cout)))
    return wk.reshape(kh, kw * cin_pad, cout_pad).astype(jnp.bfloat16)


def _prep_b(b, cout_pad):
    return jnp.pad(b, (0, cout_pad - b.shape[0])).reshape(1, cout_pad).astype(
        jnp.float32)


def prepare_edsr_params(head, blocks, mid, tail):
    """Pack / pad all EDSR trunk weights once (call outside the jitted fwd)."""
    num_channels = head[0].shape[0]
    C = _round_up(max(num_channels, 1), LANE)
    packed_blocks = tuple(
        (_prep_w(w1, C, C), _prep_b(b1, C), _prep_w(w2, C, C), _prep_b(b2, C))
        for (w1, b1, w2, b2) in blocks)
    return (_prep_w(head[0], LANE, C), _prep_b(head[1], C),
            packed_blocks,
            _prep_w(mid[0], C, C), _prep_b(mid[1], C),
            _prep_w(tail[0], C, LANE), _prep_b(tail[1], LANE))


# -------------------------------- EDSR forward ---------------------------------


def _default_row_tile(H):
    t = min(H, 32)
    while t > 1 and H % t:
        t -= 1
    return t


def edsr_forward(x_nchw, params, *, row_tile=None):
    """EDSR trunk: head -> residual blocks -> mid + global skip -> tail -> sigmoid.

    x_nchw : (N, 3, H, W) f32
    params : output of prepare_edsr_params(...)
    """
    head_w, head_b, blocks, mid_w, mid_b, tail_w, tail_b = params
    N, cin, H, W = x_nchw.shape
    if row_tile is None:
        row_tile = _default_row_tile(H)
    assert W % 8 == 0, "W must be a multiple of 8 (sublane width)"
    assert H % row_tile == 0 and row_tile >= 2
    assert cin <= LANE

    # NCHW f32 -> NHWC bf16, channels lane-padded; all inter-layer activations
    # stay bf16 in HBM (matmuls accumulate in f32 inside the kernels).
    x = jnp.transpose(x_nchw, (0, 2, 3, 1))
    x = jnp.pad(x, ((0, 0), (0, 0), (0, 0), (0, LANE - cin))).astype(jnp.bfloat16)

    head_out = _conv3x3_lane(x, head_w, head_b, row_tile=row_tile)

    out = head_out
    for (w1, b1, w2, b2) in blocks:
        # TODO(synk): input_output_aliases could reuse the input buffer here,
        # but halo reads cross row-tile boundaries, so it is not safe as-is.
        out = _residual_block_lane(out, w1, b1, w2, b2, row_tile=row_tile)

    out = _conv3x3_lane(out, mid_w, mid_b, row_tile=row_tile, residual=head_out)
    out = _conv3x3_lane(out, tail_w, tail_b, row_tile=row_tile,
                        apply_sigmoid=True)

    out = out[..., :3].astype(jnp.float32)       # drop lane padding (tail -> 3)
    return jnp.transpose(out, (0, 3, 1, 2))      # back to NCHW


# ------------------------------ pure-JAX reference -----------------------------


def _reference(x_nchw, head, blocks, mid, tail):
    def conv(x, w, b):
        dn = jax.lax.conv_dimension_numbers(x.shape, w.shape,
                                            ("NCHW", "OIHW", "NCHW"))
        y = jax.lax.conv_general_dilated(x, w, (1, 1), ((1, 1), (1, 1)),
                                         dimension_numbers=dn)
        return y + b[None, :, None, None]

    out = conv(x_nchw, *head)
    residual = out
    for (w1, b1, w2, b2) in blocks:
        r = out
        out = jnp.maximum(conv(out, w1, b1), 0.0)
        out = conv(out, w2, b2) + r
    out = conv(out, *mid) + residual
    out = conv(out, *tail)
    return jax.nn.sigmoid(out)


if __name__ == "__main__":
    key = jax.random.PRNGKey(0)
    num_blocks, num_channels = 2, 4
    N, H, W = 2, 16, 16
    ROW_TILE = 8                              # 2 row tiles -> halo path exercised

    keys = iter(jax.random.split(key, 32))

    def rnd(shape, scale=0.1):
        return scale * jax.random.normal(next(keys), shape, jnp.float32)

    x = jax.random.normal(next(keys), (N, 3, H, W), jnp.float32)
    head = (rnd((num_channels, 3, 3, 3)), rnd((num_channels,)))
    blocks = [(rnd((num_channels, num_channels, 3, 3)), rnd((num_channels,)),
               rnd((num_channels, num_channels, 3, 3)), rnd((num_channels,)))
              for _ in range(num_blocks)]
    mid = (rnd((num_channels, num_channels, 3, 3)), rnd((num_channels,)))
    tail = (rnd((3, num_channels, 3, 3)), rnd((3,)))

    # Weights are packed / padded once, outside the jitted hot path.
    params = prepare_edsr_params(head, blocks, mid, tail)

    fwd = jax.jit(functools.partial(edsr_forward, row_tile=ROW_TILE))
    out = jax.block_until_ready(fwd(x, params))

    ref = _reference(x, head, blocks, mid, tail)
    assert out.shape == (N, 3, H, W)
    # bf16 activations / MXU operands with f32 accumulation vs f32 reference.
    err = float(jnp.max(jnp.abs(out - ref)))
    assert jnp.allclose(out, ref, atol=3e-2, rtol=3e-2), err

    print("KERNEL_OK")
</pallas_src>

<mosaic_0001>
module attributes {stable_mosaic.version = 11 : i64} {
  func.func @_conv_kernel(%arg0: i32, %arg1: i32, %arg2: memref<1x8x16x128xbf16, #tpu.memory_space<vmem>>, %arg3: memref<2x16x16x128xbf16, #tpu.memory_space<any>>, %arg4: memref<3x384x128xbf16, #tpu.memory_space<vmem>>, %arg5: memref<1x128xf32, #tpu.memory_space<vmem>>, %arg6: memref<1x8x16x128xbf16, #tpu.memory_space<vmem>>, %arg7: memref<2x16x128xbf16, #tpu.memory_space<vmem>>, %arg8: memref<2x!tpu.dma_semaphore, #tpu.memory_space<semaphore_mem>>) attributes {dimension_semantics = [#tpu.dimension_semantics<parallel>, #tpu.dimension_semantics<parallel>], iteration_bounds = array<i64: 2, 2>, scalar_prefetch = 0 : i64, scratch_operands = 2 : i64, tpu.core_type = #tpu.core_type<tc>, window_params = [{transform_indices = @transform_0, window_bounds = array<i64: 1, 8, 16, 128>}, {}, {pipeline_mode = #tpu.pipeline_mode<synchronous>, transform_indices = @transform_2, window_bounds = array<i64: 3, 384, 128>}, {pipeline_mode = #tpu.pipeline_mode<synchronous>, transform_indices = @transform_3, window_bounds = array<i64: 1, 128>}, {transform_indices = @transform_4, window_bounds = array<i64: 1, 8, 16, 128>}]} {
    %c8_i32 = arith.constant 8 : i32
    %0 = arith.muli %arg1, %c8_i32 : i32
    %cst = arith.constant 0.000000e+00 : bf16
    %1 = vector.broadcast %cst : bf16 to vector<1x16x128xbf16>
    %c0_i32 = arith.constant 0 : i32
    %2 = arith.cmpi sgt, %arg1, %c0_i32 : i32
    %3 = arith.extui %2 : i1 to i32
    %c0_i32_0 = arith.constant 0 : i32
    %4 = arith.cmpi ne, %3, %c0_i32_0 : i32
    scf.if %4 {
      %c1_i32_40 = arith.constant 1 : i32
      %83 = arith.subi %0, %c1_i32_40 : i32
      %c0_i32_41 = arith.constant 0 : i32
      %c0_i32_42 = arith.constant 0 : i32
      %c0_i32_43 = arith.constant 0 : i32
      %84 = tpu.memref_slice %arg3[%arg0, %83, %c0_i32_42, %c0_i32_43] : memref<2x16x16x128xbf16, #tpu.memory_space<any>> -> memref<1x1x16x128xbf16, #tpu.memory_space<any>>
      %85 = tpu.memref_squeeze %84 : memref<1x1x16x128xbf16, #tpu.memory_space<any>> -> memref<1x16x128xbf16, #tpu.memory_space<any>>
      %c0_i32_44 = arith.constant 0 : i32
      %c0_i32_45 = arith.constant 0 : i32
      %c0_i32_46 = arith.constant 0 : i32
      %86 = tpu.memref_slice %arg7[%c0_i32_44, %c0_i32_45, %c0_i32_46] : memref<2x16x128xbf16, #tpu.memory_space<vmem>> -> memref<1x16x128xbf16, #tpu.memory_space<vmem>>
      %87 = tpu.memref_slice %arg8[%c0_i32_41] : memref<2x!tpu.dma_semaphore, #tpu.memory_space<semaphore_mem>> -> memref<1x!tpu.dma_semaphore, #tpu.memory_space<semaphore_mem>>
      %88 = tpu.memref_squeeze %87 : memref<1x!tpu.dma_semaphore, #tpu.memory_space<semaphore_mem>> -> memref<!tpu.dma_semaphore, #tpu.memory_space<semaphore_mem>>
      tpu.enqueue_dma source(%85 : memref<1x16x128xbf16, #tpu.memory_space<any>>) target(%86 : memref<1x16x128xbf16, #tpu.memory_space<vmem>>) target_semaphore(%88 : memref<!tpu.dma_semaphore, #tpu.memory_space<semaphore_mem>>)
    } else {
    }
    %c0_i32_1 = arith.constant 0 : i32
    %5 = arith.cmpi eq, %arg1, %c0_i32_1 : i32
    %6 = arith.extui %5 : i1 to i32
    %c0_i32_2 = arith.constant 0 : i32
    %7 = arith.cmpi ne, %6, %c0_i32_2 : i32
    scf.if %7 {
      %c0_40 = arith.constant 0 : index
      %c0_41 = arith.constant 0 : index
      %c0_42 = arith.constant 0 : index
      %83 = vector.load %arg7[%c0_40, %c0_41, %c0_42] : memref<2x16x128xbf16, #tpu.memory_space<vmem>>, vector<1x16x128xbf16>
      tpu.vector_store %arg7[%c0_40, %c0_41, %c0_42], %1 {strides = array<i32>} : memref<2x16x128xbf16, #tpu.memory_space<vmem>>, vector<1x16x128xbf16>,
    } else {
    }
    %c1_i32 = arith.constant 1 : i32
    %8 = arith.cmpi slt, %arg1, %c1_i32 : i32
    %9 = arith.extui %8 : i1 to i32
    %c0_i32_3 = arith.constant 0 : i32
    %10 = arith.cmpi ne, %9, %c0_i32_3 : i32
    scf.if %10 {
      %c8_i32_40 = arith.constant 8 : i32
      %83 = arith.addi %0, %c8_i32_40 : i32
      %c1_i32_41 = arith.constant 1 : i32
      %c0_i32_42 = arith.constant 0 : i32
      %c0_i32_43 = arith.constant 0 : i32
      %84 = tpu.memref_slice %arg3[%arg0, %83, %c0_i32_42, %c0_i32_43] : memref<2x16x16x128xbf16, #tpu.memory_space<any>> -> memref<1x1x16x128xbf16, #tpu.memory_space<any>>
      %85 = tpu.memref_squeeze %84 : memref<1x1x16x128xbf16, #tpu.memory_space<any>> -> memref<1x16x128xbf16, #tpu.memory_space<any>>
      %c1_i32_44 = arith.constant 1 : i32
      %c0_i32_45 = arith.constant 0 : i32
      %c0_i32_46 = arith.constant 0 : i32
      %86 = tpu.memref_slice %arg7[%c1_i32_44, %c0_i32_45, %c0_i32_46] : memref<2x16x128xbf16, #tpu.memory_space<vmem>> -> memref<1x16x128xbf16, #tpu.memory_space<vmem>>
      %87 = tpu.memref_slice %arg8[%c1_i32_41] : memref<2x!tpu.dma_semaphore, #tpu.memory_space<semaphore_mem>> -> memref<1x!tpu.dma_semaphore, #tpu.memory_space<semaphore_mem>>
      %88 = tpu.memref_squeeze %87 : memref<1x!tpu.dma_semaphore, #tpu.memory_space<semaphore_mem>> -> memref<!tpu.dma_semaphore, #tpu.memory_space<semaphore_mem>>
      tpu.enqueue_dma source(%85 : memref<1x16x128xbf16, #tpu.memory_space<any>>) target(%86 : memref<1x16x128xbf16, #tpu.memory_space<vmem>>) target_semaphore(%88 : memref<!tpu.dma_semaphore, #tpu.memory_space<semaphore_mem>>)
    } else {
    }
    %c1_i32_4 = arith.constant 1 : i32
    %11 = arith.cmpi eq, %arg1, %c1_i32_4 : i32
    %12 = arith.extui %11 : i1 to i32
    %c0_i32_5 = arith.constant 0 : i32
    %13 = arith.cmpi ne, %12, %c0_i32_5 : i32
    scf.if %13 {
      %c1_40 = arith.constant 1 : index
      %c0_41 = arith.constant 0 : index
      %c0_42 = arith.constant 0 : index
      %83 = vector.load %arg7[%c1_40, %c0_41, %c0_42] : memref<2x16x128xbf16, #tpu.memory_space<vmem>>, vector<1x16x128xbf16>
      tpu.vector_store %arg7[%c1_40, %c0_41, %c0_42], %1 {strides = array<i32>} : memref<2x16x128xbf16, #tpu.memory_space<vmem>>, vector<1x16x128xbf16>,
    } else {
    }
    %c0_i32_6 = arith.constant 0 : i32
    %14 = arith.cmpi sgt, %arg1, %c0_i32_6 : i32
    %15 = arith.extui %14 : i1 to i32
    %c0_i32_7 = arith.constant 0 : i32
    %16 = arith.cmpi ne, %15, %c0_i32_7 : i32
    scf.if %16 {
      %c1_i32_40 = arith.constant 1 : i32
      %83 = arith.subi %0, %c1_i32_40 : i32
      %c0_i32_41 = arith.constant 0 : i32
      %c0_i32_42 = arith.constant 0 : i32
      %c0_i32_43 = arith.constant 0 : i32
      %84 = tpu.memref_slice %arg3[%arg0, %83, %c0_i32_42, %c0_i32_43] : memref<2x16x16x128xbf16, #tpu.memory_space<any>> -> memref<1x1x16x128xbf16, #tpu.memory_space<any>>
      %85 = tpu.memref_squeeze %84 : memref<1x1x16x128xbf16, #tpu.memory_space<any>> -> memref<1x16x128xbf16, #tpu.memory_space<any>>
      %c0_i32_44 = arith.constant 0 : i32
      %c0_i32_45 = arith.constant 0 : i32
      %c0_i32_46 = arith.constant 0 : i32
      %86 = tpu.memref_slice %arg7[%c0_i32_44, %c0_i32_45, %c0_i32_46] : memref<2x16x128xbf16, #tpu.memory_space<vmem>> -> memref<1x16x128xbf16, #tpu.memory_space<vmem>>
      %87 = tpu.memref_slice %arg8[%c0_i32_41] : memref<2x!tpu.dma_semaphore, #tpu.memory_space<semaphore_mem>> -> memref<1x!tpu.dma_semaphore, #tpu.memory_space<semaphore_mem>>
      %88 = tpu.memref_squeeze %87 : memref<1x!tpu.dma_semaphore, #tpu.memory_space<semaphore_mem>> -> memref<!tpu.dma_semaphore, #tpu.memory_space<semaphore_mem>>
      tpu.wait_dma2 semaphore(%88 : memref<!tpu.dma_semaphore, #tpu.memory_space<semaphore_mem>>) src(%85 : memref<1x16x128xbf16, #tpu.memory_space<any>>) dst(%86 : memref<1x16x128xbf16, #tpu.memory_space<vmem>>)
    } else {
    }
    %c1_i32_8 = arith.constant 1 : i32
    %17 = arith.cmpi slt, %arg1, %c1_i32_8 : i32
    %18 = arith.extui %17 : i1 to i32
    %c0_i32_9 = arith.constant 0 : i32
    %19 = arith.cmpi ne, %18, %c0_i32_9 : i32
    scf.if %19 {
      %c8_i32_40 = arith.constant 8 : i32
      %83 = arith.addi %0, %c8_i32_40 : i32
      %c1_i32_41 = arith.constant 1 : i32
      %c0_i32_42 = arith.constant 0 : i32
      %c0_i32_43 = arith.constant 0 : i32
      %84 = tpu.memref_slice %arg3[%arg0, %83, %c0_i32_42, %c0_i32_43] : memref<2x16x16x128xbf16, #tpu.memory_space<any>> -> memref<1x1x16x128xbf16, #tpu.memory_space<any>>
      %85 = tpu.memref_squeeze %84 : memref<1x1x16x128xbf16, #tpu.memory_space<any>> -> memref<1x16x128xbf16, #tpu.memory_space<any>>
      %c1_i32_44 = arith.constant 1 : i32
      %c0_i32_45 = arith.constant 0 : i32
      %c0_i32_46 = arith.constant 0 : i32
      %86 = tpu.memref_slice %arg7[%c1_i32_44, %c0_i32_45, %c0_i32_46] : memref<2x16x128xbf16, #tpu.memory_space<vmem>> -> memref<1x16x128xbf16, #tpu.memory_space<vmem>>
      %87 = tpu.memref_slice %arg8[%c1_i32_41] : memref<2x!tpu.dma_semaphore, #tpu.memory_space<semaphore_mem>> -> memref<1x!tpu.dma_semaphore, #tpu.memory_space<semaphore_mem>>
      %88 = tpu.memref_squeeze %87 : memref<1x!tpu.dma_semaphore, #tpu.memory_space<semaphore_mem>> -> memref<!tpu.dma_semaphore, #tpu.memory_space<semaphore_mem>>
      tpu.wait_dma2 semaphore(%88 : memref<!tpu.dma_semaphore, #tpu.memory_space<semaphore_mem>>) src(%85 : memref<1x16x128xbf16, #tpu.memory_space<any>>) dst(%86 : memref<1x16x128xbf16, #tpu.memory_space<vmem>>)
    } else {
    }
    %c0 = arith.constant 0 : index
    %c0_10 = arith.constant 0 : index
    %c0_11 = arith.constant 0 : index
    %20 = vector.load %arg7[%c0, %c0_10, %c0_11] : memref<2x16x128xbf16, #tpu.memory_space<vmem>>, vector<1x16x128xbf16>
    %c0_12 = arith.constant 0 : index
    %c0_13 = arith.constant 0 : index
    %c0_14 = arith.constant 0 : index
    %c0_15 = arith.constant 0 : index
    %21 = vector.load %arg2[%c0_12, %c0_13, %c0_14, %c0_15] : memref<1x8x16x128xbf16, #tpu.memory_space<vmem>>, vector<1x8x16x128xbf16>
    %22 = vector.shape_cast %21 : vector<1x8x16x128xbf16> to vector<8x16x128xbf16>
    %c1 = arith.constant 1 : index
    %c0_16 = arith.constant 0 : index
    %c0_17 = arith.constant 0 : index
    %23 = vector.load %arg7[%c1, %c0_16, %c0_17] : memref<2x16x128xbf16, #tpu.memory_space<vmem>>, vector<1x16x128xbf16>
    %24 = tpu.concatenate %20, %22, %23 in 0 : vector<1x16x128xbf16>, vector<8x16x128xbf16>, vector<1x16x128xbf16> -> vector<10x16x128xbf16>
    %25 = vector.shape_cast %24 : vector<10x16x128xbf16> to vector<160x128xbf16>
    %26 = arith.extf %25 : vector<160x128xbf16> to vector<160x128xf32>
    %c1_i32_18 = arith.constant 1 : i32
    %27 = tpu.dynamic_rotate %26 by %c1_i32_18 dim 0 : vector<160x128xf32>, i32 -> vector<160x128xf32>
    %28 = vector.shape_cast %27 : vector<160x128xf32> to vector<10x16x128xf32>
    %c159_i32 = arith.constant 159 : i32
    %29 = tpu.dynamic_rotate %26 by %c159_i32 dim 0 : vector<160x128xf32>, i32 -> vector<160x128xf32>
    %30 = vector.shape_cast %29 : vector<160x128xf32> to vector<10x16x128xf32>
    %31 = tpu.iota {dimensions = array<i32: 1>} : vector<1x16x1xi32>
    %c0_i32_19 = arith.constant 0 : i32
    %32 = vector.broadcast %c0_i32_19 : i32 to vector<1x16x1xi32>
    %33 = arith.cmpi eq, %31, %32 : vector<1x16x1xi32>
    %cst_20 = arith.constant 0.000000e+00 : f32
    %34 = vector.shape_cast %33 : vector<1x16x1xi1> to vector<1x16x1xi1>
    %35 = vector.broadcast %34 : vector<1x16x1xi1> to vector<10x16x128xi1>
    %36 = vector.broadcast %cst_20 : f32 to vector<10x16x128xf32>
    %37 = arith.select %35, %36, %28 : vector<10x16x128xi1>, vector<10x16x128xf32>
    %38 = arith.truncf %37 : vector<10x16x128xf32> to vector<10x16x128xbf16>
    %c15_i32 = arith.constant 15 : i32
    %39 = vector.broadcast %c15_i32 : i32 to vector<1x16x1xi32>
    %40 = arith.cmpi eq, %31, %39 : vector<1x16x1xi32>
    %cst_21 = arith.constant 0.000000e+00 : f32
    %41 = vector.shape_cast %40 : vector<1x16x1xi1> to vector<1x16x1xi1>
    %42 = vector.broadcast %41 : vector<1x16x1xi1> to vector<10x16x128xi1>
    %43 = vector.broadcast %cst_21 : f32 to vector<10x16x128xf32>
    %44 = arith.select %42, %43, %30 : vector<10x16x128xi1>, vector<10x16x128xf32>
    %45 = arith.truncf %44 : vector<10x16x128xf32> to vector<10x16x128xbf16>
    %cst_22 = arith.constant 0.000000e+00 : f32
    %46 = vector.broadcast %cst_22 : f32 to vector<128x128xf32>
    %47 = vector.extract_strided_slice %38 {offsets = [0, 0, 0], sizes = [8, 16, 128], strides = [1, 1, 1]} : vector<10x16x128xbf16> to vector<8x16x128xbf16>
    %48 = vector.extract_strided_slice %24 {offsets = [0, 0, 0], sizes = [8, 16, 128], strides = [1, 1, 1]} : vector<10x16x128xbf16> to vector<8x16x128xbf16>
    %49 = vector.extract_strided_slice %45 {offsets = [0, 0, 0], sizes = [8, 16, 128], strides = [1, 1, 1]} : vector<10x16x128xbf16> to vector<8x16x128xbf16>
    %50 = tpu.concatenate %47, %48, %49 in 2 : vector<8x16x128xbf16>, vector<8x16x128xbf16>, vector<8x16x128xbf16> -> vector<8x16x384xbf16>
    %51 = vector.shape_cast %50 : vector<8x16x384xbf16> to vector<128x384xbf16>
    %c0_23 = arith.constant 0 : index
    %c0_24 = arith.constant 0 : index
    %c0_25 = arith.constant 0 : index
    %52 = vector.load %arg4[%c0_23, %c0_24, %c0_25] : memref<3x384x128xbf16, #tpu.memory_space<vmem>>, vector<1x384x128xbf16>
    %53 = vector.shape_cast %52 : vector<1x384x128xbf16> to vector<384x128xbf16>
    %cst_26 = arith.constant dense<0.000000e+00> : vector<128x128xf32>
    %54 = tpu.matmul %51, %53, %cst_26 {dimension_numbers = #tpu.dot_dimension_numbers<[1], [0], [0], [1], [0, 0, 1, 1], [], []>} : vector<128x384xbf16>, vector<384x128xbf16>, vector<128x128xf32> -> vector<128x128xf32>
    %55 = arith.addf %46, %54 : vector<128x128xf32>
    %56 = vector.extract_strided_slice %38 {offsets = [1, 0, 0], sizes = [8, 16, 128], strides = [1, 1, 1]} : vector<10x16x128xbf16> to vector<8x16x128xbf16>
    %57 = vector.extract_strided_slice %24 {offsets = [1, 0, 0], sizes = [8, 16, 128], strides = [1, 1, 1]} : vector<10x16x128xbf16> to vector<8x16x128xbf16>
    %58 = vector.extract_strided_slice %45 {offsets = [1, 0, 0], sizes = [8, 16, 128], strides = [1, 1, 1]} : vector<10x16x128xbf16> to vector<8x16x128xbf16>
    %59 = tpu.concatenate %56, %57, %58 in 2 : vector<8x16x128xbf16>, vector<8x16x128xbf16>, vector<8x16x128xbf16> -> vector<8x16x384xbf16>
    %60 = vector.shape_cast %59 : vector<8x16x384xbf16> to vector<128x384xbf16>
    %c1_27 = arith.constant 1 : index
    %c0_28 = arith.constant 0 : index
    %c0_29 = arith.constant 0 : index
    %61 = vector.load %arg4[%c1_27, %c0_28, %c0_29] : memref<3x384x128xbf16, #tpu.memory_space<vmem>>, vector<1x384x128xbf16>
    %62 = vector.shape_cast %61 : vector<1x384x128xbf16> to vector<384x128xbf16>
    %cst_30 = arith.constant dense<0.000000e+00> : vector<128x128xf32>
    %63 = tpu.matmul %60, %62, %cst_30 {dimension_numbers = #tpu.dot_dimension_numbers<[1], [0], [0], [1], [0, 0, 1, 1], [], []>} : vector<128x384xbf16>, vector<384x128xbf16>, vector<128x128xf32> -> vector<128x128xf32>
    %64 = arith.addf %55, %63 : vector<128x128xf32>
    %65 = vector.extract_strided_slice %38 {offsets = [2, 0, 0], sizes = [8, 16, 128], strides = [1, 1, 1]} : vector<10x16x128xbf16> to vector<8x16x128xbf16>
    %66 = vector.extract_strided_slice %24 {offsets = [2, 0, 0], sizes = [8, 16, 128], strides = [1, 1, 1]} : vector<10x16x128xbf16> to vector<8x16x128xbf16>
    %67 = vector.extract_strided_slice %45 {offsets = [2, 0, 0], sizes = [8, 16, 128], strides = [1, 1, 1]} : vector<10x16x128xbf16> to vector<8x16x128xbf16>
    %68 = tpu.concatenate %65, %66, %67 in 2 : vector<8x16x128xbf16>, vector<8x16x128xbf16>, vector<8x16x128xbf16> -> vector<8x16x384xbf16>
    %69 = vector.shape_cast %68 : vector<8x16x384xbf16> to vector<128x384xbf16>
    %c2 = arith.constant 2 : index
    %c0_31 = arith.constant 0 : index
    %c0_32 = arith.constant 0 : index
    %70 = vector.load %arg4[%c2, %c0_31, %c0_32] : memref<3x384x128xbf16, #tpu.memory_space<vmem>>, vector<1x384x128xbf16>
    %71 = vector.shape_cast %70 : vector<1x384x128xbf16> to vector<384x128xbf16>
    %cst_33 = arith.constant dense<0.000000e+00> : vector<128x128xf32>
    %72 = tpu.matmul %69, %71, %cst_33 {dimension_numbers = #tpu.dot_dimension_numbers<[1], [0], [0], [1], [0, 0, 1, 1], [], []>} : vector<128x384xbf16>, vector<384x128xbf16>, vector<128x128xf32> -> vector<128x128xf32>
    %73 = arith.addf %64, %72 : vector<128x128xf32>
    %74 = vector.shape_cast %73 : vector<128x128xf32> to vector<8x16x128xf32>
    %c0_34 = arith.constant 0 : index
    %c0_35 = arith.constant 0 : index
    %75 = vector.load %arg5[%c0_34, %c0_35] : memref<1x128xf32, #tpu.memory_space<vmem>>, vector<1x128xf32>
    %76 = vector.shape_cast %75 : vector<1x128xf32> to vector<1x1x128xf32>
    %77 = vector.broadcast %76 : vector<1x1x128xf32> to vector<8x16x128xf32>
    %78 = arith.addf %74, %77 : vector<8x16x128xf32>
    %79 = arith.truncf %78 : vector<8x16x128xf32> to vector<8x16x128xbf16>
    %c0_36 = arith.constant 0 : index
    %c0_37 = arith.constant 0 : index
    %c0_38 = arith.constant 0 : index
    %c0_39 = arith.constant 0 : index
    %80 = vector.load %arg6[%c0_36, %c0_37, %c0_38, %c0_39] : memref<1x8x16x128xbf16, #tpu.memory_space<vmem>>, vector<1x8x16x128xbf16>
    %81 = vector.shape_cast %80 : vector<1x8x16x128xbf16> to vector<8x16x128xbf16>
    %82 = vector.shape_cast %79 : vector<8x16x128xbf16> to vector<1x8x16x128xbf16>
    tpu.vector_store %arg6[%c0_36, %c0_37, %c0_38, %c0_39], %82 {strides = array<i32>} : memref<1x8x16x128xbf16, #tpu.memory_space<vmem>>, vector<1x8x16x128xbf16>,
    return
  }
  func.func @transform_0(%arg0: i32, %arg1: i32) -> (i32, i32, i32, i32) {
    %c0_i32 = arith.constant 0 : i32
    %c0_i32_0 = arith.constant 0 : i32
    %c0_i32_1 = arith.constant 0 : i32
    return %arg0, %arg1, %c0_i32, %c0_i32_0 : i32, i32, i32, i32
  }
  func.func @transform_2(%arg0: i32, %arg1: i32) -> (i32, i32, i32) {
    %c0_i32 = arith.constant 0 : i32
    %c0_i32_0 = arith.constant 0 : i32
    %c0_i32_1 = arith.constant 0 : i32
    %c0_i32_2 = arith.constant 0 : i32
    return %c0_i32, %c0_i32_0, %c0_i32_1 : i32, i32, i32
  }
  func.func @transform_3(%arg0: i32, %arg1: i32) -> (i32, i32) {
    %c0_i32 = arith.constant 0 : i32
    %c0_i32_0 = arith.constant 0 : i32
    %c0_i32_1 = arith.constant 0 : i32
    return %c0_i32, %c0_i32_0 : i32, i32
  }
  func.func @transform_4(%arg0: i32, %arg1: i32) -> (i32, i32, i32, i32) {
    %c0_i32 = arith.constant 0 : i32
    %c0_i32_0 = arith.constant 0 : i32
    %c0_i32_1 = arith.constant 0 : i32
    return %arg0, %arg1, %c0_i32, %c0_i32_0 : i32, i32, i32, i32
  }
}

module attributes {stable_mosaic.version = 11 : i64} {
  func.func @_resblock_kernel(%arg0: i32, %arg1: i32, %arg2: memref<1x8x16x128xbf16, #tpu.memory_space<vmem>>, %arg3: memref<2x16x16x128xbf16, #tpu.memory_space<any>>, %arg4: memref<3x384x128xbf16, #tpu.memory_space<vmem>>, %arg5: memref<1x128xf32, #tpu.memory_space<vmem>>, %arg6: memref<3x384x128xbf16, #tpu.memory_space<vmem>>, %arg7: memref<1x128xf32, #tpu.memory_space<vmem>>, %arg8: memref<1x8x16x128xbf16, #tpu.memory_space<vmem>>, %arg9: memref<4x16x128xbf16, #tpu.memory_space<vmem>>, %arg10: memref<2x!tpu.dma_semaphore, #tpu.memory_space<semaphore_mem>>) attributes {dimension_semantics = [#tpu.dimension_semantics<parallel>, #tpu.dimension_semantics<parallel>], iteration_bounds = array<i64: 2, 2>, scalar_prefetch = 0 : i64, scratch_operands = 2 : i64, tpu.core_type = #tpu.core_type<tc>, window_params = [{transform_indices = @transform_0, window_bounds = array<i64: 1, 8, 16, 128>}, {}, {pipeline_mode = #tpu.pipeline_mode<synchronous>, transform_indices = @transform_2, window_bounds = array<i64: 3, 384, 128>}, {pipeline_mode = #tpu.pipeline_mode<synchronous>, transform_indices = @transform_3, window_bounds = array<i64: 1, 128>}, {pipeline_mode = #tpu.pipeline_mode<synchronous>, transform_indices = @transform_4, window_bounds = array<i64: 3, 384, 128>}, {pipeline_mode = #tpu.pipeline_mode<synchronous>, transform_indices = @transform_5, window_bounds = array<i64: 1, 128>}, {transform_indices = @transform_6, window_bounds = array<i64: 1, 8, 16, 128>}]} {
    %c8_i32 = arith.constant 8 : i32
    %0 = arith.muli %arg1, %c8_i32 : i32
    %cst = arith.constant 0.000000e+00 : bf16
    %1 = vector.broadcast %cst : bf16 to vector<2x16x128xbf16>
    %c0_i32 = arith.constant 0 : i32
    %2 = arith.cmpi sgt, %arg1, %c0_i32 : i32
    %3 = arith.extui %2 : i1 to i32
    %c0_i32_0 = arith.constant 0 : i32
    %4 = arith.cmpi ne, %3, %c0_i32_0 : i32
    scf.if %4 {
      %c2_i32 = arith.constant 2 : i32
      %160 = arith.subi %0, %c2_i32 : i32
      %c0_i32_69 = arith.constant 0 : i32
      %c0_i32_70 = arith.constant 0 : i32
      %c0_i32_71 = arith.constant 0 : i32
      %161 = tpu.memref_slice %arg3[%arg0, %160, %c0_i32_70, %c0_i32_71] : memref<2x16x16x128xbf16, #tpu.memory_space<any>> -> memref<1x2x16x128xbf16, #tpu.memory_space<any>>
      %162 = tpu.memref_squeeze %161 : memref<1x2x16x128xbf16, #tpu.memory_space<any>> -> memref<2x16x128xbf16, #tpu.memory_space<any>>
      %c0_i32_72 = arith.constant 0 : i32
      %c0_i32_73 = arith.constant 0 : i32
      %c0_i32_74 = arith.constant 0 : i32
      %163 = tpu.memref_slice %arg9[%c0_i32_72, %c0_i32_73, %c0_i32_74] : memref<4x16x128xbf16, #tpu.memory_space<vmem>> -> memref<2x16x128xbf16, #tpu.memory_space<vmem>>
      %164 = tpu.memref_slice %arg10[%c0_i32_69] : memref<2x!tpu.dma_semaphore, #tpu.memory_space<semaphore_mem>> -> memref<1x!tpu.dma_semaphore, #tpu.memory_space<semaphore_mem>>
      %165 = tpu.memref_squeeze %164 : memref<1x!tpu.dma_semaphore, #tpu.memory_space<semaphore_mem>> -> memref<!tpu.dma_semaphore, #tpu.memory_space<semaphore_mem>>
      tpu.enqueue_dma source(%162 : memref<2x16x128xbf16, #tpu.memory_space<any>>) target(%163 : memref<2x16x128xbf16, #tpu.memory_space<vmem>>) target_semaphore(%165 : memref<!tpu.dma_semaphore, #tpu.memory_space<semaphore_mem>>)
    } else {
    }
    %c0_i32_1 = arith.constant 0 : i32
    %5 = arith.cmpi eq, %arg1, %c0_i32_1 : i32
    %6 = arith.extui %5 : i1 to i32
    %c0_i32_2 = arith.constant 0 : i32
    %7 = arith.cmpi ne, %6, %c0_i32_2 : i32
    scf.if %7 {
      %c0_69 = arith.constant 0 : index
      %c0_70 = arith.constant 0 : index
      %c0_71 = arith.constant 0 : index
      %160 = vector.load %arg9[%c0_69, %c0_70, %c0_71] : memref<4x16x128xbf16, #tpu.memory_space<vmem>>, vector<2x16x128xbf16>
      tpu.vector_store %arg9[%c0_69, %c0_70, %c0_71], %1 {strides = array<i32>} : memref<4x16x128xbf16, #tpu.memory_space<vmem>>, vector<2x16x128xbf16>,
    } else {
    }
    %c1_i32 = arith.constant 1 : i32
    %8 = arith.cmpi slt, %arg1, %c1_i32 : i32
    %9 = arith.extui %8 : i1 to i32
    %c0_i32_3 = arith.constant 0 : i32
    %10 = arith.cmpi ne, %9, %c0_i32_3 : i32
    scf.if %10 {
      %c8_i32_69 = arith.constant 8 : i32
      %160 = arith.addi %0, %c8_i32_69 : i32
      %c1_i32_70 = arith.constant 1 : i32
      %c0_i32_71 = arith.constant 0 : i32
      %c0_i32_72 = arith.constant 0 : i32
      %161 = tpu.memref_slice %arg3[%arg0, %160, %c0_i32_71, %c0_i32_72] : memref<2x16x16x128xbf16, #tpu.memory_space<any>> -> memref<1x2x16x128xbf16, #tpu.memory_space<any>>
      %162 = tpu.memref_squeeze %161 : memref<1x2x16x128xbf16, #tpu.memory_space<any>> -> memref<2x16x128xbf16, #tpu.memory_space<any>>
      %c2_i32 = arith.constant 2 : i32
      %c0_i32_73 = arith.constant 0 : i32
      %c0_i32_74 = arith.constant 0 : i32
      %163 = tpu.memref_slice %arg9[%c2_i32, %c0_i32_73, %c0_i32_74] : memref<4x16x128xbf16, #tpu.memory_space<vmem>> -> memref<2x16x128xbf16, #tpu.memory_space<vmem>>
      %164 = tpu.memref_slice %arg10[%c1_i32_70] : memref<2x!tpu.dma_semaphore, #tpu.memory_space<semaphore_mem>> -> memref<1x!tpu.dma_semaphore, #tpu.memory_space<semaphore_mem>>
      %165 = tpu.memref_squeeze %164 : memref<1x!tpu.dma_semaphore, #tpu.memory_space<semaphore_mem>> -> memref<!tpu.dma_semaphore, #tpu.memory_space<semaphore_mem>>
      tpu.enqueue_dma source(%162 : memref<2x16x128xbf16, #tpu.memory_space<any>>) target(%163 : memref<2x16x128xbf16, #tpu.memory_space<vmem>>) target_semaphore(%165 : memref<!tpu.dma_semaphore, #tpu.memory_space<semaphore_mem>>)
    } else {
    }
    %c1_i32_4 = arith.constant 1 : i32
    %11 = arith.cmpi eq, %arg1, %c1_i32_4 : i32
    %12 = arith.extui %11 : i1 to i32
    %c0_i32_5 = arith.constant 0 : i32
    %13 = arith.cmpi ne, %12, %c0_i32_5 : i32
    scf.if %13 {
      %c2_69 = arith.constant 2 : index
      %c0_70 = arith.constant 0 : index
      %c0_71 = arith.constant 0 : index
      %160 = vector.load %arg9[%c2_69, %c0_70, %c0_71] : memref<4x16x128xbf16, #tpu.memory_space<vmem>>, vector<2x16x128xbf16>
      tpu.vector_store %arg9[%c2_69, %c0_70, %c0_71], %1 {strides = array<i32>} : memref<4x16x128xbf16, #tpu.memory_space<vmem>>, vector<2x16x128xbf16>,
    } else {
    }
    %c0_i32_6 = arith.constant 0 : i32
    %14 = arith.cmpi sgt, %arg1, %c0_i32_6 : i32
    %15 = arith.extui %14 : i1 to i32
    %c0_i32_7 = arith.constant 0 : i32
    %16 = arith.cmpi ne, %15, %c0_i32_7 : i32
    scf.if %16 {
      %c2_i32 = arith.constant 2 : i32
      %160 = arith.subi %0, %c2_i32 : i32
      %c0_i32_69 = arith.constant 0 : i32
      %c0_i32_70 = arith.constant 0 : i32
      %c0_i32_71 = arith.constant 0 : i32
      %161 = tpu.memref_slice %arg3[%arg0, %160, %c0_i32_70, %c0_i32_71] : memref<2x16x16x128xbf16, #tpu.memory_space<any>> -> memref<1x2x16x128xbf16, #tpu.memory_space<any>>
      %162 = tpu.memref_squeeze %161 : memref<1x2x16x128xbf16, #tpu.memory_space<any>> -> memref<2x16x128xbf16, #tpu.memory_space<any>>
      %c0_i32_72 = arith.constant 0 : i32
      %c0_i32_73 = arith.constant 0 : i32
      %c0_i32_74 = arith.constant 0 : i32
      %163 = tpu.memref_slice %arg9[%c0_i32_72, %c0_i32_73, %c0_i32_74] : memref<4x16x128xbf16, #tpu.memory_space<vmem>> -> memref<2x16x128xbf16, #tpu.memory_space<vmem>>
      %164 = tpu.memref_slice %arg10[%c0_i32_69] : memref<2x!tpu.dma_semaphore, #tpu.memory_space<semaphore_mem>> -> memref<1x!tpu.dma_semaphore, #tpu.memory_space<semaphore_mem>>
      %165 = tpu.memref_squeeze %164 : memref<1x!tpu.dma_semaphore, #tpu.memory_space<semaphore_mem>> -> memref<!tpu.dma_semaphore, #tpu.memory_space<semaphore_mem>>
      tpu.wait_dma2 semaphore(%165 : memref<!tpu.dma_semaphore, #tpu.memory_space<semaphore_mem>>) src(%162 : memref<2x16x128xbf16, #tpu.memory_space<any>>) dst(%163 : memref<2x16x128xbf16, #tpu.memory_space<vmem>>)
    } else {
    }
    %c1_i32_8 = arith.constant 1 : i32
    %17 = arith.cmpi slt, %arg1, %c1_i32_8 : i32
    %18 = arith.extui %17 : i1 to i32
    %c0_i32_9 = arith.constant 0 : i32
    %19 = arith.cmpi ne, %18, %c0_i32_9 : i32
    scf.if %19 {
      %c8_i32_69 = arith.constant 8 : i32
      %160 = arith.addi %0, %c8_i32_69 : i32
      %c1_i32_70 = arith.constant 1 : i32
      %c0_i32_71 = arith.constant 0 : i32
      %c0_i32_72 = arith.constant 0 : i32
      %161 = tpu.memref_slice %arg3[%arg0, %160, %c0_i32_71, %c0_i32_72] : memref<2x16x16x128xbf16, #tpu.memory_space<any>> -> memref<1x2x16x128xbf16, #tpu.memory_space<any>>
      %162 = tpu.memref_squeeze %161 : memref<1x2x16x128xbf16, #tpu.memory_space<any>> -> memref<2x16x128xbf16, #tpu.memory_space<any>>
      %c2_i32 = arith.constant 2 : i32
      %c0_i32_73 = arith.constant 0 : i32
      %c0_i32_74 = arith.constant 0 : i32
      %163 = tpu.memref_slice %arg9[%c2_i32, %c0_i32_73, %c0_i32_74] : memref<4x16x128xbf16, #tpu.memory_space<vmem>> -> memref<2x16x128xbf16, #tpu.memory_space<vmem>>
      %164 = tpu.memref_slice %arg10[%c1_i32_70] : memref<2x!tpu.dma_semaphore, #tpu.memory_space<semaphore_mem>> -> memref<1x!tpu.dma_semaphore, #tpu.memory_space<semaphore_mem>>
      %165 = tpu.memref_squeeze %164 : memref<1x!tpu.dma_semaphore, #tpu.memory_space<semaphore_mem>> -> memref<!tpu.dma_semaphore, #tpu.memory_space<semaphore_mem>>
      tpu.wait_dma2 semaphore(%165 : memref<!tpu.dma_semaphore, #tpu.memory_space<semaphore_mem>>) src(%162 : memref<2x16x128xbf16, #tpu.memory_space<any>>) dst(%163 : memref<2x16x128xbf16, #tpu.memory_space<vmem>>)
    } else {
    }
    %c0 = arith.constant 0 : index
    %c0_10 = arith.constant 0 : index
    %c0_11 = arith.constant 0 : index
    %20 = vector.load %arg9[%c0, %c0_10, %c0_11] : memref<4x16x128xbf16, #tpu.memory_space<vmem>>, vector<2x16x128xbf16>
    %c0_12 = arith.constant 0 : index
    %c0_13 = arith.constant 0 : index
    %c0_14 = arith.constant 0 : index
    %c0_15 = arith.constant 0 : index
    %21 = vector.load %arg2[%c0_12, %c0_13, %c0_14, %c0_15] : memref<1x8x16x128xbf16, #tpu.memory_space<vmem>>, vector<1x8x16x128xbf16>
    %22 = vector.shape_cast %21 : vector<1x8x16x128xbf16> to vector<8x16x128xbf16>
    %c2 = arith.constant 2 : index
    %c0_16 = arith.constant 0 : index
    %c0_17 = arith.constant 0 : index
    %23 = vector.load %arg9[%c2, %c0_16, %c0_17] : memref<4x16x128xbf16, #tpu.memory_space<vmem>>, vector<2x16x128xbf16>
    %24 = tpu.concatenate %20, %22, %23 in 0 : vector<2x16x128xbf16>, vector<8x16x128xbf16>, vector<2x16x128xbf16> -> vector<12x16x128xbf16>
    %25 = vector.shape_cast %24 : vector<12x16x128xbf16> to vector<192x128xbf16>
    %26 = arith.extf %25 : vector<192x128xbf16> to vector<192x128xf32>
    %c1_i32_18 = arith.constant 1 : i32
    %27 = tpu.dynamic_rotate %26 by %c1_i32_18 dim 0 : vector<192x128xf32>, i32 -> vector<192x128xf32>
    %28 = vector.shape_cast %27 : vector<192x128xf32> to vector<12x16x128xf32>
    %c191_i32 = arith.constant 191 : i32
    %29 = tpu.dynamic_rotate %26 by %c191_i32 dim 0 : vector<192x128xf32>, i32 -> vector<192x128xf32>
    %30 = vector.shape_cast %29 : vector<192x128xf32> to vector<12x16x128xf32>
    %31 = tpu.iota {dimensions = array<i32: 1>} : vector<1x16x1xi32>
    %c0_i32_19 = arith.constant 0 : i32
    %32 = vector.broadcast %c0_i32_19 : i32 to vector<1x16x1xi32>
    %33 = arith.cmpi eq, %31, %32 : vector<1x16x1xi32>
    %cst_20 = arith.constant 0.000000e+00 : f32
    %34 = vector.shape_cast %33 : vector<1x16x1xi1> to vector<1x16x1xi1>
    %35 = vector.broadcast %34 : vector<1x16x1xi1> to vector<12x16x128xi1>
    %36 = vector.broadcast %cst_20 : f32 to vector<12x16x128xf32>
    %37 = arith.select %35, %36, %28 : vector<12x16x128xi1>, vector<12x16x128xf32>
    %38 = arith.truncf %37 : vector<12x16x128xf32> to vector<12x16x128xbf16>
    %c15_i32 = arith.constant 15 : i32
    %39 = vector.broadcast %c15_i32 : i32 to vector<1x16x1xi32>
    %40 = arith.cmpi eq, %31, %39 : vector<1x16x1xi32>
    %cst_21 = arith.constant 0.000000e+00 : f32
    %41 = vector.shape_cast %40 : vector<1x16x1xi1> to vector<1x16x1xi1>
    %42 = vector.broadcast %41 : vector<1x16x1xi1> to vector<12x16x128xi1>
    %43 = vector.broadcast %cst_21 : f32 to vector<12x16x128xf32>
    %44 = arith.select %42, %43, %30 : vector<12x16x128xi1>, vector<12x16x128xf32>
    %45 = arith.truncf %44 : vector<12x16x128xf32> to vector<12x16x128xbf16>
    %cst_22 = arith.constant 0.000000e+00 : f32
    %46 = vector.broadcast %cst_22 : f32 to vector<160x128xf32>
    %47 = vector.extract_strided_slice %38 {offsets = [0, 0, 0], sizes = [10, 16, 128], strides = [1, 1, 1]} : vector<12x16x128xbf16> to vector<10x16x128xbf16>
    %48 = vector.extract_strided_slice %24 {offsets = [0, 0, 0], sizes = [10, 16, 128], strides = [1, 1, 1]} : vector<12x16x128xbf16> to vector<10x16x128xbf16>
    %49 = vector.extract_strided_slice %45 {offsets = [0, 0, 0], sizes = [10, 16, 128], strides = [1, 1, 1]} : vector<12x16x128xbf16> to vector<10x16x128xbf16>
    %50 = tpu.concatenate %47, %48, %49 in 2 : vector<10x16x128xbf16>, vector<10x16x128xbf16>, vector<10x16x128xbf16> -> vector<10x16x384xbf16>
    %51 = vector.shape_cast %50 : vector<10x16x384xbf16> to vector<160x384xbf16>
    %c0_23 = arith.constant 0 : index
    %c0_24 = arith.constant 0 : index
    %c0_25 = arith.constant 0 : index
    %52 = vector.load %arg4[%c0_23, %c0_24, %c0_25] : memref<3x384x128xbf16, #tpu.memory_space<vmem>>, vector<1x384x128xbf16>
    %53 = vector.shape_cast %52 : vector<1x384x128xbf16> to vector<384x128xbf16>
    %cst_26 = arith.constant dense<0.000000e+00> : vector<160x128xf32>
    %54 = tpu.matmul %51, %53, %cst_26 {dimension_numbers = #tpu.dot_dimension_numbers<[1], [0], [0], [1], [0, 0, 1, 1], [], []>} : vector<160x384xbf16>, vector<384x128xbf16>, vector<160x128xf32> -> vector<160x128xf32>
    %55 = arith.addf %46, %54 : vector<160x128xf32>
    %56 = vector.extract_strided_slice %38 {offsets = [1, 0, 0], sizes = [10, 16, 128], strides = [1, 1, 1]} : vector<12x16x128xbf16> to vector<10x16x128xbf16>
    %57 = vector.extract_strided_slice %24 {offsets = [1, 0, 0], sizes = [10, 16, 128], strides = [1, 1, 1]} : vector<12x16x128xbf16> to vector<10x16x128xbf16>
    %58 = vector.extract_strided_slice %45 {offsets = [1, 0, 0], sizes = [10, 16, 128], strides = [1, 1, 1]} : vector<12x16x128xbf16> to vector<10x16x128xbf16>
    %59 = tpu.concatenate %56, %57, %58 in 2 : vector<10x16x128xbf16>, vector<10x16x128xbf16>, vector<10x16x128xbf16> -> vector<10x16x384xbf16>
    %60 = vector.shape_cast %59 : vector<10x16x384xbf16> to vector<160x384xbf16>
    %c1 = arith.constant 1 : index
    %c0_27 = arith.constant 0 : index
    %c0_28 = arith.constant 0 : index
    %61 = vector.load %arg4[%c1, %c0_27, %c0_28] : memref<3x384x128xbf16, #tpu.memory_space<vmem>>, vector<1x384x128xbf16>
    %62 = vector.shape_cast %61 : vector<1x384x128xbf16> to vector<384x128xbf16>
    %cst_29 = arith.constant dense<0.000000e+00> : vector<160x128xf32>
    %63 = tpu.matmul %60, %62, %cst_29 {dimension_numbers = #tpu.dot_dimension_numbers<[1], [0], [0], [1], [0, 0, 1, 1], [], []>} : vector<160x384xbf16>, vector<384x128xbf16>, vector<160x128xf32> -> vector<160x128xf32>
    %64 = arith.addf %55, %63 : vector<160x128xf32>
    %65 = vector.extract_strided_slice %38 {offsets = [2, 0, 0], sizes = [10, 16, 128], strides = [1, 1, 1]} : vector<12x16x128xbf16> to vector<10x16x128xbf16>
    %66 = vector.extract_strided_slice %24 {offsets = [2, 0, 0], sizes = [10, 16, 128], strides = [1, 1, 1]} : vector<12x16x128xbf16> to vector<10x16x128xbf16>
    %67 = vector.extract_strided_slice %45 {offsets = [2, 0, 0], sizes = [10, 16, 128], strides = [1, 1, 1]} : vector<12x16x128xbf16> to vector<10x16x128xbf16>
    %68 = tpu.concatenate %65, %66, %67 in 2 : vector<10x16x128xbf16>, vector<10x16x128xbf16>, vector<10x16x128xbf16> -> vector<10x16x384xbf16>
    %69 = vector.shape_cast %68 : vector<10x16x384xbf16> to vector<160x384xbf16>
    %c2_30 = arith.constant 2 : index
    %c0_31 = arith.constant 0 : index
    %c0_32 = arith.constant 0 : index
    %70 = vector.load %arg4[%c2_30, %c0_31, %c0_32] : memref<3x384x128xbf16, #tpu.memory_space<vmem>>, vector<1x384x128xbf16>
    %71 = vector.shape_cast %70 : vector<1x384x128xbf16> to vector<384x128xbf16>
    %cst_33 = arith.constant dense<0.000000e+00> : vector<160x128xf32>
    %72 = tpu.matmul %69, %71, %cst_33 {dimension_numbers = #tpu.dot_dimension_numbers<[1], [0], [0], [1], [0, 0, 1, 1], [], []>} : vector<160x384xbf16>, vector<384x128xbf16>, vector<160x128xf32> -> vector<160x128xf32>
    %73 = arith.addf %64, %72 : vector<160x128xf32>
    %74 = vector.shape_cast %73 : vector<160x128xf32> to vector<10x16x128xf32>
    %c0_34 = arith.constant 0 : index
    %c0_35 = arith.constant 0 : index
    %75 = vector.load %arg5[%c0_34, %c0_35] : memref<1x128xf32, #tpu.memory_space<vmem>>, vector<1x128xf32>
    %76 = vector.shape_cast %75 : vector<1x128xf32> to vector<1x1x128xf32>
    %77 = vector.broadcast %76 : vector<1x1x128xf32> to vector<10x16x128xf32>
    %78 = arith.addf %74, %77 : vector<10x16x128xf32>
    %cst_36 = arith.constant 0.000000e+00 : f32
    %79 = vector.broadcast %cst_36 : f32 to vector<10x16x128xf32>
    %80 = arith.maximumf %78, %79 : vector<10x16x128xf32>
    %81 = tpu.iota {dimensions = array<i32: 0>} : vector<10x1x1xi32>
    %c0_i32_37 = arith.constant 0 : i32
    %82 = vector.broadcast %c0_i32_37 : i32 to vector<10x1x1xi32>
    %83 = arith.cmpi eq, %81, %82 : vector<10x1x1xi32>
    %c0_i32_38 = arith.constant 0 : i32
    %84 = arith.cmpi eq, %arg1, %c0_i32_38 : i32
    %85 = vector.broadcast %84 : i1 to vector<10x1x1xi1>
    %86 = arith.andi %83, %85 : vector<10x1x1xi1>
    %c9_i32 = arith.constant 9 : i32
    %87 = vector.broadcast %c9_i32 : i32 to vector<10x1x1xi32>
    %88 = arith.cmpi eq, %81, %87 : vector<10x1x1xi32>
    %c1_i32_39 = arith.constant 1 : i32
    %89 = arith.cmpi eq, %arg1, %c1_i32_39 : i32
    %90 = vector.broadcast %89 : i1 to vector<10x1x1xi1>
    %91 = arith.andi %88, %90 : vector<10x1x1xi1>
    %92 = arith.ori %86, %91 : vector<10x1x1xi1>
    %cst_40 = arith.constant 0.000000e+00 : f32
    %93 = vector.shape_cast %92 : vector<10x1x1xi1> to vector<10x1x1xi1>
    %94 = vector.broadcast %93 : vector<10x1x1xi1> to vector<10x16x128xi1>
    %95 = vector.broadcast %cst_40 : f32 to vector<10x16x128xf32>
    %96 = arith.select %94, %95, %80 : vector<10x16x128xi1>, vector<10x16x128xf32>
    %97 = arith.truncf %96 : vector<10x16x128xf32> to vector<10x16x128xbf16>
    %98 = vector.shape_cast %97 : vector<10x16x128xbf16> to vector<160x128xbf16>
    %99 = arith.extf %98 : vector<160x128xbf16> to vector<160x128xf32>
    %c1_i32_41 = arith.constant 1 : i32
    %100 = tpu.dynamic_rotate %99 by %c1_i32_41 dim 0 : vector<160x128xf32>, i32 -> vector<160x128xf32>
    %101 = vector.shape_cast %100 : vector<160x128xf32> to vector<10x16x128xf32>
    %c159_i32 = arith.constant 159 : i32
    %102 = tpu.dynamic_rotate %99 by %c159_i32 dim 0 : vector<160x128xf32>, i32 -> vector<160x128xf32>
    %103 = vector.shape_cast %102 : vector<160x128xf32> to vector<10x16x128xf32>
    %104 = tpu.iota {dimensions = array<i32: 1>} : vector<1x16x1xi32>
    %c0_i32_42 = arith.constant 0 : i32
    %105 = vector.broadcast %c0_i32_42 : i32 to vector<1x16x1xi32>
    %106 = arith.cmpi eq, %104, %105 : vector<1x16x1xi32>
    %cst_43 = arith.constant 0.000000e+00 : f32
    %107 = vector.shape_cast %106 : vector<1x16x1xi1> to vector<1x16x1xi1>
    %108 = vector.broadcast %107 : vector<1x16x1xi1> to vector<10x16x128xi1>
    %109 = vector.broadcast %cst_43 : f32 to vector<10x16x128xf32>
    %110 = arith.select %108, %109, %101 : vector<10x16x128xi1>, vector<10x16x128xf32>
    %111 = arith.truncf %110 : vector<10x16x128xf32> to vector<10x16x128xbf16>
    %c15_i32_44 = arith.constant 15 : i32
    %112 = vector.broadcast %c15_i32_44 : i32 to vector<1x16x1xi32>
    %113 = arith.cmpi eq, %104, %112 : vector<1x16x1xi32>
    %cst_45 = arith.constant 0.000000e+00 : f32
    %114 = vector.shape_cast %113 : vector<1x16x1xi1> to vector<1x16x1xi1>
    %115 = vector.broadcast %114 : vector<1x16x1xi1> to vector<10x16x128xi1>
    %116 = vector.broadcast %cst_45 : f32 to vector<10x16x128xf32>
    %117 = arith.select %115, %116, %103 : vector<10x16x128xi1>, vector<10x16x128xf32>
    %118 = arith.truncf %117 : vector<10x16x128xf32> to vector<10x16x128xbf16>
    %cst_46 = arith.constant 0.000000e+00 : f32
    %119 = vector.broadcast %cst_46 : f32 to vector<128x128xf32>
    %120 = vector.extract_strided_slice %111 {offsets = [0, 0, 0], sizes = [8, 16, 128], strides = [1, 1, 1]} : vector<10x16x128xbf16> to vector<8x16x128xbf16>
    %121 = vector.extract_strided_slice %97 {offsets = [0, 0, 0], sizes = [8, 16, 128], strides = [1, 1, 1]} : vector<10x16x128xbf16> to vector<8x16x128xbf16>
    %122 = vector.extract_strided_slice %118 {offsets = [0, 0, 0], sizes = [8, 16, 128], strides = [1, 1, 1]} : vector<10x16x128xbf16> to vector<8x16x128xbf16>
    %123 = tpu.concatenate %120, %121, %122 in 2 : vector<8x16x128xbf16>, vector<8x16x128xbf16>, vector<8x16x128xbf16> -> vector<8x16x384xbf16>
    %124 = vector.shape_cast %123 : vector<8x16x384xbf16> to vector<128x384xbf16>
    %c0_47 = arith.constant 0 : index
    %c0_48 = arith.constant 0 : index
    %c0_49 = arith.constant 0 : index
    %125 = vector.load %arg6[%c0_47, %c0_48, %c0_49] : memref<3x384x128xbf16, #tpu.memory_space<vmem>>, vector<1x384x128xbf16>
    %126 = vector.shape_cast %125 : vector<1x384x128xbf16> to vector<384x128xbf16>
    %cst_50 = arith.constant dense<0.000000e+00> : vector<128x128xf32>
    %127 = tpu.matmul %124, %126, %cst_50 {dimension_numbers = #tpu.dot_dimension_numbers<[1], [0], [0], [1], [0, 0, 1, 1], [], []>} : vector<128x384xbf16>, vector<384x128xbf16>, vector<128x128xf32> -> vector<128x128xf32>
    %128 = arith.addf %119, %127 : vector<128x128xf32>
    %129 = vector.extract_strided_slice %111 {offsets = [1, 0, 0], sizes = [8, 16, 128], strides = [1, 1, 1]} : vector<10x16x128xbf16> to vector<8x16x128xbf16>
    %130 = vector.extract_strided_slice %97 {offsets = [1, 0, 0], sizes = [8, 16, 128], strides = [1, 1, 1]} : vector<10x16x128xbf16> to vector<8x16x128xbf16>
    %131 = vector.extract_strided_slice %118 {offsets = [1, 0, 0], sizes = [8, 16, 128], strides = [1, 1, 1]} : vector<10x16x128xbf16> to vector<8x16x128xbf16>
    %132 = tpu.concatenate %129, %130, %131 in 2 : vector<8x16x128xbf16>, vector<8x16x128xbf16>, vector<8x16x128xbf16> -> vector<8x16x384xbf16>
    %133 = vector.shape_cast %132 : vector<8x16x384xbf16> to vector<128x384xbf16>
    %c1_51 = arith.constant 1 : index
    %c0_52 = arith.constant 0 : index
    %c0_53 = arith.constant 0 : index
    %134 = vector.load %arg6[%c1_51, %c0_52, %c0_53] : memref<3x384x128xbf16, #tpu.memory_space<vmem>>, vector<1x384x128xbf16>
    %135 = vector.shape_cast %134 : vector<1x384x128xbf16> to vector<384x128xbf16>
    %cst_54 = arith.constant dense<0.000000e+00> : vector<128x128xf32>
    %136 = tpu.matmul %133, %135, %cst_54 {dimension_numbers = #tpu.dot_dimension_numbers<[1], [0], [0], [1], [0, 0, 1, 1], [], []>} : vector<128x384xbf16>, vector<384x128xbf16>, vector<128x128xf32> -> vector<128x128xf32>
    %137 = arith.addf %128, %136 : vector<128x128xf32>
    %138 = vector.extract_strided_slice %111 {offsets = [2, 0, 0], sizes = [8, 16, 128], strides = [1, 1, 1]} : vector<10x16x128xbf16> to vector<8x16x128xbf16>
    %139 = vector.extract_strided_slice %97 {offsets = [2, 0, 0], sizes = [8, 16, 128], strides = [1, 1, 1]} : vector<10x16x128xbf16> to vector<8x16x128xbf16>
    %140 = vector.extract_strided_slice %118 {offsets = [2, 0, 0], sizes = [8, 16, 128], strides = [1, 1, 1]} : vector<10x16x128xbf16> to vector<8x16x128xbf16>
    %141 = tpu.concatenate %138, %139, %140 in 2 : vector<8x16x128xbf16>, vector<8x16x128xbf16>, vector<8x16x128xbf16> -> vector<8x16x384xbf16>
    %142 = vector.shape_cast %141 : vector<8x16x384xbf16> to vector<128x384xbf16>
    %c2_55 = arith.constant 2 : index
    %c0_56 = arith.constant 0 : index
    %c0_57 = arith.constant 0 : index
    %143 = vector.load %arg6[%c2_55, %c0_56, %c0_57] : memref<3x384x128xbf16, #tpu.memory_space<vmem>>, vector<1x384x128xbf16>
    %144 = vector.shape_cast %143 : vector<1x384x128xbf16> to vector<384x128xbf16>
    %cst_58 = arith.constant dense<0.000000e+00> : vector<128x128xf32>
    %145 = tpu.matmul %142, %144, %cst_58 {dimension_numbers = #tpu.dot_dimension_numbers<[1], [0], [0], [1], [0, 0, 1, 1], [], []>} : vector<128x384xbf16>, vector<384x128xbf16>, vector<128x128xf32> -> vector<128x128xf32>
    %146 = arith.addf %137, %145 : vector<128x128xf32>
    %147 = vector.shape_cast %146 : vector<128x128xf32> to vector<8x16x128xf32>
    %c0_59 = arith.constant 0 : index
    %c0_60 = arith.constant 0 : index
    %148 = vector.load %arg7[%c0_59, %c0_60] : memref<1x128xf32, #tpu.memory_space<vmem>>, vector<1x128xf32>
    %149 = vector.shape_cast %148 : vector<1x128xf32> to vector<1x1x128xf32>
    %150 = vector.broadcast %149 : vector<1x1x128xf32> to vector<8x16x128xf32>
    %151 = arith.addf %147, %150 : vector<8x16x128xf32>
    %c0_61 = arith.constant 0 : index
    %c0_62 = arith.constant 0 : index
    %c0_63 = arith.constant 0 : index
    %c0_64 = arith.constant 0 : index
    %152 = vector.load %arg2[%c0_61, %c0_62, %c0_63, %c0_64] : memref<1x8x16x128xbf16, #tpu.memory_space<vmem>>, vector<1x8x16x128xbf16>
    %153 = vector.shape_cast %152 : vector<1x8x16x128xbf16> to vector<8x16x128xbf16>
    %154 = arith.extf %153 : vector<8x16x128xbf16> to vector<8x16x128xf32>
    %155 = arith.addf %151, %154 : vector<8x16x128xf32>
    %156 = arith.truncf %155 : vector<8x16x128xf32> to vector<8x16x128xbf16>
    %c0_65 = arith.constant 0 : index
    %c0_66 = arith.constant 0 : index
    %c0_67 = arith.constant 0 : index
    %c0_68 = arith.constant 0 : index
    %157 = vector.load %arg8[%c0_65, %c0_66, %c0_67, %c0_68] : memref<1x8x16x128xbf16, #tpu.memory_space<vmem>>, vector<1x8x16x128xbf16>
    %158 = vector.shape_cast %157 : vector<1x8x16x128xbf16> to vector<8x16x128xbf16>
    %159 = vector.shape_cast %156 : vector<8x16x128xbf16> to vector<1x8x16x128xbf16>
    tpu.vector_store %arg8[%c0_65, %c0_66, %c0_67, %c0_68], %159 {strides = array<i32>} : memref<1x8x16x128xbf16, #tpu.memory_space<vmem>>, vector<1x8x16x128xbf16>,
    return
  }
  func.func @transform_0(%arg0: i32, %arg1: i32) -> (i32, i32, i32, i32) {
    %c0_i32 = arith.constant 0 : i32
    %c0_i32_0 = arith.constant 0 : i32
    %c0_i32_1 = arith.constant 0 : i32
    return %arg0, %arg1, %c0_i32, %c0_i32_0 : i32, i32, i32, i32
  }
  func.func @transform_2(%arg0: i32, %arg1: i32) -> (i32, i32, i32) {
    %c0_i32 = arith.constant 0 : i32
    %c0_i32_0 = arith.constant 0 : i32
    %c0_i32_1 = arith.constant 0 : i32
    %c0_i32_2 = arith.constant 0 : i32
    return %c0_i32, %c0_i32_0, %c0_i32_1 : i32, i32, i32
  }
  func.func @transform_3(%arg0: i32, %arg1: i32) -> (i32, i32) {
    %c0_i32 = arith.constant 0 : i32
    %c0_i32_0 = arith.constant 0 : i32
    %c0_i32_1 = arith.constant 0 : i32
    return %c0_i32, %c0_i32_0 : i32, i32
  }
  func.func @transform_4(%arg0: i32, %arg1: i32) -> (i32, i32, i32) {
    %c0_i32 = arith.constant 0 : i32
    %c0_i32_0 = arith.constant 0 : i32
    %c0_i32_1 = arith.constant 0 : i32
    %c0_i32_2 = arith.constant 0 : i32
    return %c0_i32, %c0_i32_0, %c0_i32_1 : i32, i32, i32
  }
  func.func @transform_5(%arg0: i32, %arg1: i32) -> (i32, i32) {
    %c0_i32 = arith.constant 0 : i32
    %c0_i32_0 = arith.constant 0 : i32
    %c0_i32_1 = arith.constant 0 : i32
    return %c0_i32, %c0_i32_0 : i32, i32
  }
  func.func @transform_6(%arg0: i32, %arg1: i32) -> (i32, i32, i32, i32) {
    %c0_i32 = arith.constant 0 : i32
    %c0_i32_0 = arith.constant 0 : i32
    %c0_i32_1 = arith.constant 0 : i32
    return %arg0, %arg1, %c0_i32, %c0_i32_0 : i32, i32, i32, i32
  }
}

module attributes {stable_mosaic.version = 11 : i64} {
  func.func @_conv_kernel(%arg0: i32, %arg1: i32, %arg2: memref<1x8x16x128xbf16, #tpu.memory_space<vmem>>, %arg3: memref<2x16x16x128xbf16, #tpu.memory_space<any>>, %arg4: memref<3x384x128xbf16, #tpu.memory_space<vmem>>, %arg5: memref<1x128xf32, #tpu.memory_space<vmem>>, %arg6: memref<1x8x16x128xbf16, #tpu.memory_space<vmem>>, %arg7: memref<1x8x16x128xbf16, #tpu.memory_space<vmem>>, %arg8: memref<2x16x128xbf16, #tpu.memory_space<vmem>>, %arg9: memref<2x!tpu.dma_semaphore, #tpu.memory_space<semaphore_mem>>) attributes {dimension_semantics = [#tpu.dimension_semantics<parallel>, #tpu.dimension_semantics<parallel>], iteration_bounds = array<i64: 2, 2>, scalar_prefetch = 0 : i64, scratch_operands = 2 : i64, tpu.core_type = #tpu.core_type<tc>, window_params = [{transform_indices = @transform_0, window_bounds = array<i64: 1, 8, 16, 128>}, {}, {pipeline_mode = #tpu.pipeline_mode<synchronous>, transform_indices = @transform_2, window_bounds = array<i64: 3, 384, 128>}, {pipeline_mode = #tpu.pipeline_mode<synchronous>, transform_indices = @transform_3, window_bounds = array<i64: 1, 128>}, {transform_indices = @transform_4, window_bounds = array<i64: 1, 8, 16, 128>}, {transform_indices = @transform_5, window_bounds = array<i64: 1, 8, 16, 128>}]} {
    %c8_i32 = arith.constant 8 : i32
    %0 = arith.muli %arg1, %c8_i32 : i32
    %cst = arith.constant 0.000000e+00 : bf16
    %1 = vector.broadcast %cst : bf16 to vector<1x16x128xbf16>
    %c0_i32 = arith.constant 0 : i32
    %2 = arith.cmpi sgt, %arg1, %c0_i32 : i32
    %3 = arith.extui %2 : i1 to i32
    %c0_i32_0 = arith.constant 0 : i32
    %4 = arith.cmpi ne, %3, %c0_i32_0 : i32
    scf.if %4 {
      %c1_i32_44 = arith.constant 1 : i32
      %87 = arith.subi %0, %c1_i32_44 : i32
      %c0_i32_45 = arith.constant 0 : i32
      %c0_i32_46 = arith.constant 0 : i32
      %c0_i32_47 = arith.constant 0 : i32
      %88 = tpu.memref_slice %arg3[%arg0, %87, %c0_i32_46, %c0_i32_47] : memref<2x16x16x128xbf16, #tpu.memory_space<any>> -> memref<1x1x16x128xbf16, #tpu.memory_space<any>>
      %89 = tpu.memref_squeeze %88 : memref<1x1x16x128xbf16, #tpu.memory_space<any>> -> memref<1x16x128xbf16, #tpu.memory_space<any>>
      %c0_i32_48 = arith.constant 0 : i32
      %c0_i32_49 = arith.constant 0 : i32
      %c0_i32_50 = arith.constant 0 : i32
      %90 = tpu.memref_slice %arg8[%c0_i32_48, %c0_i32_49, %c0_i32_50] : memref<2x16x128xbf16, #tpu.memory_space<vmem>> -> memref<1x16x128xbf16, #tpu.memory_space<vmem>>
      %91 = tpu.memref_slice %arg9[%c0_i32_45] : memref<2x!tpu.dma_semaphore, #tpu.memory_space<semaphore_mem>> -> memref<1x!tpu.dma_semaphore, #tpu.memory_space<semaphore_mem>>
      %92 = tpu.memref_squeeze %91 : memref<1x!tpu.dma_semaphore, #tpu.memory_space<semaphore_mem>> -> memref<!tpu.dma_semaphore, #tpu.memory_space<semaphore_mem>>
      tpu.enqueue_dma source(%89 : memref<1x16x128xbf16, #tpu.memory_space<any>>) target(%90 : memref<1x16x128xbf16, #tpu.memory_space<vmem>>) target_semaphore(%92 : memref<!tpu.dma_semaphore, #tpu.memory_space<semaphore_mem>>)
    } else {
    }
    %c0_i32_1 = arith.constant 0 : i32
    %5 = arith.cmpi eq, %arg1, %c0_i32_1 : i32
    %6 = arith.extui %5 : i1 to i32
    %c0_i32_2 = arith.constant 0 : i32
    %7 = arith.cmpi ne, %6, %c0_i32_2 : i32
    scf.if %7 {
      %c0_44 = arith.constant 0 : index
      %c0_45 = arith.constant 0 : index
      %c0_46 = arith.constant 0 : index
      %87 = vector.load %arg8[%c0_44, %c0_45, %c0_46] : memref<2x16x128xbf16, #tpu.memory_space<vmem>>, vector<1x16x128xbf16>
      tpu.vector_store %arg8[%c0_44, %c0_45, %c0_46], %1 {strides = array<i32>} : memref<2x16x128xbf16, #tpu.memory_space<vmem>>, vector<1x16x128xbf16>,
    } else {
    }
    %c1_i32 = arith.constant 1 : i32
    %8 = arith.cmpi slt, %arg1, %c1_i32 : i32
    %9 = arith.extui %8 : i1 to i32
    %c0_i32_3 = arith.constant 0 : i32
    %10 = arith.cmpi ne, %9, %c0_i32_3 : i32
    scf.if %10 {
      %c8_i32_44 = arith.constant 8 : i32
      %87 = arith.addi %0, %c8_i32_44 : i32
      %c1_i32_45 = arith.constant 1 : i32
      %c0_i32_46 = arith.constant 0 : i32
      %c0_i32_47 = arith.constant 0 : i32
      %88 = tpu.memref_slice %arg3[%arg0, %87, %c0_i32_46, %c0_i32_47] : memref<2x16x16x128xbf16, #tpu.memory_space<any>> -> memref<1x1x16x128xbf16, #tpu.memory_space<any>>
      %89 = tpu.memref_squeeze %88 : memref<1x1x16x128xbf16, #tpu.memory_space<any>> -> memref<1x16x128xbf16, #tpu.memory_space<any>>
      %c1_i32_48 = arith.constant 1 : i32
      %c0_i32_49 = arith.constant 0 : i32
      %c0_i32_50 = arith.constant 0 : i32
      %90 = tpu.memref_slice %arg8[%c1_i32_48, %c0_i32_49, %c0_i32_50] : memref<2x16x128xbf16, #tpu.memory_space<vmem>> -> memref<1x16x128xbf16, #tpu.memory_space<vmem>>
      %91 = tpu.memref_slice %arg9[%c1_i32_45] : memref<2x!tpu.dma_semaphore, #tpu.memory_space<semaphore_mem>> -> memref<1x!tpu.dma_semaphore, #tpu.memory_space<semaphore_mem>>
      %92 = tpu.memref_squeeze %91 : memref<1x!tpu.dma_semaphore, #tpu.memory_space<semaphore_mem>> -> memref<!tpu.dma_semaphore, #tpu.memory_space<semaphore_mem>>
      tpu.enqueue_dma source(%89 : memref<1x16x128xbf16, #tpu.memory_space<any>>) target(%90 : memref<1x16x128xbf16, #tpu.memory_space<vmem>>) target_semaphore(%92 : memref<!tpu.dma_semaphore, #tpu.memory_space<semaphore_mem>>)
    } else {
    }
    %c1_i32_4 = arith.constant 1 : i32
    %11 = arith.cmpi eq, %arg1, %c1_i32_4 : i32
    %12 = arith.extui %11 : i1 to i32
    %c0_i32_5 = arith.constant 0 : i32
    %13 = arith.cmpi ne, %12, %c0_i32_5 : i32
    scf.if %13 {
      %c1_44 = arith.constant 1 : index
      %c0_45 = arith.constant 0 : index
      %c0_46 = arith.constant 0 : index
      %87 = vector.load %arg8[%c1_44, %c0_45, %c0_46] : memref<2x16x128xbf16, #tpu.memory_space<vmem>>, vector<1x16x128xbf16>
      tpu.vector_store %arg8[%c1_44, %c0_45, %c0_46], %1 {strides = array<i32>} : memref<2x16x128xbf16, #tpu.memory_space<vmem>>, vector<1x16x128xbf16>,
    } else {
    }
    %c0_i32_6 = arith.constant 0 : i32
    %14 = arith.cmpi sgt, %arg1, %c0_i32_6 : i32
    %15 = arith.extui %14 : i1 to i32
    %c0_i32_7 = arith.constant 0 : i32
    %16 = arith.cmpi ne, %15, %c0_i32_7 : i32
    scf.if %16 {
      %c1_i32_44 = arith.constant 1 : i32
      %87 = arith.subi %0, %c1_i32_44 : i32
      %c0_i32_45 = arith.constant 0 : i32
      %c0_i32_46 = arith.constant 0 : i32
      %c0_i32_47 = arith.constant 0 : i32
      %88 = tpu.memref_slice %arg3[%arg0, %87, %c0_i32_46, %c0_i32_47] : memref<2x16x16x128xbf16, #tpu.memory_space<any>> -> memref<1x1x16x128xbf16, #tpu.memory_space<any>>
      %89 = tpu.memref_squeeze %88 : memref<1x1x16x128xbf16, #tpu.memory_space<any>> -> memref<1x16x128xbf16, #tpu.memory_space<any>>
      %c0_i32_48 = arith.constant 0 : i32
      %c0_i32_49 = arith.constant 0 : i32
      %c0_i32_50 = arith.constant 0 : i32
      %90 = tpu.memref_slice %arg8[%c0_i32_48, %c0_i32_49, %c0_i32_50] : memref<2x16x128xbf16, #tpu.memory_space<vmem>> -> memref<1x16x128xbf16, #tpu.memory_space<vmem>>
      %91 = tpu.memref_slice %arg9[%c0_i32_45] : memref<2x!tpu.dma_semaphore, #tpu.memory_space<semaphore_mem>> -> memref<1x!tpu.dma_semaphore, #tpu.memory_space<semaphore_mem>>
      %92 = tpu.memref_squeeze %91 : memref<1x!tpu.dma_semaphore, #tpu.memory_space<semaphore_mem>> -> memref<!tpu.dma_semaphore, #tpu.memory_space<semaphore_mem>>
      tpu.wait_dma2 semaphore(%92 : memref<!tpu.dma_semaphore, #tpu.memory_space<semaphore_mem>>) src(%89 : memref<1x16x128xbf16, #tpu.memory_space<any>>) dst(%90 : memref<1x16x128xbf16, #tpu.memory_space<vmem>>)
    } else {
    }
    %c1_i32_8 = arith.constant 1 : i32
    %17 = arith.cmpi slt, %arg1, %c1_i32_8 : i32
    %18 = arith.extui %17 : i1 to i32
    %c0_i32_9 = arith.constant 0 : i32
    %19 = arith.cmpi ne, %18, %c0_i32_9 : i32
    scf.if %19 {
      %c8_i32_44 = arith.constant 8 : i32
      %87 = arith.addi %0, %c8_i32_44 : i32
      %c1_i32_45 = arith.constant 1 : i32
      %c0_i32_46 = arith.constant 0 : i32
      %c0_i32_47 = arith.constant 0 : i32
      %88 = tpu.memref_slice %arg3[%arg0, %87, %c0_i32_46, %c0_i32_47] : memref<2x16x16x128xbf16, #tpu.memory_space<any>> -> memref<1x1x16x128xbf16, #tpu.memory_space<any>>
      %89 = tpu.memref_squeeze %88 : memref<1x1x16x128xbf16, #tpu.memory_space<any>> -> memref<1x16x128xbf16, #tpu.memory_space<any>>
      %c1_i32_48 = arith.constant 1 : i32
      %c0_i32_49 = arith.constant 0 : i32
      %c0_i32_50 = arith.constant 0 : i32
      %90 = tpu.memref_slice %arg8[%c1_i32_48, %c0_i32_49, %c0_i32_50] : memref<2x16x128xbf16, #tpu.memory_space<vmem>> -> memref<1x16x128xbf16, #tpu.memory_space<vmem>>
      %91 = tpu.memref_slice %arg9[%c1_i32_45] : memref<2x!tpu.dma_semaphore, #tpu.memory_space<semaphore_mem>> -> memref<1x!tpu.dma_semaphore, #tpu.memory_space<semaphore_mem>>
      %92 = tpu.memref_squeeze %91 : memref<1x!tpu.dma_semaphore, #tpu.memory_space<semaphore_mem>> -> memref<!tpu.dma_semaphore, #tpu.memory_space<semaphore_mem>>
      tpu.wait_dma2 semaphore(%92 : memref<!tpu.dma_semaphore, #tpu.memory_space<semaphore_mem>>) src(%89 : memref<1x16x128xbf16, #tpu.memory_space<any>>) dst(%90 : memref<1x16x128xbf16, #tpu.memory_space<vmem>>)
    } else {
    }
    %c0 = arith.constant 0 : index
    %c0_10 = arith.constant 0 : index
    %c0_11 = arith.constant 0 : index
    %20 = vector.load %arg8[%c0, %c0_10, %c0_11] : memref<2x16x128xbf16, #tpu.memory_space<vmem>>, vector<1x16x128xbf16>
    %c0_12 = arith.constant 0 : index
    %c0_13 = arith.constant 0 : index
    %c0_14 = arith.constant 0 : index
    %c0_15 = arith.constant 0 : index
    %21 = vector.load %arg2[%c0_12, %c0_13, %c0_14, %c0_15] : memref<1x8x16x128xbf16, #tpu.memory_space<vmem>>, vector<1x8x16x128xbf16>
    %22 = vector.shape_cast %21 : vector<1x8x16x128xbf16> to vector<8x16x128xbf16>
    %c1 = arith.constant 1 : index
    %c0_16 = arith.constant 0 : index
    %c0_17 = arith.constant 0 : index
    %23 = vector.load %arg8[%c1, %c0_16, %c0_17] : memref<2x16x128xbf16, #tpu.memory_space<vmem>>, vector<1x16x128xbf16>
    %24 = tpu.concatenate %20, %22, %23 in 0 : vector<1x16x128xbf16>, vector<8x16x128xbf16>, vector<1x16x128xbf16> -> vector<10x16x128xbf16>
    %25 = vector.shape_cast %24 : vector<10x16x128xbf16> to vector<160x128xbf16>
    %26 = arith.extf %25 : vector<160x128xbf16> to vector<160x128xf32>
    %c1_i32_18 = arith.constant 1 : i32
    %27 = tpu.dynamic_rotate %26 by %c1_i32_18 dim 0 : vector<160x128xf32>, i32 -> vector<160x128xf32>
    %28 = vector.shape_cast %27 : vector<160x128xf32> to vector<10x16x128xf32>
    %c159_i32 = arith.constant 159 : i32
    %29 = tpu.dynamic_rotate %26 by %c159_i32 dim 0 : vector<160x128xf32>, i32 -> vector<160x128xf32>
    %30 = vector.shape_cast %29 : vector<160x128xf32> to vector<10x16x128xf32>
    %31 = tpu.iota {dimensions = array<i32: 1>} : vector<1x16x1xi32>
    %c0_i32_19 = arith.constant 0 : i32
    %32 = vector.broadcast %c0_i32_19 : i32 to vector<1x16x1xi32>
    %33 = arith.cmpi eq, %31, %32 : vector<1x16x1xi32>
    %cst_20 = arith.constant 0.000000e+00 : f32
    %34 = vector.shape_cast %33 : vector<1x16x1xi1> to vector<1x16x1xi1>
    %35 = vector.broadcast %34 : vector<1x16x1xi1> to vector<10x16x128xi1>
    %36 = vector.broadcast %cst_20 : f32 to vector<10x16x128xf32>
    %37 = arith.select %35, %36, %28 : vector<10x16x128xi1>, vector<10x16x128xf32>
    %38 = arith.truncf %37 : vector<10x16x128xf32> to vector<10x16x128xbf16>
    %c15_i32 = arith.constant 15 : i32
    %39 = vector.broadcast %c15_i32 : i32 to vector<1x16x1xi32>
    %40 = arith.cmpi eq, %31, %39 : vector<1x16x1xi32>
    %cst_21 = arith.constant 0.000000e+00 : f32
    %41 = vector.shape_cast %40 : vector<1x16x1xi1> to vector<1x16x1xi1>
    %42 = vector.broadcast %41 : vector<1x16x1xi1> to vector<10x16x128xi1>
    %43 = vector.broadcast %cst_21 : f32 to vector<10x16x128xf32>
    %44 = arith.select %42, %43, %30 : vector<10x16x128xi1>, vector<10x16x128xf32>
    %45 = arith.truncf %44 : vector<10x16x128xf32> to vector<10x16x128xbf16>
    %cst_22 = arith.constant 0.000000e+00 : f32
    %46 = vector.broadcast %cst_22 : f32 to vector<128x128xf32>
    %47 = vector.extract_strided_slice %38 {offsets = [0, 0, 0], sizes = [8, 16, 128], strides = [1, 1, 1]} : vector<10x16x128xbf16> to vector<8x16x128xbf16>
    %48 = vector.extract_strided_slice %24 {offsets = [0, 0, 0], sizes = [8, 16, 128], strides = [1, 1, 1]} : vector<10x16x128xbf16> to vector<8x16x128xbf16>
    %49 = vector.extract_strided_slice %45 {offsets = [0, 0, 0], sizes = [8, 16, 128], strides = [1, 1, 1]} : vector<10x16x128xbf16> to vector<8x16x128xbf16>
    %50 = tpu.concatenate %47, %48, %49 in 2 : vector<8x16x128xbf16>, vector<8x16x128xbf16>, vector<8x16x128xbf16> -> vector<8x16x384xbf16>
    %51 = vector.shape_cast %50 : vector<8x16x384xbf16> to vector<128x384xbf16>
    %c0_23 = arith.constant 0 : index
    %c0_24 = arith.constant 0 : index
    %c0_25 = arith.constant 0 : index
    %52 = vector.load %arg4[%c0_23, %c0_24, %c0_25] : memref<3x384x128xbf16, #tpu.memory_space<vmem>>, vector<1x384x128xbf16>
    %53 = vector.shape_cast %52 : vector<1x384x128xbf16> to vector<384x128xbf16>
    %cst_26 = arith.constant dense<0.000000e+00> : vector<128x128xf32>
    %54 = tpu.matmul %51, %53, %cst_26 {dimension_numbers = #tpu.dot_dimension_numbers<[1], [0], [0], [1], [0, 0, 1, 1], [], []>} : vector<128x384xbf16>, vector<384x128xbf16>, vector<128x128xf32> -> vector<128x128xf32>
    %55 = arith.addf %46, %54 : vector<128x128xf32>
    %56 = vector.extract_strided_slice %38 {offsets = [1, 0, 0], sizes = [8, 16, 128], strides = [1, 1, 1]} : vector<10x16x128xbf16> to vector<8x16x128xbf16>
    %57 = vector.extract_strided_slice %24 {offsets = [1, 0, 0], sizes = [8, 16, 128], strides = [1, 1, 1]} : vector<10x16x128xbf16> to vector<8x16x128xbf16>
    %58 = vector.extract_strided_slice %45 {offsets = [1, 0, 0], sizes = [8, 16, 128], strides = [1, 1, 1]} : vector<10x16x128xbf16> to vector<8x16x128xbf16>
    %59 = tpu.concatenate %56, %57, %58 in 2 : vector<8x16x128xbf16>, vector<8x16x128xbf16>, vector<8x16x128xbf16> -> vector<8x16x384xbf16>
    %60 = vector.shape_cast %59 : vector<8x16x384xbf16> to vector<128x384xbf16>
    %c1_27 = arith.constant 1 : index
    %c0_28 = arith.constant 0 : index
    %c0_29 = arith.constant 0 : index
    %61 = vector.load %arg4[%c1_27, %c0_28, %c0_29] : memref<3x384x128xbf16, #tpu.memory_space<vmem>>, vector<1x384x128xbf16>
    %62 = vector.shape_cast %61 : vector<1x384x128xbf16> to vector<384x128xbf16>
    %cst_30 = arith.constant dense<0.000000e+00> : vector<128x128xf32>
    %63 = tpu.matmul %60, %62, %cst_30 {dimension_numbers = #tpu.dot_dimension_numbers<[1], [0], [0], [1], [0, 0, 1, 1], [], []>} : vector<128x384xbf16>, vector<384x128xbf16>, vector<128x128xf32> -> vector<128x128xf32>
    %64 = arith.addf %55, %63 : vector<128x128xf32>
    %65 = vector.extract_strided_slice %38 {offsets = [2, 0, 0], sizes = [8, 16, 128], strides = [1, 1, 1]} : vector<10x16x128xbf16> to vector<8x16x128xbf16>
    %66 = vector.extract_strided_slice %24 {offsets = [2, 0, 0], sizes = [8, 16, 128], strides = [1, 1, 1]} : vector<10x16x128xbf16> to vector<8x16x128xbf16>
    %67 = vector.extract_strided_slice %45 {offsets = [2, 0, 0], sizes = [8, 16, 128], strides = [1, 1, 1]} : vector<10x16x128xbf16> to vector<8x16x128xbf16>
    %68 = tpu.concatenate %65, %66, %67 in 2 : vector<8x16x128xbf16>, vector<8x16x128xbf16>, vector<8x16x128xbf16> -> vector<8x16x384xbf16>
    %69 = vector.shape_cast %68 : vector<8x16x384xbf16> to vector<128x384xbf16>
    %c2 = arith.constant 2 : index
    %c0_31 = arith.constant 0 : index
    %c0_32 = arith.constant 0 : index
    %70 = vector.load %arg4[%c2, %c0_31, %c0_32] : memref<3x384x128xbf16, #tpu.memory_space<vmem>>, vector<1x384x128xbf16>
    %71 = vector.shape_cast %70 : vector<1x384x128xbf16> to vector<384x128xbf16>
    %cst_33 = arith.constant dense<0.000000e+00> : vector<128x128xf32>
    %72 = tpu.matmul %69, %71, %cst_33 {dimension_numbers = #tpu.dot_dimension_numbers<[1], [0], [0], [1], [0, 0, 1, 1], [], []>} : vector<128x384xbf16>, vector<384x128xbf16>, vector<128x128xf32> -> vector<128x128xf32>
    %73 = arith.addf %64, %72 : vector<128x128xf32>
    %74 = vector.shape_cast %73 : vector<128x128xf32> to vector<8x16x128xf32>
    %c0_34 = arith.constant 0 : index
    %c0_35 = arith.constant 0 : index
    %75 = vector.load %arg5[%c0_34, %c0_35] : memref<1x128xf32, #tpu.memory_space<vmem>>, vector<1x128xf32>
    %76 = vector.shape_cast %75 : vector<1x128xf32> to vector<1x1x128xf32>
    %77 = vector.broadcast %76 : vector<1x1x128xf32> to vector<8x16x128xf32>
    %78 = arith.addf %74, %77 : vector<8x16x128xf32>
    %c0_36 = arith.constant 0 : index
    %c0_37 = arith.constant 0 : index
    %c0_38 = arith.constant 0 : index
    %c0_39 = arith.constant 0 : index
    %79 = vector.load %arg6[%c0_36, %c0_37, %c0_38, %c0_39] : memref<1x8x16x128xbf16, #tpu.memory_space<vmem>>, vector<1x8x16x128xbf16>
    %80 = vector.shape_cast %79 : vector<1x8x16x128xbf16> to vector<8x16x128xbf16>
    %81 = arith.extf %80 : vector<8x16x128xbf16> to vector<8x16x128xf32>
    %82 = arith.addf %78, %81 : vector<8x16x128xf32>
    %83 = arith.truncf %82 : vector<8x16x128xf32> to vector<8x16x128xbf16>
    %c0_40 = arith.constant 0 : index
    %c0_41 = arith.constant 0 : index
    %c0_42 = arith.constant 0 : index
    %c0_43 = arith.constant 0 : index
    %84 = vector.load %arg7[%c0_40, %c0_41, %c0_42, %c0_43] : memref<1x8x16x128xbf16, #tpu.memory_space<vmem>>, vector<1x8x16x128xbf16>
    %85 = vector.shape_cast %84 : vector<1x8x16x128xbf16> to vector<8x16x128xbf16>
    %86 = vector.shape_cast %83 : vector<8x16x128xbf16> to vector<1x8x16x128xbf16>
    tpu.vector_store %arg7[%c0_40, %c0_41, %c0_42, %c0_43], %86 {strides = array<i32>} : memref<1x8x16x128xbf16, #tpu.memory_space<vmem>>, vector<1x8x16x128xbf16>,
    return
  }
  func.func @transform_0(%arg0: i32, %arg1: i32) -> (i32, i32, i32, i32) {
    %c0_i32 = arith.constant 0 : i32
    %c0_i32_0 = arith.constant 0 : i32
    %c0_i32_1 = arith.constant 0 : i32
    return %arg0, %arg1, %c0_i32, %c0_i32_0 : i32, i32, i32, i32
  }
  func.func @transform_2(%arg0: i32, %arg1: i32) -> (i32, i32, i32) {
    %c0_i32 = arith.constant 0 : i32
    %c0_i32_0 = arith.constant 0 : i32
    %c0_i32_1 = arith.constant 0 : i32
    %c0_i32_2 = arith.constant 0 : i32
    return %c0_i32, %c0_i32_0, %c0_i32_1 : i32, i32, i32
  }
  func.func @transform_3(%arg0: i32, %arg1: i32) -> (i32, i32) {
    %c0_i32 = arith.constant 0 : i32
    %c0_i32_0 = arith.constant 0 : i32
    %c0_i32_1 = arith.constant 0 : i32
    return %c0_i32, %c0_i32_0 : i32, i32
  }
  func.func @transform_4(%arg0: i32, %arg1: i32) -> (i32, i32, i32, i32) {
    %c0_i32 = arith.constant 0 : i32
    %c0_i32_0 = arith.constant 0 : i32
    %c0_i32_1 = arith.constant 0 : i32
    return %arg0, %arg1, %c0_i32, %c0_i32_0 : i32, i32, i32, i32
  }
  func.func @transform_5(%arg0: i32, %arg1: i32) -> (i32, i32, i32, i32) {
    %c0_i32 = arith.constant 0 : i32
    %c0_i32_0 = arith.constant 0 : i32
    %c0_i32_1 = arith.constant 0 : i32
    return %arg0, %arg1, %c0_i32, %c0_i32_0 : i32, i32, i32, i32
  }
}

module attributes {stable_mosaic.version = 11 : i64} {
  func.func @_conv_kernel(%arg0: i32, %arg1: i32, %arg2: memref<1x8x16x128xbf16, #tpu.memory_space<vmem>>, %arg3: memref<2x16x16x128xbf16, #tpu.memory_space<any>>, %arg4: memref<3x384x128xbf16, #tpu.memory_space<vmem>>, %arg5: memref<1x128xf32, #tpu.memory_space<vmem>>, %arg6: memref<1x8x16x128xbf16, #tpu.memory_space<vmem>>, %arg7: memref<2x16x128xbf16, #tpu.memory_space<vmem>>, %arg8: memref<2x!tpu.dma_semaphore, #tpu.memory_space<semaphore_mem>>) attributes {dimension_semantics = [#tpu.dimension_semantics<parallel>, #tpu.dimension_semantics<parallel>], iteration_bounds = array<i64: 2, 2>, scalar_prefetch = 0 : i64, scratch_operands = 2 : i64, tpu.core_type = #tpu.core_type<tc>, window_params = [{transform_indices = @transform_0, window_bounds = array<i64: 1, 8, 16, 128>}, {}, {pipeline_mode = #tpu.pipeline_mode<synchronous>, transform_indices = @transform_2, window_bounds = array<i64: 3, 384, 128>}, {pipeline_mode = #tpu.pipeline_mode<synchronous>, transform_indices = @transform_3, window_bounds = array<i64: 1, 128>}, {transform_indices = @transform_4, window_bounds = array<i64: 1, 8, 16, 128>}]} {
    %c8_i32 = arith.constant 8 : i32
    %0 = arith.muli %arg1, %c8_i32 : i32
    %cst = arith.constant 0.000000e+00 : bf16
    %1 = vector.broadcast %cst : bf16 to vector<1x16x128xbf16>
    %c0_i32 = arith.constant 0 : i32
    %2 = arith.cmpi sgt, %arg1, %c0_i32 : i32
    %3 = arith.extui %2 : i1 to i32
    %c0_i32_0 = arith.constant 0 : i32
    %4 = arith.cmpi ne, %3, %c0_i32_0 : i32
    scf.if %4 {
      %c1_i32_43 = arith.constant 1 : i32
      %90 = arith.subi %0, %c1_i32_43 : i32
      %c0_i32_44 = arith.constant 0 : i32
      %c0_i32_45 = arith.constant 0 : i32
      %c0_i32_46 = arith.constant 0 : i32
      %91 = tpu.memref_slice %arg3[%arg0, %90, %c0_i32_45, %c0_i32_46] : memref<2x16x16x128xbf16, #tpu.memory_space<any>> -> memref<1x1x16x128xbf16, #tpu.memory_space<any>>
      %92 = tpu.memref_squeeze %91 : memref<1x1x16x128xbf16, #tpu.memory_space<any>> -> memref<1x16x128xbf16, #tpu.memory_space<any>>
      %c0_i32_47 = arith.constant 0 : i32
      %c0_i32_48 = arith.constant 0 : i32
      %c0_i32_49 = arith.constant 0 : i32
      %93 = tpu.memref_slice %arg7[%c0_i32_47, %c0_i32_48, %c0_i32_49] : memref<2x16x128xbf16, #tpu.memory_space<vmem>> -> memref<1x16x128xbf16, #tpu.memory_space<vmem>>
      %94 = tpu.memref_slice %arg8[%c0_i32_44] : memref<2x!tpu.dma_semaphore, #tpu.memory_space<semaphore_mem>> -> memref<1x!tpu.dma_semaphore, #tpu.memory_space<semaphore_mem>>
      %95 = tpu.memref_squeeze %94 : memref<1x!tpu.dma_semaphore, #tpu.memory_space<semaphore_mem>> -> memref<!tpu.dma_semaphore, #tpu.memory_space<semaphore_mem>>
      tpu.enqueue_dma source(%92 : memref<1x16x128xbf16, #tpu.memory_space<any>>) target(%93 : memref<1x16x128xbf16, #tpu.memory_space<vmem>>) target_semaphore(%95 : memref<!tpu.dma_semaphore, #tpu.memory_space<semaphore_mem>>)
    } else {
    }
    %c0_i32_1 = arith.constant 0 : i32
    %5 = arith.cmpi eq, %arg1, %c0_i32_1 : i32
    %6 = arith.extui %5 : i1 to i32
    %c0_i32_2 = arith.constant 0 : i32
    %7 = arith.cmpi ne, %6, %c0_i32_2 : i32
    scf.if %7 {
      %c0_43 = arith.constant 0 : index
      %c0_44 = arith.constant 0 : index
      %c0_45 = arith.constant 0 : index
      %90 = vector.load %arg7[%c0_43, %c0_44, %c0_45] : memref<2x16x128xbf16, #tpu.memory_space<vmem>>, vector<1x16x128xbf16>
      tpu.vector_store %arg7[%c0_43, %c0_44, %c0_45], %1 {strides = array<i32>} : memref<2x16x128xbf16, #tpu.memory_space<vmem>>, vector<1x16x128xbf16>,
    } else {
    }
    %c1_i32 = arith.constant 1 : i32
    %8 = arith.cmpi slt, %arg1, %c1_i32 : i32
    %9 = arith.extui %8 : i1 to i32
    %c0_i32_3 = arith.constant 0 : i32
    %10 = arith.cmpi ne, %9, %c0_i32_3 : i32
    scf.if %10 {
      %c8_i32_43 = arith.constant 8 : i32
      %90 = arith.addi %0, %c8_i32_43 : i32
      %c1_i32_44 = arith.constant 1 : i32
      %c0_i32_45 = arith.constant 0 : i32
      %c0_i32_46 = arith.constant 0 : i32
      %91 = tpu.memref_slice %arg3[%arg0, %90, %c0_i32_45, %c0_i32_46] : memref<2x16x16x128xbf16, #tpu.memory_space<any>> -> memref<1x1x16x128xbf16, #tpu.memory_space<any>>
      %92 = tpu.memref_squeeze %91 : memref<1x1x16x128xbf16, #tpu.memory_space<any>> -> memref<1x16x128xbf16, #tpu.memory_space<any>>
      %c1_i32_47 = arith.constant 1 : i32
      %c0_i32_48 = arith.constant 0 : i32
      %c0_i32_49 = arith.constant 0 : i32
      %93 = tpu.memref_slice %arg7[%c1_i32_47, %c0_i32_48, %c0_i32_49] : memref<2x16x128xbf16, #tpu.memory_space<vmem>> -> memref<1x16x128xbf16, #tpu.memory_space<vmem>>
      %94 = tpu.memref_slice %arg8[%c1_i32_44] : memref<2x!tpu.dma_semaphore, #tpu.memory_space<semaphore_mem>> -> memref<1x!tpu.dma_semaphore, #tpu.memory_space<semaphore_mem>>
      %95 = tpu.memref_squeeze %94 : memref<1x!tpu.dma_semaphore, #tpu.memory_space<semaphore_mem>> -> memref<!tpu.dma_semaphore, #tpu.memory_space<semaphore_mem>>
      tpu.enqueue_dma source(%92 : memref<1x16x128xbf16, #tpu.memory_space<any>>) target(%93 : memref<1x16x128xbf16, #tpu.memory_space<vmem>>) target_semaphore(%95 : memref<!tpu.dma_semaphore, #tpu.memory_space<semaphore_mem>>)
    } else {
    }
    %c1_i32_4 = arith.constant 1 : i32
    %11 = arith.cmpi eq, %arg1, %c1_i32_4 : i32
    %12 = arith.extui %11 : i1 to i32
    %c0_i32_5 = arith.constant 0 : i32
    %13 = arith.cmpi ne, %12, %c0_i32_5 : i32
    scf.if %13 {
      %c1_43 = arith.constant 1 : index
      %c0_44 = arith.constant 0 : index
      %c0_45 = arith.constant 0 : index
      %90 = vector.load %arg7[%c1_43, %c0_44, %c0_45] : memref<2x16x128xbf16, #tpu.memory_space<vmem>>, vector<1x16x128xbf16>
      tpu.vector_store %arg7[%c1_43, %c0_44, %c0_45], %1 {strides = array<i32>} : memref<2x16x128xbf16, #tpu.memory_space<vmem>>, vector<1x16x128xbf16>,
    } else {
    }
    %c0_i32_6 = arith.constant 0 : i32
    %14 = arith.cmpi sgt, %arg1, %c0_i32_6 : i32
    %15 = arith.extui %14 : i1 to i32
    %c0_i32_7 = arith.constant 0 : i32
    %16 = arith.cmpi ne, %15, %c0_i32_7 : i32
    scf.if %16 {
      %c1_i32_43 = arith.constant 1 : i32
      %90 = arith.subi %0, %c1_i32_43 : i32
      %c0_i32_44 = arith.constant 0 : i32
      %c0_i32_45 = arith.constant 0 : i32
      %c0_i32_46 = arith.constant 0 : i32
      %91 = tpu.memref_slice %arg3[%arg0, %90, %c0_i32_45, %c0_i32_46] : memref<2x16x16x128xbf16, #tpu.memory_space<any>> -> memref<1x1x16x128xbf16, #tpu.memory_space<any>>
      %92 = tpu.memref_squeeze %91 : memref<1x1x16x128xbf16, #tpu.memory_space<any>> -> memref<1x16x128xbf16, #tpu.memory_space<any>>
      %c0_i32_47 = arith.constant 0 : i32
      %c0_i32_48 = arith.constant 0 : i32
      %c0_i32_49 = arith.constant 0 : i32
      %93 = tpu.memref_slice %arg7[%c0_i32_47, %c0_i32_48, %c0_i32_49] : memref<2x16x128xbf16, #tpu.memory_space<vmem>> -> memref<1x16x128xbf16, #tpu.memory_space<vmem>>
      %94 = tpu.memref_slice %arg8[%c0_i32_44] : memref<2x!tpu.dma_semaphore, #tpu.memory_space<semaphore_mem>> -> memref<1x!tpu.dma_semaphore, #tpu.memory_space<semaphore_mem>>
      %95 = tpu.memref_squeeze %94 : memref<1x!tpu.dma_semaphore, #tpu.memory_space<semaphore_mem>> -> memref<!tpu.dma_semaphore, #tpu.memory_space<semaphore_mem>>
      tpu.wait_dma2 semaphore(%95 : memref<!tpu.dma_semaphore, #tpu.memory_space<semaphore_mem>>) src(%92 : memref<1x16x128xbf16, #tpu.memory_space<any>>) dst(%93 : memref<1x16x128xbf16, #tpu.memory_space<vmem>>)
    } else {
    }
    %c1_i32_8 = arith.constant 1 : i32
    %17 = arith.cmpi slt, %arg1, %c1_i32_8 : i32
    %18 = arith.extui %17 : i1 to i32
    %c0_i32_9 = arith.constant 0 : i32
    %19 = arith.cmpi ne, %18, %c0_i32_9 : i32
    scf.if %19 {
      %c8_i32_43 = arith.constant 8 : i32
      %90 = arith.addi %0, %c8_i32_43 : i32
      %c1_i32_44 = arith.constant 1 : i32
      %c0_i32_45 = arith.constant 0 : i32
      %c0_i32_46 = arith.constant 0 : i32
      %91 = tpu.memref_slice %arg3[%arg0, %90, %c0_i32_45, %c0_i32_46] : memref<2x16x16x128xbf16, #tpu.memory_space<any>> -> memref<1x1x16x128xbf16, #tpu.memory_space<any>>
      %92 = tpu.memref_squeeze %91 : memref<1x1x16x128xbf16, #tpu.memory_space<any>> -> memref<1x16x128xbf16, #tpu.memory_space<any>>
      %c1_i32_47 = arith.constant 1 : i32
      %c0_i32_48 = arith.constant 0 : i32
      %c0_i32_49 = arith.constant 0 : i32
      %93 = tpu.memref_slice %arg7[%c1_i32_47, %c0_i32_48, %c0_i32_49] : memref<2x16x128xbf16, #tpu.memory_space<vmem>> -> memref<1x16x128xbf16, #tpu.memory_space<vmem>>
      %94 = tpu.memref_slice %arg8[%c1_i32_44] : memref<2x!tpu.dma_semaphore, #tpu.memory_space<semaphore_mem>> -> memref<1x!tpu.dma_semaphore, #tpu.memory_space<semaphore_mem>>
      %95 = tpu.memref_squeeze %94 : memref<1x!tpu.dma_semaphore, #tpu.memory_space<semaphore_mem>> -> memref<!tpu.dma_semaphore, #tpu.memory_space<semaphore_mem>>
      tpu.wait_dma2 semaphore(%95 : memref<!tpu.dma_semaphore, #tpu.memory_space<semaphore_mem>>) src(%92 : memref<1x16x128xbf16, #tpu.memory_space<any>>) dst(%93 : memref<1x16x128xbf16, #tpu.memory_space<vmem>>)
    } else {
    }
    %c0 = arith.constant 0 : index
    %c0_10 = arith.constant 0 : index
    %c0_11 = arith.constant 0 : index
    %20 = vector.load %arg7[%c0, %c0_10, %c0_11] : memref<2x16x128xbf16, #tpu.memory_space<vmem>>, vector<1x16x128xbf16>
    %c0_12 = arith.constant 0 : index
    %c0_13 = arith.constant 0 : index
    %c0_14 = arith.constant 0 : index
    %c0_15 = arith.constant 0 : index
    %21 = vector.load %arg2[%c0_12, %c0_13, %c0_14, %c0_15] : memref<1x8x16x128xbf16, #tpu.memory_space<vmem>>, vector<1x8x16x128xbf16>
    %22 = vector.shape_cast %21 : vector<1x8x16x128xbf16> to vector<8x16x128xbf16>
    %c1 = arith.constant 1 : index
    %c0_16 = arith.constant 0 : index
    %c0_17 = arith.constant 0 : index
    %23 = vector.load %arg7[%c1, %c0_16, %c0_17] : memref<2x16x128xbf16, #tpu.memory_space<vmem>>, vector<1x16x128xbf16>
    %24 = tpu.concatenate %20, %22, %23 in 0 : vector<1x16x128xbf16>, vector<8x16x128xbf16>, vector<1x16x128xbf16> -> vector<10x16x128xbf16>
    %25 = vector.shape_cast %24 : vector<10x16x128xbf16> to vector<160x128xbf16>
    %26 = arith.extf %25 : vector<160x128xbf16> to vector<160x128xf32>
    %c1_i32_18 = arith.constant 1 : i32
    %27 = tpu.dynamic_rotate %26 by %c1_i32_18 dim 0 : vector<160x128xf32>, i32 -> vector<160x128xf32>
    %28 = vector.shape_cast %27 : vector<160x128xf32> to vector<10x16x128xf32>
    %c159_i32 = arith.constant 159 : i32
    %29 = tpu.dynamic_rotate %26 by %c159_i32 dim 0 : vector<160x128xf32>, i32 -> vector<160x128xf32>
    %30 = vector.shape_cast %29 : vector<160x128xf32> to vector<10x16x128xf32>
    %31 = tpu.iota {dimensions = array<i32: 1>} : vector<1x16x1xi32>
    %c0_i32_19 = arith.constant 0 : i32
    %32 = vector.broadcast %c0_i32_19 : i32 to vector<1x16x1xi32>
    %33 = arith.cmpi eq, %31, %32 : vector<1x16x1xi32>
    %cst_20 = arith.constant 0.000000e+00 : f32
    %34 = vector.shape_cast %33 : vector<1x16x1xi1> to vector<1x16x1xi1>
    %35 = vector.broadcast %34 : vector<1x16x1xi1> to vector<10x16x128xi1>
    %36 = vector.broadcast %cst_20 : f32 to vector<10x16x128xf32>
    %37 = arith.select %35, %36, %28 : vector<10x16x128xi1>, vector<10x16x128xf32>
    %38 = arith.truncf %37 : vector<10x16x128xf32> to vector<10x16x128xbf16>
    %c15_i32 = arith.constant 15 : i32
    %39 = vector.broadcast %c15_i32 : i32 to vector<1x16x1xi32>
    %40 = arith.cmpi eq, %31, %39 : vector<1x16x1xi32>
    %cst_21 = arith.constant 0.000000e+00 : f32
    %41 = vector.shape_cast %40 : vector<1x16x1xi1> to vector<1x16x1xi1>
    %42 = vector.broadcast %41 : vector<1x16x1xi1> to vector<10x16x128xi1>
    %43 = vector.broadcast %cst_21 : f32 to vector<10x16x128xf32>
    %44 = arith.select %42, %43, %30 : vector<10x16x128xi1>, vector<10x16x128xf32>
    %45 = arith.truncf %44 : vector<10x16x128xf32> to vector<10x16x128xbf16>
    %cst_22 = arith.constant 0.000000e+00 : f32
    %46 = vector.broadcast %cst_22 : f32 to vector<128x128xf32>
    %47 = vector.extract_strided_slice %38 {offsets = [0, 0, 0], sizes = [8, 16, 128], strides = [1, 1, 1]} : vector<10x16x128xbf16> to vector<8x16x128xbf16>
    %48 = vector.extract_strided_slice %24 {offsets = [0, 0, 0], sizes = [8, 16, 128], strides = [1, 1, 1]} : vector<10x16x128xbf16> to vector<8x16x128xbf16>
    %49 = vector.extract_strided_slice %45 {offsets = [0, 0, 0], sizes = [8, 16, 128], strides = [1, 1, 1]} : vector<10x16x128xbf16> to vector<8x16x128xbf16>
    %50 = tpu.concatenate %47, %48, %49 in 2 : vector<8x16x128xbf16>, vector<8x16x128xbf16>, vector<8x16x128xbf16> -> vector<8x16x384xbf16>
    %51 = vector.shape_cast %50 : vector<8x16x384xbf16> to vector<128x384xbf16>
    %c0_23 = arith.constant 0 : index
    %c0_24 = arith.constant 0 : index
    %c0_25 = arith.constant 0 : index
    %52 = vector.load %arg4[%c0_23, %c0_24, %c0_25] : memref<3x384x128xbf16, #tpu.memory_space<vmem>>, vector<1x384x128xbf16>
    %53 = vector.shape_cast %52 : vector<1x384x128xbf16> to vector<384x128xbf16>
    %cst_26 = arith.constant dense<0.000000e+00> : vector<128x128xf32>
    %54 = tpu.matmul %51, %53, %cst_26 {dimension_numbers = #tpu.dot_dimension_numbers<[1], [0], [0], [1], [0, 0, 1, 1], [], []>} : vector<128x384xbf16>, vector<384x128xbf16>, vector<128x128xf32> -> vector<128x128xf32>
    %55 = arith.addf %46, %54 : vector<128x128xf32>
    %56 = vector.extract_strided_slice %38 {offsets = [1, 0, 0], sizes = [8, 16, 128], strides = [1, 1, 1]} : vector<10x16x128xbf16> to vector<8x16x128xbf16>
    %57 = vector.extract_strided_slice %24 {offsets = [1, 0, 0], sizes = [8, 16, 128], strides = [1, 1, 1]} : vector<10x16x128xbf16> to vector<8x16x128xbf16>
    %58 = vector.extract_strided_slice %45 {offsets = [1, 0, 0], sizes = [8, 16, 128], strides = [1, 1, 1]} : vector<10x16x128xbf16> to vector<8x16x128xbf16>
    %59 = tpu.concatenate %56, %57, %58 in 2 : vector<8x16x128xbf16>, vector<8x16x128xbf16>, vector<8x16x128xbf16> -> vector<8x16x384xbf16>
    %60 = vector.shape_cast %59 : vector<8x16x384xbf16> to vector<128x384xbf16>
    %c1_27 = arith.constant 1 : index
    %c0_28 = arith.constant 0 : index
    %c0_29 = arith.constant 0 : index
    %61 = vector.load %arg4[%c1_27, %c0_28, %c0_29] : memref<3x384x128xbf16, #tpu.memory_space<vmem>>, vector<1x384x128xbf16>
    %62 = vector.shape_cast %61 : vector<1x384x128xbf16> to vector<384x128xbf16>
    %cst_30 = arith.constant dense<0.000000e+00> : vector<128x128xf32>
    %63 = tpu.matmul %60, %62, %cst_30 {dimension_numbers = #tpu.dot_dimension_numbers<[1], [0], [0], [1], [0, 0, 1, 1], [], []>} : vector<128x384xbf16>, vector<384x128xbf16>, vector<128x128xf32> -> vector<128x128xf32>
    %64 = arith.addf %55, %63 : vector<128x128xf32>
    %65 = vector.extract_strided_slice %38 {offsets = [2, 0, 0], sizes = [8, 16, 128], strides = [1, 1, 1]} : vector<10x16x128xbf16> to vector<8x16x128xbf16>
    %66 = vector.extract_strided_slice %24 {offsets = [2, 0, 0], sizes = [8, 16, 128], strides = [1, 1, 1]} : vector<10x16x128xbf16> to vector<8x16x128xbf16>
    %67 = vector.extract_strided_slice %45 {offsets = [2, 0, 0], sizes = [8, 16, 128], strides = [1, 1, 1]} : vector<10x16x128xbf16> to vector<8x16x128xbf16>
    %68 = tpu.concatenate %65, %66, %67 in 2 : vector<8x16x128xbf16>, vector<8x16x128xbf16>, vector<8x16x128xbf16> -> vector<8x16x384xbf16>
    %69 = vector.shape_cast %68 : vector<8x16x384xbf16> to vector<128x384xbf16>
    %c2 = arith.constant 2 : index
    %c0_31 = arith.constant 0 : index
    %c0_32 = arith.constant 0 : index
    %70 = vector.load %arg4[%c2, %c0_31, %c0_32] : memref<3x384x128xbf16, #tpu.memory_space<vmem>>, vector<1x384x128xbf16>
    %71 = vector.shape_cast %70 : vector<1x384x128xbf16> to vector<384x128xbf16>
    %cst_33 = arith.constant dense<0.000000e+00> : vector<128x128xf32>
    %72 = tpu.matmul %69, %71, %cst_33 {dimension_numbers = #tpu.dot_dimension_numbers<[1], [0], [0], [1], [0, 0, 1, 1], [], []>} : vector<128x384xbf16>, vector<384x128xbf16>, vector<128x128xf32> -> vector<128x128xf32>
    %73 = arith.addf %64, %72 : vector<128x128xf32>
    %74 = vector.shape_cast %73 : vector<128x128xf32> to vector<8x16x128xf32>
    %c0_34 = arith.constant 0 : index
    %c0_35 = arith.constant 0 : index
    %75 = vector.load %arg5[%c0_34, %c0_35] : memref<1x128xf32, #tpu.memory_space<vmem>>, vector<1x128xf32>
    %76 = vector.shape_cast %75 : vector<1x128xf32> to vector<1x1x128xf32>
    %77 = vector.broadcast %76 : vector<1x1x128xf32> to vector<8x16x128xf32>
    %78 = arith.addf %74, %77 : vector<8x16x128xf32>
    %cst_36 = arith.constant 0.000000e+00 : f32
    %79 = vector.broadcast %cst_36 : f32 to vector<8x16x128xf32>
    %80 = arith.subf %79, %78 : vector<8x16x128xf32>
    %81 = math.exp %80 : vector<8x16x128xf32>
    %cst_37 = arith.constant 1.000000e+00 : f32
    %82 = vector.broadcast %cst_37 : f32 to vector<8x16x128xf32>
    %83 = arith.addf %82, %81 : vector<8x16x128xf32>
    %cst_38 = arith.constant 1.000000e+00 : f32
    %84 = vector.broadcast %cst_38 : f32 to vector<8x16x128xf32>
    %85 = arith.divf %84, %83 : vector<8x16x128xf32>
    %86 = arith.truncf %85 : vector<8x16x128xf32> to vector<8x16x128xbf16>
    %c0_39 = arith.constant 0 : index
    %c0_40 = arith.constant 0 : index
    %c0_41 = arith.constant 0 : index
    %c0_42 = arith.constant 0 : index
    %87 = vector.load %arg6[%c0_39, %c0_40, %c0_41, %c0_42] : memref<1x8x16x128xbf16, #tpu.memory_space<vmem>>, vector<1x8x16x128xbf16>
    %88 = vector.shape_cast %87 : vector<1x8x16x128xbf16> to vector<8x16x128xbf16>
    %89 = vector.shape_cast %86 : vector<8x16x128xbf16> to vector<1x8x16x128xbf16>
    tpu.vector_store %arg6[%c0_39, %c0_40, %c0_41, %c0_42], %89 {strides = array<i32>} : memref<1x8x16x128xbf16, #tpu.memory_space<vmem>>, vector<1x8x16x128xbf16>,
    return
  }
  func.func @transform_0(%arg0: i32, %arg1: i32) -> (i32, i32, i32, i32) {
    %c0_i32 = arith.constant 0 : i32
    %c0_i32_0 = arith.constant 0 : i32
    %c0_i32_1 = arith.constant 0 : i32
    return %arg0, %arg1, %c0_i32, %c0_i32_0 : i32, i32, i32, i32
  }
  func.func @transform_2(%arg0: i32, %arg1: i32) -> (i32, i32, i32) {
    %c0_i32 = arith.constant 0 : i32
    %c0_i32_0 = arith.constant 0 : i32
    %c0_i32_1 = arith.constant 0 : i32
    %c0_i32_2 = arith.constant 0 : i32
    return %c0_i32, %c0_i32_0, %c0_i32_1 : i32, i32, i32
  }
  func.func @transform_3(%arg0: i32, %arg1: i32) -> (i32, i32) {
    %c0_i32 = arith.constant 0 : i32
    %c0_i32_0 = arith.constant 0 : i32
    %c0_i32_1 = arith.constant 0 : i32
    return %c0_i32, %c0_i32_0 : i32, i32
  }
  func.func @transform_4(%arg0: i32, %arg1: i32) -> (i32, i32, i32, i32) {
    %c0_i32 = arith.constant 0 : i32
    %c0_i32_0 = arith.constant 0 : i32
    %c0_i32_1 = arith.constant 0 : i32
    return %arg0, %arg1, %c0_i32, %c0_i32_0 : i32, i32, i32, i32
  }
}

</mosaic_0001>

<llo_original>
// kernel: edsr_forward.5
$region0: #{edsr_forward.5}
  #allocation0 [shape = 'u32[]', space=smem, size = 0x4, offset = 0x4, fixed_abs, tag = 'smem constant byte address 0x4 - core index']
  #allocation1 [shape = 'u32[144,128]{1,0:T(1,128)}', space=vmem, size = 0x12000, scoped, tag = 'internal scratch']
  #allocation2 [shape = 'bf16[2,16,128]{2,1,0:T(16,128)(2,1)}', space=vmem, size = 0x2000, scoped, tag = 'scratch operand']
  #allocation3 [shape = 's32[2]{0}', space=sflag, size = 0x8, scoped, tag = 'scratch operand']
  #allocation11 [shape = 's32[]', space=sflag, size = 0x4, offset = 0, fixed_abs, tag = 'sflag constant byte address 0x0 - dummy sync flag']
  #allocation12 [shape = 's32[]', space=sflag, size = 0x4, offset = 0, fixed_abs, tag = 'sflag constant byte address 0x0 - dummy sync flag']
  #allocation13 [shape = 'u32[]', space=smem, size = 0x4, offset = 0x44, fixed_abs, tag = 'smem constant byte address 0x44 - assertion arg 0']
  #allocation14 [shape = 'u32[]', space=smem, size = 0x4, offset = 0x48, fixed_abs, tag = 'smem constant byte address 0x48 - assertion arg 1']
  #allocation15 [shape = 's32[]', space=sflag, size = 0x4, offset = 0, fixed_abs, tag = 'sflag constant byte address 0x0 - dummy sync flag']
  #allocation16 [shape = 's32[]', space=sflag, size = 0x4, offset = 0, fixed_abs, tag = 'sflag constant byte address 0x0 - dummy sync flag']
  %s0 = inlined_call_operand.hbm [shape: bf16[2,16,16,128], index: 0, kind: input, shape index: {}, may-alias: {0,1}]
  %s1 = inlined_call_operand.hbm [shape: bf16[2,16,16,128], index: 1, kind: input, shape index: {}, may-alias: {0,1}]
  %s2 = inlined_call_operand.hbm [shape: bf16[3,384,128], index: 2, kind: input, shape index: {}]
  %s3 = inlined_call_operand.hbm [shape: f32[1,128], index: 3, kind: input, shape index: {}]
  %s4 = inlined_call_operand.hbm [shape: bf16[2,16,16,128], index: 4, kind: output, shape index: {}]
  %s5 = sld [smem:[#allocation0]]
  $region89: #{edsr_forward.5} parent=0
    _
  %s7 = ssub.s32 1, %s5
  %s8 = scalar_select 0, %s7, %s5
  $region1: #{edsr_forward.5} parent=0
    #allocation4 [shape = 'u8[65536]{0}', space=vmem, size = 0x10000, scoped, tag = 'input window, operand 0']
    #allocation5 [shape = 's32[2]{0}', space=sflag, size = 0x8, scoped, tag = 'scoped memory for edsr_forward.5']
    #allocation6 [shape = 's32[2]{0}', space=sflag, size = 0x8, scoped, tag = 'scoped memory for edsr_forward.5']
    #allocation7 [shape = 'u8[294912]{0}', space=vmem, size = 0x48000, scoped, tag = 'input window, operand 2, single buffered']
    #allocation8 [shape = 's32[1]{0}', space=sflag, size = 0x4, scoped, tag = 'scoped memory for edsr_forward.5']
    #allocation9 [shape = 'u8[512]{0}', space=vmem, size = 0x400, scoped, tag = 'input window, operand 3, single buffered']
    #allocation10 [shape = 'u8[65536]{0}', space=vmem, size = 0x10000, scoped, tag = 'output window, operand 0']
    %9 = vsyncpa [#allocation5], 0
    %s10 = scalar_lea.sflag [#allocation5], 1
    %11 = vsyncpa %s10, 0
    %12 = vsyncpa [#allocation8], 0
    %13 = vsyncpa [#allocation6], 0
    %s14 = scalar_lea.sflag [#allocation6], 1
    %15 = vsyncpa %s14, 0
    loop: start=0, step=1, limit=6
    $region2: #{edsr_forward.5} parent=1 // loop_pre_header
      _
    $region3: #{edsr_forward.5} parent=1 // loop_header
      %s17 = sphi 0, %s21
      %p18 = scmp.ge.s32.totalorder %s17, 6
      %s24 = sphi 0, %s36
      %s25 = sphi 0, %s32
      %s26 = sphi 0, %s24
      %s27 = sphi 0, %s25
      %s28 = sphi 0, %s26
      %s29 = sphi 0, %s27
      %s41 = sphi 0, %s43
      %s44 = sphi 0, %s41
      %s45 = sphi 0, %s44
      %s61 = sphi 0, %s45
      %s65 = sphi 0, %s65
      %s67 = sphi 0, %s65
      %s68 = sphi 0, %s67
      %s82 = sphi 0, %s68
      %s86 = sphi 0, %s86
      %s88 = sphi 0, %s86
      %s89 = sphi 0, %s88
      %s103 = sphi 0, %s89
      %s111 = sphi 0, %s113
      %s114 = sphi 0, %s111
      %s115 = sphi 0, %s114
      %s131 = sphi 0, %s115
    $region4: #{edsr_forward.5} parent=1 // loop_header_branch
      %20 = sbr.rel (%p18) target = $region8
    $region5: #{edsr_forward.5} parent=1 // loop_body
      %s22 = ssub.s32 %s17, 1
      %s23 = ssub.s32 %s17, 2
      %s30 = sadd.s32 1, %s25
      %p31 = scmp.ge.s32.totalorder %s30, 2
      %s32 = scalar_select %p31, 0, %s30
      %s33 = sadd.s32 1, %s24
      %s34 = scalar_select %p31, %s33, %s24
      %p35 = scmp.ge.s32.totalorder %s34, 2
      %s36 = scalar_select %p35, 0, %s34
      %s37 = ssub.s32 %s24, %s36
      %s38 = ssub.s32 %s25, %s32
      %s39 = sor.u32 %s37, %s38
      %p40 = scmp.eq.s32.totalorder %s39, 0
      %s42 = sadd.s32 %s41, 1
      %s43 = scalar_select %p40, %s41, %s42
      %p46 = pneg %p40
      %p47 = scmp.eq.s32.totalorder %s17, 3
      %p48 = por %p46, %p47
      %p49 = scmp.ne.s32.totalorder %s41, %s44
      %p50 = scmp.eq.s32.totalorder %s17, 0
      %p51 = por %p49, %p50
      %p52 = scmp.ne.s32.totalorder %s41, %s44
      %p53 = scmp.eq.s32.totalorder %s22, 3
      %p54 = por %p52, %p53
      %p55 = scmp.ne.s32.totalorder %s44, %s45
      %p56 = scmp.eq.s32.totalorder %s22, 0
      %p57 = por %p55, %p56
      %p58 = scmp.ne.s32.totalorder %s44, %s45
      %p59 = scmp.eq.s32.totalorder %s23, 3
      %p60 = por %p58, %p59
      %p62 = scmp.ne.s32.totalorder %s45, %s61
      %p63 = scmp.eq.s32.totalorder %s23, 0
      %p64 = por %p62, %p63
      %s66 = sadd.s32 %s65, 1
      %p69 = scmp.eq.s32.totalorder %s17, 3
      %p70 = scmp.ne.s32.totalorder %s65, %s67
      %p71 = scmp.eq.s32.totalorder %s17, 0
      %p72 = por %p70, %p71
      %p73 = scmp.ne.s32.totalorder %s65, %s67
      %p74 = scmp.eq.s32.totalorder %s22, 3
      %p75 = por %p73, %p74
      %p76 = scmp.ne.s32.totalorder %s67, %s68
      %p77 = scmp.eq.s32.totalorder %s22, 0
      %p78 = por %p76, %p77
      %p79 = scmp.ne.s32.totalorder %s67, %s68
      %p80 = scmp.eq.s32.totalorder %s23, 3
      %p81 = por %p79, %p80
      %p83 = scmp.ne.s32.totalorder %s68, %s82
      %p84 = scmp.eq.s32.totalorder %s23, 0
      %p85 = por %p83, %p84
      %s87 = sadd.s32 %s86, 1
      %p90 = scmp.eq.s32.totalorder %s17, 3
      %p91 = scmp.ne.s32.totalorder %s86, %s88
      %p92 = scmp.eq.s32.totalorder %s17, 0
      %p93 = por %p91, %p92
      %p94 = scmp.ne.s32.totalorder %s86, %s88
      %p95 = scmp.eq.s32.totalorder %s22, 3
      %p96 = por %p94, %p95
      %p97 = scmp.ne.s32.totalorder %s88, %s89
      %p98 = scmp.eq.s32.totalorder %s22, 0
      %p99 = por %p97, %p98
      %p100 = scmp.ne.s32.totalorder %s88, %s89
      %p101 = scmp.eq.s32.totalorder %s23, 3
      %p102 = por %p100, %p101
      %p104 = scmp.ne.s32.totalorder %s89, %s103
      %p105 = scmp.eq.s32.totalorder %s23, 0
      %p106 = por %p104, %p105
      %s107 = ssub.s32 %s24, %s36
      %s108 = ssub.s32 %s25, %s32
      %s109 = sor.u32 %s107, %s108
      %p110 = scmp.eq.s32.totalorder %s109, 0
      %s112 = sadd.s32 %s111, 1
      %s113 = scalar_select %p110, %s111, %s112
      %p116 = pneg %p110
      %p117 = scmp.eq.s32.totalorder %s17, 3
      %p118 = por %p116, %p117
      %p119 = scmp.ne.s32.totalorder %s111, %s114
      %p120 = scmp.eq.s32.totalorder %s17, 0
      %p121 = por %p119, %p120
      %p122 = scmp.ne.s32.totalorder %s111, %s114
      %p123 = scmp.eq.s32.totalorder %s22, 3
      %p124 = por %p122, %p123
      %p125 = scmp.ne.s32.totalorder %s114, %s115
      %p126 = scmp.eq.s32.totalorder %s22, 0
      %p127 = por %p125, %p126
      %p128 = scmp.ne.s32.totalorder %s114, %s115
      %p129 = scmp.eq.s32.totalorder %s23, 3
      %p130 = por %p128, %p129
      %p132 = scmp.ne.s32.totalorder %s115, %s131
      %p133 = scmp.eq.s32.totalorder %s23, 0
      %p134 = por %p132, %p133
      %p135 = scmp.le.s32.totalorder 1, %s17
      %p136 = scmp.lt.s32.totalorder %s17, 5
      %p137 = pnand %p135, %p136
      %p138 = pneg %p137
      // Predicated region
      $region9: #{edsr_forward.5} parent=5 // pred_check
        _
      $region10: #{edsr_forward.5} parent=5 // pred_check_branch
        %140 = sbr.rel (%p137) target = $region12
      $region11: #{edsr_forward.5} parent=5 // pred_region
        %s141 = ssub.s32 %s17, 1
        // Predicated region
        $region13: #{edsr_forward.5} parent=11 // pred_check
          %p142 = pneg %p78
        $region14: #{edsr_forward.5} parent=11 // pred_check_branch
          %144 = sbr.rel (%p142) target = $region16
        $region15: #{edsr_forward.5} parent=11 // pred_region
          %s146 = ssub.s32 9216, 9216
          %147 = vsyncadd [#allocation8], %s146
          %s148 = sshll.u32 [#allocation7], 4
          %s149 = int_to_ptr.vmem [resolvable:$true] %s148
          %154 = dma.hbm_to_vmem [thread:$0]  %s2, 9216, %s149, [#allocation8], 64, 64, 4
        $region16: #{edsr_forward.5} parent=11 // pred_fallthru
          _
        // Predicated region
        $region17: #{edsr_forward.5} parent=11 // pred_check
          %p155 = pneg %p99
        $region18: #{edsr_forward.5} parent=11 // pred_check_branch
          %157 = sbr.rel (%p155) target = $region20
        $region19: #{edsr_forward.5} parent=11 // pred_region
          %s159 = ssub.s32 16, 16
          %160 = vsyncadd [#allocation8], %s159
          %s162 = sshll.u32 [#allocation9], 4
          %s163 = int_to_ptr.vmem [resolvable:$true] %s162
          %165 = dma.hbm_to_vmem [thread:$0]  %s3, 16, %s163, [#allocation8]
        $region20: #{edsr_forward.5} parent=11 // pred_fallthru
          _
      $region12: #{edsr_forward.5} parent=5 // pred_fallthru
        _
      %p166 = scmp.lt.s32.totalorder %s17, 4
      // Predicated region
      $region21: #{edsr_forward.5} parent=5 // pred_check
        %p167 = pneg %p166
      $region22: #{edsr_forward.5} parent=5 // pred_check_branch
        %169 = sbr.rel (%p167) target = $region24
      $region23: #{edsr_forward.5} parent=5 // pred_region
        // Predicated region
        $region25: #{edsr_forward.5} parent=23 // pred_check
          %p170 = pneg %p51
        $region26: #{edsr_forward.5} parent=23 // pred_check_branch
          %172 = sbr.rel (%p170) target = $region28
        $region27: #{edsr_forward.5} parent=23 // pred_region
          %s173 = sand.u32 %s41, 1
          %s174 = scalar_lea.sflag [#allocation5], %s173
          %s175 = sand.u32 %s41, 1
          %s176 = smul.addr %s175, 64
          %s177 = scalar_lea.vmem [#allocation4], %s176
          %s178 = smul.u32 8, %s25
          %s180 = ssub.s32 1024, 1024
          %181 = vsyncadd %s174, %s180
          %s182 = smul.addr %s178, 2
          %s183 = smul.addr %s24, 32
          %s184 = sadd.s32 %s182, %s183
          %s185 = smul.addr %s184, 64
          %s186 = scalar_lea.hbm %s0, %s185
          %s187 = sshll.u32 %s177, 4
          %s188 = int_to_ptr.vmem [resolvable:$true] %s187
          %193 = dma.hbm_to_vmem [thread:$0]  %s186, 1024, %s188, %s174, 64, 64, 4
        $region28: #{edsr_forward.5} parent=23 // pred_fallthru
          _
      $region24: #{edsr_forward.5} parent=5 // pred_fallthru
        _
      %p194 = scmp.le.s32.totalorder 1, %s17
      %p195 = scmp.lt.s32.totalorder %s17, 5
      %p196 = pnand %p194, %p195
      %p197 = pneg %p196
      // Predicated region
      $region29: #{edsr_forward.5} parent=5 // pred_check
        _
      $region30: #{edsr_forward.5} parent=5 // pred_check_branch
        %199 = sbr.rel (%p196) target = $region32
      $region31: #{edsr_forward.5} parent=5 // pred_region
        %s200 = ssub.s32 %s17, 1
        %s201 = sand.u32 %s44, 1
        %s202 = scalar_lea.sflag [#allocation5], %s201
        %s203 = sand.u32 %s44, 1
        %s204 = smul.addr %s203, 64
        %s205 = scalar_lea.vmem [#allocation4], %s204
        // Predicated region
        $region33: #{edsr_forward.5} parent=31 // pred_check
          %p206 = pneg %p57
        $region34: #{edsr_forward.5} parent=31 // pred_check_branch
          %208 = sbr.rel (%p206) target = $region36
        $region35: #{edsr_forward.5} parent=31 // pred_region
          %209 = dma.done %s202, 1024
        $region36: #{edsr_forward.5} parent=31 // pred_fallthru
          _
        // Predicated region
        $region37: #{edsr_forward.5} parent=31 // pred_check
          %p210 = pneg %p78
        $region38: #{edsr_forward.5} parent=31 // pred_check_branch
          %212 = sbr.rel (%p210) target = $region40
        $region39: #{edsr_forward.5} parent=31 // pred_region
          %213 = dma.done [#allocation8], 9216
        $region40: #{edsr_forward.5} parent=31 // pred_fallthru
          _
        // Predicated region
        $region41: #{edsr_forward.5} parent=31 // pred_check
          %p214 = pneg %p99
        $region42: #{edsr_forward.5} parent=31 // pred_check_branch
          %216 = sbr.rel (%p214) target = $region44
        $region43: #{edsr_forward.5} parent=31 // pred_region
          %217 = dma.done [#allocation8], 16
        $region44: #{edsr_forward.5} parent=31 // pred_fallthru
          _
        %s218 = sand.u32 %s44, 1
        %s219 = scalar_lea.sflag [#allocation5], %s218
        %s220 = sand.u32 %s44, 1
        %s221 = smul.addr %s220, 64
        %s222 = scalar_lea.vmem [#allocation4], %s221
        %p223 = pneg %p57
        %p224 = pneg %p54
        %p225 = pneg %p78
        %p226 = pneg %p75
        %p227 = pneg %p99
        %p228 = pneg %p96
        %p229 = pneg %p127
        %p230 = pneg %p124
        %s231 = sand.u32 %s114, 1
        %s232 = scalar_lea.sflag [#allocation6], %s231
        %s233 = sand.u32 %s114, 1
        %s234 = smul.addr %s233, 64
        %s235 = scalar_lea.vmem [#allocation10], %s234
        %s236 = smul.u32 8, %s27
        %s237 = smul.u32 8, %s27
        %s239 = smul.u32 %s27, 8
        %p240 = scmp.gt.s32.totalorder %s27, 0
        // Predicated region
        $region45: #{edsr_forward.5} parent=31 // pred_check
          %p241 = pneg %p240
        $region46: #{edsr_forward.5} parent=31 // pred_check_branch
          %243 = sbr.rel (%p241) target = $region48
        $region47: #{edsr_forward.5} parent=31 // pred_region
          %s244 = ssub.s32 %s239, 1
          %s245 = smul.u32 %s244, 2
          %s246 = smul.u32 %s26, 32
          %s247 = sadd.s32 %s245, %s246
          %s248 = smul.addr %s247, 64
          %s249 = scalar_lea.hbm %s1, %s248
          // Predicated region
          $region49: #{edsr_forward.5} parent=47 // pred_check
            _
          $region50: #{edsr_forward.5} parent=47 // pred_check_branch
            %251 = sbr.rel target = $region52
          $region51: #{edsr_forward.5} parent=47 // pred_region
            %252 = sst [smem:[#allocation13]] [#allocation12]
            %253 = sst [smem:[#allocation14]] [#allocation11]
          $region52: #{edsr_forward.5} parent=47 // pred_fallthru
            _
          %255 = shalt.err (0)
          %s257 = sshll.u32 [#allocation2], 4
          %s258 = int_to_ptr.vmem [resolvable:$true] %s257
          %260 = dma.hbm_to_vmem [thread:$0]  %s249, 128, %s258, [#allocation3]
        $region48: #{edsr_forward.5} parent=31 // pred_fallthru
          _
        %p261 = scmp.eq.s32.totalorder %s27, 0
        // Predicated region
        $region53: #{edsr_forward.5} parent=31 // pred_check
          %p262 = pneg %p261
        $region54: #{edsr_forward.5} parent=31 // pred_check_branch
          %264 = sbr.rel (%p262) target = $region56
        $region55: #{edsr_forward.5} parent=31 // pred_region
          %265 = vst [vmem:[#allocation2] sm:$0xff] 0
        $region56: #{edsr_forward.5} parent=31 // pred_fallthru
          _
        %p266 = scmp.lt.s32.totalorder %s27, 1
        // Predicated region
        $region57: #{edsr_forward.5} parent=31 // pred_check
          %p267 = pneg %p266
        $region58: #{edsr_forward.5} parent=31 // pred_check_branch
          %269 = sbr.rel (%p267) target = $region60
        $region59: #{edsr_forward.5} parent=31 // pred_region
          %s270 = sadd.s32 %s239, 8
          %s271 = smul.u32 %s270, 2
          %s272 = smul.u32 %s26, 32
          %s273 = sadd.s32 %s271, %s272
          %s274 = smul.addr %s273, 64
          %s275 = scalar_lea.hbm %s1, %s274
          %s276 = scalar_lea.vmem [#allocation2], 8
          %s277 = scalar_lea.sflag [#allocation3], 1
          // Predicated region
          $region61: #{edsr_forward.5} parent=59 // pred_check
            _
          $region62: #{edsr_forward.5} parent=59 // pred_check_branch
            %279 = sbr.rel target = $region64
          $region63: #{edsr_forward.5} parent=59 // pred_region
            %280 = sst [smem:[#allocation13]] [#allocation16]
            %281 = sst [smem:[#allocation14]] [#allocation15]
          $region64: #{edsr_forward.5} parent=59 // pred_fallthru
            _
          %283 = shalt.err (0)
          %s285 = sshll.u32 %s276, 4
          %s286 = int_to_ptr.vmem [resolvable:$true] %s285
          %288 = dma.hbm_to_vmem [thread:$0]  %s275, 128, %s286, %s277
        $region60: #{edsr_forward.5} parent=31 // pred_fallthru
          _
        %p289 = scmp.eq.s32.totalorder %s27, 1
        // Predicated region
        $region65: #{edsr_forward.5} parent=31 // pred_check
          %p290 = pneg %p289
        $region66: #{edsr_forward.5} parent=31 // pred_check_branch
          %292 = sbr.rel (%p290) target = $region68
        $region67: #{edsr_forward.5} parent=31 // pred_region
          %s293 = scalar_lea.vmem [#allocation2], 8
          %294 = vst [vmem:[%s293] sm:$0xff] 0
        $region68: #{edsr_forward.5} parent=31 // pred_fallthru
          _
        // Predicated region
        $region69: #{edsr_forward.5} parent=31 // pred_check
          %p295 = pneg %p240
        $region70: #{edsr_forward.5} parent=31 // pred_check_branch
          %297 = sbr.rel (%p295) target = $region72
        $region71: #{edsr_forward.5} parent=31 // pred_region
          %s298 = smul.u32 4, 1
          %s299 = smul.u32 %s298, 2
          %s300 = smul.u32 %s299, 1
          %s301 = sshll.u32 %s300, 4
          %302 = dma.done [#allocation3], %s301
        $region72: #{edsr_forward.5} parent=31 // pred_fallthru
          _
        // Predicated region
        $region73: #{edsr_forward.5} parent=31 // pred_check
          %p303 = pneg %p266
        $region74: #{edsr_forward.5} parent=31 // pred_check_branch
          %305 = sbr.rel (%p303) target = $region76
        $region75: #{edsr_forward.5} parent=31 // pred_region
          %s306 = scalar_lea.sflag [#allocation3], 1
          %s307 = smul.u32 4, 1
          %s308 = smul.u32 %s307, 2
          %s309 = smul.u32 %s308, 1
          %s310 = sshll.u32 %s309, 4
          %311 = dma.done %s306, %s310
        $region76: #{edsr_forward.5} parent=31 // pred_fallthru
          _
        %v312 = vld [vmem:[#allocation2] sm:$0xff]
        %v313 = vld [vmem:[%s205] sm:$0xf]
        %v314 = vld [vmem:[%s205 + $0x4] sm:$0xf]
        %v315 = vld [vmem:[%s205 + $0x8] sm:$0xf]
        %v316 = vld [vmem:[%s205 + $0xc] sm:$0xf]
        %v317 = vld [vmem:[%s205 + $0x10] sm:$0xf]
        %v318 = vld [vmem:[%s205 + $0x14] sm:$0xf]
        %v319 = vld [vmem:[%s205 + $0x18] sm:$0xf]
        %v320 = vld [vmem:[%s205 + $0x1c] sm:$0xf]
        %v321 = vld [vmem:[%s205 + $0x20] sm:$0xf]
        %v322 = vld [vmem:[%s205 + $0x24] sm:$0xf]
        %v323 = vld [vmem:[%s205 + $0x28] sm:$0xf]
        %v324 = vld [vmem:[%s205 + $0x2c] sm:$0xf]
        %v325 = vld [vmem:[%s205 + $0x30] sm:$0xf]
        %v326 = vld [vmem:[%s205 + $0x34] sm:$0xf]
        %v327 = vld [vmem:[%s205 + $0x38] sm:$0xf]
        %v328 = vld [vmem:[%s205 + $0x3c] sm:$0xf]
        %s329 = scalar_lea.vmem [#allocation2], 8
        %v330 = vld [vmem:[%s329] sm:$0xff]
        %v347 = vunpack.c.l.b16 %v313
        %v348 = vunpack.c.l.b16 %v314
        %v349 = vunpack.c.l.b16 %v315
        %v350 = vunpack.c.l.b16 %v316
        %v351 = vunpack.c.l.b16 %v317
        %v352 = vunpack.c.l.b16 %v318
        %v353 = vunpack.c.l.b16 %v319
        %v354 = vunpack.c.l.b16 %v320
        %v355 = vunpack.c.l.b16 %v321
        %v356 = vunpack.c.l.b16 %v322
        %v357 = vunpack.c.l.b16 %v323
        %v358 = vunpack.c.l.b16 %v324
        %v359 = vunpack.c.l.b16 %v325
        %v360 = vunpack.c.l.b16 %v326
        %v361 = vunpack.c.l.b16 %v327
        %v362 = vunpack.c.l.b16 %v328
        %v363 = vpack.c.b16 %v348, %v347
        %v364 = vpack.c.b16 %v350, %v349
        %v365 = vpack.c.b16 %v352, %v351
        %v366 = vpack.c.b16 %v354, %v353
        %v367 = vpack.c.b16 %v356, %v355
        %v368 = vpack.c.b16 %v358, %v357
        %v369 = vpack.c.b16 %v360, %v359
        %v370 = vpack.c.b16 %v362, %v361
        %v379 = vunpack.c.l.bf16 %v312
        %v380 = vunpack.c.h.bf16 %v312
        %v381 = vunpack.c.l.bf16 %v363
        %v382 = vunpack.c.h.bf16 %v363
        %v383 = vunpack.c.l.bf16 %v364
        %v384 = vunpack.c.h.bf16 %v364
        %v385 = vunpack.c.l.bf16 %v365
        %v386 = vunpack.c.h.bf16 %v365
        %v387 = vunpack.c.l.bf16 %v366
        %v388 = vunpack.c.h.bf16 %v366
        %v389 = vunpack.c.l.bf16 %v367
        %v390 = vunpack.c.h.bf16 %v367
        %v391 = vunpack.c.l.bf16 %v368
        %v392 = vunpack.c.h.bf16 %v368
        %v393 = vunpack.c.l.bf16 %v369
        %v394 = vunpack.c.h.bf16 %v369
        %v395 = vunpack.c.l.bf16 %v370
        %v396 = vunpack.c.h.bf16 %v370
        %v397 = vunpack.c.l.bf16 %v330
        %v398 = vunpack.c.h.bf16 %v330
        %v399 = vrot.slane %v379, 7
        %v400 = vrot.slane %v380, 7
        %v401 = vrot.slane %v381, 7
        %v402 = vrot.slane %v382, 7
        %v403 = vrot.slane %v383, 7
        %v404 = vrot.slane %v384, 7
        %v405 = vrot.slane %v385, 7
        %v406 = vrot.slane %v386, 7
        %v407 = vrot.slane %v387, 7
        %v408 = vrot.slane %v388, 7
        %v409 = vrot.slane %v389, 7
        %v410 = vrot.slane %v390, 7
        %v411 = vrot.slane %v391, 7
        %v412 = vrot.slane %v392, 7
        %v413 = vrot.slane %v393, 7
        %v414 = vrot.slane %v394, 7
        %v415 = vrot.slane %v395, 7
        %v416 = vrot.slane %v396, 7
        %v417 = vrot.slane %v397, 7
        %v418 = vrot.slane %v398, 7
        %v419 = vlaneseq
        %v420 = vshrl.u32 %v419, 7
        %vm421 = vcmp.lt.s32.totalorder %v420, 1
        %v422 = vsel %vm421, %v417, %v418
        %v423 = vsel %vm421, %v416, %v417
        %v424 = vsel %vm421, %v415, %v416
        %v425 = vsel %vm421, %v414, %v415
        %v426 = vsel %vm421, %v413, %v414
        %v427 = vsel %vm421, %v412, %v413
        %v428 = vsel %vm421, %v411, %v412
        %v429 = vsel %vm421, %v410, %v411
        %v430 = vsel %vm421, %v409, %v410
        %v431 = vsel %vm421, %v408, %v409
        %v432 = vsel %vm421, %v407, %v408
        %v433 = vsel %vm421, %v406, %v407
        %v434 = vsel %vm421, %v405, %v406
        %v435 = vsel %vm421, %v404, %v405
        %v436 = vsel %vm421, %v403, %v404
        %v437 = vsel %vm421, %v402, %v403
        %v438 = vsel %vm421, %v401, %v402
        %v439 = vsel %vm421, %v400, %v401
        %v440 = vsel %vm421, %v399, %v400
        %v441 = vsel %vm421, %v418, %v399
        %v442 = vrot.slane %v379, 1
        %v443 = vrot.slane %v380, 1
        %v444 = vrot.slane %v381, 1
        %v445 = vrot.slane %v382, 1
        %v446 = vrot.slane %v383, 1
        %v447 = vrot.slane %v384, 1
        %v448 = vrot.slane %v385, 1
        %v449 = vrot.slane %v386, 1
        %v450 = vrot.slane %v387, 1
        %v451 = vrot.slane %v388, 1
        %v452 = vrot.slane %v389, 1
        %v453 = vrot.slane %v390, 1
        %v454 = vrot.slane %v391, 1
        %v455 = vrot.slane %v392, 1
        %v456 = vrot.slane %v393, 1
        %v457 = vrot.slane %v394, 1
        %v458 = vrot.slane %v395, 1
        %v459 = vrot.slane %v396, 1
        %v460 = vrot.slane %v397, 1
        %v461 = vrot.slane %v398, 1
        %vm462 = vcmp.lt.s32.totalorder %v420, 7
        %v463 = vsel %vm462, %v460, %v461
        %v464 = vsel %vm462, %v459, %v460
        %v465 = vsel %vm462, %v458, %v459
        %v466 = vsel %vm462, %v457, %v458
        %v467 = vsel %vm462, %v456, %v457
        %v468 = vsel %vm462, %v455, %v456
        %v469 = vsel %vm462, %v454, %v455
        %v470 = vsel %vm462, %v453, %v454
        %v471 = vsel %vm462, %v452, %v453
        %v472 = vsel %vm462, %v451, %v452
        %v473 = vsel %vm462, %v450, %v451
        %v474 = vsel %vm462, %v449, %v450
        %v475 = vsel %vm462, %v448, %v449
        %v476 = vsel %vm462, %v447, %v448
        %v477 = vsel %vm462, %v446, %v447
        %v478 = vsel %vm462, %v445, %v446
        %v479 = vsel %vm462, %v444, %v445
        %v480 = vsel %vm462, %v443, %v444
        %v481 = vsel %vm462, %v442, %v443
        %v482 = vsel %vm462, %v461, %v442
        %v483 = vadd.s32 %v420, 8
        %vm484 = vcmp.eq.s32.totalorder %v420, 0
        %vm485 = vcmp.eq.s32.totalorder %v483, 0
        %v486 = vsel %vm484, 1, 0
        %v487 = vsel %vm485, 1, 0
        %vm488 = vcmp.eq.s32.totalorder %v486, 1
        %vm489 = vcmp.eq.s32.totalorder %v487, 1
        %v490 = vsel %vm488, 0.0, %v441
        %v491 = vsel %vm489, 0.0, %v440
        %v492 = vsel %vm488, 0.0, %v439
        %v493 = vsel %vm489, 0.0, %v438
        %v494 = vsel %vm488, 0.0, %v437
        %v495 = vsel %vm489, 0.0, %v436
        %v496 = vsel %vm488, 0.0, %v435
        %v497 = vsel %vm489, 0.0, %v434
        %v498 = vsel %vm488, 0.0, %v433
        %v499 = vsel %vm489, 0.0, %v432
        %v500 = vsel %vm488, 0.0, %v431
        %v501 = vsel %vm489, 0.0, %v430
        %v502 = vsel %vm488, 0.0, %v429
        %v503 = vsel %vm489, 0.0, %v428
        %v504 = vsel %vm488, 0.0, %v427
        %v505 = vsel %vm489, 0.0, %v426
        %v506 = vsel %vm488, 0.0, %v425
        %v507 = vsel %vm489, 0.0, %v424
        %v508 = vsel %vm488, 0.0, %v423
        %v509 = vsel %vm489, 0.0, %v422
        %v510 = vpack.c.bf16 %v491, %v490
        %v511 = vpack.c.bf16 %v493, %v492
        %v512 = vpack.c.bf16 %v495, %v494
        %v513 = vpack.c.bf16 %v497, %v496
        %v514 = vpack.c.bf16 %v499, %v498
        %v515 = vpack.c.bf16 %v501, %v500
        %v516 = vpack.c.bf16 %v503, %v502
        %v517 = vpack.c.bf16 %v505, %v504
        %v518 = vpack.c.bf16 %v507, %v506
        %v519 = vpack.c.bf16 %v509, %v508
        %vm520 = vcmp.eq.s32.totalorder %v420, 15
        %vm521 = vcmp.eq.s32.totalorder %v483, 15
        %v522 = vsel %vm520, 1, 0
        %v523 = vsel %vm521, 1, 0
        %vm524 = vcmp.eq.s32.totalorder %v522, 1
        %vm525 = vcmp.eq.s32.totalorder %v523, 1
        %v526 = vsel %vm524, 0.0, %v481
        %v527 = vsel %vm525, 0.0, %v480
        %v528 = vsel %vm524, 0.0, %v479
        %v529 = vsel %vm525, 0.0, %v478
        %v530 = vsel %vm524, 0.0, %v477
        %v531 = vsel %vm525, 0.0, %v476
        %v532 = vsel %vm524, 0.0, %v475
        %v533 = vsel %vm525, 0.0, %v474
        %v534 = vsel %vm524, 0.0, %v473
        %v535 = vsel %vm525, 0.0, %v472
        %v536 = vsel %vm524, 0.0, %v471
        %v537 = vsel %vm525, 0.0, %v470
        %v538 = vsel %vm524, 0.0, %v469
        %v539 = vsel %vm525, 0.0, %v468
        %v540 = vsel %vm524, 0.0, %v467
        %v541 = vsel %vm525, 0.0, %v466
        %v542 = vsel %vm524, 0.0, %v465
        %v543 = vsel %vm525, 0.0, %v464
        %v544 = vsel %vm524, 0.0, %v463
        %v545 = vsel %vm525, 0.0, %v482
        %v546 = vpack.c.bf16 %v527, %v526
        %v547 = vpack.c.bf16 %v529, %v528
        %v548 = vpack.c.bf16 %v531, %v530
        %v549 = vpack.c.bf16 %v533, %v532
        %v550 = vpack.c.bf16 %v535, %v534
        %v551 = vpack.c.bf16 %v537, %v536
        %v552 = vpack.c.bf16 %v539, %v538
        %v553 = vpack.c.bf16 %v541, %v540
        %v554 = vpack.c.bf16 %v543, %v542
        %v555 = vpack.c.bf16 %v545, %v544
        %v556 = vld [vmem:[#allocation7] sm:$0xf]
        %v557 = vld [vmem:[#allocation7 + $0x4] sm:$0xf]
        %v558 = vld [vmem:[#allocation7 + $0x8] sm:$0xf]
        %v559 = vld [vmem:[#allocation7 + $0xc] sm:$0xf]
        %v560 = vld [vmem:[#allocation7 + $0x10] sm:$0xf]
        %v561 = vld [vmem:[#allocation7 + $0x14] sm:$0xf]
        %v562 = vld [vmem:[#allocation7 + $0x18] sm:$0xf]
        %v563 = vld [vmem:[#allocation7 + $0x1c] sm:$0xf]
        %v564 = vld [vmem:[#allocation7 + $0x20] sm:$0xf]
        %v565 = vld [vmem:[#allocation7 + $0x24] sm:$0xf]
        %v566 = vld [vmem:[#allocation7 + $0x28] sm:$0xf]
        %v567 = vld [vmem:[#allocation7 + $0x2c] sm:$0xf]
        %v568 = vld [vmem:[#allocation7 + $0x30] sm:$0xf]
        %v569 = vld [vmem:[#allocation7 + $0x34] sm:$0xf]
        %v570 = vld [vmem:[#allocation7 + $0x38] sm:$0xf]
        %v571 = vld [vmem:[#allocation7 + $0x3c] sm:$0xf]
        %v572 = vld [vmem:[#allocation7 + $0x40] sm:$0xf]
        %v573 = vld [vmem:[#allocation7 + $0x44] sm:$0xf]
        %v574 = vld [vmem:[#allocation7 + $0x48] sm:$0xf]
        %v575 = vld [vmem:[#allocation7 + $0x4c] sm:$0xf]
        %v576 = vld [vmem:[#allocation7 + $0x50] sm:$0xf]
        %v577 = vld [vmem:[#allocation7 + $0x54] sm:$0xf]
        %v578 = vld [vmem:[#allocation7 + $0x58] sm:$0xf]
        %v579 = vld [vmem:[#allocation7 + $0x5c] sm:$0xf]
        %v580 = vld [vmem:[#allocation7 + $0x60] sm:$0xf]
        %v581 = vld [vmem:[#allocation7 + $0x64] sm:$0xf]
        %v582 = vld [vmem:[#allocation7 + $0x68] sm:$0xf]
        %v583 = vld [vmem:[#allocation7 + $0x6c] sm:$0xf]
        %v584 = vld [vmem:[#allocation7 + $0x70] sm:$0xf]
        %v585 = vld [vmem:[#allocation7 + $0x74] sm:$0xf]
        %v586 = vld [vmem:[#allocation7 + $0x78] sm:$0xf]
        %v587 = vld [vmem:[#allocation7 + $0x7c] sm:$0xf]
        %v588 = vld [vmem:[#allocation7 + $0x80] sm:$0xf]
        %v589 = vld [vmem:[#allocation7 + $0x84] sm:$0xf]
        %v590 = vld [vmem:[#allocation7 + $0x88] sm:$0xf]
        %v591 = vld [vmem:[#allocation7 + $0x8c] sm:$0xf]
        %v592 = vld [vmem:[#allocation7 + $0x90] sm:$0xf]
        %v593 = vld [vmem:[#allocation7 + $0x94] sm:$0xf]
        %v594 = vld [vmem:[#allocation7 + $0x98] sm:$0xf]
        %v595 = vld [vmem:[#allocation7 + $0x9c] sm:$0xf]
        %v596 = vld [vmem:[#allocation7 + $0xa0] sm:$0xf]
        %v597 = vld [vmem:[#allocation7 + $0xa4] sm:$0xf]
        %v598 = vld [vmem:[#allocation7 + $0xa8] sm:$0xf]
        %v599 = vld [vmem:[#allocation7 + $0xac] sm:$0xf]
        %v600 = vld [vmem:[#allocation7 + $0xb0] sm:$0xf]
        %v601 = vld [vmem:[#allocation7 + $0xb4] sm:$0xf]
        %v602 = vld [vmem:[#allocation7 + $0xb8] sm:$0xf]
        %v603 = vld [vmem:[#allocation7 + $0xbc] sm:$0xf]
        %s604 = scalar_lea.vmem [#allocation7], 192
        %v605 = vld [vmem:[%s604] sm:$0xf]
        %v606 = vld [vmem:[%s604 + $0x4] sm:$0xf]
        %v607 = vld [vmem:[%s604 + $0x8] sm:$0xf]
        %v608 = vld [vmem:[%s604 + $0xc] sm:$0xf]
        %v609 = vld [vmem:[%s604 + $0x10] sm:$0xf]
        %v610 = vld [vmem:[%s604 + $0x14] sm:$0xf]
        %v611 = vld [vmem:[%s604 + $0x18] sm:$0xf]
        %v612 = vld [vmem:[%s604 + $0x1c] sm:$0xf]
        %v613 = vld [vmem:[%s604 + $0x20] sm:$0xf]
        %v614 = vld [vmem:[%s604 + $0x24] sm:$0xf]
        %v615 = vld [vmem:[%s604 + $0x28] sm:$0xf]
        %v616 = vld [vmem:[%s604 + $0x2c] sm:$0xf]
        %v617 = vld [vmem:[%s604 + $0x30] sm:$0xf]
        %v618 = vld [vmem:[%s604 + $0x34] sm:$0xf]
        %v619 = vld [vmem:[%s604 + $0x38] sm:$0xf]
        %v620 = vld [vmem:[%s604 + $0x3c] sm:$0xf]
        %v621 = vld [vmem:[%s604 + $0x40] sm:$0xf]
        %v622 = vld [vmem:[%s604 + $0x44] sm:$0xf]
        %v623 = vld [vmem:[%s604 + $0x48] sm:$0xf]
        %v624 = vld [vmem:[%s604 + $0x4c] sm:$0xf]
        %v625 = vld [vmem:[%s604 + $0x50] sm:$0xf]
        %v626 = vld [vmem:[%s604 + $0x54] sm:$0xf]
        %v627 = vld [vmem:[%s604 + $0x58] sm:$0xf]
        %v628 = vld [vmem:[%s604 + $0x5c] sm:$0xf]
        %v629 = vld [vmem:[%s604 + $0x60] sm:$0xf]
        %v630 = vld [vmem:[%s604 + $0x64] sm:$0xf]
        %v631 = vld [vmem:[%s604 + $0x68] sm:$0xf]
        %v632 = vld [vmem:[%s604 + $0x6c] sm:$0xf]
        %v633 = vld [vmem:[%s604 + $0x70] sm:$0xf]
        %v634 = vld [vmem:[%s604 + $0x74] sm:$0xf]
        %v635 = vld [vmem:[%s604 + $0x78] sm:$0xf]
        %v636 = vld [vmem:[%s604 + $0x7c] sm:$0xf]
        %v637 = vld [vmem:[%s604 + $0x80] sm:$0xf]
        %v638 = vld [vmem:[%s604 + $0x84] sm:$0xf]
        %v639 = vld [vmem:[%s604 + $0x88] sm:$0xf]
        %v640 = vld [vmem:[%s604 + $0x8c] sm:$0xf]
        %v641 = vld [vmem:[%s604 + $0x90] sm:$0xf]
        %v642 = vld [vmem:[%s604 + $0x94] sm:$0xf]
        %v643 = vld [vmem:[%s604 + $0x98] sm:$0xf]
        %v644 = vld [vmem:[%s604 + $0x9c] sm:$0xf]
        %v645 = vld [vmem:[%s604 + $0xa0] sm:$0xf]
        %v646 = vld [vmem:[%s604 + $0xa4] sm:$0xf]
        %v647 = vld [vmem:[%s604 + $0xa8] sm:$0xf]
        %v648 = vld [vmem:[%s604 + $0xac] sm:$0xf]
        %v649 = vld [vmem:[%s604 + $0xb0] sm:$0xf]
        %v650 = vld [vmem:[%s604 + $0xb4] sm:$0xf]
        %v651 = vld [vmem:[%s604 + $0xb8] sm:$0xf]
        %v652 = vld [vmem:[%s604 + $0xbc] sm:$0xf]
        %v701 = vunpack.c.l.b16 %v605
        %v702 = vunpack.c.l.b16 %v606
        %v703 = vunpack.c.l.b16 %v607
        %v704 = vunpack.c.l.b16 %v608
        %v705 = vunpack.c.l.b16 %v609
        %v706 = vunpack.c.l.b16 %v610
        %v707 = vunpack.c.l.b16 %v611
        %v708 = vunpack.c.l.b16 %v612
        %v709 = vunpack.c.l.b16 %v613
        %v710 = vunpack.c.l.b16 %v614
        %v711 = vunpack.c.l.b16 %v615
        %v712 = vunpack.c.l.b16 %v616
        %v713 = vunpack.c.l.b16 %v617
        %v714 = vunpack.c.l.b16 %v618
        %v715 = vunpack.c.l.b16 %v619
        %v716 = vunpack.c.l.b16 %v620
        %v717 = vunpack.c.l.b16 %v621
        %v718 = vunpack.c.l.b16 %v622
        %v719 = vunpack.c.l.b16 %v623
        %v720 = vunpack.c.l.b16 %v624
        %v721 = vunpack.c.l.b16 %v625
        %v722 = vunpack.c.l.b16 %v626
        %v723 = vunpack.c.l.b16 %v627
        %v724 = vunpack.c.l.b16 %v628
        %v725 = vunpack.c.l.b16 %v629
        %v726 = vunpack.c.l.b16 %v630
        %v727 = vunpack.c.l.b16 %v631
        %v728 = vunpack.c.l.b16 %v632
        %v729 = vunpack.c.l.b16 %v633
        %v730 = vunpack.c.l.b16 %v634
        %v731 = vunpack.c.l.b16 %v635
        %v732 = vunpack.c.l.b16 %v636
        %v733 = vunpack.c.l.b16 %v637
        %v734 = vunpack.c.l.b16 %v638
        %v735 = vunpack.c.l.b16 %v639
        %v736 = vunpack.c.l.b16 %v640
        %v737 = vunpack.c.l.b16 %v641
        %v738 = vunpack.c.l.b16 %v642
        %v739 = vunpack.c.l.b16 %v643
        %v740 = vunpack.c.l.b16 %v644
        %v741 = vunpack.c.l.b16 %v645
        %v742 = vunpack.c.l.b16 %v646
        %v743 = vunpack.c.l.b16 %v647
        %v744 = vunpack.c.l.b16 %v648
        %v745 = vunpack.c.l.b16 %v649
        %v746 = vunpack.c.l.b16 %v650
        %v747 = vunpack.c.l.b16 %v651
        %v748 = vunpack.c.l.b16 %v652
        %v749 = vpack.c.b16 %v702, %v701
        %v750 = vpack.c.b16 %v704, %v703
        %v751 = vpack.c.b16 %v706, %v705
        %v752 = vpack.c.b16 %v708, %v707
        %v753 = vpack.c.b16 %v710, %v709
        %v754 = vpack.c.b16 %v712, %v711
        %v755 = vpack.c.b16 %v714, %v713
        %v756 = vpack.c.b16 %v716, %v715
        %v757 = vpack.c.b16 %v718, %v717
        %v758 = vpack.c.b16 %v720, %v719
        %v759 = vpack.c.b16 %v722, %v721
        %v760 = vpack.c.b16 %v724, %v723
        %v761 = vpack.c.b16 %v726, %v725
        %v762 = vpack.c.b16 %v728, %v727
        %v763 = vpack.c.b16 %v730, %v729
        %v764 = vpack.c.b16 %v732, %v731
        %v765 = vpack.c.b16 %v734, %v733
        %v766 = vpack.c.b16 %v736, %v735
        %v767 = vpack.c.b16 %v738, %v737
        %v768 = vpack.c.b16 %v740, %v739
        %v769 = vpack.c.b16 %v742, %v741
        %v770 = vpack.c.b16 %v744, %v743
        %v771 = vpack.c.b16 %v746, %v745
        %v772 = vpack.c.b16 %v748, %v747
        %797 = vmatprep.subr.bf16.mxu0 0
        %798 = vmatpush1.bf16.msra.mxu0 %v749
        %799 = vmatprep.subr.bf16.mxu0 0
        %800 = vmatpush1.bf16.msra.mxu0 %v750
        %801 = vmatprep.subr.bf16.mxu0 0
        %802 = vmatpush1.bf16.msra.mxu0 %v751
        %803 = vmatprep.subr.bf16.mxu0 0
        %804 = vmatpush1.bf16.msra.mxu0 %v752
        %805 = vmatprep.subr.bf16.mxu0 0
        %806 = vmatpush1.bf16.msra.mxu0 %v753
        %807 = vmatprep.subr.bf16.mxu0 0
        %808 = vmatpush1.bf16.msra.mxu0 %v754
        %809 = vmatprep.subr.bf16.mxu0 0
        %810 = vmatpush1.bf16.msra.mxu0 %v755
        %811 = vmatprep.subr.bf16.mxu0 0
        %812 = vmatpush1.bf16.msra.mxu0 %v756
        %813 = vmatprep.subr.bf16.mxu0 0
        %814 = vmatpush1.bf16.msra.mxu0 %v757
        %815 = vmatprep.subr.bf16.mxu0 0
        %816 = vmatpush1.bf16.msra.mxu0 %v758
        %817 = vmatprep.subr.bf16.mxu0 0
        %818 = vmatpush1.bf16.msra.mxu0 %v759
        %819 = vmatprep.subr.bf16.mxu0 0
        %820 = vmatpush1.bf16.msra.mxu0 %v760
        %821 = vmatprep.subr.bf16.mxu0 0
        %822 = vmatpush1.bf16.msra.mxu0 %v761
        %823 = vmatprep.subr.bf16.mxu0 0
        %824 = vmatpush1.bf16.msra.mxu0 %v762
        %825 = vmatprep.subr.bf16.mxu0 0
        %826 = vmatpush1.bf16.msra.mxu0 %v763
        %827 = vmatprep.subr.bf16.mxu0 0
        %828 = vmatpush1.bf16.msra.mxu0 %v764
        %829 = vmatprep.mubr.bf16.mxu0 %v363
        %830 = vmatmul.mubr.bf16.gmra.mrb[0].mxu0 %v511
        %v831 = vpop.f32.mrb[0].mxu0
        %v832 = vadd.f32 0.0, %v831
        %v833 = vpop.f32.mrb[0].mxu0
        %v834 = vpop.f32.mrb[0].mxu0
        %v835 = vadd.f32 0.0, %v834
        %v836 = vpop.f32.mrb[0].mxu0
        %837 = vmatprep.mubr.bf16.mxu0 %v364
        %838 = vmatmul.mubr.bf16.gmra.mrb[0].mxu0 %v512
        %v839 = vpop.f32.mrb[0].mxu0
        %v840 = vadd.f32 0.0, %v839
        %v841 = vpop.f32.mrb[0].mxu0
        %v842 = vpop.f32.mrb[0].mxu0
        %v843 = vadd.f32 0.0, %v842
        %v844 = vpop.f32.mrb[0].mxu0
        %845 = vmatprep.mubr.bf16.mxu0 %v365
        %846 = vmatmul.mubr.bf16.gmra.mrb[0].mxu0 %v513
        %v847 = vpop.f32.mrb[0].mxu0
        %v848 = vadd.f32 0.0, %v847
        %v849 = vpop.f32.mrb[0].mxu0
        %v850 = vpop.f32.mrb[0].mxu0
        %v851 = vadd.f32 0.0, %v850
        %v852 = vpop.f32.mrb[0].mxu0
        %853 = vmatprep.mubr.bf16.mxu0 %v366
        %854 = vmatmul.mubr.bf16.gmra.mrb[0].mxu0 %v514
        %v855 = vpop.f32.mrb[0].mxu0
        %v856 = vadd.f32 0.0, %v855
        %v857 = vpop.f32.mrb[0].mxu0
        %v858 = vpop.f32.mrb[0].mxu0
        %v859 = vadd.f32 0.0, %v858
        %v860 = vpop.f32.mrb[0].mxu0
        %861 = vmatprep.mubr.bf16.mxu0 %v367
        %862 = vmatmul.mubr.bf16.gmra.mrb[0].mxu0 %v515
        %v863 = vpop.f32.mrb[0].mxu0
        %v864 = vadd.f32 0.0, %v863
        %v865 = vpop.f32.mrb[0].mxu0
        %v866 = vpop.f32.mrb[0].mxu0
        %v867 = vadd.f32 0.0, %v866
        %v868 = vpop.f32.mrb[0].mxu0
        %869 = vmatprep.mubr.bf16.mxu0 %v368
        %870 = vmatmul.mubr.bf16.gmra.mrb[0].mxu0 %v516
        %v871 = vpop.f32.mrb[0].mxu0
        %v872 = vadd.f32 0.0, %v871
        %v873 = vpop.f32.mrb[0].mxu0
        %v874 = vpop.f32.mrb[0].mxu0
        %v875 = vadd.f32 0.0, %v874
        %v876 = vpop.f32.mrb[0].mxu0
        %877 = vmatprep.mubr.bf16.mxu0 %v369
        %878 = vmatmul.mubr.bf16.gmra.mrb[0].mxu0 %v517
        %v879 = vpop.f32.mrb[0].mxu0
        %v880 = vadd.f32 0.0, %v879
        %v881 = vpop.f32.mrb[0].mxu0
        %v882 = vpop.f32.mrb[0].mxu0
        %v883 = vadd.f32 0.0, %v882
        %v884 = vpop.f32.mrb[0].mxu0
        %885 = vmatprep.mubr.bf16.mxu0 %v370
        %886 = vmatmul.mubr.bf16.gmra.mrb[0].mxu0 %v518
        %v887 = vpop.f32.mrb[0].mxu0
        %v888 = vadd.f32 0.0, %v887
        %v889 = vpop.f32.mrb[0].mxu0
        %v890 = vpop.f32.mrb[0].mxu0
        %v891 = vadd.f32 0.0, %v890
        %v892 = vpop.f32.mrb[0].mxu0
        %893 = vdwg.mxu0
        %894 = vmatprep.subr.bf16.mxu0 0
        %895 = vmatpush1.bf16.msra.mxu0 %v765
        %896 = vmatprep.subr.bf16.mxu0 0
        %897 = vmatpush1.bf16.msra.mxu0 %v766
        %898 = vmatprep.subr.bf16.mxu0 0
        %899 = vmatpush1.bf16.msra.mxu0 %v767
        %900 = vmatprep.subr.bf16.mxu0 0
        %901 = vmatpush1.bf16.msra.mxu0 %v768
        %902 = vmatprep.subr.bf16.mxu0 0
        %903 = vmatpush1.bf16.msra.mxu0 %v769
        %904 = vmatprep.subr.bf16.mxu0 0
        %905 = vmatpush1.bf16.msra.mxu0 %v770
        %906 = vmatprep.subr.bf16.mxu0 0
        %907 = vmatpush1.bf16.msra.mxu0 %v771
        %908 = vmatprep.subr.bf16.mxu0 0
        %909 = vmatpush1.bf16.msra.mxu0 %v772
        %910 = vmatprep.subr.bf16.mxu0 0
        %911 = vmatpush1.bf16.msra.mxu0 0
        %912 = vmatprep.subr.bf16.mxu0 0
        %913 = vmatpush1.bf16.msra.mxu0 0
        %914 = vmatprep.subr.bf16.mxu0 0
        %915 = vmatpush1.bf16.msra.mxu0 0
        %916 = vmatprep.subr.bf16.mxu0 0
        %917 = vmatpush1.bf16.msra.mxu0 0
        %918 = vmatprep.subr.bf16.mxu0 0
        %919 = vmatpush1.bf16.msra.mxu0 0
        %920 = vmatprep.subr.bf16.mxu0 0
        %921 = vmatpush1.bf16.msra.mxu0 0
        %922 = vmatprep.subr.bf16.mxu0 0
        %923 = vmatpush1.bf16.msra.mxu0 0
        %924 = vmatprep.subr.bf16.mxu0 0
        %925 = vmatpush1.bf16.msra.mxu0 0
        %926 = vmatprep.mubr.bf16.mxu0 0
        %927 = vmatmul.mubr.bf16.gmra.mrb[0].mxu0 %v547
        %v928 = vpop.f32.mrb[0].mxu0
        %v929 = vadd.f32 %v832, %v928
        %v930 = vpop.f32.mrb[0].mxu0
        %v931 = vpop.f32.mrb[0].mxu0
        %v932 = vadd.f32 %v835, %v931
        %v933 = vpop.f32.mrb[0].mxu0
        %934 = vmatprep.mubr.bf16.mxu0 0
        %935 = vmatmul.mubr.bf16.gmra.mrb[0].mxu0 %v548
        %v936 = vpop.f32.mrb[0].mxu0
        %v937 = vadd.f32 %v840, %v936
        %v938 = vpop.f32.mrb[0].mxu0
        %v939 = vpop.f32.mrb[0].mxu0
        %v940 = vadd.f32 %v843, %v939
        %v941 = vpop.f32.mrb[0].mxu0
        %942 = vmatprep.mubr.bf16.mxu0 0
        %943 = vmatmul.mubr.bf16.gmra.mrb[0].mxu0 %v549
        %v944 = vpop.f32.mrb[0].mxu0
        %v945 = vadd.f32 %v848, %v944
        %v946 = vpop.f32.mrb[0].mxu0
        %v947 = vpop.f32.mrb[0].mxu0
        %v948 = vadd.f32 %v851, %v947
        %v949 = vpop.f32.mrb[0].mxu0
        %950 = vmatprep.mubr.bf16.mxu0 0
        %951 = vmatmul.mubr.bf16.gmra.mrb[0].mxu0 %v550
        %v952 = vpop.f32.mrb[0].mxu0
        %v953 = vadd.f32 %v856, %v952
        %v954 = vpop.f32.mrb[0].mxu0
        %v955 = vpop.f32.mrb[0].mxu0
        %v956 = vadd.f32 %v859, %v955
        %v957 = vpop.f32.mrb[0].mxu0
        %958 = vmatprep.mubr.bf16.mxu0 0
        %959 = vmatmul.mubr.bf16.gmra.mrb[0].mxu0 %v551
        %v960 = vpop.f32.mrb[0].mxu0
        %v961 = vadd.f32 %v864, %v960
        %v962 = vpop.f32.mrb[0].mxu0
        %v963 = vpop.f32.mrb[0].mxu0
        %v964 = vadd.f32 %v867, %v963
        %v965 = vpop.f32.mrb[0].mxu0
        %966 = vmatprep.mubr.bf16.mxu0 0
        %967 = vmatmul.mubr.bf16.gmra.mrb[0].mxu0 %v552
        %v968 = vpop.f32.mrb[0].mxu0
        %v969 = vadd.f32 %v872, %v968
        %v970 = vpop.f32.mrb[0].mxu0
        %v971 = vpop.f32.mrb[0].mxu0
        %v972 = vadd.f32 %v875, %v971
        %v973 = vpop.f32.mrb[0].mxu0
        %974 = vmatprep.mubr.bf16.mxu0 0
        %975 = vmatmul.mubr.bf16.gmra.mrb[0].mxu0 %v553
        %v976 = vpop.f32.mrb[0].mxu0
        %v977 = vadd.f32 %v880, %v976
        %v978 = vpop.f32.mrb[0].mxu0
        %v979 = vpop.f32.mrb[0].mxu0
        %v980 = vadd.f32 %v883, %v979
        %v981 = vpop.f32.mrb[0].mxu0
        %982 = vmatprep.mubr.bf16.mxu0 0
        %983 = vmatmul.mubr.bf16.gmra.mrb[0].mxu0 %v554
        %v984 = vpop.f32.mrb[0].mxu0
        %v985 = vadd.f32 %v888, %v984
        %v986 = vpop.f32.mrb[0].mxu0
        %v987 = vpop.f32.mrb[0].mxu0
        %v988 = vadd.f32 %v891, %v987
        %v989 = vpop.f32.mrb[0].mxu0
        %990 = vdwg.mxu0
        %v1039 = vunpack.c.l.b16 %v556
        %v1040 = vunpack.c.l.b16 %v557
        %v1041 = vunpack.c.l.b16 %v558
        %v1042 = vunpack.c.l.b16 %v559
        %v1043 = vunpack.c.l.b16 %v560
        %v1044 = vunpack.c.l.b16 %v561
        %v1045 = vunpack.c.l.b16 %v562
        %v1046 = vunpack.c.l.b16 %v563
        %v1047 = vunpack.c.l.b16 %v564
        %v1048 = vunpack.c.l.b16 %v565
        %v1049 = vunpack.c.l.b16 %v566
        %v1050 = vunpack.c.l.b16 %v567
        %v1051 = vunpack.c.l.b16 %v568
        %v1052 = vunpack.c.l.b16 %v569
        %v1053 = vunpack.c.l.b16 %v570
        %v1054 = vunpack.c.l.b16 %v571
        %v1055 = vunpack.c.l.b16 %v572
        %v1056 = vunpack.c.l.b16 %v573
        %v1057 = vunpack.c.l.b16 %v574
        %v1058 = vunpack.c.l.b16 %v575
        %v1059 = vunpack.c.l.b16 %v576
        %v1060 = vunpack.c.l.b16 %v577
        %v1061 = vunpack.c.l.b16 %v578
        %v1062 = vunpack.c.l.b16 %v579
        %v1063 = vunpack.c.l.b16 %v580
        %v1064 = vunpack.c.l.b16 %v581
        %v1065 = vunpack.c.l.b16 %v582
        %v1066 = vunpack.c.l.b16 %v583
        %v1067 = vunpack.c.l.b16 %v584
        %v1068 = vunpack.c.l.b16 %v585
        %v1069 = vunpack.c.l.b16 %v586
        %v1070 = vunpack.c.l.b16 %v587
        %v1071 = vunpack.c.l.b16 %v588
        %v1072 = vunpack.c.l.b16 %v589
        %v1073 = vunpack.c.l.b16 %v590
        %v1074 = vunpack.c.l.b16 %v591
        %v1075 = vunpack.c.l.b16 %v592
        %v1076 = vunpack.c.l.b16 %v593
        %v1077 = vunpack.c.l.b16 %v594
        %v1078 = vunpack.c.l.b16 %v595
        %v1079 = vunpack.c.l.b16 %v596
        %v1080 = vunpack.c.l.b16 %v597
        %v1081 = vunpack.c.l.b16 %v598
        %v1082 = vunpack.c.l.b16 %v599
        %v1083 = vunpack.c.l.b16 %v600
        %v1084 = vunpack.c.l.b16 %v601
        %v1085 = vunpack.c.l.b16 %v602
        %v1086 = vunpack.c.l.b16 %v603
        %v1087 = vpack.c.b16 %v1040, %v1039
        %v1088 = vpack.c.b16 %v1042, %v1041
        %v1089 = vpack.c.b16 %v1044, %v1043
        %v1090 = vpack.c.b16 %v1046, %v1045
        %v1091 = vpack.c.b16 %v1048, %v1047
        %v1092 = vpack.c.b16 %v1050, %v1049
        %v1093 = vpack.c.b16 %v1052, %v1051
        %v1094 = vpack.c.b16 %v1054, %v1053
        %v1095 = vpack.c.b16 %v1056, %v1055
        %v1096 = vpack.c.b16 %v1058, %v1057
        %v1097 = vpack.c.b16 %v1060, %v1059
        %v1098 = vpack.c.b16 %v1062, %v1061
        %v1099 = vpack.c.b16 %v1064, %v1063
        %v1100 = vpack.c.b16 %v1066, %v1065
        %v1101 = vpack.c.b16 %v1068, %v1067
        %v1102 = vpack.c.b16 %v1070, %v1069
        %v1103 = vpack.c.b16 %v1072, %v1071
        %v1104 = vpack.c.b16 %v1074, %v1073
        %v1105 = vpack.c.b16 %v1076, %v1075
        %v1106 = vpack.c.b16 %v1078, %v1077
        %v1107 = vpack.c.b16 %v1080, %v1079
        %v1108 = vpack.c.b16 %v1082, %v1081
        %v1109 = vpack.c.b16 %v1084, %v1083
        %v1110 = vpack.c.b16 %v1086, %v1085
        %1135 = vmatprep.subr.bf16.mxu0 0
        %1136 = vmatpush1.bf16.msra.mxu0 %v1087
        %1137 = vmatprep.subr.bf16.mxu0 0
        %1138 = vmatpush1.bf16.msra.mxu0 %v1088
        %1139 = vmatprep.subr.bf16.mxu0 0
        %1140 = vmatpush1.bf16.msra.mxu0 %v1089
        %1141 = vmatprep.subr.bf16.mxu0 0
        %1142 = vmatpush1.bf16.msra.mxu0 %v1090
        %1143 = vmatprep.subr.bf16.mxu0 0
        %1144 = vmatpush1.bf16.msra.mxu0 %v1091
        %1145 = vmatprep.subr.bf16.mxu0 0
        %1146 = vmatpush1.bf16.msra.mxu0 %v1092
        %1147 = vmatprep.subr.bf16.mxu0 0
        %1148 = vmatpush1.bf16.msra.mxu0 %v1093
        %1149 = vmatprep.subr.bf16.mxu0 0
        %1150 = vmatpush1.bf16.msra.mxu0 %v1094
        %1151 = vmatprep.subr.bf16.mxu0 0
        %1152 = vmatpush1.bf16.msra.mxu0 %v1095
        %1153 = vmatprep.subr.bf16.mxu0 0
        %1154 = vmatpush1.bf16.msra.mxu0 %v1096
        %1155 = vmatprep.subr.bf16.mxu0 0
        %1156 = vmatpush1.bf16.msra.mxu0 %v1097
        %1157 = vmatprep.subr.bf16.mxu0 0
        %1158 = vmatpush1.bf16.msra.mxu0 %v1098
        %1159 = vmatprep.subr.bf16.mxu0 0
        %1160 = vmatpush1.bf16.msra.mxu0 %v1099
        %1161 = vmatprep.subr.bf16.mxu0 0
        %1162 = vmatpush1.bf16.msra.mxu0 %v1100
        %1163 = vmatprep.subr.bf16.mxu0 0
        %1164 = vmatpush1.bf16.msra.mxu0 %v1101
        %1165 = vmatprep.subr.bf16.mxu0 0
        %1166 = vmatpush1.bf16.msra.mxu0 %v1102
        %1167 = vmatprep.mubr.bf16.mxu0 %v312
        %1168 = vmatmul.mubr.bf16.gmra.mrb[0].mxu0 %v510
        %v1169 = vpop.f32.mrb[0].mxu0
        %v1170 = vadd.f32 %v929, %v1169
        %v1171 = vpop.f32.mrb[0].mxu0
        %v1172 = vpop.f32.mrb[0].mxu0
        %v1173 = vadd.f32 %v932, %v1172
        %v1174 = vpop.f32.mrb[0].mxu0
        %1175 = vmatprep.mubr.bf16.mxu0 %v363
        %1176 = vmatmul.mubr.bf16.gmra.mrb[0].mxu0 %v511
        %v1177 = vpop.f32.mrb[0].mxu0
        %v1178 = vadd.f32 %v937, %v1177
        %v1179 = vpop.f32.mrb[0].mxu0
        %v1180 = vpop.f32.mrb[0].mxu0
        %v1181 = vadd.f32 %v940, %v1180
        %v1182 = vpop.f32.mrb[0].mxu0
        %1183 = vmatprep.mubr.bf16.mxu0 %v364
        %1184 = vmatmul.mubr.bf16.gmra.mrb[0].mxu0 %v512
        %v1185 = vpop.f32.mrb[0].mxu0
        %v1186 = vadd.f32 %v945, %v1185
        %v1187 = vpop.f32.mrb[0].mxu0
        %v1188 = vpop.f32.mrb[0].mxu0
        %v1189 = vadd.f32 %v948, %v1188
        %v1190 = vpop.f32.mrb[0].mxu0
        %1191 = vmatprep.mubr.bf16.mxu0 %v365
        %1192 = vmatmul.mubr.bf16.gmra.mrb[0].mxu0 %v513
        %v1193 = vpop.f32.mrb[0].mxu0
        %v1194 = vadd.f32 %v953, %v1193
        %v1195 = vpop.f32.mrb[0].mxu0
        %v1196 = vpop.f32.mrb[0].mxu0
        %v1197 = vadd.f32 %v956, %v1196
        %v1198 = vpop.f32.mrb[0].mxu0
        %1199 = vmatprep.mubr.bf16.mxu0 %v366
        %1200 = vmatmul.mubr.bf16.gmra.mrb[0].mxu0 %v514
        %v1201 = vpop.f32.mrb[0].mxu0
        %v1202 = vadd.f32 %v961, %v1201
        %v1203 = vpop.f32.mrb[0].mxu0
        %v1204 = vpop.f32.mrb[0].mxu0
        %v1205 = vadd.f32 %v964, %v1204
        %v1206 = vpop.f32.mrb[0].mxu0
        %1207 = vmatprep.mubr.bf16.mxu0 %v367
        %1208 = vmatmul.mubr.bf16.gmra.mrb[0].mxu0 %v515
        %v1209 = vpop.f32.mrb[0].mxu0
        %v1210 = vadd.f32 %v969, %v1209
        %v1211 = vpop.f32.mrb[0].mxu0
        %v1212 = vpop.f32.mrb[0].mxu0
        %v1213 = vadd.f32 %v972, %v1212
        %v1214 = vpop.f32.mrb[0].mxu0
        %1215 = vmatprep.mubr.bf16.mxu0 %v368
        %1216 = vmatmul.mubr.bf16.gmra.mrb[0].mxu0 %v516
        %v1217 = vpop.f32.mrb[0].mxu0
        %v1218 = vadd.f32 %v977, %v1217
        %v1219 = vpop.f32.mrb[0].mxu0
        %v1220 = vpop.f32.mrb[0].mxu0
        %v1221 = vadd.f32 %v980, %v1220
        %v1222 = vpop.f32.mrb[0].mxu0
        %1223 = vmatprep.mubr.bf16.mxu0 %v369
        %1224 = vmatmul.mubr.bf16.gmra.mrb[0].mxu0 %v517
        %v1225 = vpop.f32.mrb[0].mxu0
        %v1226 = vadd.f32 %v985, %v1225
        %v1227 = vpop.f32.mrb[0].mxu0
        %v1228 = vpop.f32.mrb[0].mxu0
        %v1229 = vadd.f32 %v988, %v1228
        %v1230 = vpop.f32.mrb[0].mxu0
        %1231 = vdwg.mxu0
        %1232 = vmatprep.subr.bf16.mxu0 0
        %1233 = vmatpush1.bf16.msra.mxu0 %v1103
        %1234 = vmatprep.subr.bf16.mxu0 0
        %1235 = vmatpush1.bf16.msra.mxu0 %v1104
        %1236 = vmatprep.subr.bf16.mxu0 0
        %1237 = vmatpush1.bf16.msra.mxu0 %v1105
        %1238 = vmatprep.subr.bf16.mxu0 0
        %1239 = vmatpush1.bf16.msra.mxu0 %v1106
        %1240 = vmatprep.subr.bf16.mxu0 0
        %1241 = vmatpush1.bf16.msra.mxu0 %v1107
        %1242 = vmatprep.subr.bf16.mxu0 0
        %1243 = vmatpush1.bf16.msra.mxu0 %v1108
        %1244 = vmatprep.subr.bf16.mxu0 0
        %1245 = vmatpush1.bf16.msra.mxu0 %v1109
        %1246 = vmatprep.subr.bf16.mxu0 0
        %1247 = vmatpush1.bf16.msra.mxu0 %v1110
        %1248 = vmatprep.subr.bf16.mxu0 0
        %1249 = vmatpush1.bf16.msra.mxu0 0
        %1250 = vmatprep.subr.bf16.mxu0 0
        %1251 = vmatpush1.bf16.msra.mxu0 0
        %1252 = vmatprep.subr.bf16.mxu0 0
        %1253 = vmatpush1.bf16.msra.mxu0 0
        %1254 = vmatprep.subr.bf16.mxu0 0
        %1255 = vmatpush1.bf16.msra.mxu0 0
        %1256 = vmatprep.subr.bf16.mxu0 0
        %1257 = vmatpush1.bf16.msra.mxu0 0
        %1258 = vmatprep.subr.bf16.mxu0 0
        %1259 = vmatpush1.bf16.msra.mxu0 0
        %1260 = vmatprep.subr.bf16.mxu0 0
        %1261 = vmatpush1.bf16.msra.mxu0 0
        %1262 = vmatprep.subr.bf16.mxu0 0
        %1263 = vmatpush1.bf16.msra.mxu0 0
        %1264 = vmatprep.mubr.bf16.mxu0 0
        %1265 = vmatmul.mubr.bf16.gmra.mrb[0].mxu0 %v546
        %v1266 = vpop.f32.mrb[0].mxu0
        %v1267 = vadd.f32 %v1170, %v1266
        %v1268 = vpop.f32.mrb[0].mxu0
        %v1269 = vpop.f32.mrb[0].mxu0
        %v1270 = vadd.f32 %v1173, %v1269
        %v1271 = vpop.f32.mrb[0].mxu0
        %1272 = vmatprep.mubr.bf16.mxu0 0
        %1273 = vmatmul.mubr.bf16.gmra.mrb[0].mxu0 %v547
        %v1274 = vpop.f32.mrb[0].mxu0
        %v1275 = vadd.f32 %v1178, %v1274
        %v1276 = vpop.f32.mrb[0].mxu0
        %v1277 = vpop.f32.mrb[0].mxu0
        %v1278 = vadd.f32 %v1181, %v1277
        %v1279 = vpop.f32.mrb[0].mxu0
        %1280 = vmatprep.mubr.bf16.mxu0 0
        %1281 = vmatmul.mubr.bf16.gmra.mrb[0].mxu0 %v548
        %v1282 = vpop.f32.mrb[0].mxu0
        %v1283 = vadd.f32 %v1186, %v1282
        %v1284 = vpop.f32.mrb[0].mxu0
        %v1285 = vpop.f32.mrb[0].mxu0
        %v1286 = vadd.f32 %v1189, %v1285
        %v1287 = vpop.f32.mrb[0].mxu0
        %1288 = vmatprep.mubr.bf16.mxu0 0
        %1289 = vmatmul.mubr.bf16.gmra.mrb[0].mxu0 %v549
        %v1290 = vpop.f32.mrb[0].mxu0
        %v1291 = vadd.f32 %v1194, %v1290
        %v1292 = vpop.f32.mrb[0].mxu0
        %v1293 = vpop.f32.mrb[0].mxu0
        %v1294 = vadd.f32 %v1197, %v1293
        %v1295 = vpop.f32.mrb[0].mxu0
        %1296 = vmatprep.mubr.bf16.mxu0 0
        %1297 = vmatmul.mubr.bf16.gmra.mrb[0].mxu0 %v550
        %v1298 = vpop.f32.mrb[0].mxu0
        %v1299 = vadd.f32 %v1202, %v1298
        %v1300 = vpop.f32.mrb[0].mxu0
        %v1301 = vpop.f32.mrb[0].mxu0
        %v1302 = vadd.f32 %v1205, %v1301
        %v1303 = vpop.f32.mrb[0].mxu0
        %1304 = vmatprep.mubr.bf16.mxu0 0
        %1305 = vmatmul.mubr.bf16.gmra.mrb[0].mxu0 %v551
        %v1306 = vpop.f32.mrb[0].mxu0
        %v1307 = vadd.f32 %v1210, %v1306
        %v1308 = vpop.f32.mrb[0].mxu0
        %v1309 = vpop.f32.mrb[0].mxu0
        %v1310 = vadd.f32 %v1213, %v1309
        %v1311 = vpop.f32.mrb[0].mxu0
        %1312 = vmatprep.mubr.bf16.mxu0 0
        %1313 = vmatmul.mubr.bf16.gmra.mrb[0].mxu0 %v552
        %v1314 = vpop.f32.mrb[0].mxu0
        %v1315 = vadd.f32 %v1218, %v1314
        %v1316 = vpop.f32.mrb[0].mxu0
        %v1317 = vpop.f32.mrb[0].mxu0
        %v1318 = vadd.f32 %v1221, %v1317
        %v1319 = vpop.f32.mrb[0].mxu0
        %1320 = vmatprep.mubr.bf16.mxu0 0
        %1321 = vmatmul.mubr.bf16.gmra.mrb[0].mxu0 %v553
        %v1322 = vpop.f32.mrb[0].mxu0
        %v1323 = vadd.f32 %v1226, %v1322
        %v1324 = vpop.f32.mrb[0].mxu0
        %v1325 = vpop.f32.mrb[0].mxu0
        %v1326 = vadd.f32 %v1229, %v1325
        %v1327 = vpop.f32.mrb[0].mxu0
        %1328 = vdwg.mxu0
        %s1329 = scalar_lea.vmem [#allocation7], 384
        %v1330 = vld [vmem:[%s1329] sm:$0xf]
        %v1331 = vld [vmem:[%s1329 + $0x4] sm:$0xf]
        %v1332 = vld [vmem:[%s1329 + $0x8] sm:$0xf]
        %v1333 = vld [vmem:[%s1329 + $0xc] sm:$0xf]
        %v1334 = vld [vmem:[%s1329 + $0x10] sm:$0xf]
        %v1335 = vld [vmem:[%s1329 + $0x14] sm:$0xf]
        %v1336 = vld [vmem:[%s1329 + $0x18] sm:$0xf]
        %v1337 = vld [vmem:[%s1329 + $0x1c] sm:$0xf]
        %v1338 = vld [vmem:[%s1329 + $0x20] sm:$0xf]
        %v1339 = vld [vmem:[%s1329 + $0x24] sm:$0xf]
        %v1340 = vld [vmem:[%s1329 + $0x28] sm:$0xf]
        %v1341 = vld [vmem:[%s1329 + $0x2c] sm:$0xf]
        %v1342 = vld [vmem:[%s1329 + $0x30] sm:$0xf]
        %v1343 = vld [vmem:[%s1329 + $0x34] sm:$0xf]
        %v1344 = vld [vmem:[%s1329 + $0x38] sm:$0xf]
        %v1345 = vld [vmem:[%s1329 + $0x3c] sm:$0xf]
        %v1346 = vld [vmem:[%s1329 + $0x40] sm:$0xf]
        %v1347 = vld [vmem:[%s1329 + $0x44] sm:$0xf]
        %v1348 = vld [vmem:[%s1329 + $0x48] sm:$0xf]
        %v1349 = vld [vmem:[%s1329 + $0x4c] sm:$0xf]
        %v1350 = vld [vmem:[%s1329 + $0x50] sm:$0xf]
        %v1351 = vld [vmem:[%s1329 + $0x54] sm:$0xf]
        %v1352 = vld [vmem:[%s1329 + $0x58] sm:$0xf]
        %v1353 = vld [vmem:[%s1329 + $0x5c] sm:$0xf]
        %v1354 = vld [vmem:[%s1329 + $0x60] sm:$0xf]
        %v1355 = vld [vmem:[%s1329 + $0x64] sm:$0xf]
        %v1356 = vld [vmem:[%s1329 + $0x68] sm:$0xf]
        %v1357 = vld [vmem:[%s1329 + $0x6c] sm:$0xf]
        %v1358 = vld [vmem:[%s1329 + $0x70] sm:$0xf]
        %v1359 = vld [vmem:[%s1329 + $0x74] sm:$0xf]
        %v1360 = vld [vmem:[%s1329 + $0x78] sm:$0xf]
        %v1361 = vld [vmem:[%s1329 + $0x7c] sm:$0xf]
        %v1362 = vld [vmem:[%s1329 + $0x80] sm:$0xf]
        %v1363 = vld [vmem:[%s1329 + $0x84] sm:$0xf]
        %v1364 = vld [vmem:[%s1329 + $0x88] sm:$0xf]
        %v1365 = vld [vmem:[%s1329 + $0x8c] sm:$0xf]
        %v1366 = vld [vmem:[%s1329 + $0x90] sm:$0xf]
        %v1367 = vld [vmem:[%s1329 + $0x94] sm:$0xf]
        %v1368 = vld [vmem:[%s1329 + $0x98] sm:$0xf]
        %v1369 = vld [vmem:[%s1329 + $0x9c] sm:$0xf]
        %v1370 = vld [vmem:[%s1329 + $0xa0] sm:$0xf]
        %v1371 = vld [vmem:[%s1329 + $0xa4] sm:$0xf]
        %v1372 = vld [vmem:[%s1329 + $0xa8] sm:$0xf]
        %v1373 = vld [vmem:[%s1329 + $0xac] sm:$0xf]
        %v1374 = vld [vmem:[%s1329 + $0xb0] sm:$0xf]
        %v1375 = vld [vmem:[%s1329 + $0xb4] sm:$0xf]
        %v1376 = vld [vmem:[%s1329 + $0xb8] sm:$0xf]
        %v1377 = vld [vmem:[%s1329 + $0xbc] sm:$0xf]
        %v1426 = vunpack.c.l.b16 %v1330
        %v1427 = vunpack.c.l.b16 %v1331
        %v1428 = vunpack.c.l.b16 %v1332
        %v1429 = vunpack.c.l.b16 %v1333
        %v1430 = vunpack.c.l.b16 %v1334
        %v1431 = vunpack.c.l.b16 %v1335
        %v1432 = vunpack.c.l.b16 %v1336
        %v1433 = vunpack.c.l.b16 %v1337
        %v1434 = vunpack.c.l.b16 %v1338
        %v1435 = vunpack.c.l.b16 %v1339
        %v1436 = vunpack.c.l.b16 %v1340
        %v1437 = vunpack.c.l.b16 %v1341
        %v1438 = vunpack.c.l.b16 %v1342
        %v1439 = vunpack.c.l.b16 %v1343
        %v1440 = vunpack.c.l.b16 %v1344
        %v1441 = vunpack.c.l.b16 %v1345
        %v1442 = vunpack.c.l.b16 %v1346
        %v1443 = vunpack.c.l.b16 %v1347
        %v1444 = vunpack.c.l.b16 %v1348
        %v1445 = vunpack.c.l.b16 %v1349
        %v1446 = vunpack.c.l.b16 %v1350
        %v1447 = vunpack.c.l.b16 %v1351
        %v1448 = vunpack.c.l.b16 %v1352
        %v1449 = vunpack.c.l.b16 %v1353
        %v1450 = vunpack.c.l.b16 %v1354
        %v1451 = vunpack.c.l.b16 %v1355
        %v1452 = vunpack.c.l.b16 %v1356
        %v1453 = vunpack.c.l.b16 %v1357
        %v1454 = vunpack.c.l.b16 %v1358
        %v1455 = vunpack.c.l.b16 %v1359
        %v1456 = vunpack.c.l.b16 %v1360
        %v1457 = vunpack.c.l.b16 %v1361
        %v1458 = vunpack.c.l.b16 %v1362
        %v1459 = vunpack.c.l.b16 %v1363
        %v1460 = vunpack.c.l.b16 %v1364
        %v1461 = vunpack.c.l.b16 %v1365
        %v1462 = vunpack.c.l.b16 %v1366
        %v1463 = vunpack.c.l.b16 %v1367
        %v1464 = vunpack.c.l.b16 %v1368
        %v1465 = vunpack.c.l.b16 %v1369
        %v1466 = vunpack.c.l.b16 %v1370
        %v1467 = vunpack.c.l.b16 %v1371
        %v1468 = vunpack.c.l.b16 %v1372
        %v1469 = vunpack.c.l.b16 %v1373
        %v1470 = vunpack.c.l.b16 %v1374
        %v1471 = vunpack.c.l.b16 %v1375
        %v1472 = vunpack.c.l.b16 %v1376
        %v1473 = vunpack.c.l.b16 %v1377
        %v1474 = vpack.c.b16 %v1427, %v1426
        %v1475 = vpack.c.b16 %v1429, %v1428
        %v1476 = vpack.c.b16 %v1431, %v1430
        %v1477 = vpack.c.b16 %v1433, %v1432
        %v1478 = vpack.c.b16 %v1435, %v1434
        %v1479 = vpack.c.b16 %v1437, %v1436
        %v1480 = vpack.c.b16 %v1439, %v1438
        %v1481 = vpack.c.b16 %v1441, %v1440
        %v1482 = vpack.c.b16 %v1443, %v1442
        %v1483 = vpack.c.b16 %v1445, %v1444
        %v1484 = vpack.c.b16 %v1447, %v1446
        %v1485 = vpack.c.b16 %v1449, %v1448
        %v1486 = vpack.c.b16 %v1451, %v1450
        %v1487 = vpack.c.b16 %v1453, %v1452
        %v1488 = vpack.c.b16 %v1455, %v1454
        %v1489 = vpack.c.b16 %v1457, %v1456
        %v1490 = vpack.c.b16 %v1459, %v1458
        %v1491 = vpack.c.b16 %v1461, %v1460
        %v1492 = vpack.c.b16 %v1463, %v1462
        %v1493 = vpack.c.b16 %v1465, %v1464
        %v1494 = vpack.c.b16 %v1467, %v1466
        %v1495 = vpack.c.b16 %v1469, %v1468
        %v1496 = vpack.c.b16 %v1471, %v1470
        %v1497 = vpack.c.b16 %v1473, %v1472
        %1522 = vmatprep.subr.bf16.mxu0 0
        %1523 = vmatpush1.bf16.msra.mxu0 %v1474
        %1524 = vmatprep.subr.bf16.mxu0 0
        %1525 = vmatpush1.bf16.msra.mxu0 %v1475
        %1526 = vmatprep.subr.bf16.mxu0 0
        %1527 = vmatpush1.bf16.msra.mxu0 %v1476
        %1528 = vmatprep.subr.bf16.mxu0 0
        %1529 = vmatpush1.bf16.msra.mxu0 %v1477
        %1530 = vmatprep.subr.bf16.mxu0 0
        %1531 = vmatpush1.bf16.msra.mxu0 %v1478
        %1532 = vmatprep.subr.bf16.mxu0 0
        %1533 = vmatpush1.bf16.msra.mxu0 %v1479
        %1534 = vmatprep.subr.bf16.mxu0 0
        %1535 = vmatpush1.bf16.msra.mxu0 %v1480
        %1536 = vmatprep.subr.bf16.mxu0 0
        %1537 = vmatpush1.bf16.msra.mxu0 %v1481
        %1538 = vmatprep.subr.bf16.mxu0 0
        %1539 = vmatpush1.bf16.msra.mxu0 %v1482
        %1540 = vmatprep.subr.bf16.mxu0 0
        %1541 = vmatpush1.bf16.msra.mxu0 %v1483
        %1542 = vmatprep.subr.bf16.mxu0 0
        %1543 = vmatpush1.bf16.msra.mxu0 %v1484
        %1544 = vmatprep.subr.bf16.mxu0 0
        %1545 = vmatpush1.bf16.msra.mxu0 %v1485
        %1546 = vmatprep.subr.bf16.mxu0 0
        %1547 = vmatpush1.bf16.msra.mxu0 %v1486
        %1548 = vmatprep.subr.bf16.mxu0 0
        %1549 = vmatpush1.bf16.msra.mxu0 %v1487
        %1550 = vmatprep.subr.bf16.mxu0 0
        %1551 = vmatpush1.bf16.msra.mxu0 %v1488
        %1552 = vmatprep.subr.bf16.mxu0 0
        %1553 = vmatpush1.bf16.msra.mxu0 %v1489
        %1554 = vmatprep.mubr.bf16.mxu0 %v364
        %1555 = vmatmul.mubr.bf16.gmra.mrb[0].mxu0 %v512
        %v1556 = vpop.f32.mrb[0].mxu0
        %v1557 = vadd.f32 0.0, %v1556
        %v1558 = vpop.f32.mrb[0].mxu0
        %v1559 = vpop.f32.mrb[0].mxu0
        %v1560 = vadd.f32 0.0, %v1559
        %v1561 = vpop.f32.mrb[0].mxu0
        %1562 = vmatprep.mubr.bf16.mxu0 %v365
        %1563 = vmatmul.mubr.bf16.gmra.mrb[0].mxu0 %v513
        %v1564 = vpop.f32.mrb[0].mxu0
        %v1565 = vadd.f32 0.0, %v1564
        %v1566 = vpop.f32.mrb[0].mxu0
        %v1567 = vpop.f32.mrb[0].mxu0
        %v1568 = vadd.f32 0.0, %v1567
        %v1569 = vpop.f32.mrb[0].mxu0
        %1570 = vmatprep.mubr.bf16.mxu0 %v366
        %1571 = vmatmul.mubr.bf16.gmra.mrb[0].mxu0 %v514
        %v1572 = vpop.f32.mrb[0].mxu0
        %v1573 = vadd.f32 0.0, %v1572
        %v1574 = vpop.f32.mrb[0].mxu0
        %v1575 = vpop.f32.mrb[0].mxu0
        %v1576 = vadd.f32 0.0, %v1575
        %v1577 = vpop.f32.mrb[0].mxu0
        %1578 = vmatprep.mubr.bf16.mxu0 %v367
        %1579 = vmatmul.mubr.bf16.gmra.mrb[0].mxu0 %v515
        %v1580 = vpop.f32.mrb[0].mxu0
        %v1581 = vadd.f32 0.0, %v1580
        %v1582 = vpop.f32.mrb[0].mxu0
        %v1583 = vpop.f32.mrb[0].mxu0
        %v1584 = vadd.f32 0.0, %v1583
        %v1585 = vpop.f32.mrb[0].mxu0
        %1586 = vmatprep.mubr.bf16.mxu0 %v368
        %1587 = vmatmul.mubr.bf16.gmra.mrb[0].mxu0 %v516
        %v1588 = vpop.f32.mrb[0].mxu0
        %v1589 = vadd.f32 0.0, %v1588
        %v1590 = vpop.f32.mrb[0].mxu0
        %v1591 = vpop.f32.mrb[0].mxu0
        %v1592 = vadd.f32 0.0, %v1591
        %v1593 = vpop.f32.mrb[0].mxu0
        %1594 = vmatprep.mubr.bf16.mxu0 %v369
        %1595 = vmatmul.mubr.bf16.gmra.mrb[0].mxu0 %v517
        %v1596 = vpop.f32.mrb[0].mxu0
        %v1597 = vadd.f32 0.0, %v1596
        %v1598 = vpop.f32.mrb[0].mxu0
        %v1599 = vpop.f32.mrb[0].mxu0
        %v1600 = vadd.f32 0.0, %v1599
        %v1601 = vpop.f32.mrb[0].mxu0
        %1602 = vmatprep.mubr.bf16.mxu0 %v370
        %1603 = vmatmul.mubr.bf16.gmra.mrb[0].mxu0 %v518
        %v1604 = vpop.f32.mrb[0].mxu0
        %v1605 = vadd.f32 0.0, %v1604
        %v1606 = vpop.f32.mrb[0].mxu0
        %v1607 = vpop.f32.mrb[0].mxu0
        %v1608 = vadd.f32 0.0, %v1607
        %v1609 = vpop.f32.mrb[0].mxu0
        %1610 = vmatprep.mubr.bf16.mxu0 %v330
        %1611 = vmatmul.mubr.bf16.gmra.mrb[0].mxu0 %v519
        %v1612 = vpop.f32.mrb[0].mxu0
        %v1613 = vadd.f32 0.0, %v1612
        %v1614 = vpop.f32.mrb[0].mxu0
        %v1615 = vpop.f32.mrb[0].mxu0
        %v1616 = vadd.f32 0.0, %v1615
        %v1617 = vpop.f32.mrb[0].mxu0
        %1618 = vdwg.mxu0
        %1619 = vmatprep.subr.bf16.mxu0 0
        %1620 = vmatpush1.bf16.msra.mxu0 %v1490
        %1621 = vmatprep.subr.bf16.mxu0 0
        %1622 = vmatpush1.bf16.msra.mxu0 %v1491
        %1623 = vmatprep.subr.bf16.mxu0 0
        %1624 = vmatpush1.bf16.msra.mxu0 %v1492
        %1625 = vmatprep.subr.bf16.mxu0 0
        %1626 = vmatpush1.bf16.msra.mxu0 %v1493
        %1627 = vmatprep.subr.bf16.mxu0 0
        %1628 = vmatpush1.bf16.msra.mxu0 %v1494
        %1629 = vmatprep.subr.bf16.mxu0 0
        %1630 = vmatpush1.bf16.msra.mxu0 %v1495
        %1631 = vmatprep.subr.bf16.mxu0 0
        %1632 = vmatpush1.bf16.msra.mxu0 %v1496
        %1633 = vmatprep.subr.bf16.mxu0 0
        %1634 = vmatpush1.bf16.msra.mxu0 %v1497
        %1635 = vmatprep.subr.bf16.mxu0 0
        %1636 = vmatpush1.bf16.msra.mxu0 0
        %1637 = vmatprep.subr.bf16.mxu0 0
        %1638 = vmatpush1.bf16.msra.mxu0 0
        %1639 = vmatprep.subr.bf16.mxu0 0
        %1640 = vmatpush1.bf16.msra.mxu0 0
        %1641 = vmatprep.subr.bf16.mxu0 0
        %1642 = vmatpush1.bf16.msra.mxu0 0
        %1643 = vmatprep.subr.bf16.mxu0 0
        %1644 = vmatpush1.bf16.msra.mxu0 0
        %1645 = vmatprep.subr.bf16.mxu0 0
        %1646 = vmatpush1.bf16.msra.mxu0 0
        %1647 = vmatprep.subr.bf16.mxu0 0
        %1648 = vmatpush1.bf16.msra.mxu0 0
        %1649 = vmatprep.subr.bf16.mxu0 0
        %1650 = vmatpush1.bf16.msra.mxu0 0
        %1651 = vmatprep.mubr.bf16.mxu0 0
        %1652 = vmatmul.mubr.bf16.gmra.mrb[0].mxu0 %v548
        %v1653 = vpop.f32.mrb[0].mxu0
        %v1654 = vadd.f32 %v1557, %v1653
        %v1655 = vpop.f32.mrb[0].mxu0
        %v1656 = vpop.f32.mrb[0].mxu0
        %v1657 = vadd.f32 %v1560, %v1656
        %v1658 = vpop.f32.mrb[0].mxu0
        %1659 = vmatprep.mubr.bf16.mxu0 0
        %1660 = vmatmul.mubr.bf16.gmra.mrb[0].mxu0 %v549
        %v1661 = vpop.f32.mrb[0].mxu0
        %v1662 = vadd.f32 %v1565, %v1661
        %v1663 = vpop.f32.mrb[0].mxu0
        %v1664 = vpop.f32.mrb[0].mxu0
        %v1665 = vadd.f32 %v1568, %v1664
        %v1666 = vpop.f32.mrb[0].mxu0
        %1667 = vmatprep.mubr.bf16.mxu0 0
        %1668 = vmatmul.mubr.bf16.gmra.mrb[0].mxu0 %v550
        %v1669 = vpop.f32.mrb[0].mxu0
        %v1670 = vadd.f32 %v1573, %v1669
        %v1671 = vpop.f32.mrb[0].mxu0
        %v1672 = vpop.f32.mrb[0].mxu0
        %v1673 = vadd.f32 %v1576, %v1672
        %v1674 = vpop.f32.mrb[0].mxu0
        %1675 = vmatprep.mubr.bf16.mxu0 0
        %1676 = vmatmul.mubr.bf16.gmra.mrb[0].mxu0 %v551
        %v1677 = vpop.f32.mrb[0].mxu0
        %v1678 = vadd.f32 %v1581, %v1677
        %v1679 = vpop.f32.mrb[0].mxu0
        %v1680 = vpop.f32.mrb[0].mxu0
        %v1681 = vadd.f32 %v1584, %v1680
        %v1682 = vpop.f32.mrb[0].mxu0
        %1683 = vmatprep.mubr.bf16.mxu0 0
        %1684 = vmatmul.mubr.bf16.gmra.mrb[0].mxu0 %v552
        %v1685 = vpop.f32.mrb[0].mxu0
        %v1686 = vadd.f32 %v1589, %v1685
        %v1687 = vpop.f32.mrb[0].mxu0
        %v1688 = vpop.f32.mrb[0].mxu0
        %v1689 = vadd.f32 %v1592, %v1688
        %v1690 = vpop.f32.mrb[0].mxu0
        %1691 = vmatprep.mubr.bf16.mxu0 0
        %1692 = vmatmul.mubr.bf16.gmra.mrb[0].mxu0 %v553
        %v1693 = vpop.f32.mrb[0].mxu0
        %v1694 = vadd.f32 %v1597, %v1693
        %v1695 = vpop.f32.mrb[0].mxu0
        %v1696 = vpop.f32.mrb[0].mxu0
        %v1697 = vadd.f32 %v1600, %v1696
        %v1698 = vpop.f32.mrb[0].mxu0
        %1699 = vmatprep.mubr.bf16.mxu0 0
        %1700 = vmatmul.mubr.bf16.gmra.mrb[0].mxu0 %v554
        %v1701 = vpop.f32.mrb[0].mxu0
        %v1702 = vadd.f32 %v1605, %v1701
        %v1703 = vpop.f32.mrb[0].mxu0
        %v1704 = vpop.f32.mrb[0].mxu0
        %v1705 = vadd.f32 %v1608, %v1704
        %v1706 = vpop.f32.mrb[0].mxu0
        %1707 = vmatprep.mubr.bf16.mxu0 0
        %1708 = vmatmul.mubr.bf16.gmra.mrb[0].mxu0 %v555
        %v1709 = vpop.f32.mrb[0].mxu0
        %v1710 = vadd.f32 %v1613, %v1709
        %v1711 = vpop.f32.mrb[0].mxu0
        %v1712 = vpop.f32.mrb[0].mxu0
        %v1713 = vadd.f32 %v1616, %v1712
        %v1714 = vpop.f32.mrb[0].mxu0
        %1715 = vdwg.mxu0
        %v1716 = vadd.f32 %v1267, %v1654
        %v1717 = vadd.f32 %v1270, %v1657
        %v1718 = vadd.f32 %v1275, %v1662
        %v1719 = vadd.f32 %v1278, %v1665
        %v1720 = vadd.f32 %v1283, %v1670
        %v1721 = vadd.f32 %v1286, %v1673
        %v1722 = vadd.f32 %v1291, %v1678
        %v1723 = vadd.f32 %v1294, %v1681
        %v1724 = vadd.f32 %v1299, %v1686
        %v1725 = vadd.f32 %v1302, %v1689
        %v1726 = vadd.f32 %v1307, %v1694
        %v1727 = vadd.f32 %v1310, %v1697
        %v1728 = vadd.f32 %v1315, %v1702
        %v1729 = vadd.f32 %v1318, %v1705
        %v1730 = vadd.f32 %v1323, %v1710
        %v1731 = vadd.f32 %v1326, %v1713
        %v1732 = vld [vmem:[#allocation9] sm:$0x1]
        %v1734 = vlaneseq
        %v1735 = vshrl.u32 %v1734, 7
        %v1736 = vsub.s32 0, %v1735
        %v1737 = vrot.slane %v1732, %v1736
        %v1739 = vadd.f32 %v1716, %v1737
        %v1740 = vadd.f32 %v1717, %v1737
        %v1741 = vadd.f32 %v1718, %v1737
        %v1742 = vadd.f32 %v1719, %v1737
        %v1743 = vadd.f32 %v1720, %v1737
        %v1744 = vadd.f32 %v1721, %v1737
        %v1745 = vadd.f32 %v1722, %v1737
        %v1746 = vadd.f32 %v1723, %v1737
        %v1747 = vadd.f32 %v1724, %v1737
        %v1748 = vadd.f32 %v1725, %v1737
        %v1749 = vadd.f32 %v1726, %v1737
        %v1750 = vadd.f32 %v1727, %v1737
        %v1751 = vadd.f32 %v1728, %v1737
        %v1752 = vadd.f32 %v1729, %v1737
        %v1753 = vadd.f32 %v1730, %v1737
        %v1754 = vadd.f32 %v1731, %v1737
        %v1755 = vpack.c.bf16 %v1740, %v1739
        %v1756 = vpack.c.bf16 %v1742, %v1741
        %v1757 = vpack.c.bf16 %v1744, %v1743
        %v1758 = vpack.c.bf16 %v1746, %v1745
        %v1759 = vpack.c.bf16 %v1748, %v1747
        %v1760 = vpack.c.bf16 %v1750, %v1749
        %v1761 = vpack.c.bf16 %v1752, %v1751
        %v1762 = vpack.c.bf16 %v1754, %v1753
        %v1771 = vunpack.c.l.b16 %v1755
        %v1772 = vunpack.c.h.b16 %v1755
        %v1773 = vunpack.c.l.b16 %v1756
        %v1774 = vunpack.c.h.b16 %v1756
        %v1775 = vunpack.c.l.b16 %v1757
        %v1776 = vunpack.c.h.b16 %v1757
        %v1777 = vunpack.c.l.b16 %v1758
        %v1778 = vunpack.c.h.b16 %v1758
        %v1779 = vunpack.c.l.b16 %v1759
        %v1780 = vunpack.c.h.b16 %v1759
        %v1781 = vunpack.c.l.b16 %v1760
        %v1782 = vunpack.c.h.b16 %v1760
        %v1783 = vunpack.c.l.b16 %v1761
        %v1784 = vunpack.c.h.b16 %v1761
        %v1785 = vunpack.c.l.b16 %v1762
        %v1786 = vunpack.c.h.b16 %v1762
        %v1787 = vpack.c.b16 %v1771, %v1771
        %v1788 = vpack.c.b16 %v1772, %v1772
        %v1789 = vpack.c.b16 %v1773, %v1773
        %v1790 = vpack.c.b16 %v1774, %v1774
        %v1791 = vpack.c.b16 %v1775, %v1775
        %v1792 = vpack.c.b16 %v1776, %v1776
        %v1793 = vpack.c.b16 %v1777, %v1777
        %v1794 = vpack.c.b16 %v1778, %v1778
        %v1795 = vpack.c.b16 %v1779, %v1779
        %v1796 = vpack.c.b16 %v1780, %v1780
        %v1797 = vpack.c.b16 %v1781, %v1781
        %v1798 = vpack.c.b16 %v1782, %v1782
        %v1799 = vpack.c.b16 %v1783, %v1783
        %v1800 = vpack.c.b16 %v1784, %v1784
        %v1801 = vpack.c.b16 %v1785, %v1785
        %v1802 = vpack.c.b16 %v1786, %v1786
        %1819 = vst [vmem:[%s235] sm:$0xf] %v1787
        %1820 = vst [vmem:[%s235 + $0x4] sm:$0xf] %v1788
        %1821 = vst [vmem:[%s235 + $0x8] sm:$0xf] %v1789
        %1822 = vst [vmem:[%s235 + $0xc] sm:$0xf] %v1790
        %1823 = vst [vmem:[%s235 + $0x10] sm:$0xf] %v1791
        %1824 = vst [vmem:[%s235 + $0x14] sm:$0xf] %v1792
        %1825 = vst [vmem:[%s235 + $0x18] sm:$0xf] %v1793
        %1826 = vst [vmem:[%s235 + $0x1c] sm:$0xf] %v1794
        %1827 = vst [vmem:[%s235 + $0x20] sm:$0xf] %v1795
        %1828 = vst [vmem:[%s235 + $0x24] sm:$0xf] %v1796
        %1829 = vst [vmem:[%s235 + $0x28] sm:$0xf] %v1797
        %1830 = vst [vmem:[%s235 + $0x2c] sm:$0xf] %v1798
        %1831 = vst [vmem:[%s235 + $0x30] sm:$0xf] %v1799
        %1832 = vst [vmem:[%s235 + $0x34] sm:$0xf] %v1800
        %1833 = vst [vmem:[%s235 + $0x38] sm:$0xf] %v1801
        %1834 = vst [vmem:[%s235 + $0x3c] sm:$0xf] %v1802
        %s1835 = sand.u32 %s114, 1
        %s1836 = scalar_lea.sflag [#allocation6], %s1835
        %s1837 = sand.u32 %s114, 1
        %s1838 = smul.addr %s1837, 64
        %s1839 = scalar_lea.vmem [#allocation10], %s1838
        // Predicated region
        $region77: #{edsr_forward.5} parent=31 // pred_check
          %p1840 = pneg %p124
        $region78: #{edsr_forward.5} parent=31 // pred_check_branch
          %1842 = sbr.rel (%p1840) target = $region80
        $region79: #{edsr_forward.5} parent=31 // pred_region
          %s1843 = smul.u32 8, %s27
          %s1845 = ssub.s32 1024, 1024
          %1846 = vsyncadd %s1836, %s1845
          %s1847 = smul.addr %s1843, 2
          %s1848 = smul.addr %s26, 32
          %s1849 = sadd.s32 %s1847, %s1848
          %s1850 = smul.addr %s1849, 64
          %s1851 = scalar_lea.hbm %s4, %s1850
          %s1852 = sshll.u32 %s1839, 4
          %s1853 = int_to_ptr.vmem [resolvable:$true] %s1852
          %1858 = dma.vmem_to_hbm [thread:$0]  %s1853, 1024, %s1851, %s1836, 64, 64, 4
        $region80: #{edsr_forward.5} parent=31 // pred_fallthru
          _
      $region32: #{edsr_forward.5} parent=5 // pred_fallthru
        _
      %p1859 = scmp.le.s32.totalorder 2, %s17
      // Predicated region
      $region81: #{edsr_forward.5} parent=5 // pred_check
        %p1860 = pneg %p1859
      $region82: #{edsr_forward.5} parent=5 // pred_check_branch
        %1862 = sbr.rel (%p1860) target = $region84
      $region83: #{edsr_forward.5} parent=5 // pred_region
        %s1863 = ssub.s32 %s17, 2
        // Predicated region
        $region85: #{edsr_forward.5} parent=83 // pred_check
          %p1864 = pneg %p130
        $region86: #{edsr_forward.5} parent=83 // pred_check_branch
          %1866 = sbr.rel (%p1864) target = $region88
        $region87: #{edsr_forward.5} parent=83 // pred_region
          %s1867 = sand.u32 %s115, 1
          %s1868 = scalar_lea.sflag [#allocation6], %s1867
          %s1869 = sand.u32 %s115, 1
          %s1870 = smul.addr %s1869, 64
          %s1871 = scalar_lea.vmem [#allocation10], %s1870
          %1872 = dma.done %s1868, 1024
        $region88: #{edsr_forward.5} parent=83 // pred_fallthru
          _
      $region84: #{edsr_forward.5} parent=5 // pred_fallthru
        _
    $region6: #{edsr_forward.5} parent=1 // loop_footer
      %s21 = sadd.s32 1, %s17
    $region7: #{edsr_forward.5} parent=1 // loop_footer_branch
      %16 = sbr.rel target = $region3
    $region8: #{edsr_forward.5} parent=1 // loop_exit
      _
    %1873 = vsyncpa [#allocation5], 1
    %s1874 = scalar_lea.sflag [#allocation5], 1
    %1875 = vsyncpa %s1874, 1
    %1876 = vsyncpa [#allocation8], 1
    %1877 = vsyncpa [#allocation6], 1
    %s1878 = scalar_lea.sflag [#allocation6], 1
    %1879 = vsyncpa %s1878, 1
  %1880 = vsyncmov [#allocation3]
  %s1881 = vpop.sfrf %1880
  %p1882 = scmp.eq.s32.totalorder %s1881, 0
  %p1883 = pneg %p1882
  %1885 = shalt.err (%p1883)
  %s1886 = scalar_lea.sflag [#allocation3], 1
  %1887 = vsyncmov %s1886
  %s1888 = vpop.sfrf %1887
  %p1889 = scmp.eq.s32.totalorder %s1888, 0
  %p1890 = pneg %p1889
  %1892 = shalt.err (%p1890)

// kernel: edsr_forward.8
$region0: #{edsr_forward.8}
  #allocation0 [shape = 'u32[]', space=smem, size = 0x4, offset = 0x4, fixed_abs, tag = 'smem constant byte address 0x4 - core index']
  #allocation1 [shape = 'u32[144,128]{1,0:T(1,128)}', space=vmem, size = 0x12000, scoped, tag = 'internal scratch']
  #allocation2 [shape = 'bf16[2,16,128]{2,1,0:T(16,128)(2,1)}', space=vmem, size = 0x2000, scoped, tag = 'scratch operand']
  #allocation3 [shape = 's32[2]{0}', space=sflag, size = 0x8, scoped, tag = 'scratch operand']
  #allocation13 [shape = 's32[]', space=sflag, size = 0x4, offset = 0, fixed_abs, tag = 'sflag constant byte address 0x0 - dummy sync flag']
  #allocation14 [shape = 's32[]', space=sflag, size = 0x4, offset = 0, fixed_abs, tag = 'sflag constant byte address 0x0 - dummy sync flag']
  #allocation15 [shape = 'u32[]', space=smem, size = 0x4, offset = 0x44, fixed_abs, tag = 'smem constant byte address 0x44 - assertion arg 0']
  #allocation16 [shape = 'u32[]', space=smem, size = 0x4, offset = 0x48, fixed_abs, tag = 'smem constant byte address 0x48 - assertion arg 1']
  #allocation17 [shape = 's32[]', space=sflag, size = 0x4, offset = 0, fixed_abs, tag = 'sflag constant byte address 0x0 - dummy sync flag']
  #allocation18 [shape = 's32[]', space=sflag, size = 0x4, offset = 0, fixed_abs, tag = 'sflag constant byte address 0x0 - dummy sync flag']
  %s0 = inlined_call_operand.hbm [shape: bf16[2,16,16,128], index: 0, kind: input, shape index: {}, may-alias: {0,1}]
  %s1 = inlined_call_operand.hbm [shape: bf16[2,16,16,128], index: 1, kind: input, shape index: {}, may-alias: {0,1}]
  %s2 = inlined_call_operand.hbm [shape: bf16[3,384,128], index: 2, kind: input, shape index: {}]
  %s3 = inlined_call_operand.hbm [shape: f32[1,128], index: 3, kind: input, shape index: {}]
  %s4 = inlined_call_operand.hbm [shape: bf16[2,16,16,128], index: 4, kind: input, shape index: {}]
  %s5 = inlined_call_operand.hbm [shape: bf16[2,16,16,128], index: 5, kind: output, shape index: {}]
  %s6 = sld [smem:[#allocation0]]
  $region97: #{edsr_forward.8} parent=0
    _
  %s8 = ssub.s32 1, %s6
  %s9 = scalar_select 0, %s8, %s6
  $region1: #{edsr_forward.8} parent=0
    #allocation4 [shape = 'u8[65536]{0}', space=vmem, size = 0x10000, scoped, tag = 'input window, operand 0']
    #allocation5 [shape = 's32[2]{0}', space=sflag, size = 0x8, scoped, tag = 'scoped memory for edsr_forward.8']
    #allocation6 [shape = 's32[2]{0}', space=sflag, size = 0x8, scoped, tag = 'scoped memory for edsr_forward.8']
    #allocation7 [shape = 'u8[294912]{0}', space=vmem, size = 0x48000, scoped, tag = 'input window, operand 2, single buffered']
    #allocation8 [shape = 's32[1]{0}', space=sflag, size = 0x4, scoped, tag = 'scoped memory for edsr_forward.8']
    #allocation9 [shape = 'u8[512]{0}', space=vmem, size = 0x400, scoped, tag = 'input window, operand 3, single buffered']
    #allocation10 [shape = 'u8[65536]{0}', space=vmem, size = 0x10000, scoped, tag = 'input window, operand 4']
    #allocation11 [shape = 's32[2]{0}', space=sflag, size = 0x8, scoped, tag = 'scoped memory for edsr_forward.8']
    #allocation12 [shape = 'u8[65536]{0}', space=vmem, size = 0x10000, scoped, tag = 'output window, operand 0']
    %10 = vsyncpa [#allocation5], 0
    %s11 = scalar_lea.sflag [#allocation5], 1
    %12 = vsyncpa %s11, 0
    %13 = vsyncpa [#allocation8], 0
    %14 = vsyncpa [#allocation11], 0
    %s15 = scalar_lea.sflag [#allocation11], 1
    %16 = vsyncpa %s15, 0
    %17 = vsyncpa [#allocation6], 0
    %s18 = scalar_lea.sflag [#allocation6], 1
    %19 = vsyncpa %s18, 0
    loop: start=0, step=1, limit=6
    $region2: #{edsr_forward.8} parent=1 // loop_pre_header
      _
    $region3: #{edsr_forward.8} parent=1 // loop_header
      %s21 = sphi 0, %s25
      %p22 = scmp.ge.s32.totalorder %s21, 6
      %s28 = sphi 0, %s40
      %s29 = sphi 0, %s36
      %s30 = sphi 0, %s28
      %s31 = sphi 0, %s29
      %s32 = sphi 0, %s30
      %s33 = sphi 0, %s31
      %s45 = sphi 0, %s47
      %s48 = sphi 0, %s45
      %s49 = sphi 0, %s48
      %s65 = sphi 0, %s49
      %s69 = sphi 0, %s69
      %s71 = sphi 0, %s69
      %s72 = sphi 0, %s71
      %s86 = sphi 0, %s72
      %s90 = sphi 0, %s90
      %s92 = sphi 0, %s90
      %s93 = sphi 0, %s92
      %s107 = sphi 0, %s93
      %s115 = sphi 0, %s117
      %s118 = sphi 0, %s115
      %s119 = sphi 0, %s118
      %s135 = sphi 0, %s119
      %s143 = sphi 0, %s145
      %s146 = sphi 0, %s143
      %s147 = sphi 0, %s146
      %s163 = sphi 0, %s147
    $region4: #{edsr_forward.8} parent=1 // loop_header_branch
      %24 = sbr.rel (%p22) target = $region8
    $region5: #{edsr_forward.8} parent=1 // loop_body
      %s26 = ssub.s32 %s21, 1
      %s27 = ssub.s32 %s21, 2
      %s34 = sadd.s32 1, %s29
      %p35 = scmp.ge.s32.totalorder %s34, 2
      %s36 = scalar_select %p35, 0, %s34
      %s37 = sadd.s32 1, %s28
      %s38 = scalar_select %p35, %s37, %s28
      %p39 = scmp.ge.s32.totalorder %s38, 2
      %s40 = scalar_select %p39, 0, %s38
      %s41 = ssub.s32 %s28, %s40
      %s42 = ssub.s32 %s29, %s36
      %s43 = sor.u32 %s41, %s42
      %p44 = scmp.eq.s32.totalorder %s43, 0
      %s46 = sadd.s32 %s45, 1
      %s47 = scalar_select %p44, %s45, %s46
      %p50 = pneg %p44
      %p51 = scmp.eq.s32.totalorder %s21, 3
      %p52 = por %p50, %p51
      %p53 = scmp.ne.s32.totalorder %s45, %s48
      %p54 = scmp.eq.s32.totalorder %s21, 0
      %p55 = por %p53, %p54
      %p56 = scmp.ne.s32.totalorder %s45, %s48
      %p57 = scmp.eq.s32.totalorder %s26, 3
      %p58 = por %p56, %p57
      %p59 = scmp.ne.s32.totalorder %s48, %s49
      %p60 = scmp.eq.s32.totalorder %s26, 0
      %p61 = por %p59, %p60
      %p62 = scmp.ne.s32.totalorder %s48, %s49
      %p63 = scmp.eq.s32.totalorder %s27, 3
      %p64 = por %p62, %p63
      %p66 = scmp.ne.s32.totalorder %s49, %s65
      %p67 = scmp.eq.s32.totalorder %s27, 0
      %p68 = por %p66, %p67
      %s70 = sadd.s32 %s69, 1
      %p73 = scmp.eq.s32.totalorder %s21, 3
      %p74 = scmp.ne.s32.totalorder %s69, %s71
      %p75 = scmp.eq.s32.totalorder %s21, 0
      %p76 = por %p74, %p75
      %p77 = scmp.ne.s32.totalorder %s69, %s71
      %p78 = scmp.eq.s32.totalorder %s26, 3
      %p79 = por %p77, %p78
      %p80 = scmp.ne.s32.totalorder %s71, %s72
      %p81 = scmp.eq.s32.totalorder %s26, 0
      %p82 = por %p80, %p81
      %p83 = scmp.ne.s32.totalorder %s71, %s72
      %p84 = scmp.eq.s32.totalorder %s27, 3
      %p85 = por %p83, %p84
      %p87 = scmp.ne.s32.totalorder %s72, %s86
      %p88 = scmp.eq.s32.totalorder %s27, 0
      %p89 = por %p87, %p88
      %s91 = sadd.s32 %s90, 1
      %p94 = scmp.eq.s32.totalorder %s21, 3
      %p95 = scmp.ne.s32.totalorder %s90, %s92
      %p96 = scmp.eq.s32.totalorder %s21, 0
      %p97 = por %p95, %p96
      %p98 = scmp.ne.s32.totalorder %s90, %s92
      %p99 = scmp.eq.s32.totalorder %s26, 3
      %p100 = por %p98, %p99
      %p101 = scmp.ne.s32.totalorder %s92, %s93
      %p102 = scmp.eq.s32.totalorder %s26, 0
      %p103 = por %p101, %p102
      %p104 = scmp.ne.s32.totalorder %s92, %s93
      %p105 = scmp.eq.s32.totalorder %s27, 3
      %p106 = por %p104, %p105
      %p108 = scmp.ne.s32.totalorder %s93, %s107
      %p109 = scmp.eq.s32.totalorder %s27, 0
      %p110 = por %p108, %p109
      %s111 = ssub.s32 %s28, %s40
      %s112 = ssub.s32 %s29, %s36
      %s113 = sor.u32 %s111, %s112
      %p114 = scmp.eq.s32.totalorder %s113, 0
      %s116 = sadd.s32 %s115, 1
      %s117 = scalar_select %p114, %s115, %s116
      %p120 = pneg %p114
      %p121 = scmp.eq.s32.totalorder %s21, 3
      %p122 = por %p120, %p121
      %p123 = scmp.ne.s32.totalorder %s115, %s118
      %p124 = scmp.eq.s32.totalorder %s21, 0
      %p125 = por %p123, %p124
      %p126 = scmp.ne.s32.totalorder %s115, %s118
      %p127 = scmp.eq.s32.totalorder %s26, 3
      %p128 = por %p126, %p127
      %p129 = scmp.ne.s32.totalorder %s118, %s119
      %p130 = scmp.eq.s32.totalorder %s26, 0
      %p131 = por %p129, %p130
      %p132 = scmp.ne.s32.totalorder %s118, %s119
      %p133 = scmp.eq.s32.totalorder %s27, 3
      %p134 = por %p132, %p133
      %p136 = scmp.ne.s32.totalorder %s119, %s135
      %p137 = scmp.eq.s32.totalorder %s27, 0
      %p138 = por %p136, %p137
      %s139 = ssub.s32 %s28, %s40
      %s140 = ssub.s32 %s29, %s36
      %s141 = sor.u32 %s139, %s140
      %p142 = scmp.eq.s32.totalorder %s141, 0
      %s144 = sadd.s32 %s143, 1
      %s145 = scalar_select %p142, %s143, %s144
      %p148 = pneg %p142
      %p149 = scmp.eq.s32.totalorder %s21, 3
      %p150 = por %p148, %p149
      %p151 = scmp.ne.s32.totalorder %s143, %s146
      %p152 = scmp.eq.s32.totalorder %s21, 0
      %p153 = por %p151, %p152
      %p154 = scmp.ne.s32.totalorder %s143, %s146
      %p155 = scmp.eq.s32.totalorder %s26, 3
      %p156 = por %p154, %p155
      %p157 = scmp.ne.s32.totalorder %s146, %s147
      %p158 = scmp.eq.s32.totalorder %s26, 0
      %p159 = por %p157, %p158
      %p160 = scmp.ne.s32.totalorder %s146, %s147
      %p161 = scmp.eq.s32.totalorder %s27, 3
      %p162 = por %p160, %p161
      %p164 = scmp.ne.s32.totalorder %s147, %s163
      %p165 = scmp.eq.s32.totalorder %s27, 0
      %p166 = por %p164, %p165
      %p167 = scmp.le.s32.totalorder 1, %s21
      %p168 = scmp.lt.s32.totalorder %s21, 5
      %p169 = pnand %p167, %p168
      %p170 = pneg %p169
      // Predicated region
      $region9: #{edsr_forward.8} parent=5 // pred_check
        _
      $region10: #{edsr_forward.8} parent=5 // pred_check_branch
        %172 = sbr.rel (%p169) target = $region12
      $region11: #{edsr_forward.8} parent=5 // pred_region
        %s173 = ssub.s32 %s21, 1
        // Predicated region
        $region13: #{edsr_forward.8} parent=11 // pred_check
          %p174 = pneg %p82
        $region14: #{edsr_forward.8} parent=11 // pred_check_branch
          %176 = sbr.rel (%p174) target = $region16
        $region15: #{edsr_forward.8} parent=11 // pred_region
          %s178 = ssub.s32 9216, 9216
          %179 = vsyncadd [#allocation8], %s178
          %s180 = sshll.u32 [#allocation7], 4
          %s181 = int_to_ptr.vmem [resolvable:$true] %s180
          %186 = dma.hbm_to_vmem [thread:$0]  %s2, 9216, %s181, [#allocation8], 64, 64, 4
        $region16: #{edsr_forward.8} parent=11 // pred_fallthru
          _
        // Predicated region
        $region17: #{edsr_forward.8} parent=11 // pred_check
          %p187 = pneg %p103
        $region18: #{edsr_forward.8} parent=11 // pred_check_branch
          %189 = sbr.rel (%p187) target = $region20
        $region19: #{edsr_forward.8} parent=11 // pred_region
          %s191 = ssub.s32 16, 16
          %192 = vsyncadd [#allocation8], %s191
          %s194 = sshll.u32 [#allocation9], 4
          %s195 = int_to_ptr.vmem [resolvable:$true] %s194
          %197 = dma.hbm_to_vmem [thread:$0]  %s3, 16, %s195, [#allocation8]
        $region20: #{edsr_forward.8} parent=11 // pred_fallthru
          _
      $region12: #{edsr_forward.8} parent=5 // pred_fallthru
        _
      %p198 = scmp.lt.s32.totalorder %s21, 4
      // Predicated region
      $region21: #{edsr_forward.8} parent=5 // pred_check
        %p199 = pneg %p198
      $region22: #{edsr_forward.8} parent=5 // pred_check_branch
        %201 = sbr.rel (%p199) target = $region24
      $region23: #{edsr_forward.8} parent=5 // pred_region
        // Predicated region
        $region25: #{edsr_forward.8} parent=23 // pred_check
          %p202 = pneg %p55
        $region26: #{edsr_forward.8} parent=23 // pred_check_branch
          %204 = sbr.rel (%p202) target = $region28
        $region27: #{edsr_forward.8} parent=23 // pred_region
          %s205 = sand.u32 %s45, 1
          %s206 = scalar_lea.sflag [#allocation5], %s205
          %s207 = sand.u32 %s45, 1
          %s208 = smul.addr %s207, 64
          %s209 = scalar_lea.vmem [#allocation4], %s208
          %s210 = smul.u32 8, %s29
          %s212 = ssub.s32 1024, 1024
          %213 = vsyncadd %s206, %s212
          %s214 = smul.addr %s210, 2
          %s215 = smul.addr %s28, 32
          %s216 = sadd.s32 %s214, %s215
          %s217 = smul.addr %s216, 64
          %s218 = scalar_lea.hbm %s0, %s217
          %s219 = sshll.u32 %s209, 4
          %s220 = int_to_ptr.vmem [resolvable:$true] %s219
          %225 = dma.hbm_to_vmem [thread:$0]  %s218, 1024, %s220, %s206, 64, 64, 4
        $region28: #{edsr_forward.8} parent=23 // pred_fallthru
          _
        // Predicated region
        $region29: #{edsr_forward.8} parent=23 // pred_check
          %p226 = pneg %p125
        $region30: #{edsr_forward.8} parent=23 // pred_check_branch
          %228 = sbr.rel (%p226) target = $region32
        $region31: #{edsr_forward.8} parent=23 // pred_region
          %s229 = sand.u32 %s115, 1
          %s230 = scalar_lea.sflag [#allocation11], %s229
          %s231 = sand.u32 %s115, 1
          %s232 = smul.addr %s231, 64
          %s233 = scalar_lea.vmem [#allocation10], %s232
          %s234 = smul.u32 8, %s29
          %s236 = ssub.s32 1024, 1024
          %237 = vsyncadd %s230, %s236
          %s238 = smul.addr %s234, 2
          %s239 = smul.addr %s28, 32
          %s240 = sadd.s32 %s238, %s239
          %s241 = smul.addr %s240, 64
          %s242 = scalar_lea.hbm %s4, %s241
          %s243 = sshll.u32 %s233, 4
          %s244 = int_to_ptr.vmem [resolvable:$true] %s243
          %249 = dma.hbm_to_vmem [thread:$0]  %s242, 1024, %s244, %s230, 64, 64, 4
        $region32: #{edsr_forward.8} parent=23 // pred_fallthru
          _
      $region24: #{edsr_forward.8} parent=5 // pred_fallthru
        _
      %p250 = scmp.le.s32.totalorder 1, %s21
      %p251 = scmp.lt.s32.totalorder %s21, 5
      %p252 = pnand %p250, %p251
      %p253 = pneg %p252
      // Predicated region
      $region33: #{edsr_forward.8} parent=5 // pred_check
        _
      $region34: #{edsr_forward.8} parent=5 // pred_check_branch
        %255 = sbr.rel (%p252) target = $region36
      $region35: #{edsr_forward.8} parent=5 // pred_region
        %s256 = ssub.s32 %s21, 1
        %s257 = sand.u32 %s48, 1
        %s258 = scalar_lea.sflag [#allocation5], %s257
        %s259 = sand.u32 %s48, 1
        %s260 = smul.addr %s259, 64
        %s261 = scalar_lea.vmem [#allocation4], %s260
        // Predicated region
        $region37: #{edsr_forward.8} parent=35 // pred_check
          %p262 = pneg %p61
        $region38: #{edsr_forward.8} parent=35 // pred_check_branch
          %264 = sbr.rel (%p262) target = $region40
        $region39: #{edsr_forward.8} parent=35 // pred_region
          %265 = dma.done %s258, 1024
        $region40: #{edsr_forward.8} parent=35 // pred_fallthru
          _
        // Predicated region
        $region41: #{edsr_forward.8} parent=35 // pred_check
          %p266 = pneg %p82
        $region42: #{edsr_forward.8} parent=35 // pred_check_branch
          %268 = sbr.rel (%p266) target = $region44
        $region43: #{edsr_forward.8} parent=35 // pred_region
          %269 = dma.done [#allocation8], 9216
        $region44: #{edsr_forward.8} parent=35 // pred_fallthru
          _
        // Predicated region
        $region45: #{edsr_forward.8} parent=35 // pred_check
          %p270 = pneg %p103
        $region46: #{edsr_forward.8} parent=35 // pred_check_branch
          %272 = sbr.rel (%p270) target = $region48
        $region47: #{edsr_forward.8} parent=35 // pred_region
          %273 = dma.done [#allocation8], 16
        $region48: #{edsr_forward.8} parent=35 // pred_fallthru
          _
        %s274 = sand.u32 %s118, 1
        %s275 = scalar_lea.sflag [#allocation11], %s274
        %s276 = sand.u32 %s118, 1
        %s277 = smul.addr %s276, 64
        %s278 = scalar_lea.vmem [#allocation10], %s277
        // Predicated region
        $region49: #{edsr_forward.8} parent=35 // pred_check
          %p279 = pneg %p131
        $region50: #{edsr_forward.8} parent=35 // pred_check_branch
          %281 = sbr.rel (%p279) target = $region52
        $region51: #{edsr_forward.8} parent=35 // pred_region
          %282 = dma.done %s275, 1024
        $region52: #{edsr_forward.8} parent=35 // pred_fallthru
          _
        %s283 = sand.u32 %s48, 1
        %s284 = scalar_lea.sflag [#allocation5], %s283
        %s285 = sand.u32 %s48, 1
        %s286 = smul.addr %s285, 64
        %s287 = scalar_lea.vmem [#allocation4], %s286
        %p288 = pneg %p61
        %p289 = pneg %p58
        %p290 = pneg %p82
        %p291 = pneg %p79
        %p292 = pneg %p103
        %p293 = pneg %p100
        %s294 = sand.u32 %s118, 1
        %s295 = scalar_lea.sflag [#allocation11], %s294
        %s296 = sand.u32 %s118, 1
        %s297 = smul.addr %s296, 64
        %s298 = scalar_lea.vmem [#allocation10], %s297
        %p299 = pneg %p131
        %p300 = pneg %p128
        %p301 = pneg %p159
        %p302 = pneg %p156
        %s303 = sand.u32 %s146, 1
        %s304 = scalar_lea.sflag [#allocation6], %s303
        %s305 = sand.u32 %s146, 1
        %s306 = smul.addr %s305, 64
        %s307 = scalar_lea.vmem [#allocation12], %s306
        %s308 = smul.u32 8, %s31
        %s309 = smul.u32 8, %s31
        %s310 = smul.u32 8, %s31
        %s312 = smul.u32 %s31, 8
        %p313 = scmp.gt.s32.totalorder %s31, 0
        // Predicated region
        $region53: #{edsr_forward.8} parent=35 // pred_check
          %p314 = pneg %p313
        $region54: #{edsr_forward.8} parent=35 // pred_check_branch
          %316 = sbr.rel (%p314) target = $region56
        $region55: #{edsr_forward.8} parent=35 // pred_region
          %s317 = ssub.s32 %s312, 1
          %s318 = smul.u32 %s317, 2
          %s319 = smul.u32 %s30, 32
          %s320 = sadd.s32 %s318, %s319
          %s321 = smul.addr %s320, 64
          %s322 = scalar_lea.hbm %s1, %s321
          // Predicated region
          $region57: #{edsr_forward.8} parent=55 // pred_check
            _
          $region58: #{edsr_forward.8} parent=55 // pred_check_branch
            %324 = sbr.rel target = $region60
          $region59: #{edsr_forward.8} parent=55 // pred_region
            %325 = sst [smem:[#allocation15]] [#allocation14]
            %326 = sst [smem:[#allocation16]] [#allocation13]
          $region60: #{edsr_forward.8} parent=55 // pred_fallthru
            _
          %328 = shalt.err (0)
          %s330 = sshll.u32 [#allocation2], 4
          %s331 = int_to_ptr.vmem [resolvable:$true] %s330
          %333 = dma.hbm_to_vmem [thread:$0]  %s322, 128, %s331, [#allocation3]
        $region56: #{edsr_forward.8} parent=35 // pred_fallthru
          _
        %p334 = scmp.eq.s32.totalorder %s31, 0
        // Predicated region
        $region61: #{edsr_forward.8} parent=35 // pred_check
          %p335 = pneg %p334
        $region62: #{edsr_forward.8} parent=35 // pred_check_branch
          %337 = sbr.rel (%p335) target = $region64
        $region63: #{edsr_forward.8} parent=35 // pred_region
          %338 = vst [vmem:[#allocation2] sm:$0xff] 0
        $region64: #{edsr_forward.8} parent=35 // pred_fallthru
          _
        %p339 = scmp.lt.s32.totalorder %s31, 1
        // Predicated region
        $region65: #{edsr_forward.8} parent=35 // pred_check
          %p340 = pneg %p339
        $region66: #{edsr_forward.8} parent=35 // pred_check_branch
          %342 = sbr.rel (%p340) target = $region68
        $region67: #{edsr_forward.8} parent=35 // pred_region
          %s343 = sadd.s32 %s312, 8
          %s344 = smul.u32 %s343, 2
          %s345 = smul.u32 %s30, 32
          %s346 = sadd.s32 %s344, %s345
          %s347 = smul.addr %s346, 64
          %s348 = scalar_lea.hbm %s1, %s347
          %s349 = scalar_lea.vmem [#allocation2], 8
          %s350 = scalar_lea.sflag [#allocation3], 1
          // Predicated region
          $region69: #{edsr_forward.8} parent=67 // pred_check
            _
          $region70: #{edsr_forward.8} parent=67 // pred_check_branch
            %352 = sbr.rel target = $region72
          $region71: #{edsr_forward.8} parent=67 // pred_region
            %353 = sst [smem:[#allocation15]] [#allocation18]
            %354 = sst [smem:[#allocation16]] [#allocation17]
          $region72: #{edsr_forward.8} parent=67 // pred_fallthru
            _
          %356 = shalt.err (0)
          %s358 = sshll.u32 %s349, 4
          %s359 = int_to_ptr.vmem [resolvable:$true] %s358
          %361 = dma.hbm_to_vmem [thread:$0]  %s348, 128, %s359, %s350
        $region68: #{edsr_forward.8} parent=35 // pred_fallthru
          _
        %p362 = scmp.eq.s32.totalorder %s31, 1
        // Predicated region
        $region73: #{edsr_forward.8} parent=35 // pred_check
          %p363 = pneg %p362
        $region74: #{edsr_forward.8} parent=35 // pred_check_branch
          %365 = sbr.rel (%p363) target = $region76
        $region75: #{edsr_forward.8} parent=35 // pred_region
          %s366 = scalar_lea.vmem [#allocation2], 8
          %367 = vst [vmem:[%s366] sm:$0xff] 0
        $region76: #{edsr_forward.8} parent=35 // pred_fallthru
          _
        // Predicated region
        $region77: #{edsr_forward.8} parent=35 // pred_check
          %p368 = pneg %p313
        $region78: #{edsr_forward.8} parent=35 // pred_check_branch
          %370 = sbr.rel (%p368) target = $region80
        $region79: #{edsr_forward.8} parent=35 // pred_region
          %s371 = smul.u32 4, 1
          %s372 = smul.u32 %s371, 2
          %s373 = smul.u32 %s372, 1
          %s374 = sshll.u32 %s373, 4
          %375 = dma.done [#allocation3], %s374
        $region80: #{edsr_forward.8} parent=35 // pred_fallthru
          _
        // Predicated region
        $region81: #{edsr_forward.8} parent=35 // pred_check
          %p376 = pneg %p339
        $region82: #{edsr_forward.8} parent=35 // pred_check_branch
          %378 = sbr.rel (%p376) target = $region84
        $region83: #{edsr_forward.8} parent=35 // pred_region
          %s379 = scalar_lea.sflag [#allocation3], 1
          %s380 = smul.u32 4, 1
          %s381 = smul.u32 %s380, 2
          %s382 = smul.u32 %s381, 1
          %s383 = sshll.u32 %s382, 4
          %384 = dma.done %s379, %s383
        $region84: #{edsr_forward.8} parent=35 // pred_fallthru
          _
        %v385 = vld [vmem:[#allocation2] sm:$0xff]
        %v386 = vld [vmem:[%s261] sm:$0xf]
        %v387 = vld [vmem:[%s261 + $0x4] sm:$0xf]
        %v388 = vld [vmem:[%s261 + $0x8] sm:$0xf]
        %v389 = vld [vmem:[%s261 + $0xc] sm:$0xf]
        %v390 = vld [vmem:[%s261 + $0x10] sm:$0xf]
        %v391 = vld [vmem:[%s261 + $0x14] sm:$0xf]
        %v392 = vld [vmem:[%s261 + $0x18] sm:$0xf]
        %v393 = vld [vmem:[%s261 + $0x1c] sm:$0xf]
        %v394 = vld [vmem:[%s261 + $0x20] sm:$0xf]
        %v395 = vld [vmem:[%s261 + $0x24] sm:$0xf]
        %v396 = vld [vmem:[%s261 + $0x28] sm:$0xf]
        %v397 = vld [vmem:[%s261 + $0x2c] sm:$0xf]
        %v398 = vld [vmem:[%s261 + $0x30] sm:$0xf]
        %v399 = vld [vmem:[%s261 + $0x34] sm:$0xf]
        %v400 = vld [vmem:[%s261 + $0x38] sm:$0xf]
        %v401 = vld [vmem:[%s261 + $0x3c] sm:$0xf]
        %s402 = scalar_lea.vmem [#allocation2], 8
        %v403 = vld [vmem:[%s402] sm:$0xff]
        %v420 = vunpack.c.l.b16 %v386
        %v421 = vunpack.c.l.b16 %v387
        %v422 = vunpack.c.l.b16 %v388
        %v423 = vunpack.c.l.b16 %v389
        %v424 = vunpack.c.l.b16 %v390
        %v425 = vunpack.c.l.b16 %v391
        %v426 = vunpack.c.l.b16 %v392
        %v427 = vunpack.c.l.b16 %v393
        %v428 = vunpack.c.l.b16 %v394
        %v429 = vunpack.c.l.b16 %v395
        %v430 = vunpack.c.l.b16 %v396
        %v431 = vunpack.c.l.b16 %v397
        %v432 = vunpack.c.l.b16 %v398
        %v433 = vunpack.c.l.b16 %v399
        %v434 = vunpack.c.l.b16 %v400
        %v435 = vunpack.c.l.b16 %v401
        %v436 = vpack.c.b16 %v421, %v420
        %v437 = vpack.c.b16 %v423, %v422
        %v438 = vpack.c.b16 %v425, %v424
        %v439 = vpack.c.b16 %v427, %v426
        %v440 = vpack.c.b16 %v429, %v428
        %v441 = vpack.c.b16 %v431, %v430
        %v442 = vpack.c.b16 %v433, %v432
        %v443 = vpack.c.b16 %v435, %v434
        %v452 = vunpack.c.l.bf16 %v385
        %v453 = vunpack.c.h.bf16 %v385
        %v454 = vunpack.c.l.bf16 %v436
        %v455 = vunpack.c.h.bf16 %v436
        %v456 = vunpack.c.l.bf16 %v437
        %v457 = vunpack.c.h.bf16 %v437
        %v458 = vunpack.c.l.bf16 %v438
        %v459 = vunpack.c.h.bf16 %v438
        %v460 = vunpack.c.l.bf16 %v439
        %v461 = vunpack.c.h.bf16 %v439
        %v462 = vunpack.c.l.bf16 %v440
        %v463 = vunpack.c.h.bf16 %v440
        %v464 = vunpack.c.l.bf16 %v441
        %v465 = vunpack.c.h.bf16 %v441
        %v466 = vunpack.c.l.bf16 %v442
        %v467 = vunpack.c.h.bf16 %v442
        %v468 = vunpack.c.l.bf16 %v443
        %v469 = vunpack.c.h.bf16 %v443
        %v470 = vunpack.c.l.bf16 %v403
        %v471 = vunpack.c.h.bf16 %v403
        %v472 = vrot.slane %v452, 7
        %v473 = vrot.slane %v453, 7
        %v474 = vrot.slane %v454, 7
        %v475 = vrot.slane %v455, 7
        %v476 = vrot.slane %v456, 7
        %v477 = vrot.slane %v457, 7
        %v478 = vrot.slane %v458, 7
        %v479 = vrot.slane %v459, 7
        %v480 = vrot.slane %v460, 7
        %v481 = vrot.slane %v461, 7
        %v482 = vrot.slane %v462, 7
        %v483 = vrot.slane %v463, 7
        %v484 = vrot.slane %v464, 7
        %v485 = vrot.slane %v465, 7
        %v486 = vrot.slane %v466, 7
        %v487 = vrot.slane %v467, 7
        %v488 = vrot.slane %v468, 7
        %v489 = vrot.slane %v469, 7
        %v490 = vrot.slane %v470, 7
        %v491 = vrot.slane %v471, 7
        %v492 = vlaneseq
        %v493 = vshrl.u32 %v492, 7
        %vm494 = vcmp.lt.s32.totalorder %v493, 1
        %v495 = vsel %vm494, %v490, %v491
        %v496 = vsel %vm494, %v489, %v490
        %v497 = vsel %vm494, %v488, %v489
        %v498 = vsel %vm494, %v487, %v488
        %v499 = vsel %vm494, %v486, %v487
        %v500 = vsel %vm494, %v485, %v486
        %v501 = vsel %vm494, %v484, %v485
        %v502 = vsel %vm494, %v483, %v484
        %v503 = vsel %vm494, %v482, %v483
        %v504 = vsel %vm494, %v481, %v482
        %v505 = vsel %vm494, %v480, %v481
        %v506 = vsel %vm494, %v479, %v480
        %v507 = vsel %vm494, %v478, %v479
        %v508 = vsel %vm494, %v477, %v478
        %v509 = vsel %vm494, %v476, %v477
        %v510 = vsel %vm494, %v475, %v476
        %v511 = vsel %vm494, %v474, %v475
        %v512 = vsel %vm494, %v473, %v474
        %v513 = vsel %vm494, %v472, %v473
        %v514 = vsel %vm494, %v491, %v472
        %v515 = vrot.slane %v452, 1
        %v516 = vrot.slane %v453, 1
        %v517 = vrot.slane %v454, 1
        %v518 = vrot.slane %v455, 1
        %v519 = vrot.slane %v456, 1
        %v520 = vrot.slane %v457, 1
        %v521 = vrot.slane %v458, 1
        %v522 = vrot.slane %v459, 1
        %v523 = vrot.slane %v460, 1
        %v524 = vrot.slane %v461, 1
        %v525 = vrot.slane %v462, 1
        %v526 = vrot.slane %v463, 1
        %v527 = vrot.slane %v464, 1
        %v528 = vrot.slane %v465, 1
        %v529 = vrot.slane %v466, 1
        %v530 = vrot.slane %v467, 1
        %v531 = vrot.slane %v468, 1
        %v532 = vrot.slane %v469, 1
        %v533 = vrot.slane %v470, 1
        %v534 = vrot.slane %v471, 1
        %vm535 = vcmp.lt.s32.totalorder %v493, 7
        %v536 = vsel %vm535, %v533, %v534
        %v537 = vsel %vm535, %v532, %v533
        %v538 = vsel %vm535, %v531, %v532
        %v539 = vsel %vm535, %v530, %v531
        %v540 = vsel %vm535, %v529, %v530
        %v541 = vsel %vm535, %v528, %v529
        %v542 = vsel %vm535, %v527, %v528
        %v543 = vsel %vm535, %v526, %v527
        %v544 = vsel %vm535, %v525, %v526
        %v545 = vsel %vm535, %v524, %v525
        %v546 = vsel %vm535, %v523, %v524
        %v547 = vsel %vm535, %v522, %v523
        %v548 = vsel %vm535, %v521, %v522
        %v549 = vsel %vm535, %v520, %v521
        %v550 = vsel %vm535, %v519, %v520
        %v551 = vsel %vm535, %v518, %v519
        %v552 = vsel %vm535, %v517, %v518
        %v553 = vsel %vm535, %v516, %v517
        %v554 = vsel %vm535, %v515, %v516
        %v555 = vsel %vm535, %v534, %v515
        %v556 = vadd.s32 %v493, 8
        %vm557 = vcmp.eq.s32.totalorder %v493, 0
        %vm558 = vcmp.eq.s32.totalorder %v556, 0
        %v559 = vsel %vm557, 1, 0
        %v560 = vsel %vm558, 1, 0
        %vm561 = vcmp.eq.s32.totalorder %v559, 1
        %vm562 = vcmp.eq.s32.totalorder %v560, 1
        %v563 = vsel %vm561, 0.0, %v514
        %v564 = vsel %vm562, 0.0, %v513
        %v565 = vsel %vm561, 0.0, %v512
        %v566 = vsel %vm562, 0.0, %v511
        %v567 = vsel %vm561, 0.0, %v510
        %v568 = vsel %vm562, 0.0, %v509
        %v569 = vsel %vm561, 0.0, %v508
        %v570 = vsel %vm562, 0.0, %v507
        %v571 = vsel %vm561, 0.0, %v506
        %v572 = vsel %vm562, 0.0, %v505
        %v573 = vsel %vm561, 0.0, %v504
        %v574 = vsel %vm562, 0.0, %v503
        %v575 = vsel %vm561, 0.0, %v502
        %v576 = vsel %vm562, 0.0, %v501
        %v577 = vsel %vm561, 0.0, %v500
        %v578 = vsel %vm562, 0.0, %v499
        %v579 = vsel %vm561, 0.0, %v498
        %v580 = vsel %vm562, 0.0, %v497
        %v581 = vsel %vm561, 0.0, %v496
        %v582 = vsel %vm562, 0.0, %v495
        %v583 = vpack.c.bf16 %v564, %v563
        %v584 = vpack.c.bf16 %v566, %v565
        %v585 = vpack.c.bf16 %v568, %v567
        %v586 = vpack.c.bf16 %v570, %v569
        %v587 = vpack.c.bf16 %v572, %v571
        %v588 = vpack.c.bf16 %v574, %v573
        %v589 = vpack.c.bf16 %v576, %v575
        %v590 = vpack.c.bf16 %v578, %v577
        %v591 = vpack.c.bf16 %v580, %v579
        %v592 = vpack.c.bf16 %v582, %v581
        %vm593 = vcmp.eq.s32.totalorder %v493, 15
        %vm594 = vcmp.eq.s32.totalorder %v556, 15
        %v595 = vsel %vm593, 1, 0
        %v596 = vsel %vm594, 1, 0
        %vm597 = vcmp.eq.s32.totalorder %v595, 1
        %vm598 = vcmp.eq.s32.totalorder %v596, 1
        %v599 = vsel %vm597, 0.0, %v554
        %v600 = vsel %vm598, 0.0, %v553
        %v601 = vsel %vm597, 0.0, %v552
        %v602 = vsel %vm598, 0.0, %v551
        %v603 = vsel %vm597, 0.0, %v550
        %v604 = vsel %vm598, 0.0, %v549
        %v605 = vsel %vm597, 0.0, %v548
        %v606 = vsel %vm598, 0.0, %v547
        %v607 = vsel %vm597, 0.0, %v546
        %v608 = vsel %vm598, 0.0, %v545
        %v609 = vsel %vm597, 0.0, %v544
        %v610 = vsel %vm598, 0.0, %v543
        %v611 = vsel %vm597, 0.0, %v542
        %v612 = vsel %vm598, 0.0, %v541
        %v613 = vsel %vm597, 0.0, %v540
        %v614 = vsel %vm598, 0.0, %v539
        %v615 = vsel %vm597, 0.0, %v538
        %v616 = vsel %vm598, 0.0, %v537
        %v617 = vsel %vm597, 0.0, %v536
        %v618 = vsel %vm598, 0.0, %v555
        %v619 = vpack.c.bf16 %v600, %v599
        %v620 = vpack.c.bf16 %v602, %v601
        %v621 = vpack.c.bf16 %v604, %v603
        %v622 = vpack.c.bf16 %v606, %v605
        %v623 = vpack.c.bf16 %v608, %v607
        %v624 = vpack.c.bf16 %v610, %v609
        %v625 = vpack.c.bf16 %v612, %v611
        %v626 = vpack.c.bf16 %v614, %v613
        %v627 = vpack.c.bf16 %v616, %v615
        %v628 = vpack.c.bf16 %v618, %v617
        %v629 = vld [vmem:[#allocation7] sm:$0xf]
        %v630 = vld [vmem:[#allocation7 + $0x4] sm:$0xf]
        %v631 = vld [vmem:[#allocation7 + $0x8] sm:$0xf]
        %v632 = vld [vmem:[#allocation7 + $0xc] sm:$0xf]
        %v633 = vld [vmem:[#allocation7 + $0x10] sm:$0xf]
        %v634 = vld [vmem:[#allocation7 + $0x14] sm:$0xf]
        %v635 = vld [vmem:[#allocation7 + $0x18] sm:$0xf]
        %v636 = vld [vmem:[#allocation7 + $0x1c] sm:$0xf]
        %v637 = vld [vmem:[#allocation7 + $0x20] sm:$0xf]
        %v638 = vld [vmem:[#allocation7 + $0x24] sm:$0xf]
        %v639 = vld [vmem:[#allocation7 + $0x28] sm:$0xf]
        %v640 = vld [vmem:[#allocation7 + $0x2c] sm:$0xf]
        %v641 = vld [vmem:[#allocation7 + $0x30] sm:$0xf]
        %v642 = vld [vmem:[#allocation7 + $0x34] sm:$0xf]
        %v643 = vld [vmem:[#allocation7 + $0x38] sm:$0xf]
        %v644 = vld [vmem:[#allocation7 + $0x3c] sm:$0xf]
        %v645 = vld [vmem:[#allocation7 + $0x40] sm:$0xf]
        %v646 = vld [vmem:[#allocation7 + $0x44] sm:$0xf]
        %v647 = vld [vmem:[#allocation7 + $0x48] sm:$0xf]
        %v648 = vld [vmem:[#allocation7 + $0x4c] sm:$0xf]
        %v649 = vld [vmem:[#allocation7 + $0x50] sm:$0xf]
        %v650 = vld [vmem:[#allocation7 + $0x54] sm:$0xf]
        %v651 = vld [vmem:[#allocation7 + $0x58] sm:$0xf]
        %v652 = vld [vmem:[#allocation7 + $0x5c] sm:$0xf]
        %v653 = vld [vmem:[#allocation7 + $0x60] sm:$0xf]
        %v654 = vld [vmem:[#allocation7 + $0x64] sm:$0xf]
        %v655 = vld [vmem:[#allocation7 + $0x68] sm:$0xf]
        %v656 = vld [vmem:[#allocation7 + $0x6c] sm:$0xf]
        %v657 = vld [vmem:[#allocation7 + $0x70] sm:$0xf]
        %v658 = vld [vmem:[#allocation7 + $0x74] sm:$0xf]
        %v659 = vld [vmem:[#allocation7 + $0x78] sm:$0xf]
        %v660 = vld [vmem:[#allocation7 + $0x7c] sm:$0xf]
        %v661 = vld [vmem:[#allocation7 + $0x80] sm:$0xf]
        %v662 = vld [vmem:[#allocation7 + $0x84] sm:$0xf]
        %v663 = vld [vmem:[#allocation7 + $0x88] sm:$0xf]
        %v664 = vld [vmem:[#allocation7 + $0x8c] sm:$0xf]
        %v665 = vld [vmem:[#allocation7 + $0x90] sm:$0xf]
        %v666 = vld [vmem:[#allocation7 + $0x94] sm:$0xf]
        %v667 = vld [vmem:[#allocation7 + $0x98] sm:$0xf]
        %v668 = vld [vmem:[#allocation7 + $0x9c] sm:$0xf]
        %v669 = vld [vmem:[#allocation7 + $0xa0] sm:$0xf]
        %v670 = vld [vmem:[#allocation7 + $0xa4] sm:$0xf]
        %v671 = vld [vmem:[#allocation7 + $0xa8] sm:$0xf]
        %v672 = vld [vmem:[#allocation7 + $0xac] sm:$0xf]
        %v673 = vld [vmem:[#allocation7 + $0xb0] sm:$0xf]
        %v674 = vld [vmem:[#allocation7 + $0xb4] sm:$0xf]
        %v675 = vld [vmem:[#allocation7 + $0xb8] sm:$0xf]
        %v676 = vld [vmem:[#allocation7 + $0xbc] sm:$0xf]
        %s677 = scalar_lea.vmem [#allocation7], 192
        %v678 = vld [vmem:[%s677] sm:$0xf]
        %v679 = vld [vmem:[%s677 + $0x4] sm:$0xf]
        %v680 = vld [vmem:[%s677 + $0x8] sm:$0xf]
        %v681 = vld [vmem:[%s677 + $0xc] sm:$0xf]
        %v682 = vld [vmem:[%s677 + $0x10] sm:$0xf]
        %v683 = vld [vmem:[%s677 + $0x14] sm:$0xf]
        %v684 = vld [vmem:[%s677 + $0x18] sm:$0xf]
        %v685 = vld [vmem:[%s677 + $0x1c] sm:$0xf]
        %v686 = vld [vmem:[%s677 + $0x20] sm:$0xf]
        %v687 = vld [vmem:[%s677 + $0x24] sm:$0xf]
        %v688 = vld [vmem:[%s677 + $0x28] sm:$0xf]
        %v689 = vld [vmem:[%s677 + $0x2c] sm:$0xf]
        %v690 = vld [vmem:[%s677 + $0x30] sm:$0xf]
        %v691 = vld [vmem:[%s677 + $0x34] sm:$0xf]
        %v692 = vld [vmem:[%s677 + $0x38] sm:$0xf]
        %v693 = vld [vmem:[%s677 + $0x3c] sm:$0xf]
        %v694 = vld [vmem:[%s677 + $0x40] sm:$0xf]
        %v695 = vld [vmem:[%s677 + $0x44] sm:$0xf]
        %v696 = vld [vmem:[%s677 + $0x48] sm:$0xf]
        %v697 = vld [vmem:[%s677 + $0x4c] sm:$0xf]
        %v698 = vld [vmem:[%s677 + $0x50] sm:$0xf]
        %v699 = vld [vmem:[%s677 + $0x54] sm:$0xf]
        %v700 = vld [vmem:[%s677 + $0x58] sm:$0xf]
        %v701 = vld [vmem:[%s677 + $0x5c] sm:$0xf]
        %v702 = vld [vmem:[%s677 + $0x60] sm:$0xf]
        %v703 = vld [vmem:[%s677 + $0x64] sm:$0xf]
        %v704 = vld [vmem:[%s677 + $0x68] sm:$0xf]
        %v705 = vld [vmem:[%s677 + $0x6c] sm:$0xf]
        %v706 = vld [vmem:[%s677 + $0x70] sm:$0xf]
        %v707 = vld [vmem:[%s677 + $0x74] sm:$0xf]
        %v708 = vld [vmem:[%s677 + $0x78] sm:$0xf]
        %v709 = vld [vmem:[%s677 + $0x7c] sm:$0xf]
        %v710 = vld [vmem:[%s677 + $0x80] sm:$0xf]
        %v711 = vld [vmem:[%s677 + $0x84] sm:$0xf]
        %v712 = vld [vmem:[%s677 + $0x88] sm:$0xf]
        %v713 = vld [vmem:[%s677 + $0x8c] sm:$0xf]
        %v714 = vld [vmem:[%s677 + $0x90] sm:$0xf]
        %v715 = vld [vmem:[%s677 + $0x94] sm:$0xf]
        %v716 = vld [vmem:[%s677 + $0x98] sm:$0xf]
        %v717 = vld [vmem:[%s677 + $0x9c] sm:$0xf]
        %v718 = vld [vmem:[%s677 + $0xa0] sm:$0xf]
        %v719 = vld [vmem:[%s677 + $0xa4] sm:$0xf]
        %v720 = vld [vmem:[%s677 + $0xa8] sm:$0xf]
        %v721 = vld [vmem:[%s677 + $0xac] sm:$0xf]
        %v722 = vld [vmem:[%s677 + $0xb0] sm:$0xf]
        %v723 = vld [vmem:[%s677 + $0xb4] sm:$0xf]
        %v724 = vld [vmem:[%s677 + $0xb8] sm:$0xf]
        %v725 = vld [vmem:[%s677 + $0xbc] sm:$0xf]
        %v774 = vunpack.c.l.b16 %v678
        %v775 = vunpack.c.l.b16 %v679
        %v776 = vunpack.c.l.b16 %v680
        %v777 = vunpack.c.l.b16 %v681
        %v778 = vunpack.c.l.b16 %v682
        %v779 = vunpack.c.l.b16 %v683
        %v780 = vunpack.c.l.b16 %v684
        %v781 = vunpack.c.l.b16 %v685
        %v782 = vunpack.c.l.b16 %v686
        %v783 = vunpack.c.l.b16 %v687
        %v784 = vunpack.c.l.b16 %v688
        %v785 = vunpack.c.l.b16 %v689
        %v786 = vunpack.c.l.b16 %v690
        %v787 = vunpack.c.l.b16 %v691
        %v788 = vunpack.c.l.b16 %v692
        %v789 = vunpack.c.l.b16 %v693
        %v790 = vunpack.c.l.b16 %v694
        %v791 = vunpack.c.l.b16 %v695
        %v792 = vunpack.c.l.b16 %v696
        %v793 = vunpack.c.l.b16 %v697
        %v794 = vunpack.c.l.b16 %v698
        %v795 = vunpack.c.l.b16 %v699
        %v796 = vunpack.c.l.b16 %v700
        %v797 = vunpack.c.l.b16 %v701
        %v798 = vunpack.c.l.b16 %v702
        %v799 = vunpack.c.l.b16 %v703
        %v800 = vunpack.c.l.b16 %v704
        %v801 = vunpack.c.l.b16 %v705
        %v802 = vunpack.c.l.b16 %v706
        %v803 = vunpack.c.l.b16 %v707
        %v804 = vunpack.c.l.b16 %v708
        %v805 = vunpack.c.l.b16 %v709
        %v806 = vunpack.c.l.b16 %v710
        %v807 = vunpack.c.l.b16 %v711
        %v808 = vunpack.c.l.b16 %v712
        %v809 = vunpack.c.l.b16 %v713
        %v810 = vunpack.c.l.b16 %v714
        %v811 = vunpack.c.l.b16 %v715
        %v812 = vunpack.c.l.b16 %v716
        %v813 = vunpack.c.l.b16 %v717
        %v814 = vunpack.c.l.b16 %v718
        %v815 = vunpack.c.l.b16 %v719
        %v816 = vunpack.c.l.b16 %v720
        %v817 = vunpack.c.l.b16 %v721
        %v818 = vunpack.c.l.b16 %v722
        %v819 = vunpack.c.l.b16 %v723
        %v820 = vunpack.c.l.b16 %v724
        %v821 = vunpack.c.l.b16 %v725
        %v822 = vpack.c.b16 %v775, %v774
        %v823 = vpack.c.b16 %v777, %v776
        %v824 = vpack.c.b16 %v779, %v778
        %v825 = vpack.c.b16 %v781, %v780
        %v826 = vpack.c.b16 %v783, %v782
        %v827 = vpack.c.b16 %v785, %v784
        %v828 = vpack.c.b16 %v787, %v786
        %v829 = vpack.c.b16 %v789, %v788
        %v830 = vpack.c.b16 %v791, %v790
        %v831 = vpack.c.b16 %v793, %v792
        %v832 = vpack.c.b16 %v795, %v794
        %v833 = vpack.c.b16 %v797, %v796
        %v834 = vpack.c.b16 %v799, %v798
        %v835 = vpack.c.b16 %v801, %v800
        %v836 = vpack.c.b16 %v803, %v802
        %v837 = vpack.c.b16 %v805, %v804
        %v838 = vpack.c.b16 %v807, %v806
        %v839 = vpack.c.b16 %v809, %v808
        %v840 = vpack.c.b16 %v811, %v810
        %v841 = vpack.c.b16 %v813, %v812
        %v842 = vpack.c.b16 %v815, %v814
        %v843 = vpack.c.b16 %v817, %v816
        %v844 = vpack.c.b16 %v819, %v818
        %v845 = vpack.c.b16 %v821, %v820
        %870 = vmatprep.subr.bf16.mxu0 0
        %871 = vmatpush1.bf16.msra.mxu0 %v822
        %872 = vmatprep.subr.bf16.mxu0 0
        %873 = vmatpush1.bf16.msra.mxu0 %v823
        %874 = vmatprep.subr.bf16.mxu0 0
        %875 = vmatpush1.bf16.msra.mxu0 %v824
        %876 = vmatprep.subr.bf16.mxu0 0
        %877 = vmatpush1.bf16.msra.mxu0 %v825
        %878 = vmatprep.subr.bf16.mxu0 0
        %879 = vmatpush1.bf16.msra.mxu0 %v826
        %880 = vmatprep.subr.bf16.mxu0 0
        %881 = vmatpush1.bf16.msra.mxu0 %v827
        %882 = vmatprep.subr.bf16.mxu0 0
        %883 = vmatpush1.bf16.msra.mxu0 %v828
        %884 = vmatprep.subr.bf16.mxu0 0
        %885 = vmatpush1.bf16.msra.mxu0 %v829
        %886 = vmatprep.subr.bf16.mxu0 0
        %887 = vmatpush1.bf16.msra.mxu0 %v830
        %888 = vmatprep.subr.bf16.mxu0 0
        %889 = vmatpush1.bf16.msra.mxu0 %v831
        %890 = vmatprep.subr.bf16.mxu0 0
        %891 = vmatpush1.bf16.msra.mxu0 %v832
        %892 = vmatprep.subr.bf16.mxu0 0
        %893 = vmatpush1.bf16.msra.mxu0 %v833
        %894 = vmatprep.subr.bf16.mxu0 0
        %895 = vmatpush1.bf16.msra.mxu0 %v834
        %896 = vmatprep.subr.bf16.mxu0 0
        %897 = vmatpush1.bf16.msra.mxu0 %v835
        %898 = vmatprep.subr.bf16.mxu0 0
        %899 = vmatpush1.bf16.msra.mxu0 %v836
        %900 = vmatprep.subr.bf16.mxu0 0
        %901 = vmatpush1.bf16.msra.mxu0 %v837
        %902 = vmatprep.mubr.bf16.mxu0 %v436
        %903 = vmatmul.mubr.bf16.gmra.mrb[0].mxu0 %v584
        %v904 = vpop.f32.mrb[0].mxu0
        %v905 = vadd.f32 0.0, %v904
        %v906 = vpop.f32.mrb[0].mxu0
        %v907 = vpop.f32.mrb[0].mxu0
        %v908 = vadd.f32 0.0, %v907
        %v909 = vpop.f32.mrb[0].mxu0
        %910 = vmatprep.mubr.bf16.mxu0 %v437
        %911 = vmatmul.mubr.bf16.gmra.mrb[0].mxu0 %v585
        %v912 = vpop.f32.mrb[0].mxu0
        %v913 = vadd.f32 0.0, %v912
        %v914 = vpop.f32.mrb[0].mxu0
        %v915 = vpop.f32.mrb[0].mxu0
        %v916 = vadd.f32 0.0, %v915
        %v917 = vpop.f32.mrb[0].mxu0
        %918 = vmatprep.mubr.bf16.mxu0 %v438
        %919 = vmatmul.mubr.bf16.gmra.mrb[0].mxu0 %v586
        %v920 = vpop.f32.mrb[0].mxu0
        %v921 = vadd.f32 0.0, %v920
        %v922 = vpop.f32.mrb[0].mxu0
        %v923 = vpop.f32.mrb[0].mxu0
        %v924 = vadd.f32 0.0, %v923
        %v925 = vpop.f32.mrb[0].mxu0
        %926 = vmatprep.mubr.bf16.mxu0 %v439
        %927 = vmatmul.mubr.bf16.gmra.mrb[0].mxu0 %v587
        %v928 = vpop.f32.mrb[0].mxu0
        %v929 = vadd.f32 0.0, %v928
        %v930 = vpop.f32.mrb[0].mxu0
        %v931 = vpop.f32.mrb[0].mxu0
        %v932 = vadd.f32 0.0, %v931
        %v933 = vpop.f32.mrb[0].mxu0
        %934 = vmatprep.mubr.bf16.mxu0 %v440
        %935 = vmatmul.mubr.bf16.gmra.mrb[0].mxu0 %v588
        %v936 = vpop.f32.mrb[0].mxu0
        %v937 = vadd.f32 0.0, %v936
        %v938 = vpop.f32.mrb[0].mxu0
        %v939 = vpop.f32.mrb[0].mxu0
        %v940 = vadd.f32 0.0, %v939
        %v941 = vpop.f32.mrb[0].mxu0
        %942 = vmatprep.mubr.bf16.mxu0 %v441
        %943 = vmatmul.mubr.bf16.gmra.mrb[0].mxu0 %v589
        %v944 = vpop.f32.mrb[0].mxu0
        %v945 = vadd.f32 0.0, %v944
        %v946 = vpop.f32.mrb[0].mxu0
        %v947 = vpop.f32.mrb[0].mxu0
        %v948 = vadd.f32 0.0, %v947
        %v949 = vpop.f32.mrb[0].mxu0
        %950 = vmatprep.mubr.bf16.mxu0 %v442
        %951 = vmatmul.mubr.bf16.gmra.mrb[0].mxu0 %v590
        %v952 = vpop.f32.mrb[0].mxu0
        %v953 = vadd.f32 0.0, %v952
        %v954 = vpop.f32.mrb[0].mxu0
        %v955 = vpop.f32.mrb[0].mxu0
        %v956 = vadd.f32 0.0, %v955
        %v957 = vpop.f32.mrb[0].mxu0
        %958 = vmatprep.mubr.bf16.mxu0 %v443
        %959 = vmatmul.mubr.bf16.gmra.mrb[0].mxu0 %v591
        %v960 = vpop.f32.mrb[0].mxu0
        %v961 = vadd.f32 0.0, %v960
        %v962 = vpop.f32.mrb[0].mxu0
        %v963 = vpop.f32.mrb[0].mxu0
        %v964 = vadd.f32 0.0, %v963
        %v965 = vpop.f32.mrb[0].mxu0
        %966 = vdwg.mxu0
        %967 = vmatprep.subr.bf16.mxu0 0
        %968 = vmatpush1.bf16.msra.mxu0 %v838
        %969 = vmatprep.subr.bf16.mxu0 0
        %970 = vmatpush1.bf16.msra.mxu0 %v839
        %971 = vmatprep.subr.bf16.mxu0 0
        %972 = vmatpush1.bf16.msra.mxu0 %v840
        %973 = vmatprep.subr.bf16.mxu0 0
        %974 = vmatpush1.bf16.msra.mxu0 %v841
        %975 = vmatprep.subr.bf16.mxu0 0
        %976 = vmatpush1.bf16.msra.mxu0 %v842
        %977 = vmatprep.subr.bf16.mxu0 0
        %978 = vmatpush1.bf16.msra.mxu0 %v843
        %979 = vmatprep.subr.bf16.mxu0 0
        %980 = vmatpush1.bf16.msra.mxu0 %v844
        %981 = vmatprep.subr.bf16.mxu0 0
        %982 = vmatpush1.bf16.msra.mxu0 %v845
        %983 = vmatprep.subr.bf16.mxu0 0
        %984 = vmatpush1.bf16.msra.mxu0 0
        %985 = vmatprep.subr.bf16.mxu0 0
        %986 = vmatpush1.bf16.msra.mxu0 0
        %987 = vmatprep.subr.bf16.mxu0 0
        %988 = vmatpush1.bf16.msra.mxu0 0
        %989 = vmatprep.subr.bf16.mxu0 0
        %990 = vmatpush1.bf16.msra.mxu0 0
        %991 = vmatprep.subr.bf16.mxu0 0
        %992 = vmatpush1.bf16.msra.mxu0 0
        %993 = vmatprep.subr.bf16.mxu0 0
        %994 = vmatpush1.bf16.msra.mxu0 0
        %995 = vmatprep.subr.bf16.mxu0 0
        %996 = vmatpush1.bf16.msra.mxu0 0
        %997 = vmatprep.subr.bf16.mxu0 0
        %998 = vmatpush1.bf16.msra.mxu0 0
        %999 = vmatprep.mubr.bf16.mxu0 0
        %1000 = vmatmul.mubr.bf16.gmra.mrb[0].mxu0 %v620
        %v1001 = vpop.f32.mrb[0].mxu0
        %v1002 = vadd.f32 %v905, %v1001
        %v1003 = vpop.f32.mrb[0].mxu0
        %v1004 = vpop.f32.mrb[0].mxu0
        %v1005 = vadd.f32 %v908, %v1004
        %v1006 = vpop.f32.mrb[0].mxu0
        %1007 = vmatprep.mubr.bf16.mxu0 0
        %1008 = vmatmul.mubr.bf16.gmra.mrb[0].mxu0 %v621
        %v1009 = vpop.f32.mrb[0].mxu0
        %v1010 = vadd.f32 %v913, %v1009
        %v1011 = vpop.f32.mrb[0].mxu0
        %v1012 = vpop.f32.mrb[0].mxu0
        %v1013 = vadd.f32 %v916, %v1012
        %v1014 = vpop.f32.mrb[0].mxu0
        %1015 = vmatprep.mubr.bf16.mxu0 0
        %1016 = vmatmul.mubr.bf16.gmra.mrb[0].mxu0 %v622
        %v1017 = vpop.f32.mrb[0].mxu0
        %v1018 = vadd.f32 %v921, %v1017
        %v1019 = vpop.f32.mrb[0].mxu0
        %v1020 = vpop.f32.mrb[0].mxu0
        %v1021 = vadd.f32 %v924, %v1020
        %v1022 = vpop.f32.mrb[0].mxu0
        %1023 = vmatprep.mubr.bf16.mxu0 0
        %1024 = vmatmul.mubr.bf16.gmra.mrb[0].mxu0 %v623
        %v1025 = vpop.f32.mrb[0].mxu0
        %v1026 = vadd.f32 %v929, %v1025
        %v1027 = vpop.f32.mrb[0].mxu0
        %v1028 = vpop.f32.mrb[0].mxu0
        %v1029 = vadd.f32 %v932, %v1028
        %v1030 = vpop.f32.mrb[0].mxu0
        %1031 = vmatprep.mubr.bf16.mxu0 0
        %1032 = vmatmul.mubr.bf16.gmra.mrb[0].mxu0 %v624
        %v1033 = vpop.f32.mrb[0].mxu0
        %v1034 = vadd.f32 %v937, %v1033
        %v1035 = vpop.f32.mrb[0].mxu0
        %v1036 = vpop.f32.mrb[0].mxu0
        %v1037 = vadd.f32 %v940, %v1036
        %v1038 = vpop.f32.mrb[0].mxu0
        %1039 = vmatprep.mubr.bf16.mxu0 0
        %1040 = vmatmul.mubr.bf16.gmra.mrb[0].mxu0 %v625
        %v1041 = vpop.f32.mrb[0].mxu0
        %v1042 = vadd.f32 %v945, %v1041
        %v1043 = vpop.f32.mrb[0].mxu0
        %v1044 = vpop.f32.mrb[0].mxu0
        %v1045 = vadd.f32 %v948, %v1044
        %v1046 = vpop.f32.mrb[0].mxu0
        %1047 = vmatprep.mubr.bf16.mxu0 0
        %1048 = vmatmul.mubr.bf16.gmra.mrb[0].mxu0 %v626
        %v1049 = vpop.f32.mrb[0].mxu0
        %v1050 = vadd.f32 %v953, %v1049
        %v1051 = vpop.f32.mrb[0].mxu0
        %v1052 = vpop.f32.mrb[0].mxu0
        %v1053 = vadd.f32 %v956, %v1052
        %v1054 = vpop.f32.mrb[0].mxu0
        %1055 = vmatprep.mubr.bf16.mxu0 0
        %1056 = vmatmul.mubr.bf16.gmra.mrb[0].mxu0 %v627
        %v1057 = vpop.f32.mrb[0].mxu0
        %v1058 = vadd.f32 %v961, %v1057
        %v1059 = vpop.f32.mrb[0].mxu0
        %v1060 = vpop.f32.mrb[0].mxu0
        %v1061 = vadd.f32 %v964, %v1060
        %v1062 = vpop.f32.mrb[0].mxu0
        %1063 = vdwg.mxu0
        %v1112 = vunpack.c.l.b16 %v629
        %v1113 = vunpack.c.l.b16 %v630
        %v1114 = vunpack.c.l.b16 %v631
        %v1115 = vunpack.c.l.b16 %v632
        %v1116 = vunpack.c.l.b16 %v633
        %v1117 = vunpack.c.l.b16 %v634
        %v1118 = vunpack.c.l.b16 %v635
        %v1119 = vunpack.c.l.b16 %v636
        %v1120 = vunpack.c.l.b16 %v637
        %v1121 = vunpack.c.l.b16 %v638
        %v1122 = vunpack.c.l.b16 %v639
        %v1123 = vunpack.c.l.b16 %v640
        %v1124 = vunpack.c.l.b16 %v641
        %v1125 = vunpack.c.l.b16 %v642
        %v1126 = vunpack.c.l.b16 %v643
        %v1127 = vunpack.c.l.b16 %v644
        %v1128 = vunpack.c.l.b16 %v645
        %v1129 = vunpack.c.l.b16 %v646
        %v1130 = vunpack.c.l.b16 %v647
        %v1131 = vunpack.c.l.b16 %v648
        %v1132 = vunpack.c.l.b16 %v649
        %v1133 = vunpack.c.l.b16 %v650
        %v1134 = vunpack.c.l.b16 %v651
        %v1135 = vunpack.c.l.b16 %v652
        %v1136 = vunpack.c.l.b16 %v653
        %v1137 = vunpack.c.l.b16 %v654
        %v1138 = vunpack.c.l.b16 %v655
        %v1139 = vunpack.c.l.b16 %v656
        %v1140 = vunpack.c.l.b16 %v657
        %v1141 = vunpack.c.l.b16 %v658
        %v1142 = vunpack.c.l.b16 %v659
        %v1143 = vunpack.c.l.b16 %v660
        %v1144 = vunpack.c.l.b16 %v661
        %v1145 = vunpack.c.l.b16 %v662
        %v1146 = vunpack.c.l.b16 %v663
        %v1147 = vunpack.c.l.b16 %v664
        %v1148 = vunpack.c.l.b16 %v665
        %v1149 = vunpack.c.l.b16 %v666
        %v1150 = vunpack.c.l.b16 %v667
        %v1151 = vunpack.c.l.b16 %v668
        %v1152 = vunpack.c.l.b16 %v669
        %v1153 = vunpack.c.l.b16 %v670
        %v1154 = vunpack.c.l.b16 %v671
        %v1155 = vunpack.c.l.b16 %v672
        %v1156 = vunpack.c.l.b16 %v673
        %v1157 = vunpack.c.l.b16 %v674
        %v1158 = vunpack.c.l.b16 %v675
        %v1159 = vunpack.c.l.b16 %v676
        %v1160 = vpack.c.b16 %v1113, %v1112
        %v1161 = vpack.c.b16 %v1115, %v1114
        %v1162 = vpack.c.b16 %v1117, %v1116
        %v1163 = vpack.c.b16 %v1119, %v1118
        %v1164 = vpack.c.b16 %v1121, %v1120
        %v1165 = vpack.c.b16 %v1123, %v1122
        %v1166 = vpack.c.b16 %v1125, %v1124
        %v1167 = vpack.c.b16 %v1127, %v1126
        %v1168 = vpack.c.b16 %v1129, %v1128
        %v1169 = vpack.c.b16 %v1131, %v1130
        %v1170 = vpack.c.b16 %v1133, %v1132
        %v1171 = vpack.c.b16 %v1135, %v1134
        %v1172 = vpack.c.b16 %v1137, %v1136
        %v1173 = vpack.c.b16 %v1139, %v1138
        %v1174 = vpack.c.b16 %v1141, %v1140
        %v1175 = vpack.c.b16 %v1143, %v1142
        %v1176 = vpack.c.b16 %v1145, %v1144
        %v1177 = vpack.c.b16 %v1147, %v1146
        %v1178 = vpack.c.b16 %v1149, %v1148
        %v1179 = vpack.c.b16 %v1151, %v1150
        %v1180 = vpack.c.b16 %v1153, %v1152
        %v1181 = vpack.c.b16 %v1155, %v1154
        %v1182 = vpack.c.b16 %v1157, %v1156
        %v1183 = vpack.c.b16 %v1159, %v1158
        %1208 = vmatprep.subr.bf16.mxu0 0
        %1209 = vmatpush1.bf16.msra.mxu0 %v1160
        %1210 = vmatprep.subr.bf16.mxu0 0
        %1211 = vmatpush1.bf16.msra.mxu0 %v1161
        %1212 = vmatprep.subr.bf16.mxu0 0
        %1213 = vmatpush1.bf16.msra.mxu0 %v1162
        %1214 = vmatprep.subr.bf16.mxu0 0
        %1215 = vmatpush1.bf16.msra.mxu0 %v1163
        %1216 = vmatprep.subr.bf16.mxu0 0
        %1217 = vmatpush1.bf16.msra.mxu0 %v1164
        %1218 = vmatprep.subr.bf16.mxu0 0
        %1219 = vmatpush1.bf16.msra.mxu0 %v1165
        %1220 = vmatprep.subr.bf16.mxu0 0
        %1221 = vmatpush1.bf16.msra.mxu0 %v1166
        %1222 = vmatprep.subr.bf16.mxu0 0
        %1223 = vmatpush1.bf16.msra.mxu0 %v1167
        %1224 = vmatprep.subr.bf16.mxu0 0
        %1225 = vmatpush1.bf16.msra.mxu0 %v1168
        %1226 = vmatprep.subr.bf16.mxu0 0
        %1227 = vmatpush1.bf16.msra.mxu0 %v1169
        %1228 = vmatprep.subr.bf16.mxu0 0
        %1229 = vmatpush1.bf16.msra.mxu0 %v1170
        %1230 = vmatprep.subr.bf16.mxu0 0
        %1231 = vmatpush1.bf16.msra.mxu0 %v1171
        %1232 = vmatprep.subr.bf16.mxu0 0
        %1233 = vmatpush1.bf16.msra.mxu0 %v1172
        %1234 = vmatprep.subr.bf16.mxu0 0
        %1235 = vmatpush1.bf16.msra.mxu0 %v1173
        %1236 = vmatprep.subr.bf16.mxu0 0
        %1237 = vmatpush1.bf16.msra.mxu0 %v1174
        %1238 = vmatprep.subr.bf16.mxu0 0
        %1239 = vmatpush1.bf16.msra.mxu0 %v1175
        %1240 = vmatprep.mubr.bf16.mxu0 %v385
        %1241 = vmatmul.mubr.bf16.gmra.mrb[0].mxu0 %v583
        %v1242 = vpop.f32.mrb[0].mxu0
        %v1243 = vadd.f32 %v1002, %v1242
        %v1244 = vpop.f32.mrb[0].mxu0
        %v1245 = vpop.f32.mrb[0].mxu0
        %v1246 = vadd.f32 %v1005, %v1245
        %v1247 = vpop.f32.mrb[0].mxu0
        %1248 = vmatprep.mubr.bf16.mxu0 %v436
        %1249 = vmatmul.mubr.bf16.gmra.mrb[0].mxu0 %v584
        %v1250 = vpop.f32.mrb[0].mxu0
        %v1251 = vadd.f32 %v1010, %v1250
        %v1252 = vpop.f32.mrb[0].mxu0
        %v1253 = vpop.f32.mrb[0].mxu0
        %v1254 = vadd.f32 %v1013, %v1253
        %v1255 = vpop.f32.mrb[0].mxu0
        %1256 = vmatprep.mubr.bf16.mxu0 %v437
        %1257 = vmatmul.mubr.bf16.gmra.mrb[0].mxu0 %v585
        %v1258 = vpop.f32.mrb[0].mxu0
        %v1259 = vadd.f32 %v1018, %v1258
        %v1260 = vpop.f32.mrb[0].mxu0
        %v1261 = vpop.f32.mrb[0].mxu0
        %v1262 = vadd.f32 %v1021, %v1261
        %v1263 = vpop.f32.mrb[0].mxu0
        %1264 = vmatprep.mubr.bf16.mxu0 %v438
        %1265 = vmatmul.mubr.bf16.gmra.mrb[0].mxu0 %v586
        %v1266 = vpop.f32.mrb[0].mxu0
        %v1267 = vadd.f32 %v1026, %v1266
        %v1268 = vpop.f32.mrb[0].mxu0
        %v1269 = vpop.f32.mrb[0].mxu0
        %v1270 = vadd.f32 %v1029, %v1269
        %v1271 = vpop.f32.mrb[0].mxu0
        %1272 = vmatprep.mubr.bf16.mxu0 %v439
        %1273 = vmatmul.mubr.bf16.gmra.mrb[0].mxu0 %v587
        %v1274 = vpop.f32.mrb[0].mxu0
        %v1275 = vadd.f32 %v1034, %v1274
        %v1276 = vpop.f32.mrb[0].mxu0
        %v1277 = vpop.f32.mrb[0].mxu0
        %v1278 = vadd.f32 %v1037, %v1277
        %v1279 = vpop.f32.mrb[0].mxu0
        %1280 = vmatprep.mubr.bf16.mxu0 %v440
        %1281 = vmatmul.mubr.bf16.gmra.mrb[0].mxu0 %v588
        %v1282 = vpop.f32.mrb[0].mxu0
        %v1283 = vadd.f32 %v1042, %v1282
        %v1284 = vpop.f32.mrb[0].mxu0
        %v1285 = vpop.f32.mrb[0].mxu0
        %v1286 = vadd.f32 %v1045, %v1285
        %v1287 = vpop.f32.mrb[0].mxu0
        %1288 = vmatprep.mubr.bf16.mxu0 %v441
        %1289 = vmatmul.mubr.bf16.gmra.mrb[0].mxu0 %v589
        %v1290 = vpop.f32.mrb[0].mxu0
        %v1291 = vadd.f32 %v1050, %v1290
        %v1292 = vpop.f32.mrb[0].mxu0
        %v1293 = vpop.f32.mrb[0].mxu0
        %v1294 = vadd.f32 %v1053, %v1293
        %v1295 = vpop.f32.mrb[0].mxu0
        %1296 = vmatprep.mubr.bf16.mxu0 %v442
        %1297 = vmatmul.mubr.bf16.gmra.mrb[0].mxu0 %v590
        %v1298 = vpop.f32.mrb[0].mxu0
        %v1299 = vadd.f32 %v1058, %v1298
        %v1300 = vpop.f32.mrb[0].mxu0
        %v1301 = vpop.f32.mrb[0].mxu0
        %v1302 = vadd.f32 %v1061, %v1301
        %v1303 = vpop.f32.mrb[0].mxu0
        %1304 = vdwg.mxu0
        %1305 = vmatprep.subr.bf16.mxu0 0
        %1306 = vmatpush1.bf16.msra.mxu0 %v1176
        %1307 = vmatprep.subr.bf16.mxu0 0
        %1308 = vmatpush1.bf16.msra.mxu0 %v1177
        %1309 = vmatprep.subr.bf16.mxu0 0
        %1310 = vmatpush1.bf16.msra.mxu0 %v1178
        %1311 = vmatprep.subr.bf16.mxu0 0
        %1312 = vmatpush1.bf16.msra.mxu0 %v1179
        %1313 = vmatprep.subr.bf16.mxu0 0
        %1314 = vmatpush1.bf16.msra.mxu0 %v1180
        %1315 = vmatprep.subr.bf16.mxu0 0
        %1316 = vmatpush1.bf16.msra.mxu0 %v1181
        %1317 = vmatprep.subr.bf16.mxu0 0
        %1318 = vmatpush1.bf16.msra.mxu0 %v1182
        %1319 = vmatprep.subr.bf16.mxu0 0
        %1320 = vmatpush1.bf16.msra.mxu0 %v1183
        %1321 = vmatprep.subr.bf16.mxu0 0
        %1322 = vmatpush1.bf16.msra.mxu0 0
        %1323 = vmatprep.subr.bf16.mxu0 0
        %1324 = vmatpush1.bf16.msra.mxu0 0
        %1325 = vmatprep.subr.bf16.mxu0 0
        %1326 = vmatpush1.bf16.msra.mxu0 0
        %1327 = vmatprep.subr.bf16.mxu0 0
        %1328 = vmatpush1.bf16.msra.mxu0 0
        %1329 = vmatprep.subr.bf16.mxu0 0
        %1330 = vmatpush1.bf16.msra.mxu0 0
        %1331 = vmatprep.subr.bf16.mxu0 0
        %1332 = vmatpush1.bf16.msra.mxu0 0
        %1333 = vmatprep.subr.bf16.mxu0 0
        %1334 = vmatpush1.bf16.msra.mxu0 0
        %1335 = vmatprep.subr.bf16.mxu0 0
        %1336 = vmatpush1.bf16.msra.mxu0 0
        %1337 = vmatprep.mubr.bf16.mxu0 0
        %1338 = vmatmul.mubr.bf16.gmra.mrb[0].mxu0 %v619
        %v1339 = vpop.f32.mrb[0].mxu0
        %v1340 = vadd.f32 %v1243, %v1339
        %v1341 = vpop.f32.mrb[0].mxu0
        %v1342 = vpop.f32.mrb[0].mxu0
        %v1343 = vadd.f32 %v1246, %v1342
        %v1344 = vpop.f32.mrb[0].mxu0
        %1345 = vmatprep.mubr.bf16.mxu0 0
        %1346 = vmatmul.mubr.bf16.gmra.mrb[0].mxu0 %v620
        %v1347 = vpop.f32.mrb[0].mxu0
        %v1348 = vadd.f32 %v1251, %v1347
        %v1349 = vpop.f32.mrb[0].mxu0
        %v1350 = vpop.f32.mrb[0].mxu0
        %v1351 = vadd.f32 %v1254, %v1350
        %v1352 = vpop.f32.mrb[0].mxu0
        %1353 = vmatprep.mubr.bf16.mxu0 0
        %1354 = vmatmul.mubr.bf16.gmra.mrb[0].mxu0 %v621
        %v1355 = vpop.f32.mrb[0].mxu0
        %v1356 = vadd.f32 %v1259, %v1355
        %v1357 = vpop.f32.mrb[0].mxu0
        %v1358 = vpop.f32.mrb[0].mxu0
        %v1359 = vadd.f32 %v1262, %v1358
        %v1360 = vpop.f32.mrb[0].mxu0
        %1361 = vmatprep.mubr.bf16.mxu0 0
        %1362 = vmatmul.mubr.bf16.gmra.mrb[0].mxu0 %v622
        %v1363 = vpop.f32.mrb[0].mxu0
        %v1364 = vadd.f32 %v1267, %v1363
        %v1365 = vpop.f32.mrb[0].mxu0
        %v1366 = vpop.f32.mrb[0].mxu0
        %v1367 = vadd.f32 %v1270, %v1366
        %v1368 = vpop.f32.mrb[0].mxu0
        %1369 = vmatprep.mubr.bf16.mxu0 0
        %1370 = vmatmul.mubr.bf16.gmra.mrb[0].mxu0 %v623
        %v1371 = vpop.f32.mrb[0].mxu0
        %v1372 = vadd.f32 %v1275, %v1371
        %v1373 = vpop.f32.mrb[0].mxu0
        %v1374 = vpop.f32.mrb[0].mxu0
        %v1375 = vadd.f32 %v1278, %v1374
        %v1376 = vpop.f32.mrb[0].mxu0
        %1377 = vmatprep.mubr.bf16.mxu0 0
        %1378 = vmatmul.mubr.bf16.gmra.mrb[0].mxu0 %v624
        %v1379 = vpop.f32.mrb[0].mxu0
        %v1380 = vadd.f32 %v1283, %v1379
        %v1381 = vpop.f32.mrb[0].mxu0
        %v1382 = vpop.f32.mrb[0].mxu0
        %v1383 = vadd.f32 %v1286, %v1382
        %v1384 = vpop.f32.mrb[0].mxu0
        %1385 = vmatprep.mubr.bf16.mxu0 0
        %1386 = vmatmul.mubr.bf16.gmra.mrb[0].mxu0 %v625
        %v1387 = vpop.f32.mrb[0].mxu0
        %v1388 = vadd.f32 %v1291, %v1387
        %v1389 = vpop.f32.mrb[0].mxu0
        %v1390 = vpop.f32.mrb[0].mxu0
        %v1391 = vadd.f32 %v1294, %v1390
        %v1392 = vpop.f32.mrb[0].mxu0
        %1393 = vmatprep.mubr.bf16.mxu0 0
        %1394 = vmatmul.mubr.bf16.gmra.mrb[0].mxu0 %v626
        %v1395 = vpop.f32.mrb[0].mxu0
        %v1396 = vadd.f32 %v1299, %v1395
        %v1397 = vpop.f32.mrb[0].mxu0
        %v1398 = vpop.f32.mrb[0].mxu0
        %v1399 = vadd.f32 %v1302, %v1398
        %v1400 = vpop.f32.mrb[0].mxu0
        %1401 = vdwg.mxu0
        %s1402 = scalar_lea.vmem [#allocation7], 384
        %v1403 = vld [vmem:[%s1402] sm:$0xf]
        %v1404 = vld [vmem:[%s1402 + $0x4] sm:$0xf]
        %v1405 = vld [vmem:[%s1402 + $0x8] sm:$0xf]
        %v1406 = vld [vmem:[%s1402 + $0xc] sm:$0xf]
        %v1407 = vld [vmem:[%s1402 + $0x10] sm:$0xf]
        %v1408 = vld [vmem:[%s1402 + $0x14] sm:$0xf]
        %v1409 = vld [vmem:[%s1402 + $0x18] sm:$0xf]
        %v1410 = vld [vmem:[%s1402 + $0x1c] sm:$0xf]
        %v1411 = vld [vmem:[%s1402 + $0x20] sm:$0xf]
        %v1412 = vld [vmem:[%s1402 + $0x24] sm:$0xf]
        %v1413 = vld [vmem:[%s1402 + $0x28] sm:$0xf]
        %v1414 = vld [vmem:[%s1402 + $0x2c] sm:$0xf]
        %v1415 = vld [vmem:[%s1402 + $0x30] sm:$0xf]
        %v1416 = vld [vmem:[%s1402 + $0x34] sm:$0xf]
        %v1417 = vld [vmem:[%s1402 + $0x38] sm:$0xf]
        %v1418 = vld [vmem:[%s1402 + $0x3c] sm:$0xf]
        %v1419 = vld [vmem:[%s1402 + $0x40] sm:$0xf]
        %v1420 = vld [vmem:[%s1402 + $0x44] sm:$0xf]
        %v1421 = vld [vmem:[%s1402 + $0x48] sm:$0xf]
        %v1422 = vld [vmem:[%s1402 + $0x4c] sm:$0xf]
        %v1423 = vld [vmem:[%s1402 + $0x50] sm:$0xf]
        %v1424 = vld [vmem:[%s1402 + $0x54] sm:$0xf]
        %v1425 = vld [vmem:[%s1402 + $0x58] sm:$0xf]
        %v1426 = vld [vmem:[%s1402 + $0x5c] sm:$0xf]
        %v1427 = vld [vmem:[%s1402 + $0x60] sm:$0xf]
        %v1428 = vld [vmem:[%s1402 + $0x64] sm:$0xf]
        %v1429 = vld [vmem:[%s1402 + $0x68] sm:$0xf]
        %v1430 = vld [vmem:[%s1402 + $0x6c] sm:$0xf]
        %v1431 = vld [vmem:[%s1402 + $0x70] sm:$0xf]
        %v1432 = vld [vmem:[%s1402 + $0x74] sm:$0xf]
        %v1433 = vld [vmem:[%s1402 + $0x78] sm:$0xf]
        %v1434 = vld [vmem:[%s1402 + $0x7c] sm:$0xf]
        %v1435 = vld [vmem:[%s1402 + $0x80] sm:$0xf]
        %v1436 = vld [vmem:[%s1402 + $0x84] sm:$0xf]
        %v1437 = vld [vmem:[%s1402 + $0x88] sm:$0xf]
        %v1438 = vld [vmem:[%s1402 + $0x8c] sm:$0xf]
        %v1439 = vld [vmem:[%s1402 + $0x90] sm:$0xf]
        %v1440 = vld [vmem:[%s1402 + $0x94] sm:$0xf]
        %v1441 = vld [vmem:[%s1402 + $0x98] sm:$0xf]
        %v1442 = vld [vmem:[%s1402 + $0x9c] sm:$0xf]
        %v1443 = vld [vmem:[%s1402 + $0xa0] sm:$0xf]
        %v1444 = vld [vmem:[%s1402 + $0xa4] sm:$0xf]
        %v1445 = vld [vmem:[%s1402 + $0xa8] sm:$0xf]
        %v1446 = vld [vmem:[%s1402 + $0xac] sm:$0xf]
        %v1447 = vld [vmem:[%s1402 + $0xb0] sm:$0xf]
        %v1448 = vld [vmem:[%s1402 + $0xb4] sm:$0xf]
        %v1449 = vld [vmem:[%s1402 + $0xb8] sm:$0xf]
        %v1450 = vld [vmem:[%s1402 + $0xbc] sm:$0xf]
        %v1499 = vunpack.c.l.b16 %v1403
        %v1500 = vunpack.c.l.b16 %v1404
        %v1501 = vunpack.c.l.b16 %v1405
        %v1502 = vunpack.c.l.b16 %v1406
        %v1503 = vunpack.c.l.b16 %v1407
        %v1504 = vunpack.c.l.b16 %v1408
        %v1505 = vunpack.c.l.b16 %v1409
        %v1506 = vunpack.c.l.b16 %v1410
        %v1507 = vunpack.c.l.b16 %v1411
        %v1508 = vunpack.c.l.b16 %v1412
        %v1509 = vunpack.c.l.b16 %v1413
        %v1510 = vunpack.c.l.b16 %v1414
        %v1511 = vunpack.c.l.b16 %v1415
        %v1512 = vunpack.c.l.b16 %v1416
        %v1513 = vunpack.c.l.b16 %v1417
        %v1514 = vunpack.c.l.b16 %v1418
        %v1515 = vunpack.c.l.b16 %v1419
        %v1516 = vunpack.c.l.b16 %v1420
        %v1517 = vunpack.c.l.b16 %v1421
        %v1518 = vunpack.c.l.b16 %v1422
        %v1519 = vunpack.c.l.b16 %v1423
        %v1520 = vunpack.c.l.b16 %v1424
        %v1521 = vunpack.c.l.b16 %v1425
        %v1522 = vunpack.c.l.b16 %v1426
        %v1523 = vunpack.c.l.b16 %v1427
        %v1524 = vunpack.c.l.b16 %v1428
        %v1525 = vunpack.c.l.b16 %v1429
        %v1526 = vunpack.c.l.b16 %v1430
        %v1527 = vunpack.c.l.b16 %v1431
        %v1528 = vunpack.c.l.b16 %v1432
        %v1529 = vunpack.c.l.b16 %v1433
        %v1530 = vunpack.c.l.b16 %v1434
        %v1531 = vunpack.c.l.b16 %v1435
        %v1532 = vunpack.c.l.b16 %v1436
        %v1533 = vunpack.c.l.b16 %v1437
        %v1534 = vunpack.c.l.b16 %v1438
        %v1535 = vunpack.c.l.b16 %v1439
        %v1536 = vunpack.c.l.b16 %v1440
        %v1537 = vunpack.c.l.b16 %v1441
        %v1538 = vunpack.c.l.b16 %v1442
        %v1539 = vunpack.c.l.b16 %v1443
        %v1540 = vunpack.c.l.b16 %v1444
        %v1541 = vunpack.c.l.b16 %v1445
        %v1542 = vunpack.c.l.b16 %v1446
        %v1543 = vunpack.c.l.b16 %v1447
        %v1544 = vunpack.c.l.b16 %v1448
        %v1545 = vunpack.c.l.b16 %v1449
        %v1546 = vunpack.c.l.b16 %v1450
        %v1547 = vpack.c.b16 %v1500, %v1499
        %v1548 = vpack.c.b16 %v1502, %v1501
        %v1549 = vpack.c.b16 %v1504, %v1503
        %v1550 = vpack.c.b16 %v1506, %v1505
        %v1551 = vpack.c.b16 %v1508, %v1507
        %v1552 = vpack.c.b16 %v1510, %v1509
        %v1553 = vpack.c.b16 %v1512, %v1511
        %v1554 = vpack.c.b16 %v1514, %v1513
        %v1555 = vpack.c.b16 %v1516, %v1515
        %v1556 = vpack.c.b16 %v1518, %v1517
        %v1557 = vpack.c.b16 %v1520, %v1519
        %v1558 = vpack.c.b16 %v1522, %v1521
        %v1559 = vpack.c.b16 %v1524, %v1523
        %v1560 = vpack.c.b16 %v1526, %v1525
        %v1561 = vpack.c.b16 %v1528, %v1527
        %v1562 = vpack.c.b16 %v1530, %v1529
        %v1563 = vpack.c.b16 %v1532, %v1531
        %v1564 = vpack.c.b16 %v1534, %v1533
        %v1565 = vpack.c.b16 %v1536, %v1535
        %v1566 = vpack.c.b16 %v1538, %v1537
        %v1567 = vpack.c.b16 %v1540, %v1539
        %v1568 = vpack.c.b16 %v1542, %v1541
        %v1569 = vpack.c.b16 %v1544, %v1543
        %v1570 = vpack.c.b16 %v1546, %v1545
        %1595 = vmatprep.subr.bf16.mxu0 0
        %1596 = vmatpush1.bf16.msra.mxu0 %v1547
        %1597 = vmatprep.subr.bf16.mxu0 0
        %1598 = vmatpush1.bf16.msra.mxu0 %v1548
        %1599 = vmatprep.subr.bf16.mxu0 0
        %1600 = vmatpush1.bf16.msra.mxu0 %v1549
        %1601 = vmatprep.subr.bf16.mxu0 0
        %1602 = vmatpush1.bf16.msra.mxu0 %v1550
        %1603 = vmatprep.subr.bf16.mxu0 0
        %1604 = vmatpush1.bf16.msra.mxu0 %v1551
        %1605 = vmatprep.subr.bf16.mxu0 0
        %1606 = vmatpush1.bf16.msra.mxu0 %v1552
        %1607 = vmatprep.subr.bf16.mxu0 0
        %1608 = vmatpush1.bf16.msra.mxu0 %v1553
        %1609 = vmatprep.subr.bf16.mxu0 0
        %1610 = vmatpush1.bf16.msra.mxu0 %v1554
        %1611 = vmatprep.subr.bf16.mxu0 0
        %1612 = vmatpush1.bf16.msra.mxu0 %v1555
        %1613 = vmatprep.subr.bf16.mxu0 0
        %1614 = vmatpush1.bf16.msra.mxu0 %v1556
        %1615 = vmatprep.subr.bf16.mxu0 0
        %1616 = vmatpush1.bf16.msra.mxu0 %v1557
        %1617 = vmatprep.subr.bf16.mxu0 0
        %1618 = vmatpush1.bf16.msra.mxu0 %v1558
        %1619 = vmatprep.subr.bf16.mxu0 0
        %1620 = vmatpush1.bf16.msra.mxu0 %v1559
        %1621 = vmatprep.subr.bf16.mxu0 0
        %1622 = vmatpush1.bf16.msra.mxu0 %v1560
        %1623 = vmatprep.subr.bf16.mxu0 0
        %1624 = vmatpush1.bf16.msra.mxu0 %v1561
        %1625 = vmatprep.subr.bf16.mxu0 0
        %1626 = vmatpush1.bf16.msra.mxu0 %v1562
        %1627 = vmatprep.mubr.bf16.mxu0 %v437
        %1628 = vmatmul.mubr.bf16.gmra.mrb[0].mxu0 %v585
        %v1629 = vpop.f32.mrb[0].mxu0
        %v1630 = vadd.f32 0.0, %v1629
        %v1631 = vpop.f32.mrb[0].mxu0
        %v1632 = vpop.f32.mrb[0].mxu0
        %v1633 = vadd.f32 0.0, %v1632
        %v1634 = vpop.f32.mrb[0].mxu0
        %1635 = vmatprep.mubr.bf16.mxu0 %v438
        %1636 = vmatmul.mubr.bf16.gmra.mrb[0].mxu0 %v586
        %v1637 = vpop.f32.mrb[0].mxu0
        %v1638 = vadd.f32 0.0, %v1637
        %v1639 = vpop.f32.mrb[0].mxu0
        %v1640 = vpop.f32.mrb[0].mxu0
        %v1641 = vadd.f32 0.0, %v1640
        %v1642 = vpop.f32.mrb[0].mxu0
        %1643 = vmatprep.mubr.bf16.mxu0 %v439
        %1644 = vmatmul.mubr.bf16.gmra.mrb[0].mxu0 %v587
        %v1645 = vpop.f32.mrb[0].mxu0
        %v1646 = vadd.f32 0.0, %v1645
        %v1647 = vpop.f32.mrb[0].mxu0
        %v1648 = vpop.f32.mrb[0].mxu0
        %v1649 = vadd.f32 0.0, %v1648
        %v1650 = vpop.f32.mrb[0].mxu0
        %1651 = vmatprep.mubr.bf16.mxu0 %v440
        %1652 = vmatmul.mubr.bf16.gmra.mrb[0].mxu0 %v588
        %v1653 = vpop.f32.mrb[0].mxu0
        %v1654 = vadd.f32 0.0, %v1653
        %v1655 = vpop.f32.mrb[0].mxu0
        %v1656 = vpop.f32.mrb[0].mxu0
        %v1657 = vadd.f32 0.0, %v1656
        %v1658 = vpop.f32.mrb[0].mxu0
        %1659 = vmatprep.mubr.bf16.mxu0 %v441
        %1660 = vmatmul.mubr.bf16.gmra.mrb[0].mxu0 %v589
        %v1661 = vpop.f32.mrb[0].mxu0
        %v1662 = vadd.f32 0.0, %v1661
        %v1663 = vpop.f32.mrb[0].mxu0
        %v1664 = vpop.f32.mrb[0].mxu0
        %v1665 = vadd.f32 0.0, %v1664
        %v1666 = vpop.f32.mrb[0].mxu0
        %1667 = vmatprep.mubr.bf16.mxu0 %v442
        %1668 = vmatmul.mubr.bf16.gmra.mrb[0].mxu0 %v590
        %v1669 = vpop.f32.mrb[0].mxu0
        %v1670 = vadd.f32 0.0, %v1669
        %v1671 = vpop.f32.mrb[0].mxu0
        %v1672 = vpop.f32.mrb[0].mxu0
        %v1673 = vadd.f32 0.0, %v1672
        %v1674 = vpop.f32.mrb[0].mxu0
        %1675 = vmatprep.mubr.bf16.mxu0 %v443
        %1676 = vmatmul.mubr.bf16.gmra.mrb[0].mxu0 %v591
        %v1677 = vpop.f32.mrb[0].mxu0
        %v1678 = vadd.f32 0.0, %v1677
        %v1679 = vpop.f32.mrb[0].mxu0
        %v1680 = vpop.f32.mrb[0].mxu0
        %v1681 = vadd.f32 0.0, %v1680
        %v1682 = vpop.f32.mrb[0].mxu0
        %1683 = vmatprep.mubr.bf16.mxu0 %v403
        %1684 = vmatmul.mubr.bf16.gmra.mrb[0].mxu0 %v592
        %v1685 = vpop.f32.mrb[0].mxu0
        %v1686 = vadd.f32 0.0, %v1685
        %v1687 = vpop.f32.mrb[0].mxu0
        %v1688 = vpop.f32.mrb[0].mxu0
        %v1689 = vadd.f32 0.0, %v1688
        %v1690 = vpop.f32.mrb[0].mxu0
        %1691 = vdwg.mxu0
        %1692 = vmatprep.subr.bf16.mxu0 0
        %1693 = vmatpush1.bf16.msra.mxu0 %v1563
        %1694 = vmatprep.subr.bf16.mxu0 0
        %1695 = vmatpush1.bf16.msra.mxu0 %v1564
        %1696 = vmatprep.subr.bf16.mxu0 0
        %1697 = vmatpush1.bf16.msra.mxu0 %v1565
        %1698 = vmatprep.subr.bf16.mxu0 0
        %1699 = vmatpush1.bf16.msra.mxu0 %v1566
        %1700 = vmatprep.subr.bf16.mxu0 0
        %1701 = vmatpush1.bf16.msra.mxu0 %v1567
        %1702 = vmatprep.subr.bf16.mxu0 0
        %1703 = vmatpush1.bf16.msra.mxu0 %v1568
        %1704 = vmatprep.subr.bf16.mxu0 0
        %1705 = vmatpush1.bf16.msra.mxu0 %v1569
        %1706 = vmatprep.subr.bf16.mxu0 0
        %1707 = vmatpush1.bf16.msra.mxu0 %v1570
        %1708 = vmatprep.subr.bf16.mxu0 0
        %1709 = vmatpush1.bf16.msra.mxu0 0
        %1710 = vmatprep.subr.bf16.mxu0 0
        %1711 = vmatpush1.bf16.msra.mxu0 0
        %1712 = vmatprep.subr.bf16.mxu0 0
        %1713 = vmatpush1.bf16.msra.mxu0 0
        %1714 = vmatprep.subr.bf16.mxu0 0
        %1715 = vmatpush1.bf16.msra.mxu0 0
        %1716 = vmatprep.subr.bf16.mxu0 0
        %1717 = vmatpush1.bf16.msra.mxu0 0
        %1718 = vmatprep.subr.bf16.mxu0 0
        %1719 = vmatpush1.bf16.msra.mxu0 0
        %1720 = vmatprep.subr.bf16.mxu0 0
        %1721 = vmatpush1.bf16.msra.mxu0 0
        %1722 = vmatprep.subr.bf16.mxu0 0
        %1723 = vmatpush1.bf16.msra.mxu0 0
        %1724 = vmatprep.mubr.bf16.mxu0 0
        %1725 = vmatmul.mubr.bf16.gmra.mrb[0].mxu0 %v621
        %v1726 = vpop.f32.mrb[0].mxu0
        %v1727 = vadd.f32 %v1630, %v1726
        %v1728 = vpop.f32.mrb[0].mxu0
        %v1729 = vpop.f32.mrb[0].mxu0
        %v1730 = vadd.f32 %v1633, %v1729
        %v1731 = vpop.f32.mrb[0].mxu0
        %1732 = vmatprep.mubr.bf16.mxu0 0
        %1733 = vmatmul.mubr.bf16.gmra.mrb[0].mxu0 %v622
        %v1734 = vpop.f32.mrb[0].mxu0
        %v1735 = vadd.f32 %v1638, %v1734
        %v1736 = vpop.f32.mrb[0].mxu0
        %v1737 = vpop.f32.mrb[0].mxu0
        %v1738 = vadd.f32 %v1641, %v1737
        %v1739 = vpop.f32.mrb[0].mxu0
        %1740 = vmatprep.mubr.bf16.mxu0 0
        %1741 = vmatmul.mubr.bf16.gmra.mrb[0].mxu0 %v623
        %v1742 = vpop.f32.mrb[0].mxu0
        %v1743 = vadd.f32 %v1646, %v1742
        %v1744 = vpop.f32.mrb[0].mxu0
        %v1745 = vpop.f32.mrb[0].mxu0
        %v1746 = vadd.f32 %v1649, %v1745
        %v1747 = vpop.f32.mrb[0].mxu0
        %1748 = vmatprep.mubr.bf16.mxu0 0
        %1749 = vmatmul.mubr.bf16.gmra.mrb[0].mxu0 %v624
        %v1750 = vpop.f32.mrb[0].mxu0
        %v1751 = vadd.f32 %v1654, %v1750
        %v1752 = vpop.f32.mrb[0].mxu0
        %v1753 = vpop.f32.mrb[0].mxu0
        %v1754 = vadd.f32 %v1657, %v1753
        %v1755 = vpop.f32.mrb[0].mxu0
        %1756 = vmatprep.mubr.bf16.mxu0 0
        %1757 = vmatmul.mubr.bf16.gmra.mrb[0].mxu0 %v625
        %v1758 = vpop.f32.mrb[0].mxu0
        %v1759 = vadd.f32 %v1662, %v1758
        %v1760 = vpop.f32.mrb[0].mxu0
        %v1761 = vpop.f32.mrb[0].mxu0
        %v1762 = vadd.f32 %v1665, %v1761
        %v1763 = vpop.f32.mrb[0].mxu0
        %1764 = vmatprep.mubr.bf16.mxu0 0
        %1765 = vmatmul.mubr.bf16.gmra.mrb[0].mxu0 %v626
        %v1766 = vpop.f32.mrb[0].mxu0
        %v1767 = vadd.f32 %v1670, %v1766
        %v1768 = vpop.f32.mrb[0].mxu0
        %v1769 = vpop.f32.mrb[0].mxu0
        %v1770 = vadd.f32 %v1673, %v1769
        %v1771 = vpop.f32.mrb[0].mxu0
        %1772 = vmatprep.mubr.bf16.mxu0 0
        %1773 = vmatmul.mubr.bf16.gmra.mrb[0].mxu0 %v627
        %v1774 = vpop.f32.mrb[0].mxu0
        %v1775 = vadd.f32 %v1678, %v1774
        %v1776 = vpop.f32.mrb[0].mxu0
        %v1777 = vpop.f32.mrb[0].mxu0
        %v1778 = vadd.f32 %v1681, %v1777
        %v1779 = vpop.f32.mrb[0].mxu0
        %1780 = vmatprep.mubr.bf16.mxu0 0
        %1781 = vmatmul.mubr.bf16.gmra.mrb[0].mxu0 %v628
        %v1782 = vpop.f32.mrb[0].mxu0
        %v1783 = vadd.f32 %v1686, %v1782
        %v1784 = vpop.f32.mrb[0].mxu0
        %v1785 = vpop.f32.mrb[0].mxu0
        %v1786 = vadd.f32 %v1689, %v1785
        %v1787 = vpop.f32.mrb[0].mxu0
        %1788 = vdwg.mxu0
        %v1789 = vadd.f32 %v1340, %v1727
        %v1790 = vadd.f32 %v1343, %v1730
        %v1791 = vadd.f32 %v1348, %v1735
        %v1792 = vadd.f32 %v1351, %v1738
        %v1793 = vadd.f32 %v1356, %v1743
        %v1794 = vadd.f32 %v1359, %v1746
        %v1795 = vadd.f32 %v1364, %v1751
        %v1796 = vadd.f32 %v1367, %v1754
        %v1797 = vadd.f32 %v1372, %v1759
        %v1798 = vadd.f32 %v1375, %v1762
        %v1799 = vadd.f32 %v1380, %v1767
        %v1800 = vadd.f32 %v1383, %v1770
        %v1801 = vadd.f32 %v1388, %v1775
        %v1802 = vadd.f32 %v1391, %v1778
        %v1803 = vadd.f32 %v1396, %v1783
        %v1804 = vadd.f32 %v1399, %v1786
        %v1805 = vld [vmem:[#allocation9] sm:$0x1]
        %v1807 = vlaneseq
        %v1808 = vshrl.u32 %v1807, 7
        %v1809 = vsub.s32 0, %v1808
        %v1810 = vrot.slane %v1805, %v1809
        %v1812 = vadd.f32 %v1789, %v1810
        %v1813 = vadd.f32 %v1790, %v1810
        %v1814 = vadd.f32 %v1791, %v1810
        %v1815 = vadd.f32 %v1792, %v1810
        %v1816 = vadd.f32 %v1793, %v1810
        %v1817 = vadd.f32 %v1794, %v1810
        %v1818 = vadd.f32 %v1795, %v1810
        %v1819 = vadd.f32 %v1796, %v1810
        %v1820 = vadd.f32 %v1797, %v1810
        %v1821 = vadd.f32 %v1798, %v1810
        %v1822 = vadd.f32 %v1799, %v1810
        %v1823 = vadd.f32 %v1800, %v1810
        %v1824 = vadd.f32 %v1801, %v1810
        %v1825 = vadd.f32 %v1802, %v1810
        %v1826 = vadd.f32 %v1803, %v1810
        %v1827 = vadd.f32 %v1804, %v1810
        %v1828 = vld [vmem:[%s278] sm:$0xf]
        %v1829 = vld [vmem:[%s278 + $0x4] sm:$0xf]
        %v1830 = vld [vmem:[%s278 + $0x8] sm:$0xf]
        %v1831 = vld [vmem:[%s278 + $0xc] sm:$0xf]
        %v1832 = vld [vmem:[%s278 + $0x10] sm:$0xf]
        %v1833 = vld [vmem:[%s278 + $0x14] sm:$0xf]
        %v1834 = vld [vmem:[%s278 + $0x18] sm:$0xf]
        %v1835 = vld [vmem:[%s278 + $0x1c] sm:$0xf]
        %v1836 = vld [vmem:[%s278 + $0x20] sm:$0xf]
        %v1837 = vld [vmem:[%s278 + $0x24] sm:$0xf]
        %v1838 = vld [vmem:[%s278 + $0x28] sm:$0xf]
        %v1839 = vld [vmem:[%s278 + $0x2c] sm:$0xf]
        %v1840 = vld [vmem:[%s278 + $0x30] sm:$0xf]
        %v1841 = vld [vmem:[%s278 + $0x34] sm:$0xf]
        %v1842 = vld [vmem:[%s278 + $0x38] sm:$0xf]
        %v1843 = vld [vmem:[%s278 + $0x3c] sm:$0xf]
        %v1844 = vunpack.c.l.bf16 %v1828
        %v1845 = vunpack.c.l.bf16 %v1829
        %v1846 = vunpack.c.l.bf16 %v1830
        %v1847 = vunpack.c.l.bf16 %v1831
        %v1848 = vunpack.c.l.bf16 %v1832
        %v1849 = vunpack.c.l.bf16 %v1833
        %v1850 = vunpack.c.l.bf16 %v1834
        %v1851 = vunpack.c.l.bf16 %v1835
        %v1852 = vunpack.c.l.bf16 %v1836
        %v1853 = vunpack.c.l.bf16 %v1837
        %v1854 = vunpack.c.l.bf16 %v1838
        %v1855 = vunpack.c.l.bf16 %v1839
        %v1856 = vunpack.c.l.bf16 %v1840
        %v1857 = vunpack.c.l.bf16 %v1841
        %v1858 = vunpack.c.l.bf16 %v1842
        %v1859 = vunpack.c.l.bf16 %v1843
        %v1860 = vadd.f32 %v1812, %v1844
        %v1861 = vadd.f32 %v1813, %v1845
        %v1862 = vadd.f32 %v1814, %v1846
        %v1863 = vadd.f32 %v1815, %v1847
        %v1864 = vadd.f32 %v1816, %v1848
        %v1865 = vadd.f32 %v1817, %v1849
        %v1866 = vadd.f32 %v1818, %v1850
        %v1867 = vadd.f32 %v1819, %v1851
        %v1868 = vadd.f32 %v1820, %v1852
        %v1869 = vadd.f32 %v1821, %v1853
        %v1870 = vadd.f32 %v1822, %v1854
        %v1871 = vadd.f32 %v1823, %v1855
        %v1872 = vadd.f32 %v1824, %v1856
        %v1873 = vadd.f32 %v1825, %v1857
        %v1874 = vadd.f32 %v1826, %v1858
        %v1875 = vadd.f32 %v1827, %v1859
        %v1876 = vpack.c.bf16 %v1861, %v1860
        %v1877 = vpack.c.bf16 %v1863, %v1862
        %v1878 = vpack.c.bf16 %v1865, %v1864
        %v1879 = vpack.c.bf16 %v1867, %v1866
        %v1880 = vpack.c.bf16 %v1869, %v1868
        %v1881 = vpack.c.bf16 %v1871, %v1870
        %v1882 = vpack.c.bf16 %v1873, %v1872
        %v1883 = vpack.c.bf16 %v1875, %v1874
        %v1892 = vunpack.c.l.b16 %v1876
        %v1893 = vunpack.c.h.b16 %v1876
        %v1894 = vunpack.c.l.b16 %v1877
        %v1895 = vunpack.c.h.b16 %v1877
        %v1896 = vunpack.c.l.b16 %v1878
        %v1897 = vunpack.c.h.b16 %v1878
        %v1898 = vunpack.c.l.b16 %v1879
        %v1899 = vunpack.c.h.b16 %v1879
        %v1900 = vunpack.c.l.b16 %v1880
        %v1901 = vunpack.c.h.b16 %v1880
        %v1902 = vunpack.c.l.b16 %v1881
        %v1903 = vunpack.c.h.b16 %v1881
        %v1904 = vunpack.c.l.b16 %v1882
        %v1905 = vunpack.c.h.b16 %v1882
        %v1906 = vunpack.c.l.b16 %v1883
        %v1907 = vunpack.c.h.b16 %v1883
        %v1908 = vpack.c.b16 %v1892, %v1892
        %v1909 = vpack.c.b16 %v1893, %v1893
        %v1910 = vpack.c.b16 %v1894, %v1894
        %v1911 = vpack.c.b16 %v1895, %v1895
        %v1912 = vpack.c.b16 %v1896, %v1896
        %v1913 = vpack.c.b16 %v1897, %v1897
        %v1914 = vpack.c.b16 %v1898, %v1898
        %v1915 = vpack.c.b16 %v1899, %v1899
        %v1916 = vpack.c.b16 %v1900, %v1900
        %v1917 = vpack.c.b16 %v1901, %v1901
        %v1918 = vpack.c.b16 %v1902, %v1902
        %v1919 = vpack.c.b16 %v1903, %v1903
        %v1920 = vpack.c.b16 %v1904, %v1904
        %v1921 = vpack.c.b16 %v1905, %v1905
        %v1922 = vpack.c.b16 %v1906, %v1906
        %v1923 = vpack.c.b16 %v1907, %v1907
        %1940 = vst [vmem:[%s307] sm:$0xf] %v1908
        %1941 = vst [vmem:[%s307 + $0x4] sm:$0xf] %v1909
        %1942 = vst [vmem:[%s307 + $0x8] sm:$0xf] %v1910
        %1943 = vst [vmem:[%s307 + $0xc] sm:$0xf] %v1911
        %1944 = vst [vmem:[%s307 + $0x10] sm:$0xf] %v1912
        %1945 = vst [vmem:[%s307 + $0x14] sm:$0xf] %v1913
        %1946 = vst [vmem:[%s307 + $0x18] sm:$0xf] %v1914
        %1947 = vst [vmem:[%s307 + $0x1c] sm:$0xf] %v1915
        %1948 = vst [vmem:[%s307 + $0x20] sm:$0xf] %v1916
        %1949 = vst [vmem:[%s307 + $0x24] sm:$0xf] %v1917
        %1950 = vst [vmem:[%s307 + $0x28] sm:$0xf] %v1918
        %1951 = vst [vmem:[%s307 + $0x2c] sm:$0xf] %v1919
        %1952 = vst [vmem:[%s307 + $0x30] sm:$0xf] %v1920
        %1953 = vst [vmem:[%s307 + $0x34] sm:$0xf] %v1921
        %1954 = vst [vmem:[%s307 + $0x38] sm:$0xf] %v1922
        %1955 = vst [vmem:[%s307 + $0x3c] sm:$0xf] %v1923
        %s1956 = sand.u32 %s146, 1
        %s1957 = scalar_lea.sflag [#allocation6], %s1956
        %s1958 = sand.u32 %s146, 1
        %s1959 = smul.addr %s1958, 64
        %s1960 = scalar_lea.vmem [#allocation12], %s1959
        // Predicated region
        $region85: #{edsr_forward.8} parent=35 // pred_check
          %p1961 = pneg %p156
        $region86: #{edsr_forward.8} parent=35 // pred_check_branch
          %1963 = sbr.rel (%p1961) target = $region88
        $region87: #{edsr_forward.8} parent=35 // pred_region
          %s1964 = smul.u32 8, %s31
          %s1966 = ssub.s32 1024, 1024
          %1967 = vsyncadd %s1957, %s1966
          %s1968 = smul.addr %s1964, 2
          %s1969 = smul.addr %s30, 32
          %s1970 = sadd.s32 %s1968, %s1969
          %s1971 = smul.addr %s1970, 64
          %s1972 = scalar_lea.hbm %s5, %s1971
          %s1973 = sshll.u32 %s1960, 4
          %s1974 = int_to_ptr.vmem [resolvable:$true] %s1973
          %1979 = dma.vmem_to_hbm [thread:$0]  %s1974, 1024, %s1972, %s1957, 64, 64, 4
        $region88: #{edsr_forward.8} parent=35 // pred_fallthru
          _
      $region36: #{edsr_forward.8} parent=5 // pred_fallthru
        _
      %p1980 = scmp.le.s32.totalorder 2, %s21
      // Predicated region
      $region89: #{edsr_forward.8} parent=5 // pred_check
        %p1981 = pneg %p1980
      $region90: #{edsr_forward.8} parent=5 // pred_check_branch
        %1983 = sbr.rel (%p1981) target = $region92
      $region91: #{edsr_forward.8} parent=5 // pred_region
        %s1984 = ssub.s32 %s21, 2
        // Predicated region
        $region93: #{edsr_forward.8} parent=91 // pred_check
          %p1985 = pneg %p162
        $region94: #{edsr_forward.8} parent=91 // pred_check_branch
          %1987 = sbr.rel (%p1985) target = $region96
        $region95: #{edsr_forward.8} parent=91 // pred_region
          %s1988 = sand.u32 %s147, 1
          %s1989 = scalar_lea.sflag [#allocation6], %s1988
          %s1990 = sand.u32 %s147, 1
          %s1991 = smul.addr %s1990, 64
          %s1992 = scalar_lea.vmem [#allocation12], %s1991
          %1993 = dma.done %s1989, 1024
        $region96: #{edsr_forward.8} parent=91 // pred_fallthru
          _
      $region92: #{edsr_forward.8} parent=5 // pred_fallthru
        _
    $region6: #{edsr_forward.8} parent=1 // loop_footer
      %s25 = sadd.s32 1, %s21
    $region7: #{edsr_forward.8} parent=1 // loop_footer_branch
      %20 = sbr.rel target = $region3
    $region8: #{edsr_forward.8} parent=1 // loop_exit
      _
    %1994 = vsyncpa [#allocation5], 1
    %s1995 = scalar_lea.sflag [#allocation5], 1
    %1996 = vsyncpa %s1995, 1
    %1997 = vsyncpa [#allocation8], 1
    %1998 = vsyncpa [#allocation11], 1
    %s1999 = scalar_lea.sflag [#allocation11], 1
    %2000 = vsyncpa %s1999, 1
    %2001 = vsyncpa [#allocation6], 1
    %s2002 = scalar_lea.sflag [#allocation6], 1
    %2003 = vsyncpa %s2002, 1
  %2004 = vsyncmov [#allocation3]
  %s2005 = vpop.sfrf %2004
  %p2006 = scmp.eq.s32.totalorder %s2005, 0
  %p2007 = pneg %p2006
  %2009 = shalt.err (%p2007)
  %s2010 = scalar_lea.sflag [#allocation3], 1
  %2011 = vsyncmov %s2010
  %s2012 = vpop.sfrf %2011
  %p2013 = scmp.eq.s32.totalorder %s2012, 0
  %p2014 = pneg %p2013
  %2016 = shalt.err (%p2014)

// kernel: edsr_forward.9
$region0: #{edsr_forward.9}
  #allocation0 [shape = 'u32[]', space=smem, size = 0x4, offset = 0x4, fixed_abs, tag = 'smem constant byte address 0x4 - core index']
  #allocation1 [shape = 'u32[144,128]{1,0:T(1,128)}', space=vmem, size = 0x12000, scoped, tag = 'internal scratch']
  #allocation2 [shape = 'bf16[2,16,128]{2,1,0:T(16,128)(2,1)}', space=vmem, size = 0x2000, scoped, tag = 'scratch operand']
  #allocation3 [shape = 's32[2]{0}', space=sflag, size = 0x8, scoped, tag = 'scratch operand']
  #allocation11 [shape = 's32[]', space=sflag, size = 0x4, offset = 0, fixed_abs, tag = 'sflag constant byte address 0x0 - dummy sync flag']
  #allocation12 [shape = 's32[]', space=sflag, size = 0x4, offset = 0, fixed_abs, tag = 'sflag constant byte address 0x0 - dummy sync flag']
  #allocation13 [shape = 'u32[]', space=smem, size = 0x4, offset = 0x44, fixed_abs, tag = 'smem constant byte address 0x44 - assertion arg 0']
  #allocation14 [shape = 'u32[]', space=smem, size = 0x4, offset = 0x48, fixed_abs, tag = 'smem constant byte address 0x48 - assertion arg 1']
  #allocation15 [shape = 's32[]', space=sflag, size = 0x4, offset = 0, fixed_abs, tag = 'sflag constant byte address 0x0 - dummy sync flag']
  #allocation16 [shape = 's32[]', space=sflag, size = 0x4, offset = 0, fixed_abs, tag = 'sflag constant byte address 0x0 - dummy sync flag']
  %s0 = inlined_call_operand.hbm [shape: bf16[2,16,16,128], index: 0, kind: input, shape index: {}, may-alias: {0,1}]
  %s1 = inlined_call_operand.hbm [shape: bf16[2,16,16,128], index: 1, kind: input, shape index: {}, may-alias: {0,1}]
  %s2 = inlined_call_operand.hbm [shape: bf16[3,384,128], index: 2, kind: input, shape index: {}]
  %s3 = inlined_call_operand.hbm [shape: f32[1,128], index: 3, kind: input, shape index: {}]
  %s4 = inlined_call_operand.hbm [shape: bf16[2,16,16,128], index: 4, kind: output, shape index: {}]
  %s5 = sld [smem:[#allocation0]]
  $region89: #{edsr_forward.9} parent=0
    _
  %s7 = ssub.s32 1, %s5
  %s8 = scalar_select 0, %s7, %s5
  $region1: #{edsr_forward.9} parent=0
    #allocation4 [shape = 'u8[65536]{0}', space=vmem, size = 0x10000, scoped, tag = 'input window, operand 0']
    #allocation5 [shape = 's32[2]{0}', space=sflag, size = 0x8, scoped, tag = 'scoped memory for edsr_forward.9']
    #allocation6 [shape = 's32[2]{0}', space=sflag, size = 0x8, scoped, tag = 'scoped memory for edsr_forward.9']
    #allocation7 [shape = 'u8[294912]{0}', space=vmem, size = 0x48000, scoped, tag = 'input window, operand 2, single buffered']
    #allocation8 [shape = 's32[1]{0}', space=sflag, size = 0x4, scoped, tag = 'scoped memory for edsr_forward.9']
    #allocation9 [shape = 'u8[512]{0}', space=vmem, size = 0x400, scoped, tag = 'input window, operand 3, single buffered']
    #allocation10 [shape = 'u8[65536]{0}', space=vmem, size = 0x10000, scoped, tag = 'output window, operand 0']
    %9 = vsyncpa [#allocation5], 0
    %s10 = scalar_lea.sflag [#allocation5], 1
    %11 = vsyncpa %s10, 0
    %12 = vsyncpa [#allocation8], 0
    %13 = vsyncpa [#allocation6], 0
    %s14 = scalar_lea.sflag [#allocation6], 1
    %15 = vsyncpa %s14, 0
    loop: start=0, step=1, limit=6
    $region2: #{edsr_forward.9} parent=1 // loop_pre_header
      _
    $region3: #{edsr_forward.9} parent=1 // loop_header
      %s17 = sphi 0, %s21
      %p18 = scmp.ge.s32.totalorder %s17, 6
      %s24 = sphi 0, %s36
      %s25 = sphi 0, %s32
      %s26 = sphi 0, %s24
      %s27 = sphi 0, %s25
      %s28 = sphi 0, %s26
      %s29 = sphi 0, %s27
      %s41 = sphi 0, %s43
      %s44 = sphi 0, %s41
      %s45 = sphi 0, %s44
      %s61 = sphi 0, %s45
      %s65 = sphi 0, %s65
      %s67 = sphi 0, %s65
      %s68 = sphi 0, %s67
      %s82 = sphi 0, %s68
      %s86 = sphi 0, %s86
      %s88 = sphi 0, %s86
      %s89 = sphi 0, %s88
      %s103 = sphi 0, %s89
      %s111 = sphi 0, %s113
      %s114 = sphi 0, %s111
      %s115 = sphi 0, %s114
      %s131 = sphi 0, %s115
    $region4: #{edsr_forward.9} parent=1 // loop_header_branch
      %20 = sbr.rel (%p18) target = $region8
    $region5: #{edsr_forward.9} parent=1 // loop_body
      %s22 = ssub.s32 %s17, 1
      %s23 = ssub.s32 %s17, 2
      %s30 = sadd.s32 1, %s25
      %p31 = scmp.ge.s32.totalorder %s30, 2
      %s32 = scalar_select %p31, 0, %s30
      %s33 = sadd.s32 1, %s24
      %s34 = scalar_select %p31, %s33, %s24
      %p35 = scmp.ge.s32.totalorder %s34, 2
      %s36 = scalar_select %p35, 0, %s34
      %s37 = ssub.s32 %s24, %s36
      %s38 = ssub.s32 %s25, %s32
      %s39 = sor.u32 %s37, %s38
      %p40 = scmp.eq.s32.totalorder %s39, 0
      %s42 = sadd.s32 %s41, 1
      %s43 = scalar_select %p40, %s41, %s42
      %p46 = pneg %p40
      %p47 = scmp.eq.s32.totalorder %s17, 3
      %p48 = por %p46, %p47
      %p49 = scmp.ne.s32.totalorder %s41, %s44
      %p50 = scmp.eq.s32.totalorder %s17, 0
      %p51 = por %p49, %p50
      %p52 = scmp.ne.s32.totalorder %s41, %s44
      %p53 = scmp.eq.s32.totalorder %s22, 3
      %p54 = por %p52, %p53
      %p55 = scmp.ne.s32.totalorder %s44, %s45
      %p56 = scmp.eq.s32.totalorder %s22, 0
      %p57 = por %p55, %p56
      %p58 = scmp.ne.s32.totalorder %s44, %s45
      %p59 = scmp.eq.s32.totalorder %s23, 3
      %p60 = por %p58, %p59
      %p62 = scmp.ne.s32.totalorder %s45, %s61
      %p63 = scmp.eq.s32.totalorder %s23, 0
      %p64 = por %p62, %p63
      %s66 = sadd.s32 %s65, 1
      %p69 = scmp.eq.s32.totalorder %s17, 3
      %p70 = scmp.ne.s32.totalorder %s65, %s67
      %p71 = scmp.eq.s32.totalorder %s17, 0
      %p72 = por %p70, %p71
      %p73 = scmp.ne.s32.totalorder %s65, %s67
      %p74 = scmp.eq.s32.totalorder %s22, 3
      %p75 = por %p73, %p74
      %p76 = scmp.ne.s32.totalorder %s67, %s68
      %p77 = scmp.eq.s32.totalorder %s22, 0
      %p78 = por %p76, %p77
      %p79 = scmp.ne.s32.totalorder %s67, %s68
      %p80 = scmp.eq.s32.totalorder %s23, 3
      %p81 = por %p79, %p80
      %p83 = scmp.ne.s32.totalorder %s68, %s82
      %p84 = scmp.eq.s32.totalorder %s23, 0
      %p85 = por %p83, %p84
      %s87 = sadd.s32 %s86, 1
      %p90 = scmp.eq.s32.totalorder %s17, 3
      %p91 = scmp.ne.s32.totalorder %s86, %s88
      %p92 = scmp.eq.s32.totalorder %s17, 0
      %p93 = por %p91, %p92
      %p94 = scmp.ne.s32.totalorder %s86, %s88
      %p95 = scmp.eq.s32.totalorder %s22, 3
      %p96 = por %p94, %p95
      %p97 = scmp.ne.s32.totalorder %s88, %s89
      %p98 = scmp.eq.s32.totalorder %s22, 0
      %p99 = por %p97, %p98
      %p100 = scmp.ne.s32.totalorder %s88, %s89
      %p101 = scmp.eq.s32.totalorder %s23, 3
      %p102 = por %p100, %p101
      %p104 = scmp.ne.s32.totalorder %s89, %s103
      %p105 = scmp.eq.s32.totalorder %s23, 0
      %p106 = por %p104, %p105
      %s107 = ssub.s32 %s24, %s36
      %s108 = ssub.s32 %s25, %s32
      %s109 = sor.u32 %s107, %s108
      %p110 = scmp.eq.s32.totalorder %s109, 0
      %s112 = sadd.s32 %s111, 1
      %s113 = scalar_select %p110, %s111, %s112
      %p116 = pneg %p110
      %p117 = scmp.eq.s32.totalorder %s17, 3
      %p118 = por %p116, %p117
      %p119 = scmp.ne.s32.totalorder %s111, %s114
      %p120 = scmp.eq.s32.totalorder %s17, 0
      %p121 = por %p119, %p120
      %p122 = scmp.ne.s32.totalorder %s111, %s114
      %p123 = scmp.eq.s32.totalorder %s22, 3
      %p124 = por %p122, %p123
      %p125 = scmp.ne.s32.totalorder %s114, %s115
      %p126 = scmp.eq.s32.totalorder %s22, 0
      %p127 = por %p125, %p126
      %p128 = scmp.ne.s32.totalorder %s114, %s115
      %p129 = scmp.eq.s32.totalorder %s23, 3
      %p130 = por %p128, %p129
      %p132 = scmp.ne.s32.totalorder %s115, %s131
      %p133 = scmp.eq.s32.totalorder %s23, 0
      %p134 = por %p132, %p133
      %p135 = scmp.le.s32.totalorder 1, %s17
      %p136 = scmp.lt.s32.totalorder %s17, 5
      %p137 = pnand %p135, %p136
      %p138 = pneg %p137
      // Predicated region
      $region9: #{edsr_forward.9} parent=5 // pred_check
        _
      $region10: #{edsr_forward.9} parent=5 // pred_check_branch
        %140 = sbr.rel (%p137) target = $region12
      $region11: #{edsr_forward.9} parent=5 // pred_region
        %s141 = ssub.s32 %s17, 1
        // Predicated region
        $region13: #{edsr_forward.9} parent=11 // pred_check
          %p142 = pneg %p78
        $region14: #{edsr_forward.9} parent=11 // pred_check_branch
          %144 = sbr.rel (%p142) target = $region16
        $region15: #{edsr_forward.9} parent=11 // pred_region
          %s146 = ssub.s32 9216, 9216
          %147 = vsyncadd [#allocation8], %s146
          %s148 = sshll.u32 [#allocation7], 4
          %s149 = int_to_ptr.vmem [resolvable:$true] %s148
          %154 = dma.hbm_to_vmem [thread:$0]  %s2, 9216, %s149, [#allocation8], 64, 64, 4
        $region16: #{edsr_forward.9} parent=11 // pred_fallthru
          _
        // Predicated region
        $region17: #{edsr_forward.9} parent=11 // pred_check
          %p155 = pneg %p99
        $region18: #{edsr_forward.9} parent=11 // pred_check_branch
          %157 = sbr.rel (%p155) target = $region20
        $region19: #{edsr_forward.9} parent=11 // pred_region
          %s159 = ssub.s32 16, 16
          %160 = vsyncadd [#allocation8], %s159
          %s162 = sshll.u32 [#allocation9], 4
          %s163 = int_to_ptr.vmem [resolvable:$true] %s162
          %165 = dma.hbm_to_vmem [thread:$0]  %s3, 16, %s163, [#allocation8]
        $region20: #{edsr_forward.9} parent=11 // pred_fallthru
          _
      $region12: #{edsr_forward.9} parent=5 // pred_fallthru
        _
      %p166 = scmp.lt.s32.totalorder %s17, 4
      // Predicated region
      $region21: #{edsr_forward.9} parent=5 // pred_check
        %p167 = pneg %p166
      $region22: #{edsr_forward.9} parent=5 // pred_check_branch
        %169 = sbr.rel (%p167) target = $region24
      $region23: #{edsr_forward.9} parent=5 // pred_region
        // Predicated region
        $region25: #{edsr_forward.9} parent=23 // pred_check
          %p170 = pneg %p51
        $region26: #{edsr_forward.9} parent=23 // pred_check_branch
          %172 = sbr.rel (%p170) target = $region28
        $region27: #{edsr_forward.9} parent=23 // pred_region
          %s173 = sand.u32 %s41, 1
          %s174 = scalar_lea.sflag [#allocation5], %s173
          %s175 = sand.u32 %s41, 1
          %s176 = smul.addr %s175, 64
          %s177 = scalar_lea.vmem [#allocation4], %s176
          %s178 = smul.u32 8, %s25
          %s180 = ssub.s32 1024, 1024
          %181 = vsyncadd %s174, %s180
          %s182 = smul.addr %s178, 2
          %s183 = smul.addr %s24, 32
          %s184 = sadd.s32 %s182, %s183
          %s185 = smul.addr %s184, 64
          %s186 = scalar_lea.hbm %s0, %s185
          %s187 = sshll.u32 %s177, 4
          %s188 = int_to_ptr.vmem [resolvable:$true] %s187
          %193 = dma.hbm_to_vmem [thread:$0]  %s186, 1024, %s188, %s174, 64, 64, 4
        $region28: #{edsr_forward.9} parent=23 // pred_fallthru
          _
      $region24: #{edsr_forward.9} parent=5 // pred_fallthru
        _
      %p194 = scmp.le.s32.totalorder 1, %s17
      %p195 = scmp.lt.s32.totalorder %s17, 5
      %p196 = pnand %p194, %p195
      %p197 = pneg %p196
      // Predicated region
      $region29: #{edsr_forward.9} parent=5 // pred_check
        _
      $region30: #{edsr_forward.9} parent=5 // pred_check_branch
        %199 = sbr.rel (%p196) target = $region32
      $region31: #{edsr_forward.9} parent=5 // pred_region
        %s200 = ssub.s32 %s17, 1
        %s201 = sand.u32 %s44, 1
        %s202 = scalar_lea.sflag [#allocation5], %s201
        %s203 = sand.u32 %s44, 1
        %s204 = smul.addr %s203, 64
        %s205 = scalar_lea.vmem [#allocation4], %s204
        // Predicated region
        $region33: #{edsr_forward.9} parent=31 // pred_check
          %p206 = pneg %p57
        $region34: #{edsr_forward.9} parent=31 // pred_check_branch
          %208 = sbr.rel (%p206) target = $region36
        $region35: #{edsr_forward.9} parent=31 // pred_region
          %209 = dma.done %s202, 1024
        $region36: #{edsr_forward.9} parent=31 // pred_fallthru
          _
        // Predicated region
        $region37: #{edsr_forward.9} parent=31 // pred_check
          %p210 = pneg %p78
        $region38: #{edsr_forward.9} parent=31 // pred_check_branch
          %212 = sbr.rel (%p210) target = $region40
        $region39: #{edsr_forward.9} parent=31 // pred_region
          %213 = dma.done [#allocation8], 9216
        $region40: #{edsr_forward.9} parent=31 // pred_fallthru
          _
        // Predicated region
        $region41: #{edsr_forward.9} parent=31 // pred_check
          %p214 = pneg %p99
        $region42: #{edsr_forward.9} parent=31 // pred_check_branch
          %216 = sbr.rel (%p214) target = $region44
        $region43: #{edsr_forward.9} parent=31 // pred_region
          %217 = dma.done [#allocation8], 16
        $region44: #{edsr_forward.9} parent=31 // pred_fallthru
          _
        %s218 = sand.u32 %s44, 1
        %s219 = scalar_lea.sflag [#allocation5], %s218
        %s220 = sand.u32 %s44, 1
        %s221 = smul.addr %s220, 64
        %s222 = scalar_lea.vmem [#allocation4], %s221
        %p223 = pneg %p57
        %p224 = pneg %p54
        %p225 = pneg %p78
        %p226 = pneg %p75
        %p227 = pneg %p99
        %p228 = pneg %p96
        %p229 = pneg %p127
        %p230 = pneg %p124
        %s231 = sand.u32 %s114, 1
        %s232 = scalar_lea.sflag [#allocation6], %s231
        %s233 = sand.u32 %s114, 1
        %s234 = smul.addr %s233, 64
        %s235 = scalar_lea.vmem [#allocation10], %s234
        %s236 = smul.u32 8, %s27
        %s237 = smul.u32 8, %s27
        %s239 = smul.u32 %s27, 8
        %p240 = scmp.gt.s32.totalorder %s27, 0
        // Predicated region
        $region45: #{edsr_forward.9} parent=31 // pred_check
          %p241 = pneg %p240
        $region46: #{edsr_forward.9} parent=31 // pred_check_branch
          %243 = sbr.rel (%p241) target = $region48
        $region47: #{edsr_forward.9} parent=31 // pred_region
          %s244 = ssub.s32 %s239, 1
          %s245 = smul.u32 %s244, 2
          %s246 = smul.u32 %s26, 32
          %s247 = sadd.s32 %s245, %s246
          %s248 = smul.addr %s247, 64
          %s249 = scalar_lea.hbm %s1, %s248
          // Predicated region
          $region49: #{edsr_forward.9} parent=47 // pred_check
            _
          $region50: #{edsr_forward.9} parent=47 // pred_check_branch
            %251 = sbr.rel target = $region52
          $region51: #{edsr_forward.9} parent=47 // pred_region
            %252 = sst [smem:[#allocation13]] [#allocation12]
            %253 = sst [smem:[#allocation14]] [#allocation11]
          $region52: #{edsr_forward.9} parent=47 // pred_fallthru
            _
          %255 = shalt.err (0)
          %s257 = sshll.u32 [#allocation2], 4
          %s258 = int_to_ptr.vmem [resolvable:$true] %s257
          %260 = dma.hbm_to_vmem [thread:$0]  %s249, 128, %s258, [#allocation3]
        $region48: #{edsr_forward.9} parent=31 // pred_fallthru
          _
        %p261 = scmp.eq.s32.totalorder %s27, 0
        // Predicated region
        $region53: #{edsr_forward.9} parent=31 // pred_check
          %p262 = pneg %p261
        $region54: #{edsr_forward.9} parent=31 // pred_check_branch
          %264 = sbr.rel (%p262) target = $region56
        $region55: #{edsr_forward.9} parent=31 // pred_region
          %265 = vst [vmem:[#allocation2] sm:$0xff] 0
        $region56: #{edsr_forward.9} parent=31 // pred_fallthru
          _
        %p266 = scmp.lt.s32.totalorder %s27, 1
        // Predicated region
        $region57: #{edsr_forward.9} parent=31 // pred_check
          %p267 = pneg %p266
        $region58: #{edsr_forward.9} parent=31 // pred_check_branch
          %269 = sbr.rel (%p267) target = $region60
        $region59: #{edsr_forward.9} parent=31 // pred_region
          %s270 = sadd.s32 %s239, 8
          %s271 = smul.u32 %s270, 2
          %s272 = smul.u32 %s26, 32
          %s273 = sadd.s32 %s271, %s272
          %s274 = smul.addr %s273, 64
          %s275 = scalar_lea.hbm %s1, %s274
          %s276 = scalar_lea.vmem [#allocation2], 8
          %s277 = scalar_lea.sflag [#allocation3], 1
          // Predicated region
          $region61: #{edsr_forward.9} parent=59 // pred_check
            _
          $region62: #{edsr_forward.9} parent=59 // pred_check_branch
            %279 = sbr.rel target = $region64
          $region63: #{edsr_forward.9} parent=59 // pred_region
            %280 = sst [smem:[#allocation13]] [#allocation16]
            %281 = sst [smem:[#allocation14]] [#allocation15]
          $region64: #{edsr_forward.9} parent=59 // pred_fallthru
            _
          %283 = shalt.err (0)
          %s285 = sshll.u32 %s276, 4
          %s286 = int_to_ptr.vmem [resolvable:$true] %s285
          %288 = dma.hbm_to_vmem [thread:$0]  %s275, 128, %s286, %s277
        $region60: #{edsr_forward.9} parent=31 // pred_fallthru
          _
        %p289 = scmp.eq.s32.totalorder %s27, 1
        // Predicated region
        $region65: #{edsr_forward.9} parent=31 // pred_check
          %p290 = pneg %p289
        $region66: #{edsr_forward.9} parent=31 // pred_check_branch
          %292 = sbr.rel (%p290) target = $region68
        $region67: #{edsr_forward.9} parent=31 // pred_region
          %s293 = scalar_lea.vmem [#allocation2], 8
          %294 = vst [vmem:[%s293] sm:$0xff] 0
        $region68: #{edsr_forward.9} parent=31 // pred_fallthru
          _
        // Predicated region
        $region69: #{edsr_forward.9} parent=31 // pred_check
          %p295 = pneg %p240
        $region70: #{edsr_forward.9} parent=31 // pred_check_branch
          %297 = sbr.rel (%p295) target = $region72
        $region71: #{edsr_forward.9} parent=31 // pred_region
          %s298 = smul.u32 4, 1
          %s299 = smul.u32 %s298, 2
          %s300 = smul.u32 %s299, 1
          %s301 = sshll.u32 %s300, 4
          %302 = dma.done [#allocation3], %s301
        $region72: #{edsr_forward.9} parent=31 // pred_fallthru
          _
        // Predicated region
        $region73: #{edsr_forward.9} parent=31 // pred_check
          %p303 = pneg %p266
        $region74: #{edsr_forward.9} parent=31 // pred_check_branch
          %305 = sbr.rel (%p303) target = $region76
        $region75: #{edsr_forward.9} parent=31 // pred_region
          %s306 = scalar_lea.sflag [#allocation3], 1
          %s307 = smul.u32 4, 1
          %s308 = smul.u32 %s307, 2
          %s309 = smul.u32 %s308, 1
          %s310 = sshll.u32 %s309, 4
          %311 = dma.done %s306, %s310
        $region76: #{edsr_forward.9} parent=31 // pred_fallthru
          _
        %v312 = vld [vmem:[#allocation2] sm:$0xff]
        %v313 = vld [vmem:[%s205] sm:$0xf]
        %v314 = vld [vmem:[%s205 + $0x4] sm:$0xf]
        %v315 = vld [vmem:[%s205 + $0x8] sm:$0xf]
        %v316 = vld [vmem:[%s205 + $0xc] sm:$0xf]
        %v317 = vld [vmem:[%s205 + $0x10] sm:$0xf]
        %v318 = vld [vmem:[%s205 + $0x14] sm:$0xf]
        %v319 = vld [vmem:[%s205 + $0x18] sm:$0xf]
        %v320 = vld [vmem:[%s205 + $0x1c] sm:$0xf]
        %v321 = vld [vmem:[%s205 + $0x20] sm:$0xf]
        %v322 = vld [vmem:[%s205 + $0x24] sm:$0xf]
        %v323 = vld [vmem:[%s205 + $0x28] sm:$0xf]
        %v324 = vld [vmem:[%s205 + $0x2c] sm:$0xf]
        %v325 = vld [vmem:[%s205 + $0x30] sm:$0xf]
        %v326 = vld [vmem:[%s205 + $0x34] sm:$0xf]
        %v327 = vld [vmem:[%s205 + $0x38] sm:$0xf]
        %v328 = vld [vmem:[%s205 + $0x3c] sm:$0xf]
        %s329 = scalar_lea.vmem [#allocation2], 8
        %v330 = vld [vmem:[%s329] sm:$0xff]
        %v347 = vunpack.c.l.b16 %v313
        %v348 = vunpack.c.l.b16 %v314
        %v349 = vunpack.c.l.b16 %v315
        %v350 = vunpack.c.l.b16 %v316
        %v351 = vunpack.c.l.b16 %v317
        %v352 = vunpack.c.l.b16 %v318
        %v353 = vunpack.c.l.b16 %v319
        %v354 = vunpack.c.l.b16 %v320
        %v355 = vunpack.c.l.b16 %v321
        %v356 = vunpack.c.l.b16 %v322
        %v357 = vunpack.c.l.b16 %v323
        %v358 = vunpack.c.l.b16 %v324
        %v359 = vunpack.c.l.b16 %v325
        %v360 = vunpack.c.l.b16 %v326
        %v361 = vunpack.c.l.b16 %v327
        %v362 = vunpack.c.l.b16 %v328
        %v363 = vpack.c.b16 %v348, %v347
        %v364 = vpack.c.b16 %v350, %v349
        %v365 = vpack.c.b16 %v352, %v351
        %v366 = vpack.c.b16 %v354, %v353
        %v367 = vpack.c.b16 %v356, %v355
        %v368 = vpack.c.b16 %v358, %v357
        %v369 = vpack.c.b16 %v360, %v359
        %v370 = vpack.c.b16 %v362, %v361
        %v379 = vunpack.c.l.bf16 %v312
        %v380 = vunpack.c.h.bf16 %v312
        %v381 = vunpack.c.l.bf16 %v363
        %v382 = vunpack.c.h.bf16 %v363
        %v383 = vunpack.c.l.bf16 %v364
        %v384 = vunpack.c.h.bf16 %v364
        %v385 = vunpack.c.l.bf16 %v365
        %v386 = vunpack.c.h.bf16 %v365
        %v387 = vunpack.c.l.bf16 %v366
        %v388 = vunpack.c.h.bf16 %v366
        %v389 = vunpack.c.l.bf16 %v367
        %v390 = vunpack.c.h.bf16 %v367
        %v391 = vunpack.c.l.bf16 %v368
        %v392 = vunpack.c.h.bf16 %v368
        %v393 = vunpack.c.l.bf16 %v369
        %v394 = vunpack.c.h.bf16 %v369
        %v395 = vunpack.c.l.bf16 %v370
        %v396 = vunpack.c.h.bf16 %v370
        %v397 = vunpack.c.l.bf16 %v330
        %v398 = vunpack.c.h.bf16 %v330
        %v399 = vrot.slane %v379, 7
        %v400 = vrot.slane %v380, 7
        %v401 = vrot.slane %v381, 7
        %v402 = vrot.slane %v382, 7
        %v403 = vrot.slane %v383, 7
        %v404 = vrot.slane %v384, 7
        %v405 = vrot.slane %v385, 7
        %v406 = vrot.slane %v386, 7
        %v407 = vrot.slane %v387, 7
        %v408 = vrot.slane %v388, 7
        %v409 = vrot.slane %v389, 7
        %v410 = vrot.slane %v390, 7
        %v411 = vrot.slane %v391, 7
        %v412 = vrot.slane %v392, 7
        %v413 = vrot.slane %v393, 7
        %v414 = vrot.slane %v394, 7
        %v415 = vrot.slane %v395, 7
        %v416 = vrot.slane %v396, 7
        %v417 = vrot.slane %v397, 7
        %v418 = vrot.slane %v398, 7
        %v419 = vlaneseq
        %v420 = vshrl.u32 %v419, 7
        %vm421 = vcmp.lt.s32.totalorder %v420, 1
        %v422 = vsel %vm421, %v417, %v418
        %v423 = vsel %vm421, %v416, %v417
        %v424 = vsel %vm421, %v415, %v416
        %v425 = vsel %vm421, %v414, %v415
        %v426 = vsel %vm421, %v413, %v414
        %v427 = vsel %vm421, %v412, %v413
        %v428 = vsel %vm421, %v411, %v412
        %v429 = vsel %vm421, %v410, %v411
        %v430 = vsel %vm421, %v409, %v410
        %v431 = vsel %vm421, %v408, %v409
        %v432 = vsel %vm421, %v407, %v408
        %v433 = vsel %vm421, %v406, %v407
        %v434 = vsel %vm421, %v405, %v406
        %v435 = vsel %vm421, %v404, %v405
        %v436 = vsel %vm421, %v403, %v404
        %v437 = vsel %vm421, %v402, %v403
        %v438 = vsel %vm421, %v401, %v402
        %v439 = vsel %vm421, %v400, %v401
        %v440 = vsel %vm421, %v399, %v400
        %v441 = vsel %vm421, %v418, %v399
        %v442 = vrot.slane %v379, 1
        %v443 = vrot.slane %v380, 1
        %v444 = vrot.slane %v381, 1
        %v445 = vrot.slane %v382, 1
        %v446 = vrot.slane %v383, 1
        %v447 = vrot.slane %v384, 1
        %v448 = vrot.slane %v385, 1
        %v449 = vrot.slane %v386, 1
        %v450 = vrot.slane %v387, 1
        %v451 = vrot.slane %v388, 1
        %v452 = vrot.slane %v389, 1
        %v453 = vrot.slane %v390, 1
        %v454 = vrot.slane %v391, 1
        %v455 = vrot.slane %v392, 1
        %v456 = vrot.slane %v393, 1
        %v457 = vrot.slane %v394, 1
        %v458 = vrot.slane %v395, 1
        %v459 = vrot.slane %v396, 1
        %v460 = vrot.slane %v397, 1
        %v461 = vrot.slane %v398, 1
        %vm462 = vcmp.lt.s32.totalorder %v420, 7
        %v463 = vsel %vm462, %v460, %v461
        %v464 = vsel %vm462, %v459, %v460
        %v465 = vsel %vm462, %v458, %v459
        %v466 = vsel %vm462, %v457, %v458
        %v467 = vsel %vm462, %v456, %v457
        %v468 = vsel %vm462, %v455, %v456
        %v469 = vsel %vm462, %v454, %v455
        %v470 = vsel %vm462, %v453, %v454
        %v471 = vsel %vm462, %v452, %v453
        %v472 = vsel %vm462, %v451, %v452
        %v473 = vsel %vm462, %v450, %v451
        %v474 = vsel %vm462, %v449, %v450
        %v475 = vsel %vm462, %v448, %v449
        %v476 = vsel %vm462, %v447, %v448
        %v477 = vsel %vm462, %v446, %v447
        %v478 = vsel %vm462, %v445, %v446
        %v479 = vsel %vm462, %v444, %v445
        %v480 = vsel %vm462, %v443, %v444
        %v481 = vsel %vm462, %v442, %v443
        %v482 = vsel %vm462, %v461, %v442
        %v483 = vadd.s32 %v420, 8
        %vm484 = vcmp.eq.s32.totalorder %v420, 0
        %vm485 = vcmp.eq.s32.totalorder %v483, 0
        %v486 = vsel %vm484, 1, 0
        %v487 = vsel %vm485, 1, 0
        %vm488 = vcmp.eq.s32.totalorder %v486, 1
        %vm489 = vcmp.eq.s32.totalorder %v487, 1
        %v490 = vsel %vm488, 0.0, %v441
        %v491 = vsel %vm489, 0.0, %v440
        %v492 = vsel %vm488, 0.0, %v439
        %v493 = vsel %vm489, 0.0, %v438
        %v494 = vsel %vm488, 0.0, %v437
        %v495 = vsel %vm489, 0.0, %v436
        %v496 = vsel %vm488, 0.0, %v435
        %v497 = vsel %vm489, 0.0, %v434
        %v498 = vsel %vm488, 0.0, %v433
        %v499 = vsel %vm489, 0.0, %v432
        %v500 = vsel %vm488, 0.0, %v431
        %v501 = vsel %vm489, 0.0, %v430
        %v502 = vsel %vm488, 0.0, %v429
        %v503 = vsel %vm489, 0.0, %v428
        %v504 = vsel %vm488, 0.0, %v427
        %v505 = vsel %vm489, 0.0, %v426
        %v506 = vsel %vm488, 0.0, %v425
        %v507 = vsel %vm489, 0.0, %v424
        %v508 = vsel %vm488, 0.0, %v423
        %v509 = vsel %vm489, 0.0, %v422
        %v510 = vpack.c.bf16 %v491, %v490
        %v511 = vpack.c.bf16 %v493, %v492
        %v512 = vpack.c.bf16 %v495, %v494
        %v513 = vpack.c.bf16 %v497, %v496
        %v514 = vpack.c.bf16 %v499, %v498
        %v515 = vpack.c.bf16 %v501, %v500
        %v516 = vpack.c.bf16 %v503, %v502
        %v517 = vpack.c.bf16 %v505, %v504
        %v518 = vpack.c.bf16 %v507, %v506
        %v519 = vpack.c.bf16 %v509, %v508
        %vm520 = vcmp.eq.s32.totalorder %v420, 15
        %vm521 = vcmp.eq.s32.totalorder %v483, 15
        %v522 = vsel %vm520, 1, 0
        %v523 = vsel %vm521, 1, 0
        %vm524 = vcmp.eq.s32.totalorder %v522, 1
        %vm525 = vcmp.eq.s32.totalorder %v523, 1
        %v526 = vsel %vm524, 0.0, %v481
        %v527 = vsel %vm525, 0.0, %v480
        %v528 = vsel %vm524, 0.0, %v479
        %v529 = vsel %vm525, 0.0, %v478
        %v530 = vsel %vm524, 0.0, %v477
        %v531 = vsel %vm525, 0.0, %v476
        %v532 = vsel %vm524, 0.0, %v475
        %v533 = vsel %vm525, 0.0, %v474
        %v534 = vsel %vm524, 0.0, %v473
        %v535 = vsel %vm525, 0.0, %v472
        %v536 = vsel %vm524, 0.0, %v471
        %v537 = vsel %vm525, 0.0, %v470
        %v538 = vsel %vm524, 0.0, %v469
        %v539 = vsel %vm525, 0.0, %v468
        %v540 = vsel %vm524, 0.0, %v467
        %v541 = vsel %vm525, 0.0, %v466
        %v542 = vsel %vm524, 0.0, %v465
        %v543 = vsel %vm525, 0.0, %v464
        %v544 = vsel %vm524, 0.0, %v463
        %v545 = vsel %vm525, 0.0, %v482
        %v546 = vpack.c.bf16 %v527, %v526
        %v547 = vpack.c.bf16 %v529, %v528
        %v548 = vpack.c.bf16 %v531, %v530
        %v549 = vpack.c.bf16 %v533, %v532
        %v550 = vpack.c.bf16 %v535, %v534
        %v551 = vpack.c.bf16 %v537, %v536
        %v552 = vpack.c.bf16 %v539, %v538
        %v553 = vpack.c.bf16 %v541, %v540
        %v554 = vpack.c.bf16 %v543, %v542
        %v555 = vpack.c.bf16 %v545, %v544
        %v556 = vld [vmem:[#allocation7] sm:$0xf]
        %v557 = vld [vmem:[#allocation7 + $0x4] sm:$0xf]
        %v558 = vld [vmem:[#allocation7 + $0x8] sm:$0xf]
        %v559 = vld [vmem:[#allocation7 + $0xc] sm:$0xf]
        %v560 = vld [vmem:[#allocation7 + $0x10] sm:$0xf]
        %v561 = vld [vmem:[#allocation7 + $0x14] sm:$0xf]
        %v562 = vld [vmem:[#allocation7 + $0x18] sm:$0xf]
        %v563 = vld [vmem:[#allocation7 + $0x1c] sm:$0xf]
        %v564 = vld [vmem:[#allocation7 + $0x20] sm:$0xf]
        %v565 = vld [vmem:[#allocation7 + $0x24] sm:$0xf]
        %v566 = vld [vmem:[#allocation7 + $0x28] sm:$0xf]
        %v567 = vld [vmem:[#allocation7 + $0x2c] sm:$0xf]
        %v568 = vld [vmem:[#allocation7 + $0x30] sm:$0xf]
        %v569 = vld [vmem:[#allocation7 + $0x34] sm:$0xf]
        %v570 = vld [vmem:[#allocation7 + $0x38] sm:$0xf]
        %v571 = vld [vmem:[#allocation7 + $0x3c] sm:$0xf]
        %v572 = vld [vmem:[#allocation7 + $0x40] sm:$0xf]
        %v573 = vld [vmem:[#allocation7 + $0x44] sm:$0xf]
        %v574 = vld [vmem:[#allocation7 + $0x48] sm:$0xf]
        %v575 = vld [vmem:[#allocation7 + $0x4c] sm:$0xf]
        %v576 = vld [vmem:[#allocation7 + $0x50] sm:$0xf]
        %v577 = vld [vmem:[#allocation7 + $0x54] sm:$0xf]
        %v578 = vld [vmem:[#allocation7 + $0x58] sm:$0xf]
        %v579 = vld [vmem:[#allocation7 + $0x5c] sm:$0xf]
        %v580 = vld [vmem:[#allocation7 + $0x60] sm:$0xf]
        %v581 = vld [vmem:[#allocation7 + $0x64] sm:$0xf]
        %v582 = vld [vmem:[#allocation7 + $0x68] sm:$0xf]
        %v583 = vld [vmem:[#allocation7 + $0x6c] sm:$0xf]
        %v584 = vld [vmem:[#allocation7 + $0x70] sm:$0xf]
        %v585 = vld [vmem:[#allocation7 + $0x74] sm:$0xf]
        %v586 = vld [vmem:[#allocation7 + $0x78] sm:$0xf]
        %v587 = vld [vmem:[#allocation7 + $0x7c] sm:$0xf]
        %v588 = vld [vmem:[#allocation7 + $0x80] sm:$0xf]
        %v589 = vld [vmem:[#allocation7 + $0x84] sm:$0xf]
        %v590 = vld [vmem:[#allocation7 + $0x88] sm:$0xf]
        %v591 = vld [vmem:[#allocation7 + $0x8c] sm:$0xf]
        %v592 = vld [vmem:[#allocation7 + $0x90] sm:$0xf]
        %v593 = vld [vmem:[#allocation7 + $0x94] sm:$0xf]
        %v594 = vld [vmem:[#allocation7 + $0x98] sm:$0xf]
        %v595 = vld [vmem:[#allocation7 + $0x9c] sm:$0xf]
        %v596 = vld [vmem:[#allocation7 + $0xa0] sm:$0xf]
        %v597 = vld [vmem:[#allocation7 + $0xa4] sm:$0xf]
        %v598 = vld [vmem:[#allocation7 + $0xa8] sm:$0xf]
        %v599 = vld [vmem:[#allocation7 + $0xac] sm:$0xf]
        %v600 = vld [vmem:[#allocation7 + $0xb0] sm:$0xf]
        %v601 = vld [vmem:[#allocation7 + $0xb4] sm:$0xf]
        %v602 = vld [vmem:[#allocation7 + $0xb8] sm:$0xf]
        %v603 = vld [vmem:[#allocation7 + $0xbc] sm:$0xf]
        %s604 = scalar_lea.vmem [#allocation7], 192
        %v605 = vld [vmem:[%s604] sm:$0xf]
        %v606 = vld [vmem:[%s604 + $0x4] sm:$0xf]
        %v607 = vld [vmem:[%s604 + $0x8] sm:$0xf]
        %v608 = vld [vmem:[%s604 + $0xc] sm:$0xf]
        %v609 = vld [vmem:[%s604 + $0x10] sm:$0xf]
        %v610 = vld [vmem:[%s604 + $0x14] sm:$0xf]
        %v611 = vld [vmem:[%s604 + $0x18] sm:$0xf]
        %v612 = vld [vmem:[%s604 + $0x1c] sm:$0xf]
        %v613 = vld [vmem:[%s604 + $0x20] sm:$0xf]
        %v614 = vld [vmem:[%s604 + $0x24] sm:$0xf]
        %v615 = vld [vmem:[%s604 + $0x28] sm:$0xf]
        %v616 = vld [vmem:[%s604 + $0x2c] sm:$0xf]
        %v617 = vld [vmem:[%s604 + $0x30] sm:$0xf]
        %v618 = vld [vmem:[%s604 + $0x34] sm:$0xf]
        %v619 = vld [vmem:[%s604 + $0x38] sm:$0xf]
        %v620 = vld [vmem:[%s604 + $0x3c] sm:$0xf]
        %v621 = vld [vmem:[%s604 + $0x40] sm:$0xf]
        %v622 = vld [vmem:[%s604 + $0x44] sm:$0xf]
        %v623 = vld [vmem:[%s604 + $0x48] sm:$0xf]
        %v624 = vld [vmem:[%s604 + $0x4c] sm:$0xf]
        %v625 = vld [vmem:[%s604 + $0x50] sm:$0xf]
        %v626 = vld [vmem:[%s604 + $0x54] sm:$0xf]
        %v627 = vld [vmem:[%s604 + $0x58] sm:$0xf]
        %v628 = vld [vmem:[%s604 + $0x5c] sm:$0xf]
        %v629 = vld [vmem:[%s604 + $0x60] sm:$0xf]
        %v630 = vld [vmem:[%s604 + $0x64] sm:$0xf]
        %v631 = vld [vmem:[%s604 + $0x68] sm:$0xf]
        %v632 = vld [vmem:[%s604 + $0x6c] sm:$0xf]
        %v633 = vld [vmem:[%s604 + $0x70] sm:$0xf]
        %v634 = vld [vmem:[%s604 + $0x74] sm:$0xf]
        %v635 = vld [vmem:[%s604 + $0x78] sm:$0xf]
        %v636 = vld [vmem:[%s604 + $0x7c] sm:$0xf]
        %v637 = vld [vmem:[%s604 + $0x80] sm:$0xf]
        %v638 = vld [vmem:[%s604 + $0x84] sm:$0xf]
        %v639 = vld [vmem:[%s604 + $0x88] sm:$0xf]
        %v640 = vld [vmem:[%s604 + $0x8c] sm:$0xf]
        %v641 = vld [vmem:[%s604 + $0x90] sm:$0xf]
        %v642 = vld [vmem:[%s604 + $0x94] sm:$0xf]
        %v643 = vld [vmem:[%s604 + $0x98] sm:$0xf]
        %v644 = vld [vmem:[%s604 + $0x9c] sm:$0xf]
        %v645 = vld [vmem:[%s604 + $0xa0] sm:$0xf]
        %v646 = vld [vmem:[%s604 + $0xa4] sm:$0xf]
        %v647 = vld [vmem:[%s604 + $0xa8] sm:$0xf]
        %v648 = vld [vmem:[%s604 + $0xac] sm:$0xf]
        %v649 = vld [vmem:[%s604 + $0xb0] sm:$0xf]
        %v650 = vld [vmem:[%s604 + $0xb4] sm:$0xf]
        %v651 = vld [vmem:[%s604 + $0xb8] sm:$0xf]
        %v652 = vld [vmem:[%s604 + $0xbc] sm:$0xf]
        %v701 = vunpack.c.l.b16 %v605
        %v702 = vunpack.c.l.b16 %v606
        %v703 = vunpack.c.l.b16 %v607
        %v704 = vunpack.c.l.b16 %v608
        %v705 = vunpack.c.l.b16 %v609
        %v706 = vunpack.c.l.b16 %v610
        %v707 = vunpack.c.l.b16 %v611
        %v708 = vunpack.c.l.b16 %v612
        %v709 = vunpack.c.l.b16 %v613
        %v710 = vunpack.c.l.b16 %v614
        %v711 = vunpack.c.l.b16 %v615
        %v712 = vunpack.c.l.b16 %v616
        %v713 = vunpack.c.l.b16 %v617
        %v714 = vunpack.c.l.b16 %v618
        %v715 = vunpack.c.l.b16 %v619
        %v716 = vunpack.c.l.b16 %v620
        %v717 = vunpack.c.l.b16 %v621
        %v718 = vunpack.c.l.b16 %v622
        %v719 = vunpack.c.l.b16 %v623
        %v720 = vunpack.c.l.b16 %v624
        %v721 = vunpack.c.l.b16 %v625
        %v722 = vunpack.c.l.b16 %v626
        %v723 = vunpack.c.l.b16 %v627
        %v724 = vunpack.c.l.b16 %v628
        %v725 = vunpack.c.l.b16 %v629
        %v726 = vunpack.c.l.b16 %v630
        %v727 = vunpack.c.l.b16 %v631
        %v728 = vunpack.c.l.b16 %v632
        %v729 = vunpack.c.l.b16 %v633
        %v730 = vunpack.c.l.b16 %v634
        %v731 = vunpack.c.l.b16 %v635
        %v732 = vunpack.c.l.b16 %v636
        %v733 = vunpack.c.l.b16 %v637
        %v734 = vunpack.c.l.b16 %v638
        %v735 = vunpack.c.l.b16 %v639
        %v736 = vunpack.c.l.b16 %v640
        %v737 = vunpack.c.l.b16 %v641
        %v738 = vunpack.c.l.b16 %v642
        %v739 = vunpack.c.l.b16 %v643
        %v740 = vunpack.c.l.b16 %v644
        %v741 = vunpack.c.l.b16 %v645
        %v742 = vunpack.c.l.b16 %v646
        %v743 = vunpack.c.l.b16 %v647
        %v744 = vunpack.c.l.b16 %v648
        %v745 = vunpack.c.l.b16 %v649
        %v746 = vunpack.c.l.b16 %v650
        %v747 = vunpack.c.l.b16 %v651
        %v748 = vunpack.c.l.b16 %v652
        %v749 = vpack.c.b16 %v702, %v701
        %v750 = vpack.c.b16 %v704, %v703
        %v751 = vpack.c.b16 %v706, %v705
        %v752 = vpack.c.b16 %v708, %v707
        %v753 = vpack.c.b16 %v710, %v709
        %v754 = vpack.c.b16 %v712, %v711
        %v755 = vpack.c.b16 %v714, %v713
        %v756 = vpack.c.b16 %v716, %v715
        %v757 = vpack.c.b16 %v718, %v717
        %v758 = vpack.c.b16 %v720, %v719
        %v759 = vpack.c.b16 %v722, %v721
        %v760 = vpack.c.b16 %v724, %v723
        %v761 = vpack.c.b16 %v726, %v725
        %v762 = vpack.c.b16 %v728, %v727
        %v763 = vpack.c.b16 %v730, %v729
        %v764 = vpack.c.b16 %v732, %v731
        %v765 = vpack.c.b16 %v734, %v733
        %v766 = vpack.c.b16 %v736, %v735
        %v767 = vpack.c.b16 %v738, %v737
        %v768 = vpack.c.b16 %v740, %v739
        %v769 = vpack.c.b16 %v742, %v741
        %v770 = vpack.c.b16 %v744, %v743
        %v771 = vpack.c.b16 %v746, %v745
        %v772 = vpack.c.b16 %v748, %v747
        %797 = vmatprep.subr.bf16.mxu0 0
        %798 = vmatpush1.bf16.msra.mxu0 %v749
        %799 = vmatprep.subr.bf16.mxu0 0
        %800 = vmatpush1.bf16.msra.mxu0 %v750
        %801 = vmatprep.subr.bf16.mxu0 0
        %802 = vmatpush1.bf16.msra.mxu0 %v751
        %803 = vmatprep.subr.bf16.mxu0 0
        %804 = vmatpush1.bf16.msra.mxu0 %v752
        %805 = vmatprep.subr.bf16.mxu0 0
        %806 = vmatpush1.bf16.msra.mxu0 %v753
        %807 = vmatprep.subr.bf16.mxu0 0
        %808 = vmatpush1.bf16.msra.mxu0 %v754
        %809 = vmatprep.subr.bf16.mxu0 0
        %810 = vmatpush1.bf16.msra.mxu0 %v755
        %811 = vmatprep.subr.bf16.mxu0 0
        %812 = vmatpush1.bf16.msra.mxu0 %v756
        %813 = vmatprep.subr.bf16.mxu0 0
        %814 = vmatpush1.bf16.msra.mxu0 %v757
        %815 = vmatprep.subr.bf16.mxu0 0
        %816 = vmatpush1.bf16.msra.mxu0 %v758
        %817 = vmatprep.subr.bf16.mxu0 0
        %818 = vmatpush1.bf16.msra.mxu0 %v759
        %819 = vmatprep.subr.bf16.mxu0 0
        %820 = vmatpush1.bf16.msra.mxu0 %v760
        %821 = vmatprep.subr.bf16.mxu0 0
        %822 = vmatpush1.bf16.msra.mxu0 %v761
        %823 = vmatprep.subr.bf16.mxu0 0
        %824 = vmatpush1.bf16.msra.mxu0 %v762
        %825 = vmatprep.subr.bf16.mxu0 0
        %826 = vmatpush1.bf16.msra.mxu0 %v763
        %827 = vmatprep.subr.bf16.mxu0 0
        %828 = vmatpush1.bf16.msra.mxu0 %v764
        %829 = vmatprep.mubr.bf16.mxu0 %v363
        %830 = vmatmul.mubr.bf16.gmra.mrb[0].mxu0 %v511
        %v831 = vpop.f32.mrb[0].mxu0
        %v832 = vadd.f32 0.0, %v831
        %v833 = vpop.f32.mrb[0].mxu0
        %v834 = vpop.f32.mrb[0].mxu0
        %v835 = vadd.f32 0.0, %v834
        %v836 = vpop.f32.mrb[0].mxu0
        %837 = vmatprep.mubr.bf16.mxu0 %v364
        %838 = vmatmul.mubr.bf16.gmra.mrb[0].mxu0 %v512
        %v839 = vpop.f32.mrb[0].mxu0
        %v840 = vadd.f32 0.0, %v839
        %v841 = vpop.f32.mrb[0].mxu0
        %v842 = vpop.f32.mrb[0].mxu0
        %v843 = vadd.f32 0.0, %v842
        %v844 = vpop.f32.mrb[0].mxu0
        %845 = vmatprep.mubr.bf16.mxu0 %v365
        %846 = vmatmul.mubr.bf16.gmra.mrb[0].mxu0 %v513
        %v847 = vpop.f32.mrb[0].mxu0
        %v848 = vadd.f32 0.0, %v847
        %v849 = vpop.f32.mrb[0].mxu0
        %v850 = vpop.f32.mrb[0].mxu0
        %v851 = vadd.f32 0.0, %v850
        %v852 = vpop.f32.mrb[0].mxu0
        %853 = vmatprep.mubr.bf16.mxu0 %v366
        %854 = vmatmul.mubr.bf16.gmra.mrb[0].mxu0 %v514
        %v855 = vpop.f32.mrb[0].mxu0
        %v856 = vadd.f32 0.0, %v855
        %v857 = vpop.f32.mrb[0].mxu0
        %v858 = vpop.f32.mrb[0].mxu0
        %v859 = vadd.f32 0.0, %v858
        %v860 = vpop.f32.mrb[0].mxu0
        %861 = vmatprep.mubr.bf16.mxu0 %v367
        %862 = vmatmul.mubr.bf16.gmra.mrb[0].mxu0 %v515
        %v863 = vpop.f32.mrb[0].mxu0
        %v864 = vadd.f32 0.0, %v863
        %v865 = vpop.f32.mrb[0].mxu0
        %v866 = vpop.f32.mrb[0].mxu0
        %v867 = vadd.f32 0.0, %v866
        %v868 = vpop.f32.mrb[0].mxu0
        %869 = vmatprep.mubr.bf16.mxu0 %v368
        %870 = vmatmul.mubr.bf16.gmra.mrb[0].mxu0 %v516
        %v871 = vpop.f32.mrb[0].mxu0
        %v872 = vadd.f32 0.0, %v871
        %v873 = vpop.f32.mrb[0].mxu0
        %v874 = vpop.f32.mrb[0].mxu0
        %v875 = vadd.f32 0.0, %v874
        %v876 = vpop.f32.mrb[0].mxu0
        %877 = vmatprep.mubr.bf16.mxu0 %v369
        %878 = vmatmul.mubr.bf16.gmra.mrb[0].mxu0 %v517
        %v879 = vpop.f32.mrb[0].mxu0
        %v880 = vadd.f32 0.0, %v879
        %v881 = vpop.f32.mrb[0].mxu0
        %v882 = vpop.f32.mrb[0].mxu0
        %v883 = vadd.f32 0.0, %v882
        %v884 = vpop.f32.mrb[0].mxu0
        %885 = vmatprep.mubr.bf16.mxu0 %v370
        %886 = vmatmul.mubr.bf16.gmra.mrb[0].mxu0 %v518
        %v887 = vpop.f32.mrb[0].mxu0
        %v888 = vadd.f32 0.0, %v887
        %v889 = vpop.f32.mrb[0].mxu0
        %v890 = vpop.f32.mrb[0].mxu0
        %v891 = vadd.f32 0.0, %v890
        %v892 = vpop.f32.mrb[0].mxu0
        %893 = vdwg.mxu0
        %894 = vmatprep.subr.bf16.mxu0 0
        %895 = vmatpush1.bf16.msra.mxu0 %v765
        %896 = vmatprep.subr.bf16.mxu0 0
        %897 = vmatpush1.bf16.msra.mxu0 %v766
        %898 = vmatprep.subr.bf16.mxu0 0
        %899 = vmatpush1.bf16.msra.mxu0 %v767
        %900 = vmatprep.subr.bf16.mxu0 0
        %901 = vmatpush1.bf16.msra.mxu0 %v768
        %902 = vmatprep.subr.bf16.mxu0 0
        %903 = vmatpush1.bf16.msra.mxu0 %v769
        %904 = vmatprep.subr.bf16.mxu0 0
        %905 = vmatpush1.bf16.msra.mxu0 %v770
        %906 = vmatprep.subr.bf16.mxu0 0
        %907 = vmatpush1.bf16.msra.mxu0 %v771
        %908 = vmatprep.subr.bf16.mxu0 0
        %909 = vmatpush1.bf16.msra.mxu0 %v772
        %910 = vmatprep.subr.bf16.mxu0 0
        %911 = vmatpush1.bf16.msra.mxu0 0
        %912 = vmatprep.subr.bf16.mxu0 0
        %913 = vmatpush1.bf16.msra.mxu0 0
        %914 = vmatprep.subr.bf16.mxu0 0
        %915 = vmatpush1.bf16.msra.mxu0 0
        %916 = vmatprep.subr.bf16.mxu0 0
        %917 = vmatpush1.bf16.msra.mxu0 0
        %918 = vmatprep.subr.bf16.mxu0 0
        %919 = vmatpush1.bf16.msra.mxu0 0
        %920 = vmatprep.subr.bf16.mxu0 0
        %921 = vmatpush1.bf16.msra.mxu0 0
        %922 = vmatprep.subr.bf16.mxu0 0
        %923 = vmatpush1.bf16.msra.mxu0 0
        %924 = vmatprep.subr.bf16.mxu0 0
        %925 = vmatpush1.bf16.msra.mxu0 0
        %926 = vmatprep.mubr.bf16.mxu0 0
        %927 = vmatmul.mubr.bf16.gmra.mrb[0].mxu0 %v547
        %v928 = vpop.f32.mrb[0].mxu0
        %v929 = vadd.f32 %v832, %v928
        %v930 = vpop.f32.mrb[0].mxu0
        %v931 = vpop.f32.mrb[0].mxu0
        %v932 = vadd.f32 %v835, %v931
        %v933 = vpop.f32.mrb[0].mxu0
        %934 = vmatprep.mubr.bf16.mxu0 0
        %935 = vmatmul.mubr.bf16.gmra.mrb[0].mxu0 %v548
        %v936 = vpop.f32.mrb[0].mxu0
        %v937 = vadd.f32 %v840, %v936
        %v938 = vpop.f32.mrb[0].mxu0
        %v939 = vpop.f32.mrb[0].mxu0
        %v940 = vadd.f32 %v843, %v939
        %v941 = vpop.f32.mrb[0].mxu0
        %942 = vmatprep.mubr.bf16.mxu0 0
        %943 = vmatmul.mubr.bf16.gmra.mrb[0].mxu0 %v549
        %v944 = vpop.f32.mrb[0].mxu0
        %v945 = vadd.f32 %v848, %v944
        %v946 = vpop.f32.mrb[0].mxu0
        %v947 = vpop.f32.mrb[0].mxu0
        %v948 = vadd.f32 %v851, %v947
        %v949 = vpop.f32.mrb[0].mxu0
        %950 = vmatprep.mubr.bf16.mxu0 0
        %951 = vmatmul.mubr.bf16.gmra.mrb[0].mxu0 %v550
        %v952 = vpop.f32.mrb[0].mxu0
        %v953 = vadd.f32 %v856, %v952
        %v954 = vpop.f32.mrb[0].mxu0
        %v955 = vpop.f32.mrb[0].mxu0
        %v956 = vadd.f32 %v859, %v955
        %v957 = vpop.f32.mrb[0].mxu0
        %958 = vmatprep.mubr.bf16.mxu0 0
        %959 = vmatmul.mubr.bf16.gmra.mrb[0].mxu0 %v551
        %v960 = vpop.f32.mrb[0].mxu0
        %v961 = vadd.f32 %v864, %v960
        %v962 = vpop.f32.mrb[0].mxu0
        %v963 = vpop.f32.mrb[0].mxu0
        %v964 = vadd.f32 %v867, %v963
        %v965 = vpop.f32.mrb[0].mxu0
        %966 = vmatprep.mubr.bf16.mxu0 0
        %967 = vmatmul.mubr.bf16.gmra.mrb[0].mxu0 %v552
        %v968 = vpop.f32.mrb[0].mxu0
        %v969 = vadd.f32 %v872, %v968
        %v970 = vpop.f32.mrb[0].mxu0
        %v971 = vpop.f32.mrb[0].mxu0
        %v972 = vadd.f32 %v875, %v971
        %v973 = vpop.f32.mrb[0].mxu0
        %974 = vmatprep.mubr.bf16.mxu0 0
        %975 = vmatmul.mubr.bf16.gmra.mrb[0].mxu0 %v553
        %v976 = vpop.f32.mrb[0].mxu0
        %v977 = vadd.f32 %v880, %v976
        %v978 = vpop.f32.mrb[0].mxu0
        %v979 = vpop.f32.mrb[0].mxu0
        %v980 = vadd.f32 %v883, %v979
        %v981 = vpop.f32.mrb[0].mxu0
        %982 = vmatprep.mubr.bf16.mxu0 0
        %983 = vmatmul.mubr.bf16.gmra.mrb[0].mxu0 %v554
        %v984 = vpop.f32.mrb[0].mxu0
        %v985 = vadd.f32 %v888, %v984
        %v986 = vpop.f32.mrb[0].mxu0
        %v987 = vpop.f32.mrb[0].mxu0
        %v988 = vadd.f32 %v891, %v987
        %v989 = vpop.f32.mrb[0].mxu0
        %990 = vdwg.mxu0
        %v1039 = vunpack.c.l.b16 %v556
        %v1040 = vunpack.c.l.b16 %v557
        %v1041 = vunpack.c.l.b16 %v558
        %v1042 = vunpack.c.l.b16 %v559
        %v1043 = vunpack.c.l.b16 %v560
        %v1044 = vunpack.c.l.b16 %v561
        %v1045 = vunpack.c.l.b16 %v562
        %v1046 = vunpack.c.l.b16 %v563
        %v1047 = vunpack.c.l.b16 %v564
        %v1048 = vunpack.c.l.b16 %v565
        %v1049 = vunpack.c.l.b16 %v566
        %v1050 = vunpack.c.l.b16 %v567
        %v1051 = vunpack.c.l.b16 %v568
        %v1052 = vunpack.c.l.b16 %v569
        %v1053 = vunpack.c.l.b16 %v570
        %v1054 = vunpack.c.l.b16 %v571
        %v1055 = vunpack.c.l.b16 %v572
        %v1056 = vunpack.c.l.b16 %v573
        %v1057 = vunpack.c.l.b16 %v574
        %v1058 = vunpack.c.l.b16 %v575
        %v1059 = vunpack.c.l.b16 %v576
        %v1060 = vunpack.c.l.b16 %v577
        %v1061 = vunpack.c.l.b16 %v578
        %v1062 = vunpack.c.l.b16 %v579
        %v1063 = vunpack.c.l.b16 %v580
        %v1064 = vunpack.c.l.b16 %v581
        %v1065 = vunpack.c.l.b16 %v582
        %v1066 = vunpack.c.l.b16 %v583
        %v1067 = vunpack.c.l.b16 %v584
        %v1068 = vunpack.c.l.b16 %v585
        %v1069 = vunpack.c.l.b16 %v586
        %v1070 = vunpack.c.l.b16 %v587
        %v1071 = vunpack.c.l.b16 %v588
        %v1072 = vunpack.c.l.b16 %v589
        %v1073 = vunpack.c.l.b16 %v590
        %v1074 = vunpack.c.l.b16 %v591
        %v1075 = vunpack.c.l.b16 %v592
        %v1076 = vunpack.c.l.b16 %v593
        %v1077 = vunpack.c.l.b16 %v594
        %v1078 = vunpack.c.l.b16 %v595
        %v1079 = vunpack.c.l.b16 %v596
        %v1080 = vunpack.c.l.b16 %v597
        %v1081 = vunpack.c.l.b16 %v598
        %v1082 = vunpack.c.l.b16 %v599
        %v1083 = vunpack.c.l.b16 %v600
        %v1084 = vunpack.c.l.b16 %v601
        %v1085 = vunpack.c.l.b16 %v602
        %v1086 = vunpack.c.l.b16 %v603
        %v1087 = vpack.c.b16 %v1040, %v1039
        %v1088 = vpack.c.b16 %v1042, %v1041
        %v1089 = vpack.c.b16 %v1044, %v1043
        %v1090 = vpack.c.b16 %v1046, %v1045
        %v1091 = vpack.c.b16 %v1048, %v1047
        %v1092 = vpack.c.b16 %v1050, %v1049
        %v1093 = vpack.c.b16 %v1052, %v1051
        %v1094 = vpack.c.b16 %v1054, %v1053
        %v1095 = vpack.c.b16 %v1056, %v1055
        %v1096 = vpack.c.b16 %v1058, %v1057
        %v1097 = vpack.c.b16 %v1060, %v1059
        %v1098 = vpack.c.b16 %v1062, %v1061
        %v1099 = vpack.c.b16 %v1064, %v1063
        %v1100 = vpack.c.b16 %v1066, %v1065
        %v1101 = vpack.c.b16 %v1068, %v1067
        %v1102 = vpack.c.b16 %v1070, %v1069
        %v1103 = vpack.c.b16 %v1072, %v1071
        %v1104 = vpack.c.b16 %v1074, %v1073
        %v1105 = vpack.c.b16 %v1076, %v1075
        %v1106 = vpack.c.b16 %v1078, %v1077
        %v1107 = vpack.c.b16 %v1080, %v1079
        %v1108 = vpack.c.b16 %v1082, %v1081
        %v1109 = vpack.c.b16 %v1084, %v1083
        %v1110 = vpack.c.b16 %v1086, %v1085
        %1135 = vmatprep.subr.bf16.mxu0 0
        %1136 = vmatpush1.bf16.msra.mxu0 %v1087
        %1137 = vmatprep.subr.bf16.mxu0 0
        %1138 = vmatpush1.bf16.msra.mxu0 %v1088
        %1139 = vmatprep.subr.bf16.mxu0 0
        %1140 = vmatpush1.bf16.msra.mxu0 %v1089
        %1141 = vmatprep.subr.bf16.mxu0 0
        %1142 = vmatpush1.bf16.msra.mxu0 %v1090
        %1143 = vmatprep.subr.bf16.mxu0 0
        %1144 = vmatpush1.bf16.msra.mxu0 %v1091
        %1145 = vmatprep.subr.bf16.mxu0 0
        %1146 = vmatpush1.bf16.msra.mxu0 %v1092
        %1147 = vmatprep.subr.bf16.mxu0 0
        %1148 = vmatpush1.bf16.msra.mxu0 %v1093
        %1149 = vmatprep.subr.bf16.mxu0 0
        %1150 = vmatpush1.bf16.msra.mxu0 %v1094
        %1151 = vmatprep.subr.bf16.mxu0 0
        %1152 = vmatpush1.bf16.msra.mxu0 %v1095
        %1153 = vmatprep.subr.bf16.mxu0 0
        %1154 = vmatpush1.bf16.msra.mxu0 %v1096
        %1155 = vmatprep.subr.bf16.mxu0 0
        %1156 = vmatpush1.bf16.msra.mxu0 %v1097
        %1157 = vmatprep.subr.bf16.mxu0 0
        %1158 = vmatpush1.bf16.msra.mxu0 %v1098
        %1159 = vmatprep.subr.bf16.mxu0 0
        %1160 = vmatpush1.bf16.msra.mxu0 %v1099
        %1161 = vmatprep.subr.bf16.mxu0 0
        %1162 = vmatpush1.bf16.msra.mxu0 %v1100
        %1163 = vmatprep.subr.bf16.mxu0 0
        %1164 = vmatpush1.bf16.msra.mxu0 %v1101
        %1165 = vmatprep.subr.bf16.mxu0 0
        %1166 = vmatpush1.bf16.msra.mxu0 %v1102
        %1167 = vmatprep.mubr.bf16.mxu0 %v312
        %1168 = vmatmul.mubr.bf16.gmra.mrb[0].mxu0 %v510
        %v1169 = vpop.f32.mrb[0].mxu0
        %v1170 = vadd.f32 %v929, %v1169
        %v1171 = vpop.f32.mrb[0].mxu0
        %v1172 = vpop.f32.mrb[0].mxu0
        %v1173 = vadd.f32 %v932, %v1172
        %v1174 = vpop.f32.mrb[0].mxu0
        %1175 = vmatprep.mubr.bf16.mxu0 %v363
        %1176 = vmatmul.mubr.bf16.gmra.mrb[0].mxu0 %v511
        %v1177 = vpop.f32.mrb[0].mxu0
        %v1178 = vadd.f32 %v937, %v1177
        %v1179 = vpop.f32.mrb[0].mxu0
        %v1180 = vpop.f32.mrb[0].mxu0
        %v1181 = vadd.f32 %v940, %v1180
        %v1182 = vpop.f32.mrb[0].mxu0
        %1183 = vmatprep.mubr.bf16.mxu0 %v364
        %1184 = vmatmul.mubr.bf16.gmra.mrb[0].mxu0 %v512
        %v1185 = vpop.f32.mrb[0].mxu0
        %v1186 = vadd.f32 %v945, %v1185
        %v1187 = vpop.f32.mrb[0].mxu0
        %v1188 = vpop.f32.mrb[0].mxu0
        %v1189 = vadd.f32 %v948, %v1188
        %v1190 = vpop.f32.mrb[0].mxu0
        %1191 = vmatprep.mubr.bf16.mxu0 %v365
        %1192 = vmatmul.mubr.bf16.gmra.mrb[0].mxu0 %v513
        %v1193 = vpop.f32.mrb[0].mxu0
        %v1194 = vadd.f32 %v953, %v1193
        %v1195 = vpop.f32.mrb[0].mxu0
        %v1196 = vpop.f32.mrb[0].mxu0
        %v1197 = vadd.f32 %v956, %v1196
        %v1198 = vpop.f32.mrb[0].mxu0
        %1199 = vmatprep.mubr.bf16.mxu0 %v366
        %1200 = vmatmul.mubr.bf16.gmra.mrb[0].mxu0 %v514
        %v1201 = vpop.f32.mrb[0].mxu0
        %v1202 = vadd.f32 %v961, %v1201
        %v1203 = vpop.f32.mrb[0].mxu0
        %v1204 = vpop.f32.mrb[0].mxu0
        %v1205 = vadd.f32 %v964, %v1204
        %v1206 = vpop.f32.mrb[0].mxu0
        %1207 = vmatprep.mubr.bf16.mxu0 %v367
        %1208 = vmatmul.mubr.bf16.gmra.mrb[0].mxu0 %v515
        %v1209 = vpop.f32.mrb[0].mxu0
        %v1210 = vadd.f32 %v969, %v1209
        %v1211 = vpop.f32.mrb[0].mxu0
        %v1212 = vpop.f32.mrb[0].mxu0
        %v1213 = vadd.f32 %v972, %v1212
        %v1214 = vpop.f32.mrb[0].mxu0
        %1215 = vmatprep.mubr.bf16.mxu0 %v368
        %1216 = vmatmul.mubr.bf16.gmra.mrb[0].mxu0 %v516
        %v1217 = vpop.f32.mrb[0].mxu0
        %v1218 = vadd.f32 %v977, %v1217
        %v1219 = vpop.f32.mrb[0].mxu0
        %v1220 = vpop.f32.mrb[0].mxu0
        %v1221 = vadd.f32 %v980, %v1220
        %v1222 = vpop.f32.mrb[0].mxu0
        %1223 = vmatprep.mubr.bf16.mxu0 %v369
        %1224 = vmatmul.mubr.bf16.gmra.mrb[0].mxu0 %v517
        %v1225 = vpop.f32.mrb[0].mxu0
        %v1226 = vadd.f32 %v985, %v1225
        %v1227 = vpop.f32.mrb[0].mxu0
        %v1228 = vpop.f32.mrb[0].mxu0
        %v1229 = vadd.f32 %v988, %v1228
        %v1230 = vpop.f32.mrb[0].mxu0
        %1231 = vdwg.mxu0
        %1232 = vmatprep.subr.bf16.mxu0 0
        %1233 = vmatpush1.bf16.msra.mxu0 %v1103
        %1234 = vmatprep.subr.bf16.mxu0 0
        %1235 = vmatpush1.bf16.msra.mxu0 %v1104
        %1236 = vmatprep.subr.bf16.mxu0 0
        %1237 = vmatpush1.bf16.msra.mxu0 %v1105
        %1238 = vmatprep.subr.bf16.mxu0 0
        %1239 = vmatpush1.bf16.msra.mxu0 %v1106
        %1240 = vmatprep.subr.bf16.mxu0 0
        %1241 = vmatpush1.bf16.msra.mxu0 %v1107
        %1242 = vmatprep.subr.bf16.mxu0 0
        %1243 = vmatpush1.bf16.msra.mxu0 %v1108
        %1244 = vmatprep.subr.bf16.mxu0 0
        %1245 = vmatpush1.bf16.msra.mxu0 %v1109
        %1246 = vmatprep.subr.bf16.mxu0 0
        %1247 = vmatpush1.bf16.msra.mxu0 %v1110
        %1248 = vmatprep.subr.bf16.mxu0 0
        %1249 = vmatpush1.bf16.msra.mxu0 0
        %1250 = vmatprep.subr.bf16.mxu0 0
        %1251 = vmatpush1.bf16.msra.mxu0 0
        %1252 = vmatprep.subr.bf16.mxu0 0
        %1253 = vmatpush1.bf16.msra.mxu0 0
        %1254 = vmatprep.subr.bf16.mxu0 0
        %1255 = vmatpush1.bf16.msra.mxu0 0
        %1256 = vmatprep.subr.bf16.mxu0 0
        %1257 = vmatpush1.bf16.msra.mxu0 0
        %1258 = vmatprep.subr.bf16.mxu0 0
        %1259 = vmatpush1.bf16.msra.mxu0 0
        %1260 = vmatprep.subr.bf16.mxu0 0
        %1261 = vmatpush1.bf16.msra.mxu0 0
        %1262 = vmatprep.subr.bf16.mxu0 0
        %1263 = vmatpush1.bf16.msra.mxu0 0
        %1264 = vmatprep.mubr.bf16.mxu0 0
        %1265 = vmatmul.mubr.bf16.gmra.mrb[0].mxu0 %v546
        %v1266 = vpop.f32.mrb[0].mxu0
        %v1267 = vadd.f32 %v1170, %v1266
        %v1268 = vpop.f32.mrb[0].mxu0
        %v1269 = vpop.f32.mrb[0].mxu0
        %v1270 = vadd.f32 %v1173, %v1269
        %v1271 = vpop.f32.mrb[0].mxu0
        %1272 = vmatprep.mubr.bf16.mxu0 0
        %1273 = vmatmul.mubr.bf16.gmra.mrb[0].mxu0 %v547
        %v1274 = vpop.f32.mrb[0].mxu0
        %v1275 = vadd.f32 %v1178, %v1274
        %v1276 = vpop.f32.mrb[0].mxu0
        %v1277 = vpop.f32.mrb[0].mxu0
        %v1278 = vadd.f32 %v1181, %v1277
        %v1279 = vpop.f32.mrb[0].mxu0
        %1280 = vmatprep.mubr.bf16.mxu0 0
        %1281 = vmatmul.mubr.bf16.gmra.mrb[0].mxu0 %v548
        %v1282 = vpop.f32.mrb[0].mxu0
        %v1283 = vadd.f32 %v1186, %v1282
        %v1284 = vpop.f32.mrb[0].mxu0
        %v1285 = vpop.f32.mrb[0].mxu0
        %v1286 = vadd.f32 %v1189, %v1285
        %v1287 = vpop.f32.mrb[0].mxu0
        %1288 = vmatprep.mubr.bf16.mxu0 0
        %1289 = vmatmul.mubr.bf16.gmra.mrb[0].mxu0 %v549
        %v1290 = vpop.f32.mrb[0].mxu0
        %v1291 = vadd.f32 %v1194, %v1290
        %v1292 = vpop.f32.mrb[0].mxu0
        %v1293 = vpop.f32.mrb[0].mxu0
        %v1294 = vadd.f32 %v1197, %v1293
        %v1295 = vpop.f32.mrb[0].mxu0
        %1296 = vmatprep.mubr.bf16.mxu0 0
        %1297 = vmatmul.mubr.bf16.gmra.mrb[0].mxu0 %v550
        %v1298 = vpop.f32.mrb[0].mxu0
        %v1299 = vadd.f32 %v1202, %v1298
        %v1300 = vpop.f32.mrb[0].mxu0
        %v1301 = vpop.f32.mrb[0].mxu0
        %v1302 = vadd.f32 %v1205, %v1301
        %v1303 = vpop.f32.mrb[0].mxu0
        %1304 = vmatprep.mubr.bf16.mxu0 0
        %1305 = vmatmul.mubr.bf16.gmra.mrb[0].mxu0 %v551
        %v1306 = vpop.f32.mrb[0].mxu0
        %v1307 = vadd.f32 %v1210, %v1306
        %v1308 = vpop.f32.mrb[0].mxu0
        %v1309 = vpop.f32.mrb[0].mxu0
        %v1310 = vadd.f32 %v1213, %v1309
        %v1311 = vpop.f32.mrb[0].mxu0
        %1312 = vmatprep.mubr.bf16.mxu0 0
        %1313 = vmatmul.mubr.bf16.gmra.mrb[0].mxu0 %v552
        %v1314 = vpop.f32.mrb[0].mxu0
        %v1315 = vadd.f32 %v1218, %v1314
        %v1316 = vpop.f32.mrb[0].mxu0
        %v1317 = vpop.f32.mrb[0].mxu0
        %v1318 = vadd.f32 %v1221, %v1317
        %v1319 = vpop.f32.mrb[0].mxu0
        %1320 = vmatprep.mubr.bf16.mxu0 0
        %1321 = vmatmul.mubr.bf16.gmra.mrb[0].mxu0 %v553
        %v1322 = vpop.f32.mrb[0].mxu0
        %v1323 = vadd.f32 %v1226, %v1322
        %v1324 = vpop.f32.mrb[0].mxu0
        %v1325 = vpop.f32.mrb[0].mxu0
        %v1326 = vadd.f32 %v1229, %v1325
        %v1327 = vpop.f32.mrb[0].mxu0
        %1328 = vdwg.mxu0
        %s1329 = scalar_lea.vmem [#allocation7], 384
        %v1330 = vld [vmem:[%s1329] sm:$0xf]
        %v1331 = vld [vmem:[%s1329 + $0x4] sm:$0xf]
        %v1332 = vld [vmem:[%s1329 + $0x8] sm:$0xf]
        %v1333 = vld [vmem:[%s1329 + $0xc] sm:$0xf]
        %v1334 = vld [vmem:[%s1329 + $0x10] sm:$0xf]
        %v1335 = vld [vmem:[%s1329 + $0x14] sm:$0xf]
        %v1336 = vld [vmem:[%s1329 + $0x18] sm:$0xf]
        %v1337 = vld [vmem:[%s1329 + $0x1c] sm:$0xf]
        %v1338 = vld [vmem:[%s1329 + $0x20] sm:$0xf]
        %v1339 = vld [vmem:[%s1329 + $0x24] sm:$0xf]
        %v1340 = vld [vmem:[%s1329 + $0x28] sm:$0xf]
        %v1341 = vld [vmem:[%s1329 + $0x2c] sm:$0xf]
        %v1342 = vld [vmem:[%s1329 + $0x30] sm:$0xf]
        %v1343 = vld [vmem:[%s1329 + $0x34] sm:$0xf]
        %v1344 = vld [vmem:[%s1329 + $0x38] sm:$0xf]
        %v1345 = vld [vmem:[%s1329 + $0x3c] sm:$0xf]
        %v1346 = vld [vmem:[%s1329 + $0x40] sm:$0xf]
        %v1347 = vld [vmem:[%s1329 + $0x44] sm:$0xf]
        %v1348 = vld [vmem:[%s1329 + $0x48] sm:$0xf]
        %v1349 = vld [vmem:[%s1329 + $0x4c] sm:$0xf]
        %v1350 = vld [vmem:[%s1329 + $0x50] sm:$0xf]
        %v1351 = vld [vmem:[%s1329 + $0x54] sm:$0xf]
        %v1352 = vld [vmem:[%s1329 + $0x58] sm:$0xf]
        %v1353 = vld [vmem:[%s1329 + $0x5c] sm:$0xf]
        %v1354 = vld [vmem:[%s1329 + $0x60] sm:$0xf]
        %v1355 = vld [vmem:[%s1329 + $0x64] sm:$0xf]
        %v1356 = vld [vmem:[%s1329 + $0x68] sm:$0xf]
        %v1357 = vld [vmem:[%s1329 + $0x6c] sm:$0xf]
        %v1358 = vld [vmem:[%s1329 + $0x70] sm:$0xf]
        %v1359 = vld [vmem:[%s1329 + $0x74] sm:$0xf]
        %v1360 = vld [vmem:[%s1329 + $0x78] sm:$0xf]
        %v1361 = vld [vmem:[%s1329 + $0x7c] sm:$0xf]
        %v1362 = vld [vmem:[%s1329 + $0x80] sm:$0xf]
        %v1363 = vld [vmem:[%s1329 + $0x84] sm:$0xf]
        %v1364 = vld [vmem:[%s1329 + $0x88] sm:$0xf]
        %v1365 = vld [vmem:[%s1329 + $0x8c] sm:$0xf]
        %v1366 = vld [vmem:[%s1329 + $0x90] sm:$0xf]
        %v1367 = vld [vmem:[%s1329 + $0x94] sm:$0xf]
        %v1368 = vld [vmem:[%s1329 + $0x98] sm:$0xf]
        %v1369 = vld [vmem:[%s1329 + $0x9c] sm:$0xf]
        %v1370 = vld [vmem:[%s1329 + $0xa0] sm:$0xf]
        %v1371 = vld [vmem:[%s1329 + $0xa4] sm:$0xf]
        %v1372 = vld [vmem:[%s1329 + $0xa8] sm:$0xf]
        %v1373 = vld [vmem:[%s1329 + $0xac] sm:$0xf]
        %v1374 = vld [vmem:[%s1329 + $0xb0] sm:$0xf]
        %v1375 = vld [vmem:[%s1329 + $0xb4] sm:$0xf]
        %v1376 = vld [vmem:[%s1329 + $0xb8] sm:$0xf]
        %v1377 = vld [vmem:[%s1329 + $0xbc] sm:$0xf]
        %v1426 = vunpack.c.l.b16 %v1330
        %v1427 = vunpack.c.l.b16 %v1331
        %v1428 = vunpack.c.l.b16 %v1332
        %v1429 = vunpack.c.l.b16 %v1333
        %v1430 = vunpack.c.l.b16 %v1334
        %v1431 = vunpack.c.l.b16 %v1335
        %v1432 = vunpack.c.l.b16 %v1336
        %v1433 = vunpack.c.l.b16 %v1337
        %v1434 = vunpack.c.l.b16 %v1338
        %v1435 = vunpack.c.l.b16 %v1339
        %v1436 = vunpack.c.l.b16 %v1340
        %v1437 = vunpack.c.l.b16 %v1341
        %v1438 = vunpack.c.l.b16 %v1342
        %v1439 = vunpack.c.l.b16 %v1343
        %v1440 = vunpack.c.l.b16 %v1344
        %v1441 = vunpack.c.l.b16 %v1345
        %v1442 = vunpack.c.l.b16 %v1346
        %v1443 = vunpack.c.l.b16 %v1347
        %v1444 = vunpack.c.l.b16 %v1348
        %v1445 = vunpack.c.l.b16 %v1349
        %v1446 = vunpack.c.l.b16 %v1350
        %v1447 = vunpack.c.l.b16 %v1351
        %v1448 = vunpack.c.l.b16 %v1352
        %v1449 = vunpack.c.l.b16 %v1353
        %v1450 = vunpack.c.l.b16 %v1354
        %v1451 = vunpack.c.l.b16 %v1355
        %v1452 = vunpack.c.l.b16 %v1356
        %v1453 = vunpack.c.l.b16 %v1357
        %v1454 = vunpack.c.l.b16 %v1358
        %v1455 = vunpack.c.l.b16 %v1359
        %v1456 = vunpack.c.l.b16 %v1360
        %v1457 = vunpack.c.l.b16 %v1361
        %v1458 = vunpack.c.l.b16 %v1362
        %v1459 = vunpack.c.l.b16 %v1363
        %v1460 = vunpack.c.l.b16 %v1364
        %v1461 = vunpack.c.l.b16 %v1365
        %v1462 = vunpack.c.l.b16 %v1366
        %v1463 = vunpack.c.l.b16 %v1367
        %v1464 = vunpack.c.l.b16 %v1368
        %v1465 = vunpack.c.l.b16 %v1369
        %v1466 = vunpack.c.l.b16 %v1370
        %v1467 = vunpack.c.l.b16 %v1371
        %v1468 = vunpack.c.l.b16 %v1372
        %v1469 = vunpack.c.l.b16 %v1373
        %v1470 = vunpack.c.l.b16 %v1374
        %v1471 = vunpack.c.l.b16 %v1375
        %v1472 = vunpack.c.l.b16 %v1376
        %v1473 = vunpack.c.l.b16 %v1377
        %v1474 = vpack.c.b16 %v1427, %v1426
        %v1475 = vpack.c.b16 %v1429, %v1428
        %v1476 = vpack.c.b16 %v1431, %v1430
        %v1477 = vpack.c.b16 %v1433, %v1432
        %v1478 = vpack.c.b16 %v1435, %v1434
        %v1479 = vpack.c.b16 %v1437, %v1436
        %v1480 = vpack.c.b16 %v1439, %v1438
        %v1481 = vpack.c.b16 %v1441, %v1440
        %v1482 = vpack.c.b16 %v1443, %v1442
        %v1483 = vpack.c.b16 %v1445, %v1444
        %v1484 = vpack.c.b16 %v1447, %v1446
        %v1485 = vpack.c.b16 %v1449, %v1448
        %v1486 = vpack.c.b16 %v1451, %v1450
        %v1487 = vpack.c.b16 %v1453, %v1452
        %v1488 = vpack.c.b16 %v1455, %v1454
        %v1489 = vpack.c.b16 %v1457, %v1456
        %v1490 = vpack.c.b16 %v1459, %v1458
        %v1491 = vpack.c.b16 %v1461, %v1460
        %v1492 = vpack.c.b16 %v1463, %v1462
        %v1493 = vpack.c.b16 %v1465, %v1464
        %v1494 = vpack.c.b16 %v1467, %v1466
        %v1495 = vpack.c.b16 %v1469, %v1468
        %v1496 = vpack.c.b16 %v1471, %v1470
        %v1497 = vpack.c.b16 %v1473, %v1472
        %1522 = vmatprep.subr.bf16.mxu0 0
        %1523 = vmatpush1.bf16.msra.mxu0 %v1474
        %1524 = vmatprep.subr.bf16.mxu0 0
        %1525 = vmatpush1.bf16.msra.mxu0 %v1475
        %1526 = vmatprep.subr.bf16.mxu0 0
        %1527 = vmatpush1.bf16.msra.mxu0 %v1476
        %1528 = vmatprep.subr.bf16.mxu0 0
        %1529 = vmatpush1.bf16.msra.mxu0 %v1477
        %1530 = vmatprep.subr.bf16.mxu0 0
        %1531 = vmatpush1.bf16.msra.mxu0 %v1478
        %1532 = vmatprep.subr.bf16.mxu0 0
        %1533 = vmatpush1.bf16.msra.mxu0 %v1479
        %1534 = vmatprep.subr.bf16.mxu0 0
        %1535 = vmatpush1.bf16.msra.mxu0 %v1480
        %1536 = vmatprep.subr.bf16.mxu0 0
        %1537 = vmatpush1.bf16.msra.mxu0 %v1481
        %1538 = vmatprep.subr.bf16.mxu0 0
        %1539 = vmatpush1.bf16.msra.mxu0 %v1482
        %1540 = vmatprep.subr.bf16.mxu0 0
        %1541 = vmatpush1.bf16.msra.mxu0 %v1483
        %1542 = vmatprep.subr.bf16.mxu0 0
        %1543 = vmatpush1.bf16.msra.mxu0 %v1484
        %1544 = vmatprep.subr.bf16.mxu0 0
        %1545 = vmatpush1.bf16.msra.mxu0 %v1485
        %1546 = vmatprep.subr.bf16.mxu0 0
        %1547 = vmatpush1.bf16.msra.mxu0 %v1486
        %1548 = vmatprep.subr.bf16.mxu0 0
        %1549 = vmatpush1.bf16.msra.mxu0 %v1487
        %1550 = vmatprep.subr.bf16.mxu0 0
        %1551 = vmatpush1.bf16.msra.mxu0 %v1488
        %1552 = vmatprep.subr.bf16.mxu0 0
        %1553 = vmatpush1.bf16.msra.mxu0 %v1489
        %1554 = vmatprep.mubr.bf16.mxu0 %v364
        %1555 = vmatmul.mubr.bf16.gmra.mrb[0].mxu0 %v512
        %v1556 = vpop.f32.mrb[0].mxu0
        %v1557 = vadd.f32 0.0, %v1556
        %v1558 = vpop.f32.mrb[0].mxu0
        %v1559 = vpop.f32.mrb[0].mxu0
        %v1560 = vadd.f32 0.0, %v1559
        %v1561 = vpop.f32.mrb[0].mxu0
        %1562 = vmatprep.mubr.bf16.mxu0 %v365
        %1563 = vmatmul.mubr.bf16.gmra.mrb[0].mxu0 %v513
        %v1564 = vpop.f32.mrb[0].mxu0
        %v1565 = vadd.f32 0.0, %v1564
        %v1566 = vpop.f32.mrb[0].mxu0
        %v1567 = vpop.f32.mrb[0].mxu0
        %v1568 = vadd.f32 0.0, %v1567
        %v1569 = vpop.f32.mrb[0].mxu0
        %1570 = vmatprep.mubr.bf16.mxu0 %v366
        %1571 = vmatmul.mubr.bf16.gmra.mrb[0].mxu0 %v514
        %v1572 = vpop.f32.mrb[0].mxu0
        %v1573 = vadd.f32 0.0, %v1572
        %v1574 = vpop.f32.mrb[0].mxu0
        %v1575 = vpop.f32.mrb[0].mxu0
        %v1576 = vadd.f32 0.0, %v1575
        %v1577 = vpop.f32.mrb[0].mxu0
        %1578 = vmatprep.mubr.bf16.mxu0 %v367
        %1579 = vmatmul.mubr.bf16.gmra.mrb[0].mxu0 %v515
        %v1580 = vpop.f32.mrb[0].mxu0
        %v1581 = vadd.f32 0.0, %v1580
        %v1582 = vpop.f32.mrb[0].mxu0
        %v1583 = vpop.f32.mrb[0].mxu0
        %v1584 = vadd.f32 0.0, %v1583
        %v1585 = vpop.f32.mrb[0].mxu0
        %1586 = vmatprep.mubr.bf16.mxu0 %v368
        %1587 = vmatmul.mubr.bf16.gmra.mrb[0].mxu0 %v516
        %v1588 = vpop.f32.mrb[0].mxu0
        %v1589 = vadd.f32 0.0, %v1588
        %v1590 = vpop.f32.mrb[0].mxu0
        %v1591 = vpop.f32.mrb[0].mxu0
        %v1592 = vadd.f32 0.0, %v1591
        %v1593 = vpop.f32.mrb[0].mxu0
        %1594 = vmatprep.mubr.bf16.mxu0 %v369
        %1595 = vmatmul.mubr.bf16.gmra.mrb[0].mxu0 %v517
        %v1596 = vpop.f32.mrb[0].mxu0
        %v1597 = vadd.f32 0.0, %v1596
        %v1598 = vpop.f32.mrb[0].mxu0
        %v1599 = vpop.f32.mrb[0].mxu0
        %v1600 = vadd.f32 0.0, %v1599
        %v1601 = vpop.f32.mrb[0].mxu0
        %1602 = vmatprep.mubr.bf16.mxu0 %v370
        %1603 = vmatmul.mubr.bf16.gmra.mrb[0].mxu0 %v518
        %v1604 = vpop.f32.mrb[0].mxu0
        %v1605 = vadd.f32 0.0, %v1604
        %v1606 = vpop.f32.mrb[0].mxu0
        %v1607 = vpop.f32.mrb[0].mxu0
        %v1608 = vadd.f32 0.0, %v1607
        %v1609 = vpop.f32.mrb[0].mxu0
        %1610 = vmatprep.mubr.bf16.mxu0 %v330
        %1611 = vmatmul.mubr.bf16.gmra.mrb[0].mxu0 %v519
        %v1612 = vpop.f32.mrb[0].mxu0
        %v1613 = vadd.f32 0.0, %v1612
        %v1614 = vpop.f32.mrb[0].mxu0
        %v1615 = vpop.f32.mrb[0].mxu0
        %v1616 = vadd.f32 0.0, %v1615
        %v1617 = vpop.f32.mrb[0].mxu0
        %1618 = vdwg.mxu0
        %1619 = vmatprep.subr.bf16.mxu0 0
        %1620 = vmatpush1.bf16.msra.mxu0 %v1490
        %1621 = vmatprep.subr.bf16.mxu0 0
        %1622 = vmatpush1.bf16.msra.mxu0 %v1491
        %1623 = vmatprep.subr.bf16.mxu0 0
        %1624 = vmatpush1.bf16.msra.mxu0 %v1492
        %1625 = vmatprep.subr.bf16.mxu0 0
        %1626 = vmatpush1.bf16.msra.mxu0 %v1493
        %1627 = vmatprep.subr.bf16.mxu0 0
        %1628 = vmatpush1.bf16.msra.mxu0 %v1494
        %1629 = vmatprep.subr.bf16.mxu0 0
        %1630 = vmatpush1.bf16.msra.mxu0 %v1495
        %1631 = vmatprep.subr.bf16.mxu0 0
        %1632 = vmatpush1.bf16.msra.mxu0 %v1496
        %1633 = vmatprep.subr.bf16.mxu0 0
        %1634 = vmatpush1.bf16.msra.mxu0 %v1497
        %1635 = vmatprep.subr.bf16.mxu0 0
        %1636 = vmatpush1.bf16.msra.mxu0 0
        %1637 = vmatprep.subr.bf16.mxu0 0
        %1638 = vmatpush1.bf16.msra.mxu0 0
        %1639 = vmatprep.subr.bf16.mxu0 0
        %1640 = vmatpush1.bf16.msra.mxu0 0
        %1641 = vmatprep.subr.bf16.mxu0 0
        %1642 = vmatpush1.bf16.msra.mxu0 0
        %1643 = vmatprep.subr.bf16.mxu0 0
        %1644 = vmatpush1.bf16.msra.mxu0 0
        %1645 = vmatprep.subr.bf16.mxu0 0
        %1646 = vmatpush1.bf16.msra.mxu0 0
        %1647 = vmatprep.subr.bf16.mxu0 0
        %1648 = vmatpush1.bf16.msra.mxu0 0
        %1649 = vmatprep.subr.bf16.mxu0 0
        %1650 = vmatpush1.bf16.msra.mxu0 0
        %1651 = vmatprep.mubr.bf16.mxu0 0
        %1652 = vmatmul.mubr.bf16.gmra.mrb[0].mxu0 %v548
        %v1653 = vpop.f32.mrb[0].mxu0
        %v1654 = vadd.f32 %v1557, %v1653
        %v1655 = vpop.f32.mrb[0].mxu0
        %v1656 = vpop.f32.mrb[0].mxu0
        %v1657 = vadd.f32 %v1560, %v1656
        %v1658 = vpop.f32.mrb[0].mxu0
        %1659 = vmatprep.mubr.bf16.mxu0 0
        %1660 = vmatmul.mubr.bf16.gmra.mrb[0].mxu0 %v549
        %v1661 = vpop.f32.mrb[0].mxu0
        %v1662 = vadd.f32 %v1565, %v1661
        %v1663 = vpop.f32.mrb[0].mxu0
        %v1664 = vpop.f32.mrb[0].mxu0
        %v1665 = vadd.f32 %v1568, %v1664
        %v1666 = vpop.f32.mrb[0].mxu0
        %1667 = vmatprep.mubr.bf16.mxu0 0
        %1668 = vmatmul.mubr.bf16.gmra.mrb[0].mxu0 %v550
        %v1669 = vpop.f32.mrb[0].mxu0
        %v1670 = vadd.f32 %v1573, %v1669
        %v1671 = vpop.f32.mrb[0].mxu0
        %v1672 = vpop.f32.mrb[0].mxu0
        %v1673 = vadd.f32 %v1576, %v1672
        %v1674 = vpop.f32.mrb[0].mxu0
        %1675 = vmatprep.mubr.bf16.mxu0 0
        %1676 = vmatmul.mubr.bf16.gmra.mrb[0].mxu0 %v551
        %v1677 = vpop.f32.mrb[0].mxu0
        %v1678 = vadd.f32 %v1581, %v1677
        %v1679 = vpop.f32.mrb[0].mxu0
        %v1680 = vpop.f32.mrb[0].mxu0
        %v1681 = vadd.f32 %v1584, %v1680
        %v1682 = vpop.f32.mrb[0].mxu0
        %1683 = vmatprep.mubr.bf16.mxu0 0
        %1684 = vmatmul.mubr.bf16.gmra.mrb[0].mxu0 %v552
        %v1685 = vpop.f32.mrb[0].mxu0
        %v1686 = vadd.f32 %v1589, %v1685
        %v1687 = vpop.f32.mrb[0].mxu0
        %v1688 = vpop.f32.mrb[0].mxu0
        %v1689 = vadd.f32 %v1592, %v1688
        %v1690 = vpop.f32.mrb[0].mxu0
        %1691 = vmatprep.mubr.bf16.mxu0 0
        %1692 = vmatmul.mubr.bf16.gmra.mrb[0].mxu0 %v553
        %v1693 = vpop.f32.mrb[0].mxu0
        %v1694 = vadd.f32 %v1597, %v1693
        %v1695 = vpop.f32.mrb[0].mxu0
        %v1696 = vpop.f32.mrb[0].mxu0
        %v1697 = vadd.f32 %v1600, %v1696
        %v1698 = vpop.f32.mrb[0].mxu0
        %1699 = vmatprep.mubr.bf16.mxu0 0
        %1700 = vmatmul.mubr.bf16.gmra.mrb[0].mxu0 %v554
        %v1701 = vpop.f32.mrb[0].mxu0
        %v1702 = vadd.f32 %v1605, %v1701
        %v1703 = vpop.f32.mrb[0].mxu0
        %v1704 = vpop.f32.mrb[0].mxu0
        %v1705 = vadd.f32 %v1608, %v1704
        %v1706 = vpop.f32.mrb[0].mxu0
        %1707 = vmatprep.mubr.bf16.mxu0 0
        %1708 = vmatmul.mubr.bf16.gmra.mrb[0].mxu0 %v555
        %v1709 = vpop.f32.mrb[0].mxu0
        %v1710 = vadd.f32 %v1613, %v1709
        %v1711 = vpop.f32.mrb[0].mxu0
        %v1712 = vpop.f32.mrb[0].mxu0
        %v1713 = vadd.f32 %v1616, %v1712
        %v1714 = vpop.f32.mrb[0].mxu0
        %1715 = vdwg.mxu0
        %v1716 = vadd.f32 %v1267, %v1654
        %v1717 = vadd.f32 %v1270, %v1657
        %v1718 = vadd.f32 %v1275, %v1662
        %v1719 = vadd.f32 %v1278, %v1665
        %v1720 = vadd.f32 %v1283, %v1670
        %v1721 = vadd.f32 %v1286, %v1673
        %v1722 = vadd.f32 %v1291, %v1678
        %v1723 = vadd.f32 %v1294, %v1681
        %v1724 = vadd.f32 %v1299, %v1686
        %v1725 = vadd.f32 %v1302, %v1689
        %v1726 = vadd.f32 %v1307, %v1694
        %v1727 = vadd.f32 %v1310, %v1697
        %v1728 = vadd.f32 %v1315, %v1702
        %v1729 = vadd.f32 %v1318, %v1705
        %v1730 = vadd.f32 %v1323, %v1710
        %v1731 = vadd.f32 %v1326, %v1713
        %v1732 = vld [vmem:[#allocation9] sm:$0x1]
        %v1734 = vlaneseq
        %v1735 = vshrl.u32 %v1734, 7
        %v1736 = vsub.s32 0, %v1735
        %v1737 = vrot.slane %v1732, %v1736
        %v1739 = vadd.f32 %v1716, %v1737
        %v1740 = vadd.f32 %v1717, %v1737
        %v1741 = vadd.f32 %v1718, %v1737
        %v1742 = vadd.f32 %v1719, %v1737
        %v1743 = vadd.f32 %v1720, %v1737
        %v1744 = vadd.f32 %v1721, %v1737
        %v1745 = vadd.f32 %v1722, %v1737
        %v1746 = vadd.f32 %v1723, %v1737
        %v1747 = vadd.f32 %v1724, %v1737
        %v1748 = vadd.f32 %v1725, %v1737
        %v1749 = vadd.f32 %v1726, %v1737
        %v1750 = vadd.f32 %v1727, %v1737
        %v1751 = vadd.f32 %v1728, %v1737
        %v1752 = vadd.f32 %v1729, %v1737
        %v1753 = vadd.f32 %v1730, %v1737
        %v1754 = vadd.f32 %v1731, %v1737
        %v1755 = vsub.f32 0.0, %v1739
        %v1756 = vsub.f32 0.0, %v1740
        %v1757 = vsub.f32 0.0, %v1741
        %v1758 = vsub.f32 0.0, %v1742
        %v1759 = vsub.f32 0.0, %v1743
        %v1760 = vsub.f32 0.0, %v1744
        %v1761 = vsub.f32 0.0, %v1745
        %v1762 = vsub.f32 0.0, %v1746
        %v1763 = vsub.f32 0.0, %v1747
        %v1764 = vsub.f32 0.0, %v1748
        %v1765 = vsub.f32 0.0, %v1749
        %v1766 = vsub.f32 0.0, %v1750
        %v1767 = vsub.f32 0.0, %v1751
        %v1768 = vsub.f32 0.0, %v1752
        %v1769 = vsub.f32 0.0, %v1753
        %v1770 = vsub.f32 0.0, %v1754
        %v1771 = vmul.f32 %v1755, 1.442695
        %v1772 = vpow.pop %v1771
        %v1773 = vmul.f32 %v1756, 1.442695
        %v1774 = vpow.pop %v1773
        %v1775 = vmul.f32 %v1757, 1.442695
        %v1776 = vpow.pop %v1775
        %v1777 = vmul.f32 %v1758, 1.442695
        %v1778 = vpow.pop %v1777
        %v1779 = vmul.f32 %v1759, 1.442695
        %v1780 = vpow.pop %v1779
        %v1781 = vmul.f32 %v1760, 1.442695
        %v1782 = vpow.pop %v1781
        %v1783 = vmul.f32 %v1761, 1.442695
        %v1784 = vpow.pop %v1783
        %v1785 = vmul.f32 %v1762, 1.442695
        %v1786 = vpow.pop %v1785
        %v1787 = vmul.f32 %v1763, 1.442695
        %v1788 = vpow.pop %v1787
        %v1789 = vmul.f32 %v1764, 1.442695
        %v1790 = vpow.pop %v1789
        %v1791 = vmul.f32 %v1765, 1.442695
        %v1792 = vpow.pop %v1791
        %v1793 = vmul.f32 %v1766, 1.442695
        %v1794 = vpow.pop %v1793
        %v1795 = vmul.f32 %v1767, 1.442695
        %v1796 = vpow.pop %v1795
        %v1797 = vmul.f32 %v1768, 1.442695
        %v1798 = vpow.pop %v1797
        %v1799 = vmul.f32 %v1769, 1.442695
        %v1800 = vpow.pop %v1799
        %v1801 = vmul.f32 %v1770, 1.442695
        %v1802 = vpow.pop %v1801
        %v1803 = vadd.f32 %v1772, 1.0
        %v1804 = vadd.f32 %v1774, 1.0
        %v1805 = vadd.f32 %v1776, 1.0
        %v1806 = vadd.f32 %v1778, 1.0
        %v1807 = vadd.f32 %v1780, 1.0
        %v1808 = vadd.f32 %v1782, 1.0
        %v1809 = vadd.f32 %v1784, 1.0
        %v1810 = vadd.f32 %v1786, 1.0
        %v1811 = vadd.f32 %v1788, 1.0
        %v1812 = vadd.f32 %v1790, 1.0
        %v1813 = vadd.f32 %v1792, 1.0
        %v1814 = vadd.f32 %v1794, 1.0
        %v1815 = vadd.f32 %v1796, 1.0
        %v1816 = vadd.f32 %v1798, 1.0
        %v1817 = vadd.f32 %v1800, 1.0
        %v1818 = vadd.f32 %v1802, 1.0
        %v1819 = vrcp.pop %v1803
        %v1820 = vmul.f32 1.0, %v1819
        %v1821 = vrcp.pop %v1804
        %v1822 = vmul.f32 1.0, %v1821
        %v1823 = vrcp.pop %v1805
        %v1824 = vmul.f32 1.0, %v1823
        %v1825 = vrcp.pop %v1806
        %v1826 = vmul.f32 1.0, %v1825
        %v1827 = vrcp.pop %v1807
        %v1828 = vmul.f32 1.0, %v1827
        %v1829 = vrcp.pop %v1808
        %v1830 = vmul.f32 1.0, %v1829
        %v1831 = vrcp.pop %v1809
        %v1832 = vmul.f32 1.0, %v1831
        %v1833 = vrcp.pop %v1810
        %v1834 = vmul.f32 1.0, %v1833
        %v1835 = vrcp.pop %v1811
        %v1836 = vmul.f32 1.0, %v1835
        %v1837 = vrcp.pop %v1812
        %v1838 = vmul.f32 1.0, %v1837
        %v1839 = vrcp.pop %v1813
        %v1840 = vmul.f32 1.0, %v1839
        %v1841 = vrcp.pop %v1814
        %v1842 = vmul.f32 1.0, %v1841
        %v1843 = vrcp.pop %v1815
        %v1844 = vmul.f32 1.0, %v1843
        %v1845 = vrcp.pop %v1816
        %v1846 = vmul.f32 1.0, %v1845
        %v1847 = vrcp.pop %v1817
        %v1848 = vmul.f32 1.0, %v1847
        %v1849 = vrcp.pop %v1818
        %v1850 = vmul.f32 1.0, %v1849
        %v1851 = vpack.c.bf16 %v1822, %v1820
        %v1852 = vpack.c.bf16 %v1826, %v1824
        %v1853 = vpack.c.bf16 %v1830, %v1828
        %v1854 = vpack.c.bf16 %v1834, %v1832
        %v1855 = vpack.c.bf16 %v1838, %v1836
        %v1856 = vpack.c.bf16 %v1842, %v1840
        %v1857 = vpack.c.bf16 %v1846, %v1844
        %v1858 = vpack.c.bf16 %v1850, %v1848
        %v1867 = vunpack.c.l.b16 %v1851
        %v1868 = vunpack.c.h.b16 %v1851
        %v1869 = vunpack.c.l.b16 %v1852
        %v1870 = vunpack.c.h.b16 %v1852
        %v1871 = vunpack.c.l.b16 %v1853
        %v1872 = vunpack.c.h.b16 %v1853
        %v1873 = vunpack.c.l.b16 %v1854
        %v1874 = vunpack.c.h.b16 %v1854
        %v1875 = vunpack.c.l.b16 %v1855
        %v1876 = vunpack.c.h.b16 %v1855
        %v1877 = vunpack.c.l.b16 %v1856
        %v1878 = vunpack.c.h.b16 %v1856
        %v1879 = vunpack.c.l.b16 %v1857
        %v1880 = vunpack.c.h.b16 %v1857
        %v1881 = vunpack.c.l.b16 %v1858
        %v1882 = vunpack.c.h.b16 %v1858
        %v1883 = vpack.c.b16 %v1867, %v1867
        %v1884 = vpack.c.b16 %v1868, %v1868
        %v1885 = vpack.c.b16 %v1869, %v1869
        %v1886 = vpack.c.b16 %v1870, %v1870
        %v1887 = vpack.c.b16 %v1871, %v1871
        %v1888 = vpack.c.b16 %v1872, %v1872
        %v1889 = vpack.c.b16 %v1873, %v1873
        %v1890 = vpack.c.b16 %v1874, %v1874
        %v1891 = vpack.c.b16 %v1875, %v1875
        %v1892 = vpack.c.b16 %v1876, %v1876
        %v1893 = vpack.c.b16 %v1877, %v1877
        %v1894 = vpack.c.b16 %v1878, %v1878
        %v1895 = vpack.c.b16 %v1879, %v1879
        %v1896 = vpack.c.b16 %v1880, %v1880
        %v1897 = vpack.c.b16 %v1881, %v1881
        %v1898 = vpack.c.b16 %v1882, %v1882
        %1915 = vst [vmem:[%s235] sm:$0xf] %v1883
        %1916 = vst [vmem:[%s235 + $0x4] sm:$0xf] %v1884
        %1917 = vst [vmem:[%s235 + $0x8] sm:$0xf] %v1885
        %1918 = vst [vmem:[%s235 + $0xc] sm:$0xf] %v1886
        %1919 = vst [vmem:[%s235 + $0x10] sm:$0xf] %v1887
        %1920 = vst [vmem:[%s235 + $0x14] sm:$0xf] %v1888
        %1921 = vst [vmem:[%s235 + $0x18] sm:$0xf] %v1889
        %1922 = vst [vmem:[%s235 + $0x1c] sm:$0xf] %v1890
        %1923 = vst [vmem:[%s235 + $0x20] sm:$0xf] %v1891
        %1924 = vst [vmem:[%s235 + $0x24] sm:$0xf] %v1892
        %1925 = vst [vmem:[%s235 + $0x28] sm:$0xf] %v1893
        %1926 = vst [vmem:[%s235 + $0x2c] sm:$0xf] %v1894
        %1927 = vst [vmem:[%s235 + $0x30] sm:$0xf] %v1895
        %1928 = vst [vmem:[%s235 + $0x34] sm:$0xf] %v1896
        %1929 = vst [vmem:[%s235 + $0x38] sm:$0xf] %v1897
        %1930 = vst [vmem:[%s235 + $0x3c] sm:$0xf] %v1898
        %s1931 = sand.u32 %s114, 1
        %s1932 = scalar_lea.sflag [#allocation6], %s1931
        %s1933 = sand.u32 %s114, 1
        %s1934 = smul.addr %s1933, 64
        %s1935 = scalar_lea.vmem [#allocation10], %s1934
        // Predicated region
        $region77: #{edsr_forward.9} parent=31 // pred_check
          %p1936 = pneg %p124
        $region78: #{edsr_forward.9} parent=31 // pred_check_branch
          %1938 = sbr.rel (%p1936) target = $region80
        $region79: #{edsr_forward.9} parent=31 // pred_region
          %s1939 = smul.u32 8, %s27
          %s1941 = ssub.s32 1024, 1024
          %1942 = vsyncadd %s1932, %s1941
          %s1943 = smul.addr %s1939, 2
          %s1944 = smul.addr %s26, 32
          %s1945 = sadd.s32 %s1943, %s1944
          %s1946 = smul.addr %s1945, 64
          %s1947 = scalar_lea.hbm %s4, %s1946
          %s1948 = sshll.u32 %s1935, 4
          %s1949 = int_to_ptr.vmem [resolvable:$true] %s1948
          %1954 = dma.vmem_to_hbm [thread:$0]  %s1949, 1024, %s1947, %s1932, 64, 64, 4
        $region80: #{edsr_forward.9} parent=31 // pred_fallthru
          _
      $region32: #{edsr_forward.9} parent=5 // pred_fallthru
        _
      %p1955 = scmp.le.s32.totalorder 2, %s17
      // Predicated region
      $region81: #{edsr_forward.9} parent=5 // pred_check
        %p1956 = pneg %p1955
      $region82: #{edsr_forward.9} parent=5 // pred_check_branch
        %1958 = sbr.rel (%p1956) target = $region84
      $region83: #{edsr_forward.9} parent=5 // pred_region
        %s1959 = ssub.s32 %s17, 2
        // Predicated region
        $region85: #{edsr_forward.9} parent=83 // pred_check
          %p1960 = pneg %p130
        $region86: #{edsr_forward.9} parent=83 // pred_check_branch
          %1962 = sbr.rel (%p1960) target = $region88
        $region87: #{edsr_forward.9} parent=83 // pred_region
          %s1963 = sand.u32 %s115, 1
          %s1964 = scalar_lea.sflag [#allocation6], %s1963
          %s1965 = sand.u32 %s115, 1
          %s1966 = smul.addr %s1965, 64
          %s1967 = scalar_lea.vmem [#allocation10], %s1966
          %1968 = dma.done %s1964, 1024
        $region88: #{edsr_forward.9} parent=83 // pred_fallthru
          _
      $region84: #{edsr_forward.9} parent=5 // pred_fallthru
        _
    $region6: #{edsr_forward.9} parent=1 // loop_footer
      %s21 = sadd.s32 1, %s17
    $region7: #{edsr_forward.9} parent=1 // loop_footer_branch
      %16 = sbr.rel target = $region3
    $region8: #{edsr_forward.9} parent=1 // loop_exit
      _
    %1969 = vsyncpa [#allocation5], 1
    %s1970 = scalar_lea.sflag [#allocation5], 1
    %1971 = vsyncpa %s1970, 1
    %1972 = vsyncpa [#allocation8], 1
    %1973 = vsyncpa [#allocation6], 1
    %s1974 = scalar_lea.sflag [#allocation6], 1
    %1975 = vsyncpa %s1974, 1
  %1976 = vsyncmov [#allocation3]
  %s1977 = vpop.sfrf %1976
  %p1978 = scmp.eq.s32.totalorder %s1977, 0
  %p1979 = pneg %p1978
  %1981 = shalt.err (%p1979)
  %s1982 = scalar_lea.sflag [#allocation3], 1
  %1983 = vsyncmov %s1982
  %s1984 = vpop.sfrf %1983
  %p1985 = scmp.eq.s32.totalorder %s1984, 0
  %p1986 = pneg %p1985
  %1988 = shalt.err (%p1986)

// kernel: edsr_forward.6
$region0: #{edsr_forward.6}
  #allocation0 [shape = 'u32[]', space=smem, size = 0x4, offset = 0x4, fixed_abs, tag = 'smem constant byte address 0x4 - core index']
  #allocation1 [shape = 'u32[144,128]{1,0:T(1,128)}', space=vmem, size = 0x12000, scoped, tag = 'internal scratch']
  #allocation2 [shape = 'bf16[4,16,128]{2,1,0:T(16,128)(2,1)}', space=vmem, size = 0x4000, scoped, tag = 'scratch operand']
  #allocation3 [shape = 's32[2]{0}', space=sflag, size = 0x8, scoped, tag = 'scratch operand']
  #allocation14 [shape = 's32[]', space=sflag, size = 0x4, offset = 0, fixed_abs, tag = 'sflag constant byte address 0x0 - dummy sync flag']
  #allocation15 [shape = 's32[]', space=sflag, size = 0x4, offset = 0, fixed_abs, tag = 'sflag constant byte address 0x0 - dummy sync flag']
  #allocation16 [shape = 'u32[]', space=smem, size = 0x4, offset = 0x44, fixed_abs, tag = 'smem constant byte address 0x44 - assertion arg 0']
  #allocation17 [shape = 'u32[]', space=smem, size = 0x4, offset = 0x48, fixed_abs, tag = 'smem constant byte address 0x48 - assertion arg 1']
  #allocation18 [shape = 's32[]', space=sflag, size = 0x4, offset = 0, fixed_abs, tag = 'sflag constant byte address 0x0 - dummy sync flag']
  #allocation19 [shape = 's32[]', space=sflag, size = 0x4, offset = 0, fixed_abs, tag = 'sflag constant byte address 0x0 - dummy sync flag']
  %s0 = inlined_call_operand.hbm [shape: bf16[2,16,16,128], index: 0, kind: input, shape index: {}, may-alias: {0,1}]
  %s1 = inlined_call_operand.hbm [shape: bf16[2,16,16,128], index: 1, kind: input, shape index: {}, may-alias: {0,1}]
  %s2 = inlined_call_operand.hbm [shape: bf16[3,384,128], index: 2, kind: input, shape index: {}]
  %s3 = inlined_call_operand.hbm [shape: f32[1,128], index: 3, kind: input, shape index: {}]
  %s4 = inlined_call_operand.hbm [shape: bf16[3,384,128], index: 4, kind: input, shape index: {}]
  %s5 = inlined_call_operand.hbm [shape: f32[1,128], index: 5, kind: input, shape index: {}]
  %s6 = inlined_call_operand.hbm [shape: bf16[2,16,16,128], index: 6, kind: output, shape index: {}]
  %s7 = sld [smem:[#allocation0]]
  $region105: #{edsr_forward.6} parent=0
    _
  %s9 = ssub.s32 1, %s7
  %s10 = scalar_select 0, %s9, %s7
  $region1: #{edsr_forward.6} parent=0
    #allocation4 [shape = 'u8[65536]{0}', space=vmem, size = 0x10000, scoped, tag = 'input window, operand 0']
    #allocation5 [shape = 's32[2]{0}', space=sflag, size = 0x8, scoped, tag = 'scoped memory for edsr_forward.6']
    #allocation6 [shape = 's32[2]{0}', space=sflag, size = 0x8, scoped, tag = 'scoped memory for edsr_forward.6']
    #allocation7 [shape = 'u8[294912]{0}', space=vmem, size = 0x48000, scoped, tag = 'input window, operand 2, single buffered']
    #allocation8 [shape = 's32[1]{0}', space=sflag, size = 0x4, scoped, tag = 'scoped memory for edsr_forward.6']
    #allocation9 [shape = 'u8[512]{0}', space=vmem, size = 0x400, scoped, tag = 'input window, operand 3, single buffered']
    #allocation10 [shape = 'u8[294912]{0}', space=vmem, size = 0x48000, scoped, tag = 'input window, operand 4, single buffered']
    #allocation11 [shape = 's32[1]{0}', space=sflag, size = 0x4, scoped, tag = 'scoped memory for edsr_forward.6']
    #allocation12 [shape = 'u8[512]{0}', space=vmem, size = 0x400, scoped, tag = 'input window, operand 5, single buffered']
    #allocation13 [shape = 'u8[65536]{0}', space=vmem, size = 0x10000, scoped, tag = 'output window, operand 0']
    %11 = vsyncpa [#allocation5], 0
    %s12 = scalar_lea.sflag [#allocation5], 1
    %13 = vsyncpa %s12, 0
    %14 = vsyncpa [#allocation8], 0
    %15 = vsyncpa [#allocation11], 0
    %16 = vsyncpa [#allocation6], 0
    %s17 = scalar_lea.sflag [#allocation6], 1
    %18 = vsyncpa %s17, 0
    loop: start=0, step=1, limit=6
    $region2: #{edsr_forward.6} parent=1 // loop_pre_header
      _
    $region3: #{edsr_forward.6} parent=1 // loop_header
      %s20 = sphi 0, %s24
      %p21 = scmp.ge.s32.totalorder %s20, 6
      %s27 = sphi 0, %s39
      %s28 = sphi 0, %s35
      %s29 = sphi 0, %s27
      %s30 = sphi 0, %s28
      %s31 = sphi 0, %s29
      %s32 = sphi 0, %s30
      %s44 = sphi 0, %s46
      %s47 = sphi 0, %s44
      %s48 = sphi 0, %s47
      %s64 = sphi 0, %s48
      %s68 = sphi 0, %s68
      %s70 = sphi 0, %s68
      %s71 = sphi 0, %s70
      %s85 = sphi 0, %s71
      %s89 = sphi 0, %s89
      %s91 = sphi 0, %s89
      %s92 = sphi 0, %s91
      %s106 = sphi 0, %s92
      %s110 = sphi 0, %s110
      %s112 = sphi 0, %s110
      %s113 = sphi 0, %s112
      %s127 = sphi 0, %s113
      %s131 = sphi 0, %s131
      %s133 = sphi 0, %s131
      %s134 = sphi 0, %s133
      %s148 = sphi 0, %s134
      %s156 = sphi 0, %s158
      %s159 = sphi 0, %s156
      %s160 = sphi 0, %s159
      %s176 = sphi 0, %s160
    $region4: #{edsr_forward.6} parent=1 // loop_header_branch
      %23 = sbr.rel (%p21) target = $region8
    $region5: #{edsr_forward.6} parent=1 // loop_body
      %s25 = ssub.s32 %s20, 1
      %s26 = ssub.s32 %s20, 2
      %s33 = sadd.s32 1, %s28
      %p34 = scmp.ge.s32.totalorder %s33, 2
      %s35 = scalar_select %p34, 0, %s33
      %s36 = sadd.s32 1, %s27
      %s37 = scalar_select %p34, %s36, %s27
      %p38 = scmp.ge.s32.totalorder %s37, 2
      %s39 = scalar_select %p38, 0, %s37
      %s40 = ssub.s32 %s27, %s39
      %s41 = ssub.s32 %s28, %s35
      %s42 = sor.u32 %s40, %s41
      %p43 = scmp.eq.s32.totalorder %s42, 0
      %s45 = sadd.s32 %s44, 1
      %s46 = scalar_select %p43, %s44, %s45
      %p49 = pneg %p43
      %p50 = scmp.eq.s32.totalorder %s20, 3
      %p51 = por %p49, %p50
      %p52 = scmp.ne.s32.totalorder %s44, %s47
      %p53 = scmp.eq.s32.totalorder %s20, 0
      %p54 = por %p52, %p53
      %p55 = scmp.ne.s32.totalorder %s44, %s47
      %p56 = scmp.eq.s32.totalorder %s25, 3
      %p57 = por %p55, %p56
      %p58 = scmp.ne.s32.totalorder %s47, %s48
      %p59 = scmp.eq.s32.totalorder %s25, 0
      %p60 = por %p58, %p59
      %p61 = scmp.ne.s32.totalorder %s47, %s48
      %p62 = scmp.eq.s32.totalorder %s26, 3
      %p63 = por %p61, %p62
      %p65 = scmp.ne.s32.totalorder %s48, %s64
      %p66 = scmp.eq.s32.totalorder %s26, 0
      %p67 = por %p65, %p66
      %s69 = sadd.s32 %s68, 1
      %p72 = scmp.eq.s32.totalorder %s20, 3
      %p73 = scmp.ne.s32.totalorder %s68, %s70
      %p74 = scmp.eq.s32.totalorder %s20, 0
      %p75 = por %p73, %p74
      %p76 = scmp.ne.s32.totalorder %s68, %s70
      %p77 = scmp.eq.s32.totalorder %s25, 3
      %p78 = por %p76, %p77
      %p79 = scmp.ne.s32.totalorder %s70, %s71
      %p80 = scmp.eq.s32.totalorder %s25, 0
      %p81 = por %p79, %p80
      %p82 = scmp.ne.s32.totalorder %s70, %s71
      %p83 = scmp.eq.s32.totalorder %s26, 3
      %p84 = por %p82, %p83
      %p86 = scmp.ne.s32.totalorder %s71, %s85
      %p87 = scmp.eq.s32.totalorder %s26, 0
      %p88 = por %p86, %p87
      %s90 = sadd.s32 %s89, 1
      %p93 = scmp.eq.s32.totalorder %s20, 3
      %p94 = scmp.ne.s32.totalorder %s89, %s91
      %p95 = scmp.eq.s32.totalorder %s20, 0
      %p96 = por %p94, %p95
      %p97 = scmp.ne.s32.totalorder %s89, %s91
      %p98 = scmp.eq.s32.totalorder %s25, 3
      %p99 = por %p97, %p98
      %p100 = scmp.ne.s32.totalorder %s91, %s92
      %p101 = scmp.eq.s32.totalorder %s25, 0
      %p102 = por %p100, %p101
      %p103 = scmp.ne.s32.totalorder %s91, %s92
      %p104 = scmp.eq.s32.totalorder %s26, 3
      %p105 = por %p103, %p104
      %p107 = scmp.ne.s32.totalorder %s92, %s106
      %p108 = scmp.eq.s32.totalorder %s26, 0
      %p109 = por %p107, %p108
      %s111 = sadd.s32 %s110, 1
      %p114 = scmp.eq.s32.totalorder %s20, 3
      %p115 = scmp.ne.s32.totalorder %s110, %s112
      %p116 = scmp.eq.s32.totalorder %s20, 0
      %p117 = por %p115, %p116
      %p118 = scmp.ne.s32.totalorder %s110, %s112
      %p119 = scmp.eq.s32.totalorder %s25, 3
      %p120 = por %p118, %p119
      %p121 = scmp.ne.s32.totalorder %s112, %s113
      %p122 = scmp.eq.s32.totalorder %s25, 0
      %p123 = por %p121, %p122
      %p124 = scmp.ne.s32.totalorder %s112, %s113
      %p125 = scmp.eq.s32.totalorder %s26, 3
      %p126 = por %p124, %p125
      %p128 = scmp.ne.s32.totalorder %s113, %s127
      %p129 = scmp.eq.s32.totalorder %s26, 0
      %p130 = por %p128, %p129
      %s132 = sadd.s32 %s131, 1
      %p135 = scmp.eq.s32.totalorder %s20, 3
      %p136 = scmp.ne.s32.totalorder %s131, %s133
      %p137 = scmp.eq.s32.totalorder %s20, 0
      %p138 = por %p136, %p137
      %p139 = scmp.ne.s32.totalorder %s131, %s133
      %p140 = scmp.eq.s32.totalorder %s25, 3
      %p141 = por %p139, %p140
      %p142 = scmp.ne.s32.totalorder %s133, %s134
      %p143 = scmp.eq.s32.totalorder %s25, 0
      %p144 = por %p142, %p143
      %p145 = scmp.ne.s32.totalorder %s133, %s134
      %p146 = scmp.eq.s32.totalorder %s26, 3
      %p147 = por %p145, %p146
      %p149 = scmp.ne.s32.totalorder %s134, %s148
      %p150 = scmp.eq.s32.totalorder %s26, 0
      %p151 = por %p149, %p150
      %s152 = ssub.s32 %s27, %s39
      %s153 = ssub.s32 %s28, %s35
      %s154 = sor.u32 %s152, %s153
      %p155 = scmp.eq.s32.totalorder %s154, 0
      %s157 = sadd.s32 %s156, 1
      %s158 = scalar_select %p155, %s156, %s157
      %p161 = pneg %p155
      %p162 = scmp.eq.s32.totalorder %s20, 3
      %p163 = por %p161, %p162
      %p164 = scmp.ne.s32.totalorder %s156, %s159
      %p165 = scmp.eq.s32.totalorder %s20, 0
      %p166 = por %p164, %p165
      %p167 = scmp.ne.s32.totalorder %s156, %s159
      %p168 = scmp.eq.s32.totalorder %s25, 3
      %p169 = por %p167, %p168
      %p170 = scmp.ne.s32.totalorder %s159, %s160
      %p171 = scmp.eq.s32.totalorder %s25, 0
      %p172 = por %p170, %p171
      %p173 = scmp.ne.s32.totalorder %s159, %s160
      %p174 = scmp.eq.s32.totalorder %s26, 3
      %p175 = por %p173, %p174
      %p177 = scmp.ne.s32.totalorder %s160, %s176
      %p178 = scmp.eq.s32.totalorder %s26, 0
      %p179 = por %p177, %p178
      %p180 = scmp.le.s32.totalorder 1, %s20
      %p181 = scmp.lt.s32.totalorder %s20, 5
      %p182 = pnand %p180, %p181
      %p183 = pneg %p182
      // Predicated region
      $region9: #{edsr_forward.6} parent=5 // pred_check
        _
      $region10: #{edsr_forward.6} parent=5 // pred_check_branch
        %185 = sbr.rel (%p182) target = $region12
      $region11: #{edsr_forward.6} parent=5 // pred_region
        %s186 = ssub.s32 %s20, 1
        // Predicated region
        $region13: #{edsr_forward.6} parent=11 // pred_check
          %p187 = pneg %p81
        $region14: #{edsr_forward.6} parent=11 // pred_check_branch
          %189 = sbr.rel (%p187) target = $region16
        $region15: #{edsr_forward.6} parent=11 // pred_region
          %s191 = ssub.s32 9216, 9216
          %192 = vsyncadd [#allocation8], %s191
          %s193 = sshll.u32 [#allocation7], 4
          %s194 = int_to_ptr.vmem [resolvable:$true] %s193
          %199 = dma.hbm_to_vmem [thread:$0]  %s2, 9216, %s194, [#allocation8], 64, 64, 4
        $region16: #{edsr_forward.6} parent=11 // pred_fallthru
          _
        // Predicated region
        $region17: #{edsr_forward.6} parent=11 // pred_check
          %p200 = pneg %p102
        $region18: #{edsr_forward.6} parent=11 // pred_check_branch
          %202 = sbr.rel (%p200) target = $region20
        $region19: #{edsr_forward.6} parent=11 // pred_region
          %s204 = ssub.s32 16, 16
          %205 = vsyncadd [#allocation8], %s204
          %s207 = sshll.u32 [#allocation9], 4
          %s208 = int_to_ptr.vmem [resolvable:$true] %s207
          %210 = dma.hbm_to_vmem [thread:$0]  %s3, 16, %s208, [#allocation8]
        $region20: #{edsr_forward.6} parent=11 // pred_fallthru
          _
        // Predicated region
        $region21: #{edsr_forward.6} parent=11 // pred_check
          %p211 = pneg %p123
        $region22: #{edsr_forward.6} parent=11 // pred_check_branch
          %213 = sbr.rel (%p211) target = $region24
        $region23: #{edsr_forward.6} parent=11 // pred_region
          %s215 = ssub.s32 9216, 9216
          %216 = vsyncadd [#allocation11], %s215
          %s217 = sshll.u32 [#allocation10], 4
          %s218 = int_to_ptr.vmem [resolvable:$true] %s217
          %223 = dma.hbm_to_vmem [thread:$0]  %s4, 9216, %s218, [#allocation11], 64, 64, 4
        $region24: #{edsr_forward.6} parent=11 // pred_fallthru
          _
        // Predicated region
        $region25: #{edsr_forward.6} parent=11 // pred_check
          %p224 = pneg %p144
        $region26: #{edsr_forward.6} parent=11 // pred_check_branch
          %226 = sbr.rel (%p224) target = $region28
        $region27: #{edsr_forward.6} parent=11 // pred_region
          %s228 = ssub.s32 16, 16
          %229 = vsyncadd [#allocation11], %s228
          %s231 = sshll.u32 [#allocation12], 4
          %s232 = int_to_ptr.vmem [resolvable:$true] %s231
          %234 = dma.hbm_to_vmem [thread:$0]  %s5, 16, %s232, [#allocation11]
        $region28: #{edsr_forward.6} parent=11 // pred_fallthru
          _
      $region12: #{edsr_forward.6} parent=5 // pred_fallthru
        _
      %p235 = scmp.lt.s32.totalorder %s20, 4
      // Predicated region
      $region29: #{edsr_forward.6} parent=5 // pred_check
        %p236 = pneg %p235
      $region30: #{edsr_forward.6} parent=5 // pred_check_branch
        %238 = sbr.rel (%p236) target = $region32
      $region31: #{edsr_forward.6} parent=5 // pred_region
        // Predicated region
        $region33: #{edsr_forward.6} parent=31 // pred_check
          %p239 = pneg %p54
        $region34: #{edsr_forward.6} parent=31 // pred_check_branch
          %241 = sbr.rel (%p239) target = $region36
        $region35: #{edsr_forward.6} parent=31 // pred_region
          %s242 = sand.u32 %s44, 1
          %s243 = scalar_lea.sflag [#allocation5], %s242
          %s244 = sand.u32 %s44, 1
          %s245 = smul.addr %s244, 64
          %s246 = scalar_lea.vmem [#allocation4], %s245
          %s247 = smul.u32 8, %s28
          %s249 = ssub.s32 1024, 1024
          %250 = vsyncadd %s243, %s249
          %s251 = smul.addr %s247, 2
          %s252 = smul.addr %s27, 32
          %s253 = sadd.s32 %s251, %s252
          %s254 = smul.addr %s253, 64
          %s255 = scalar_lea.hbm %s0, %s254
          %s256 = sshll.u32 %s246, 4
          %s257 = int_to_ptr.vmem [resolvable:$true] %s256
          %262 = dma.hbm_to_vmem [thread:$0]  %s255, 1024, %s257, %s243, 64, 64, 4
        $region36: #{edsr_forward.6} parent=31 // pred_fallthru
          _
      $region32: #{edsr_forward.6} parent=5 // pred_fallthru
        _
      %p263 = scmp.le.s32.totalorder 1, %s20
      %p264 = scmp.lt.s32.totalorder %s20, 5
      %p265 = pnand %p263, %p264
      %p266 = pneg %p265
      // Predicated region
      $region37: #{edsr_forward.6} parent=5 // pred_check
        _
      $region38: #{edsr_forward.6} parent=5 // pred_check_branch
        %268 = sbr.rel (%p265) target = $region40
      $region39: #{edsr_forward.6} parent=5 // pred_region
        %s269 = ssub.s32 %s20, 1
        %s270 = sand.u32 %s47, 1
        %s271 = scalar_lea.sflag [#allocation5], %s270
        %s272 = sand.u32 %s47, 1
        %s273 = smul.addr %s272, 64
        %s274 = scalar_lea.vmem [#allocation4], %s273
        // Predicated region
        $region41: #{edsr_forward.6} parent=39 // pred_check
          %p275 = pneg %p60
        $region42: #{edsr_forward.6} parent=39 // pred_check_branch
          %277 = sbr.rel (%p275) target = $region44
        $region43: #{edsr_forward.6} parent=39 // pred_region
          %278 = dma.done %s271, 1024
        $region44: #{edsr_forward.6} parent=39 // pred_fallthru
          _
        // Predicated region
        $region45: #{edsr_forward.6} parent=39 // pred_check
          %p279 = pneg %p81
        $region46: #{edsr_forward.6} parent=39 // pred_check_branch
          %281 = sbr.rel (%p279) target = $region48
        $region47: #{edsr_forward.6} parent=39 // pred_region
          %282 = dma.done [#allocation8], 9216
        $region48: #{edsr_forward.6} parent=39 // pred_fallthru
          _
        // Predicated region
        $region49: #{edsr_forward.6} parent=39 // pred_check
          %p283 = pneg %p102
        $region50: #{edsr_forward.6} parent=39 // pred_check_branch
          %285 = sbr.rel (%p283) target = $region52
        $region51: #{edsr_forward.6} parent=39 // pred_region
          %286 = dma.done [#allocation8], 16
        $region52: #{edsr_forward.6} parent=39 // pred_fallthru
          _
        // Predicated region
        $region53: #{edsr_forward.6} parent=39 // pred_check
          %p287 = pneg %p123
        $region54: #{edsr_forward.6} parent=39 // pred_check_branch
          %289 = sbr.rel (%p287) target = $region56
        $region55: #{edsr_forward.6} parent=39 // pred_region
          %290 = dma.done [#allocation11], 9216
        $region56: #{edsr_forward.6} parent=39 // pred_fallthru
          _
        // Predicated region
        $region57: #{edsr_forward.6} parent=39 // pred_check
          %p291 = pneg %p144
        $region58: #{edsr_forward.6} parent=39 // pred_check_branch
          %293 = sbr.rel (%p291) target = $region60
        $region59: #{edsr_forward.6} parent=39 // pred_region
          %294 = dma.done [#allocation11], 16
        $region60: #{edsr_forward.6} parent=39 // pred_fallthru
          _
        %s295 = sand.u32 %s47, 1
        %s296 = scalar_lea.sflag [#allocation5], %s295
        %s297 = sand.u32 %s47, 1
        %s298 = smul.addr %s297, 64
        %s299 = scalar_lea.vmem [#allocation4], %s298
        %p300 = pneg %p60
        %p301 = pneg %p57
        %p302 = pneg %p81
        %p303 = pneg %p78
        %p304 = pneg %p102
        %p305 = pneg %p99
        %p306 = pneg %p123
        %p307 = pneg %p120
        %p308 = pneg %p144
        %p309 = pneg %p141
        %p310 = pneg %p172
        %p311 = pneg %p169
        %s312 = sand.u32 %s159, 1
        %s313 = scalar_lea.sflag [#allocation6], %s312
        %s314 = sand.u32 %s159, 1
        %s315 = smul.addr %s314, 64
        %s316 = scalar_lea.vmem [#allocation13], %s315
        %s317 = smul.u32 8, %s30
        %s318 = smul.u32 8, %s30
        %s320 = smul.u32 %s30, 8
        %p321 = scmp.gt.s32.totalorder %s30, 0
        // Predicated region
        $region61: #{edsr_forward.6} parent=39 // pred_check
          %p322 = pneg %p321
        $region62: #{edsr_forward.6} parent=39 // pred_check_branch
          %324 = sbr.rel (%p322) target = $region64
        $region63: #{edsr_forward.6} parent=39 // pred_region
          %s325 = ssub.s32 %s320, 2
          %s326 = smul.u32 %s325, 2
          %s327 = smul.u32 %s29, 32
          %s328 = sadd.s32 %s326, %s327
          %s329 = smul.addr %s328, 64
          %s330 = scalar_lea.hbm %s1, %s329
          // Predicated region
          $region65: #{edsr_forward.6} parent=63 // pred_check
            _
          $region66: #{edsr_forward.6} parent=63 // pred_check_branch
            %332 = sbr.rel target = $region68
          $region67: #{edsr_forward.6} parent=63 // pred_region
            %333 = sst [smem:[#allocation16]] [#allocation15]
            %334 = sst [smem:[#allocation17]] [#allocation14]
          $region68: #{edsr_forward.6} parent=63 // pred_fallthru
            _
          %336 = shalt.err (0)
          %s338 = sshll.u32 [#allocation2], 4
          %s339 = int_to_ptr.vmem [resolvable:$true] %s338
          %341 = dma.hbm_to_vmem [thread:$0]  %s330, 256, %s339, [#allocation3]
        $region64: #{edsr_forward.6} parent=39 // pred_fallthru
          _
        %p342 = scmp.eq.s32.totalorder %s30, 0
        // Predicated region
        $region69: #{edsr_forward.6} parent=39 // pred_check
          %p343 = pneg %p342
        $region70: #{edsr_forward.6} parent=39 // pred_check_branch
          %345 = sbr.rel (%p343) target = $region72
        $region71: #{edsr_forward.6} parent=39 // pred_region
          %346 = vst [vmem:[#allocation2] sm:$0xff] 0
          %347 = vst [vmem:[#allocation2 + $0x8] sm:$0xff] 0
        $region72: #{edsr_forward.6} parent=39 // pred_fallthru
          _
        %p348 = scmp.lt.s32.totalorder %s30, 1
        // Predicated region
        $region73: #{edsr_forward.6} parent=39 // pred_check
          %p349 = pneg %p348
        $region74: #{edsr_forward.6} parent=39 // pred_check_branch
          %351 = sbr.rel (%p349) target = $region76
        $region75: #{edsr_forward.6} parent=39 // pred_region
          %s352 = sadd.s32 %s320, 8
          %s353 = smul.u32 %s352, 2
          %s354 = smul.u32 %s29, 32
          %s355 = sadd.s32 %s353, %s354
          %s356 = smul.addr %s355, 64
          %s357 = scalar_lea.hbm %s1, %s356
          %s358 = scalar_lea.vmem [#allocation2], 16
          %s359 = scalar_lea.sflag [#allocation3], 1
          // Predicated region
          $region77: #{edsr_forward.6} parent=75 // pred_check
            _
          $region78: #{edsr_forward.6} parent=75 // pred_check_branch
            %361 = sbr.rel target = $region80
          $region79: #{edsr_forward.6} parent=75 // pred_region
            %362 = sst [smem:[#allocation16]] [#allocation19]
            %363 = sst [smem:[#allocation17]] [#allocation18]
          $region80: #{edsr_forward.6} parent=75 // pred_fallthru
            _
          %365 = shalt.err (0)
          %s367 = sshll.u32 %s358, 4
          %s368 = int_to_ptr.vmem [resolvable:$true] %s367
          %370 = dma.hbm_to_vmem [thread:$0]  %s357, 256, %s368, %s359
        $region76: #{edsr_forward.6} parent=39 // pred_fallthru
          _
        %p371 = scmp.eq.s32.totalorder %s30, 1
        // Predicated region
        $region81: #{edsr_forward.6} parent=39 // pred_check
          %p372 = pneg %p371
        $region82: #{edsr_forward.6} parent=39 // pred_check_branch
          %374 = sbr.rel (%p372) target = $region84
        $region83: #{edsr_forward.6} parent=39 // pred_region
          %s375 = scalar_lea.vmem [#allocation2], 16
          %376 = vst [vmem:[%s375] sm:$0xff] 0
          %377 = vst [vmem:[%s375 + $0x8] sm:$0xff] 0
        $region84: #{edsr_forward.6} parent=39 // pred_fallthru
          _
        // Predicated region
        $region85: #{edsr_forward.6} parent=39 // pred_check
          %p378 = pneg %p321
        $region86: #{edsr_forward.6} parent=39 // pred_check_branch
          %380 = sbr.rel (%p378) target = $region88
        $region87: #{edsr_forward.6} parent=39 // pred_region
          %s381 = smul.u32 4, 2
          %s382 = smul.u32 %s381, 2
          %s383 = smul.u32 %s382, 1
          %s384 = sshll.u32 %s383, 4
          %385 = dma.done [#allocation3], %s384
        $region88: #{edsr_forward.6} parent=39 // pred_fallthru
          _
        // Predicated region
        $region89: #{edsr_forward.6} parent=39 // pred_check
          %p386 = pneg %p348
        $region90: #{edsr_forward.6} parent=39 // pred_check_branch
          %388 = sbr.rel (%p386) target = $region92
        $region91: #{edsr_forward.6} parent=39 // pred_region
          %s389 = scalar_lea.sflag [#allocation3], 1
          %s390 = smul.u32 4, 2
          %s391 = smul.u32 %s390, 2
          %s392 = smul.u32 %s391, 1
          %s393 = sshll.u32 %s392, 4
          %394 = dma.done %s389, %s393
        $region92: #{edsr_forward.6} parent=39 // pred_fallthru
          _
        %v395 = vld [vmem:[#allocation2] sm:$0xff]
        %v396 = vld [vmem:[#allocation2 + $0x8] sm:$0xff]
        %v397 = vld [vmem:[%s274] sm:$0xf]
        %v398 = vld [vmem:[%s274 + $0x4] sm:$0xf]
        %v399 = vld [vmem:[%s274 + $0x8] sm:$0xf]
        %v400 = vld [vmem:[%s274 + $0xc] sm:$0xf]
        %v401 = vld [vmem:[%s274 + $0x10] sm:$0xf]
        %v402 = vld [vmem:[%s274 + $0x14] sm:$0xf]
        %v403 = vld [vmem:[%s274 + $0x18] sm:$0xf]
        %v404 = vld [vmem:[%s274 + $0x1c] sm:$0xf]
        %v405 = vld [vmem:[%s274 + $0x20] sm:$0xf]
        %v406 = vld [vmem:[%s274 + $0x24] sm:$0xf]
        %v407 = vld [vmem:[%s274 + $0x28] sm:$0xf]
        %v408 = vld [vmem:[%s274 + $0x2c] sm:$0xf]
        %v409 = vld [vmem:[%s274 + $0x30] sm:$0xf]
        %v410 = vld [vmem:[%s274 + $0x34] sm:$0xf]
        %v411 = vld [vmem:[%s274 + $0x38] sm:$0xf]
        %v412 = vld [vmem:[%s274 + $0x3c] sm:$0xf]
        %s413 = scalar_lea.vmem [#allocation2], 16
        %v414 = vld [vmem:[%s413] sm:$0xff]
        %v415 = vld [vmem:[%s413 + $0x8] sm:$0xff]
        %v432 = vunpack.c.l.b16 %v397
        %v433 = vunpack.c.l.b16 %v398
        %v434 = vunpack.c.l.b16 %v399
        %v435 = vunpack.c.l.b16 %v400
        %v436 = vunpack.c.l.b16 %v401
        %v437 = vunpack.c.l.b16 %v402
        %v438 = vunpack.c.l.b16 %v403
        %v439 = vunpack.c.l.b16 %v404
        %v440 = vunpack.c.l.b16 %v405
        %v441 = vunpack.c.l.b16 %v406
        %v442 = vunpack.c.l.b16 %v407
        %v443 = vunpack.c.l.b16 %v408
        %v444 = vunpack.c.l.b16 %v409
        %v445 = vunpack.c.l.b16 %v410
        %v446 = vunpack.c.l.b16 %v411
        %v447 = vunpack.c.l.b16 %v412
        %v448 = vpack.c.b16 %v433, %v432
        %v449 = vpack.c.b16 %v435, %v434
        %v450 = vpack.c.b16 %v437, %v436
        %v451 = vpack.c.b16 %v439, %v438
        %v452 = vpack.c.b16 %v441, %v440
        %v453 = vpack.c.b16 %v443, %v442
        %v454 = vpack.c.b16 %v445, %v444
        %v455 = vpack.c.b16 %v447, %v446
        %v464 = vunpack.c.l.bf16 %v395
        %v465 = vunpack.c.h.bf16 %v395
        %v466 = vunpack.c.l.bf16 %v396
        %v467 = vunpack.c.h.bf16 %v396
        %v468 = vunpack.c.l.bf16 %v448
        %v469 = vunpack.c.h.bf16 %v448
        %v470 = vunpack.c.l.bf16 %v449
        %v471 = vunpack.c.h.bf16 %v449
        %v472 = vunpack.c.l.bf16 %v450
        %v473 = vunpack.c.h.bf16 %v450
        %v474 = vunpack.c.l.bf16 %v451
        %v475 = vunpack.c.h.bf16 %v451
        %v476 = vunpack.c.l.bf16 %v452
        %v477 = vunpack.c.h.bf16 %v452
        %v478 = vunpack.c.l.bf16 %v453
        %v479 = vunpack.c.h.bf16 %v453
        %v480 = vunpack.c.l.bf16 %v454
        %v481 = vunpack.c.h.bf16 %v454
        %v482 = vunpack.c.l.bf16 %v455
        %v483 = vunpack.c.h.bf16 %v455
        %v484 = vunpack.c.l.bf16 %v414
        %v485 = vunpack.c.h.bf16 %v414
        %v486 = vunpack.c.l.bf16 %v415
        %v487 = vunpack.c.h.bf16 %v415
        %v488 = vrot.slane %v464, 7
        %v489 = vrot.slane %v465, 7
        %v490 = vrot.slane %v466, 7
        %v491 = vrot.slane %v467, 7
        %v492 = vrot.slane %v468, 7
        %v493 = vrot.slane %v469, 7
        %v494 = vrot.slane %v470, 7
        %v495 = vrot.slane %v471, 7
        %v496 = vrot.slane %v472, 7
        %v497 = vrot.slane %v473, 7
        %v498 = vrot.slane %v474, 7
        %v499 = vrot.slane %v475, 7
        %v500 = vrot.slane %v476, 7
        %v501 = vrot.slane %v477, 7
        %v502 = vrot.slane %v478, 7
        %v503 = vrot.slane %v479, 7
        %v504 = vrot.slane %v480, 7
        %v505 = vrot.slane %v481, 7
        %v506 = vrot.slane %v482, 7
        %v507 = vrot.slane %v483, 7
        %v508 = vrot.slane %v484, 7
        %v509 = vrot.slane %v485, 7
        %v510 = vrot.slane %v486, 7
        %v511 = vrot.slane %v487, 7
        %v512 = vlaneseq
        %v513 = vshrl.u32 %v512, 7
        %vm514 = vcmp.lt.s32.totalorder %v513, 1
        %v515 = vsel %vm514, %v510, %v511
        %v516 = vsel %vm514, %v509, %v510
        %v517 = vsel %vm514, %v508, %v509
        %v518 = vsel %vm514, %v507, %v508
        %v519 = vsel %vm514, %v506, %v507
        %v520 = vsel %vm514, %v505, %v506
        %v521 = vsel %vm514, %v504, %v505
        %v522 = vsel %vm514, %v503, %v504
        %v523 = vsel %vm514, %v502, %v503
        %v524 = vsel %vm514, %v501, %v502
        %v525 = vsel %vm514, %v500, %v501
        %v526 = vsel %vm514, %v499, %v500
        %v527 = vsel %vm514, %v498, %v499
        %v528 = vsel %vm514, %v497, %v498
        %v529 = vsel %vm514, %v496, %v497
        %v530 = vsel %vm514, %v495, %v496
        %v531 = vsel %vm514, %v494, %v495
        %v532 = vsel %vm514, %v493, %v494
        %v533 = vsel %vm514, %v492, %v493
        %v534 = vsel %vm514, %v491, %v492
        %v535 = vsel %vm514, %v490, %v491
        %v536 = vsel %vm514, %v489, %v490
        %v537 = vsel %vm514, %v488, %v489
        %v538 = vsel %vm514, %v511, %v488
        %v539 = vrot.slane %v464, 1
        %v540 = vrot.slane %v465, 1
        %v541 = vrot.slane %v466, 1
        %v542 = vrot.slane %v467, 1
        %v543 = vrot.slane %v468, 1
        %v544 = vrot.slane %v469, 1
        %v545 = vrot.slane %v470, 1
        %v546 = vrot.slane %v471, 1
        %v547 = vrot.slane %v472, 1
        %v548 = vrot.slane %v473, 1
        %v549 = vrot.slane %v474, 1
        %v550 = vrot.slane %v475, 1
        %v551 = vrot.slane %v476, 1
        %v552 = vrot.slane %v477, 1
        %v553 = vrot.slane %v478, 1
        %v554 = vrot.slane %v479, 1
        %v555 = vrot.slane %v480, 1
        %v556 = vrot.slane %v481, 1
        %v557 = vrot.slane %v482, 1
        %v558 = vrot.slane %v483, 1
        %v559 = vrot.slane %v484, 1
        %v560 = vrot.slane %v485, 1
        %v561 = vrot.slane %v486, 1
        %v562 = vrot.slane %v487, 1
        %vm563 = vcmp.lt.s32.totalorder %v513, 7
        %v564 = vsel %vm563, %v561, %v562
        %v565 = vsel %vm563, %v560, %v561
        %v566 = vsel %vm563, %v559, %v560
        %v567 = vsel %vm563, %v558, %v559
        %v568 = vsel %vm563, %v557, %v558
        %v569 = vsel %vm563, %v556, %v557
        %v570 = vsel %vm563, %v555, %v556
        %v571 = vsel %vm563, %v554, %v555
        %v572 = vsel %vm563, %v553, %v554
        %v573 = vsel %vm563, %v552, %v553
        %v574 = vsel %vm563, %v551, %v552
        %v575 = vsel %vm563, %v550, %v551
        %v576 = vsel %vm563, %v549, %v550
        %v577 = vsel %vm563, %v548, %v549
        %v578 = vsel %vm563, %v547, %v548
        %v579 = vsel %vm563, %v546, %v547
        %v580 = vsel %vm563, %v545, %v546
        %v581 = vsel %vm563, %v544, %v545
        %v582 = vsel %vm563, %v543, %v544
        %v583 = vsel %vm563, %v542, %v543
        %v584 = vsel %vm563, %v541, %v542
        %v585 = vsel %vm563, %v540, %v541
        %v586 = vsel %vm563, %v539, %v540
        %v587 = vsel %vm563, %v562, %v539
        %v588 = vadd.s32 %v513, 8
        %vm589 = vcmp.eq.s32.totalorder %v513, 0
        %vm590 = vcmp.eq.s32.totalorder %v588, 0
        %v591 = vsel %vm589, 1, 0
        %v592 = vsel %vm590, 1, 0
        %vm593 = vcmp.eq.s32.totalorder %v591, 1
        %vm594 = vcmp.eq.s32.totalorder %v592, 1
        %v595 = vsel %vm593, 0.0, %v538
        %v596 = vsel %vm594, 0.0, %v537
        %v597 = vsel %vm593, 0.0, %v536
        %v598 = vsel %vm594, 0.0, %v535
        %v599 = vsel %vm593, 0.0, %v534
        %v600 = vsel %vm594, 0.0, %v533
        %v601 = vsel %vm593, 0.0, %v532
        %v602 = vsel %vm594, 0.0, %v531
        %v603 = vsel %vm593, 0.0, %v530
        %v604 = vsel %vm594, 0.0, %v529
        %v605 = vsel %vm593, 0.0, %v528
        %v606 = vsel %vm594, 0.0, %v527
        %v607 = vsel %vm593, 0.0, %v526
        %v608 = vsel %vm594, 0.0, %v525
        %v609 = vsel %vm593, 0.0, %v524
        %v610 = vsel %vm594, 0.0, %v523
        %v611 = vsel %vm593, 0.0, %v522
        %v612 = vsel %vm594, 0.0, %v521
        %v613 = vsel %vm593, 0.0, %v520
        %v614 = vsel %vm594, 0.0, %v519
        %v615 = vsel %vm593, 0.0, %v518
        %v616 = vsel %vm594, 0.0, %v517
        %v617 = vsel %vm593, 0.0, %v516
        %v618 = vsel %vm594, 0.0, %v515
        %v619 = vpack.c.bf16 %v596, %v595
        %v620 = vpack.c.bf16 %v598, %v597
        %v621 = vpack.c.bf16 %v600, %v599
        %v622 = vpack.c.bf16 %v602, %v601
        %v623 = vpack.c.bf16 %v604, %v603
        %v624 = vpack.c.bf16 %v606, %v605
        %v625 = vpack.c.bf16 %v608, %v607
        %v626 = vpack.c.bf16 %v610, %v609
        %v627 = vpack.c.bf16 %v612, %v611
        %v628 = vpack.c.bf16 %v614, %v613
        %v629 = vpack.c.bf16 %v616, %v615
        %v630 = vpack.c.bf16 %v618, %v617
        %vm631 = vcmp.eq.s32.totalorder %v513, 15
        %vm632 = vcmp.eq.s32.totalorder %v588, 15
        %v633 = vsel %vm631, 1, 0
        %v634 = vsel %vm632, 1, 0
        %vm635 = vcmp.eq.s32.totalorder %v633, 1
        %vm636 = vcmp.eq.s32.totalorder %v634, 1
        %v637 = vsel %vm635, 0.0, %v586
        %v638 = vsel %vm636, 0.0, %v585
        %v639 = vsel %vm635, 0.0, %v584
        %v640 = vsel %vm636, 0.0, %v583
        %v641 = vsel %vm635, 0.0, %v582
        %v642 = vsel %vm636, 0.0, %v581
        %v643 = vsel %vm635, 0.0, %v580
        %v644 = vsel %vm636, 0.0, %v579
        %v645 = vsel %vm635, 0.0, %v578
        %v646 = vsel %vm636, 0.0, %v577
        %v647 = vsel %vm635, 0.0, %v576
        %v648 = vsel %vm636, 0.0, %v575
        %v649 = vsel %vm635, 0.0, %v574
        %v650 = vsel %vm636, 0.0, %v573
        %v651 = vsel %vm635, 0.0, %v572
        %v652 = vsel %vm636, 0.0, %v571
        %v653 = vsel %vm635, 0.0, %v570
        %v654 = vsel %vm636, 0.0, %v569
        %v655 = vsel %vm635, 0.0, %v568
        %v656 = vsel %vm636, 0.0, %v567
        %v657 = vsel %vm635, 0.0, %v566
        %v658 = vsel %vm636, 0.0, %v565
        %v659 = vsel %vm635, 0.0, %v564
        %v660 = vsel %vm636, 0.0, %v587
        %v661 = vpack.c.bf16 %v638, %v637
        %v662 = vpack.c.bf16 %v640, %v639
        %v663 = vpack.c.bf16 %v642, %v641
        %v664 = vpack.c.bf16 %v644, %v643
        %v665 = vpack.c.bf16 %v646, %v645
        %v666 = vpack.c.bf16 %v648, %v647
        %v667 = vpack.c.bf16 %v650, %v649
        %v668 = vpack.c.bf16 %v652, %v651
        %v669 = vpack.c.bf16 %v654, %v653
        %v670 = vpack.c.bf16 %v656, %v655
        %v671 = vpack.c.bf16 %v658, %v657
        %v672 = vpack.c.bf16 %v660, %v659
        %v673 = vld [vmem:[#allocation7] sm:$0xf]
        %v674 = vld [vmem:[#allocation7 + $0x4] sm:$0xf]
        %v675 = vld [vmem:[#allocation7 + $0x8] sm:$0xf]
        %v676 = vld [vmem:[#allocation7 + $0xc] sm:$0xf]
        %v677 = vld [vmem:[#allocation7 + $0x10] sm:$0xf]
        %v678 = vld [vmem:[#allocation7 + $0x14] sm:$0xf]
        %v679 = vld [vmem:[#allocation7 + $0x18] sm:$0xf]
        %v680 = vld [vmem:[#allocation7 + $0x1c] sm:$0xf]
        %v681 = vld [vmem:[#allocation7 + $0x20] sm:$0xf]
        %v682 = vld [vmem:[#allocation7 + $0x24] sm:$0xf]
        %v683 = vld [vmem:[#allocation7 + $0x28] sm:$0xf]
        %v684 = vld [vmem:[#allocation7 + $0x2c] sm:$0xf]
        %v685 = vld [vmem:[#allocation7 + $0x30] sm:$0xf]
        %v686 = vld [vmem:[#allocation7 + $0x34] sm:$0xf]
        %v687 = vld [vmem:[#allocation7 + $0x38] sm:$0xf]
        %v688 = vld [vmem:[#allocation7 + $0x3c] sm:$0xf]
        %v689 = vld [vmem:[#allocation7 + $0x40] sm:$0xf]
        %v690 = vld [vmem:[#allocation7 + $0x44] sm:$0xf]
        %v691 = vld [vmem:[#allocation7 + $0x48] sm:$0xf]
        %v692 = vld [vmem:[#allocation7 + $0x4c] sm:$0xf]
        %v693 = vld [vmem:[#allocation7 + $0x50] sm:$0xf]
        %v694 = vld [vmem:[#allocation7 + $0x54] sm:$0xf]
        %v695 = vld [vmem:[#allocation7 + $0x58] sm:$0xf]
        %v696 = vld [vmem:[#allocation7 + $0x5c] sm:$0xf]
        %v697 = vld [vmem:[#allocation7 + $0x60] sm:$0xf]
        %v698 = vld [vmem:[#allocation7 + $0x64] sm:$0xf]
        %v699 = vld [vmem:[#allocation7 + $0x68] sm:$0xf]
        %v700 = vld [vmem:[#allocation7 + $0x6c] sm:$0xf]
        %v701 = vld [vmem:[#allocation7 + $0x70] sm:$0xf]
        %v702 = vld [vmem:[#allocation7 + $0x74] sm:$0xf]
        %v703 = vld [vmem:[#allocation7 + $0x78] sm:$0xf]
        %v704 = vld [vmem:[#allocation7 + $0x7c] sm:$0xf]
        %v705 = vld [vmem:[#allocation7 + $0x80] sm:$0xf]
        %v706 = vld [vmem:[#allocation7 + $0x84] sm:$0xf]
        %v707 = vld [vmem:[#allocation7 + $0x88] sm:$0xf]
        %v708 = vld [vmem:[#allocation7 + $0x8c] sm:$0xf]
        %v709 = vld [vmem:[#allocation7 + $0x90] sm:$0xf]
        %v710 = vld [vmem:[#allocation7 + $0x94] sm:$0xf]
        %v711 = vld [vmem:[#allocation7 + $0x98] sm:$0xf]
        %v712 = vld [vmem:[#allocation7 + $0x9c] sm:$0xf]
        %v713 = vld [vmem:[#allocation7 + $0xa0] sm:$0xf]
        %v714 = vld [vmem:[#allocation7 + $0xa4] sm:$0xf]
        %v715 = vld [vmem:[#allocation7 + $0xa8] sm:$0xf]
        %v716 = vld [vmem:[#allocation7 + $0xac] sm:$0xf]
        %v717 = vld [vmem:[#allocation7 + $0xb0] sm:$0xf]
        %v718 = vld [vmem:[#allocation7 + $0xb4] sm:$0xf]
        %v719 = vld [vmem:[#allocation7 + $0xb8] sm:$0xf]
        %v720 = vld [vmem:[#allocation7 + $0xbc] sm:$0xf]
        %s721 = scalar_lea.vmem [#allocation7], 192
        %v722 = vld [vmem:[%s721] sm:$0xf]
        %v723 = vld [vmem:[%s721 + $0x4] sm:$0xf]
        %v724 = vld [vmem:[%s721 + $0x8] sm:$0xf]
        %v725 = vld [vmem:[%s721 + $0xc] sm:$0xf]
        %v726 = vld [vmem:[%s721 + $0x10] sm:$0xf]
        %v727 = vld [vmem:[%s721 + $0x14] sm:$0xf]
        %v728 = vld [vmem:[%s721 + $0x18] sm:$0xf]
        %v729 = vld [vmem:[%s721 + $0x1c] sm:$0xf]
        %v730 = vld [vmem:[%s721 + $0x20] sm:$0xf]
        %v731 = vld [vmem:[%s721 + $0x24] sm:$0xf]
        %v732 = vld [vmem:[%s721 + $0x28] sm:$0xf]
        %v733 = vld [vmem:[%s721 + $0x2c] sm:$0xf]
        %v734 = vld [vmem:[%s721 + $0x30] sm:$0xf]
        %v735 = vld [vmem:[%s721 + $0x34] sm:$0xf]
        %v736 = vld [vmem:[%s721 + $0x38] sm:$0xf]
        %v737 = vld [vmem:[%s721 + $0x3c] sm:$0xf]
        %v738 = vld [vmem:[%s721 + $0x40] sm:$0xf]
        %v739 = vld [vmem:[%s721 + $0x44] sm:$0xf]
        %v740 = vld [vmem:[%s721 + $0x48] sm:$0xf]
        %v741 = vld [vmem:[%s721 + $0x4c] sm:$0xf]
        %v742 = vld [vmem:[%s721 + $0x50] sm:$0xf]
        %v743 = vld [vmem:[%s721 + $0x54] sm:$0xf]
        %v744 = vld [vmem:[%s721 + $0x58] sm:$0xf]
        %v745 = vld [vmem:[%s721 + $0x5c] sm:$0xf]
        %v746 = vld [vmem:[%s721 + $0x60] sm:$0xf]
        %v747 = vld [vmem:[%s721 + $0x64] sm:$0xf]
        %v748 = vld [vmem:[%s721 + $0x68] sm:$0xf]
        %v749 = vld [vmem:[%s721 + $0x6c] sm:$0xf]
        %v750 = vld [vmem:[%s721 + $0x70] sm:$0xf]
        %v751 = vld [vmem:[%s721 + $0x74] sm:$0xf]
        %v752 = vld [vmem:[%s721 + $0x78] sm:$0xf]
        %v753 = vld [vmem:[%s721 + $0x7c] sm:$0xf]
        %v754 = vld [vmem:[%s721 + $0x80] sm:$0xf]
        %v755 = vld [vmem:[%s721 + $0x84] sm:$0xf]
        %v756 = vld [vmem:[%s721 + $0x88] sm:$0xf]
        %v757 = vld [vmem:[%s721 + $0x8c] sm:$0xf]
        %v758 = vld [vmem:[%s721 + $0x90] sm:$0xf]
        %v759 = vld [vmem:[%s721 + $0x94] sm:$0xf]
        %v760 = vld [vmem:[%s721 + $0x98] sm:$0xf]
        %v761 = vld [vmem:[%s721 + $0x9c] sm:$0xf]
        %v762 = vld [vmem:[%s721 + $0xa0] sm:$0xf]
        %v763 = vld [vmem:[%s721 + $0xa4] sm:$0xf]
        %v764 = vld [vmem:[%s721 + $0xa8] sm:$0xf]
        %v765 = vld [vmem:[%s721 + $0xac] sm:$0xf]
        %v766 = vld [vmem:[%s721 + $0xb0] sm:$0xf]
        %v767 = vld [vmem:[%s721 + $0xb4] sm:$0xf]
        %v768 = vld [vmem:[%s721 + $0xb8] sm:$0xf]
        %v769 = vld [vmem:[%s721 + $0xbc] sm:$0xf]
        %v818 = vunpack.c.l.b16 %v722
        %v819 = vunpack.c.l.b16 %v723
        %v820 = vunpack.c.l.b16 %v724
        %v821 = vunpack.c.l.b16 %v725
        %v822 = vunpack.c.l.b16 %v726
        %v823 = vunpack.c.l.b16 %v727
        %v824 = vunpack.c.l.b16 %v728
        %v825 = vunpack.c.l.b16 %v729
        %v826 = vunpack.c.l.b16 %v730
        %v827 = vunpack.c.l.b16 %v731
        %v828 = vunpack.c.l.b16 %v732
        %v829 = vunpack.c.l.b16 %v733
        %v830 = vunpack.c.l.b16 %v734
        %v831 = vunpack.c.l.b16 %v735
        %v832 = vunpack.c.l.b16 %v736
        %v833 = vunpack.c.l.b16 %v737
        %v834 = vunpack.c.l.b16 %v738
        %v835 = vunpack.c.l.b16 %v739
        %v836 = vunpack.c.l.b16 %v740
        %v837 = vunpack.c.l.b16 %v741
        %v838 = vunpack.c.l.b16 %v742
        %v839 = vunpack.c.l.b16 %v743
        %v840 = vunpack.c.l.b16 %v744
        %v841 = vunpack.c.l.b16 %v745
        %v842 = vunpack.c.l.b16 %v746
        %v843 = vunpack.c.l.b16 %v747
        %v844 = vunpack.c.l.b16 %v748
        %v845 = vunpack.c.l.b16 %v749
        %v846 = vunpack.c.l.b16 %v750
        %v847 = vunpack.c.l.b16 %v751
        %v848 = vunpack.c.l.b16 %v752
        %v849 = vunpack.c.l.b16 %v753
        %v850 = vunpack.c.l.b16 %v754
        %v851 = vunpack.c.l.b16 %v755
        %v852 = vunpack.c.l.b16 %v756
        %v853 = vunpack.c.l.b16 %v757
        %v854 = vunpack.c.l.b16 %v758
        %v855 = vunpack.c.l.b16 %v759
        %v856 = vunpack.c.l.b16 %v760
        %v857 = vunpack.c.l.b16 %v761
        %v858 = vunpack.c.l.b16 %v762
        %v859 = vunpack.c.l.b16 %v763
        %v860 = vunpack.c.l.b16 %v764
        %v861 = vunpack.c.l.b16 %v765
        %v862 = vunpack.c.l.b16 %v766
        %v863 = vunpack.c.l.b16 %v767
        %v864 = vunpack.c.l.b16 %v768
        %v865 = vunpack.c.l.b16 %v769
        %v866 = vpack.c.b16 %v819, %v818
        %v867 = vpack.c.b16 %v821, %v820
        %v868 = vpack.c.b16 %v823, %v822
        %v869 = vpack.c.b16 %v825, %v824
        %v870 = vpack.c.b16 %v827, %v826
        %v871 = vpack.c.b16 %v829, %v828
        %v872 = vpack.c.b16 %v831, %v830
        %v873 = vpack.c.b16 %v833, %v832
        %v874 = vpack.c.b16 %v835, %v834
        %v875 = vpack.c.b16 %v837, %v836
        %v876 = vpack.c.b16 %v839, %v838
        %v877 = vpack.c.b16 %v841, %v840
        %v878 = vpack.c.b16 %v843, %v842
        %v879 = vpack.c.b16 %v845, %v844
        %v880 = vpack.c.b16 %v847, %v846
        %v881 = vpack.c.b16 %v849, %v848
        %v882 = vpack.c.b16 %v851, %v850
        %v883 = vpack.c.b16 %v853, %v852
        %v884 = vpack.c.b16 %v855, %v854
        %v885 = vpack.c.b16 %v857, %v856
        %v886 = vpack.c.b16 %v859, %v858
        %v887 = vpack.c.b16 %v861, %v860
        %v888 = vpack.c.b16 %v863, %v862
        %v889 = vpack.c.b16 %v865, %v864
        %914 = vmatprep.subr.bf16.mxu0 0
        %915 = vmatpush1.bf16.msra.mxu0 %v866
        %916 = vmatprep.subr.bf16.mxu0 0
        %917 = vmatpush1.bf16.msra.mxu0 %v867
        %918 = vmatprep.subr.bf16.mxu0 0
        %919 = vmatpush1.bf16.msra.mxu0 %v868
        %920 = vmatprep.subr.bf16.mxu0 0
        %921 = vmatpush1.bf16.msra.mxu0 %v869
        %922 = vmatprep.subr.bf16.mxu0 0
        %923 = vmatpush1.bf16.msra.mxu0 %v870
        %924 = vmatprep.subr.bf16.mxu0 0
        %925 = vmatpush1.bf16.msra.mxu0 %v871
        %926 = vmatprep.subr.bf16.mxu0 0
        %927 = vmatpush1.bf16.msra.mxu0 %v872
        %928 = vmatprep.subr.bf16.mxu0 0
        %929 = vmatpush1.bf16.msra.mxu0 %v873
        %930 = vmatprep.subr.bf16.mxu0 0
        %931 = vmatpush1.bf16.msra.mxu0 %v874
        %932 = vmatprep.subr.bf16.mxu0 0
        %933 = vmatpush1.bf16.msra.mxu0 %v875
        %934 = vmatprep.subr.bf16.mxu0 0
        %935 = vmatpush1.bf16.msra.mxu0 %v876
        %936 = vmatprep.subr.bf16.mxu0 0
        %937 = vmatpush1.bf16.msra.mxu0 %v877
        %938 = vmatprep.subr.bf16.mxu0 0
        %939 = vmatpush1.bf16.msra.mxu0 %v878
        %940 = vmatprep.subr.bf16.mxu0 0
        %941 = vmatpush1.bf16.msra.mxu0 %v879
        %942 = vmatprep.subr.bf16.mxu0 0
        %943 = vmatpush1.bf16.msra.mxu0 %v880
        %944 = vmatprep.subr.bf16.mxu0 0
        %945 = vmatpush1.bf16.msra.mxu0 %v881
        %946 = vmatprep.mubr.bf16.mxu0 %v396
        %947 = vmatmul.mubr.bf16.gmra.mrb[0].mxu0 %v620
        %v948 = vpop.f32.mrb[0].mxu0
        %v949 = vadd.f32 0.0, %v948
        %v950 = vpop.f32.mrb[0].mxu0
        %v951 = vpop.f32.mrb[0].mxu0
        %v952 = vadd.f32 0.0, %v951
        %v953 = vpop.f32.mrb[0].mxu0
        %954 = vmatprep.mubr.bf16.mxu0 %v448
        %955 = vmatmul.mubr.bf16.gmra.mrb[0].mxu0 %v621
        %v956 = vpop.f32.mrb[0].mxu0
        %v957 = vadd.f32 0.0, %v956
        %v958 = vpop.f32.mrb[0].mxu0
        %v959 = vpop.f32.mrb[0].mxu0
        %v960 = vadd.f32 0.0, %v959
        %v961 = vpop.f32.mrb[0].mxu0
        %962 = vmatprep.mubr.bf16.mxu0 %v449
        %963 = vmatmul.mubr.bf16.gmra.mrb[0].mxu0 %v622
        %v964 = vpop.f32.mrb[0].mxu0
        %v965 = vadd.f32 0.0, %v964
        %v966 = vpop.f32.mrb[0].mxu0
        %v967 = vpop.f32.mrb[0].mxu0
        %v968 = vadd.f32 0.0, %v967
        %v969 = vpop.f32.mrb[0].mxu0
        %970 = vmatprep.mubr.bf16.mxu0 %v450
        %971 = vmatmul.mubr.bf16.gmra.mrb[0].mxu0 %v623
        %v972 = vpop.f32.mrb[0].mxu0
        %v973 = vadd.f32 0.0, %v972
        %v974 = vpop.f32.mrb[0].mxu0
        %v975 = vpop.f32.mrb[0].mxu0
        %v976 = vadd.f32 0.0, %v975
        %v977 = vpop.f32.mrb[0].mxu0
        %978 = vmatprep.mubr.bf16.mxu0 %v451
        %979 = vmatmul.mubr.bf16.gmra.mrb[0].mxu0 %v624
        %v980 = vpop.f32.mrb[0].mxu0
        %v981 = vadd.f32 0.0, %v980
        %v982 = vpop.f32.mrb[0].mxu0
        %v983 = vpop.f32.mrb[0].mxu0
        %v984 = vadd.f32 0.0, %v983
        %v985 = vpop.f32.mrb[0].mxu0
        %986 = vmatprep.mubr.bf16.mxu0 %v452
        %987 = vmatmul.mubr.bf16.gmra.mrb[0].mxu0 %v625
        %v988 = vpop.f32.mrb[0].mxu0
        %v989 = vadd.f32 0.0, %v988
        %v990 = vpop.f32.mrb[0].mxu0
        %v991 = vpop.f32.mrb[0].mxu0
        %v992 = vadd.f32 0.0, %v991
        %v993 = vpop.f32.mrb[0].mxu0
        %994 = vmatprep.mubr.bf16.mxu0 %v453
        %995 = vmatmul.mubr.bf16.gmra.mrb[0].mxu0 %v626
        %v996 = vpop.f32.mrb[0].mxu0
        %v997 = vadd.f32 0.0, %v996
        %v998 = vpop.f32.mrb[0].mxu0
        %v999 = vpop.f32.mrb[0].mxu0
        %v1000 = vadd.f32 0.0, %v999
        %v1001 = vpop.f32.mrb[0].mxu0
        %1002 = vmatprep.mubr.bf16.mxu0 %v454
        %1003 = vmatmul.mubr.bf16.gmra.mrb[0].mxu0 %v627
        %v1004 = vpop.f32.mrb[0].mxu0
        %v1005 = vadd.f32 0.0, %v1004
        %v1006 = vpop.f32.mrb[0].mxu0
        %v1007 = vpop.f32.mrb[0].mxu0
        %v1008 = vadd.f32 0.0, %v1007
        %v1009 = vpop.f32.mrb[0].mxu0
        %1010 = vmatprep.mubr.bf16.mxu0 %v455
        %1011 = vmatmul.mubr.bf16.gmra.mrb[0].mxu0 %v628
        %v1012 = vpop.f32.mrb[0].mxu0
        %v1013 = vadd.f32 0.0, %v1012
        %v1014 = vpop.f32.mrb[0].mxu0
        %v1015 = vpop.f32.mrb[0].mxu0
        %v1016 = vadd.f32 0.0, %v1015
        %v1017 = vpop.f32.mrb[0].mxu0
        %1018 = vmatprep.mubr.bf16.mxu0 %v414
        %1019 = vmatmul.mubr.bf16.gmra.mrb[0].mxu0 %v629
        %v1020 = vpop.f32.mrb[0].mxu0
        %v1021 = vadd.f32 0.0, %v1020
        %v1022 = vpop.f32.mrb[0].mxu0
        %v1023 = vpop.f32.mrb[0].mxu0
        %v1024 = vadd.f32 0.0, %v1023
        %v1025 = vpop.f32.mrb[0].mxu0
        %1026 = vdwg.mxu0
        %1027 = vmatprep.subr.bf16.mxu0 0
        %1028 = vmatpush1.bf16.msra.mxu0 %v882
        %1029 = vmatprep.subr.bf16.mxu0 0
        %1030 = vmatpush1.bf16.msra.mxu0 %v883
        %1031 = vmatprep.subr.bf16.mxu0 0
        %1032 = vmatpush1.bf16.msra.mxu0 %v884
        %1033 = vmatprep.subr.bf16.mxu0 0
        %1034 = vmatpush1.bf16.msra.mxu0 %v885
        %1035 = vmatprep.subr.bf16.mxu0 0
        %1036 = vmatpush1.bf16.msra.mxu0 %v886
        %1037 = vmatprep.subr.bf16.mxu0 0
        %1038 = vmatpush1.bf16.msra.mxu0 %v887
        %1039 = vmatprep.subr.bf16.mxu0 0
        %1040 = vmatpush1.bf16.msra.mxu0 %v888
        %1041 = vmatprep.subr.bf16.mxu0 0
        %1042 = vmatpush1.bf16.msra.mxu0 %v889
        %1043 = vmatprep.subr.bf16.mxu0 0
        %1044 = vmatpush1.bf16.msra.mxu0 0
        %1045 = vmatprep.subr.bf16.mxu0 0
        %1046 = vmatpush1.bf16.msra.mxu0 0
        %1047 = vmatprep.subr.bf16.mxu0 0
        %1048 = vmatpush1.bf16.msra.mxu0 0
        %1049 = vmatprep.subr.bf16.mxu0 0
        %1050 = vmatpush1.bf16.msra.mxu0 0
        %1051 = vmatprep.subr.bf16.mxu0 0
        %1052 = vmatpush1.bf16.msra.mxu0 0
        %1053 = vmatprep.subr.bf16.mxu0 0
        %1054 = vmatpush1.bf16.msra.mxu0 0
        %1055 = vmatprep.subr.bf16.mxu0 0
        %1056 = vmatpush1.bf16.msra.mxu0 0
        %1057 = vmatprep.subr.bf16.mxu0 0
        %1058 = vmatpush1.bf16.msra.mxu0 0
        %1059 = vmatprep.mubr.bf16.mxu0 0
        %1060 = vmatmul.mubr.bf16.gmra.mrb[0].mxu0 %v662
        %v1061 = vpop.f32.mrb[0].mxu0
        %v1062 = vadd.f32 %v949, %v1061
        %v1063 = vpop.f32.mrb[0].mxu0
        %v1064 = vpop.f32.mrb[0].mxu0
        %v1065 = vadd.f32 %v952, %v1064
        %v1066 = vpop.f32.mrb[0].mxu0
        %1067 = vmatprep.mubr.bf16.mxu0 0
        %1068 = vmatmul.mubr.bf16.gmra.mrb[0].mxu0 %v663
        %v1069 = vpop.f32.mrb[0].mxu0
        %v1070 = vadd.f32 %v957, %v1069
        %v1071 = vpop.f32.mrb[0].mxu0
        %v1072 = vpop.f32.mrb[0].mxu0
        %v1073 = vadd.f32 %v960, %v1072
        %v1074 = vpop.f32.mrb[0].mxu0
        %1075 = vmatprep.mubr.bf16.mxu0 0
        %1076 = vmatmul.mubr.bf16.gmra.mrb[0].mxu0 %v664
        %v1077 = vpop.f32.mrb[0].mxu0
        %v1078 = vadd.f32 %v965, %v1077
        %v1079 = vpop.f32.mrb[0].mxu0
        %v1080 = vpop.f32.mrb[0].mxu0
        %v1081 = vadd.f32 %v968, %v1080
        %v1082 = vpop.f32.mrb[0].mxu0
        %1083 = vmatprep.mubr.bf16.mxu0 0
        %1084 = vmatmul.mubr.bf16.gmra.mrb[0].mxu0 %v665
        %v1085 = vpop.f32.mrb[0].mxu0
        %v1086 = vadd.f32 %v973, %v1085
        %v1087 = vpop.f32.mrb[0].mxu0
        %v1088 = vpop.f32.mrb[0].mxu0
        %v1089 = vadd.f32 %v976, %v1088
        %v1090 = vpop.f32.mrb[0].mxu0
        %1091 = vmatprep.mubr.bf16.mxu0 0
        %1092 = vmatmul.mubr.bf16.gmra.mrb[0].mxu0 %v666
        %v1093 = vpop.f32.mrb[0].mxu0
        %v1094 = vadd.f32 %v981, %v1093
        %v1095 = vpop.f32.mrb[0].mxu0
        %v1096 = vpop.f32.mrb[0].mxu0
        %v1097 = vadd.f32 %v984, %v1096
        %v1098 = vpop.f32.mrb[0].mxu0
        %1099 = vmatprep.mubr.bf16.mxu0 0
        %1100 = vmatmul.mubr.bf16.gmra.mrb[0].mxu0 %v667
        %v1101 = vpop.f32.mrb[0].mxu0
        %v1102 = vadd.f32 %v989, %v1101
        %v1103 = vpop.f32.mrb[0].mxu0
        %v1104 = vpop.f32.mrb[0].mxu0
        %v1105 = vadd.f32 %v992, %v1104
        %v1106 = vpop.f32.mrb[0].mxu0
        %1107 = vmatprep.mubr.bf16.mxu0 0
        %1108 = vmatmul.mubr.bf16.gmra.mrb[0].mxu0 %v668
        %v1109 = vpop.f32.mrb[0].mxu0
        %v1110 = vadd.f32 %v997, %v1109
        %v1111 = vpop.f32.mrb[0].mxu0
        %v1112 = vpop.f32.mrb[0].mxu0
        %v1113 = vadd.f32 %v1000, %v1112
        %v1114 = vpop.f32.mrb[0].mxu0
        %1115 = vmatprep.mubr.bf16.mxu0 0
        %1116 = vmatmul.mubr.bf16.gmra.mrb[0].mxu0 %v669
        %v1117 = vpop.f32.mrb[0].mxu0
        %v1118 = vadd.f32 %v1005, %v1117
        %v1119 = vpop.f32.mrb[0].mxu0
        %v1120 = vpop.f32.mrb[0].mxu0
        %v1121 = vadd.f32 %v1008, %v1120
        %v1122 = vpop.f32.mrb[0].mxu0
        %1123 = vmatprep.mubr.bf16.mxu0 0
        %1124 = vmatmul.mubr.bf16.gmra.mrb[0].mxu0 %v670
        %v1125 = vpop.f32.mrb[0].mxu0
        %v1126 = vadd.f32 %v1013, %v1125
        %v1127 = vpop.f32.mrb[0].mxu0
        %v1128 = vpop.f32.mrb[0].mxu0
        %v1129 = vadd.f32 %v1016, %v1128
        %v1130 = vpop.f32.mrb[0].mxu0
        %1131 = vmatprep.mubr.bf16.mxu0 0
        %1132 = vmatmul.mubr.bf16.gmra.mrb[0].mxu0 %v671
        %v1133 = vpop.f32.mrb[0].mxu0
        %v1134 = vadd.f32 %v1021, %v1133
        %v1135 = vpop.f32.mrb[0].mxu0
        %v1136 = vpop.f32.mrb[0].mxu0
        %v1137 = vadd.f32 %v1024, %v1136
        %v1138 = vpop.f32.mrb[0].mxu0
        %1139 = vdwg.mxu0
        %v1188 = vunpack.c.l.b16 %v673
        %v1189 = vunpack.c.l.b16 %v674
        %v1190 = vunpack.c.l.b16 %v675
        %v1191 = vunpack.c.l.b16 %v676
        %v1192 = vunpack.c.l.b16 %v677
        %v1193 = vunpack.c.l.b16 %v678
        %v1194 = vunpack.c.l.b16 %v679
        %v1195 = vunpack.c.l.b16 %v680
        %v1196 = vunpack.c.l.b16 %v681
        %v1197 = vunpack.c.l.b16 %v682
        %v1198 = vunpack.c.l.b16 %v683
        %v1199 = vunpack.c.l.b16 %v684
        %v1200 = vunpack.c.l.b16 %v685
        %v1201 = vunpack.c.l.b16 %v686
        %v1202 = vunpack.c.l.b16 %v687
        %v1203 = vunpack.c.l.b16 %v688
        %v1204 = vunpack.c.l.b16 %v689
        %v1205 = vunpack.c.l.b16 %v690
        %v1206 = vunpack.c.l.b16 %v691
        %v1207 = vunpack.c.l.b16 %v692
        %v1208 = vunpack.c.l.b16 %v693
        %v1209 = vunpack.c.l.b16 %v694
        %v1210 = vunpack.c.l.b16 %v695
        %v1211 = vunpack.c.l.b16 %v696
        %v1212 = vunpack.c.l.b16 %v697
        %v1213 = vunpack.c.l.b16 %v698
        %v1214 = vunpack.c.l.b16 %v699
        %v1215 = vunpack.c.l.b16 %v700
        %v1216 = vunpack.c.l.b16 %v701
        %v1217 = vunpack.c.l.b16 %v702
        %v1218 = vunpack.c.l.b16 %v703
        %v1219 = vunpack.c.l.b16 %v704
        %v1220 = vunpack.c.l.b16 %v705
        %v1221 = vunpack.c.l.b16 %v706
        %v1222 = vunpack.c.l.b16 %v707
        %v1223 = vunpack.c.l.b16 %v708
        %v1224 = vunpack.c.l.b16 %v709
        %v1225 = vunpack.c.l.b16 %v710
        %v1226 = vunpack.c.l.b16 %v711
        %v1227 = vunpack.c.l.b16 %v712
        %v1228 = vunpack.c.l.b16 %v713
        %v1229 = vunpack.c.l.b16 %v714
        %v1230 = vunpack.c.l.b16 %v715
        %v1231 = vunpack.c.l.b16 %v716
        %v1232 = vunpack.c.l.b16 %v717
        %v1233 = vunpack.c.l.b16 %v718
        %v1234 = vunpack.c.l.b16 %v719
        %v1235 = vunpack.c.l.b16 %v720
        %v1236 = vpack.c.b16 %v1189, %v1188
        %v1237 = vpack.c.b16 %v1191, %v1190
        %v1238 = vpack.c.b16 %v1193, %v1192
        %v1239 = vpack.c.b16 %v1195, %v1194
        %v1240 = vpack.c.b16 %v1197, %v1196
        %v1241 = vpack.c.b16 %v1199, %v1198
        %v1242 = vpack.c.b16 %v1201, %v1200
        %v1243 = vpack.c.b16 %v1203, %v1202
        %v1244 = vpack.c.b16 %v1205, %v1204
        %v1245 = vpack.c.b16 %v1207, %v1206
        %v1246 = vpack.c.b16 %v1209, %v1208
        %v1247 = vpack.c.b16 %v1211, %v1210
        %v1248 = vpack.c.b16 %v1213, %v1212
        %v1249 = vpack.c.b16 %v1215, %v1214
        %v1250 = vpack.c.b16 %v1217, %v1216
        %v1251 = vpack.c.b16 %v1219, %v1218
        %v1252 = vpack.c.b16 %v1221, %v1220
        %v1253 = vpack.c.b16 %v1223, %v1222
        %v1254 = vpack.c.b16 %v1225, %v1224
        %v1255 = vpack.c.b16 %v1227, %v1226
        %v1256 = vpack.c.b16 %v1229, %v1228
        %v1257 = vpack.c.b16 %v1231, %v1230
        %v1258 = vpack.c.b16 %v1233, %v1232
        %v1259 = vpack.c.b16 %v1235, %v1234
        %1284 = vmatprep.subr.bf16.mxu0 0
        %1285 = vmatpush1.bf16.msra.mxu0 %v1236
        %1286 = vmatprep.subr.bf16.mxu0 0
        %1287 = vmatpush1.bf16.msra.mxu0 %v1237
        %1288 = vmatprep.subr.bf16.mxu0 0
        %1289 = vmatpush1.bf16.msra.mxu0 %v1238
        %1290 = vmatprep.subr.bf16.mxu0 0
        %1291 = vmatpush1.bf16.msra.mxu0 %v1239
        %1292 = vmatprep.subr.bf16.mxu0 0
        %1293 = vmatpush1.bf16.msra.mxu0 %v1240
        %1294 = vmatprep.subr.bf16.mxu0 0
        %1295 = vmatpush1.bf16.msra.mxu0 %v1241
        %1296 = vmatprep.subr.bf16.mxu0 0
        %1297 = vmatpush1.bf16.msra.mxu0 %v1242
        %1298 = vmatprep.subr.bf16.mxu0 0
        %1299 = vmatpush1.bf16.msra.mxu0 %v1243
        %1300 = vmatprep.subr.bf16.mxu0 0
        %1301 = vmatpush1.bf16.msra.mxu0 %v1244
        %1302 = vmatprep.subr.bf16.mxu0 0
        %1303 = vmatpush1.bf16.msra.mxu0 %v1245
        %1304 = vmatprep.subr.bf16.mxu0 0
        %1305 = vmatpush1.bf16.msra.mxu0 %v1246
        %1306 = vmatprep.subr.bf16.mxu0 0
        %1307 = vmatpush1.bf16.msra.mxu0 %v1247
        %1308 = vmatprep.subr.bf16.mxu0 0
        %1309 = vmatpush1.bf16.msra.mxu0 %v1248
        %1310 = vmatprep.subr.bf16.mxu0 0
        %1311 = vmatpush1.bf16.msra.mxu0 %v1249
        %1312 = vmatprep.subr.bf16.mxu0 0
        %1313 = vmatpush1.bf16.msra.mxu0 %v1250
        %1314 = vmatprep.subr.bf16.mxu0 0
        %1315 = vmatpush1.bf16.msra.mxu0 %v1251
        %1316 = vmatprep.mubr.bf16.mxu0 %v395
        %1317 = vmatmul.mubr.bf16.gmra.mrb[0].mxu0 %v619
        %v1318 = vpop.f32.mrb[0].mxu0
        %v1319 = vadd.f32 %v1062, %v1318
        %v1320 = vpop.f32.mrb[0].mxu0
        %v1321 = vpop.f32.mrb[0].mxu0
        %v1322 = vadd.f32 %v1065, %v1321
        %v1323 = vpop.f32.mrb[0].mxu0
        %1324 = vmatprep.mubr.bf16.mxu0 %v396
        %1325 = vmatmul.mubr.bf16.gmra.mrb[0].mxu0 %v620
        %v1326 = vpop.f32.mrb[0].mxu0
        %v1327 = vadd.f32 %v1070, %v1326
        %v1328 = vpop.f32.mrb[0].mxu0
        %v1329 = vpop.f32.mrb[0].mxu0
        %v1330 = vadd.f32 %v1073, %v1329
        %v1331 = vpop.f32.mrb[0].mxu0
        %1332 = vmatprep.mubr.bf16.mxu0 %v448
        %1333 = vmatmul.mubr.bf16.gmra.mrb[0].mxu0 %v621
        %v1334 = vpop.f32.mrb[0].mxu0
        %v1335 = vadd.f32 %v1078, %v1334
        %v1336 = vpop.f32.mrb[0].mxu0
        %v1337 = vpop.f32.mrb[0].mxu0
        %v1338 = vadd.f32 %v1081, %v1337
        %v1339 = vpop.f32.mrb[0].mxu0
        %1340 = vmatprep.mubr.bf16.mxu0 %v449
        %1341 = vmatmul.mubr.bf16.gmra.mrb[0].mxu0 %v622
        %v1342 = vpop.f32.mrb[0].mxu0
        %v1343 = vadd.f32 %v1086, %v1342
        %v1344 = vpop.f32.mrb[0].mxu0
        %v1345 = vpop.f32.mrb[0].mxu0
        %v1346 = vadd.f32 %v1089, %v1345
        %v1347 = vpop.f32.mrb[0].mxu0
        %1348 = vmatprep.mubr.bf16.mxu0 %v450
        %1349 = vmatmul.mubr.bf16.gmra.mrb[0].mxu0 %v623
        %v1350 = vpop.f32.mrb[0].mxu0
        %v1351 = vadd.f32 %v1094, %v1350
        %v1352 = vpop.f32.mrb[0].mxu0
        %v1353 = vpop.f32.mrb[0].mxu0
        %v1354 = vadd.f32 %v1097, %v1353
        %v1355 = vpop.f32.mrb[0].mxu0
        %1356 = vmatprep.mubr.bf16.mxu0 %v451
        %1357 = vmatmul.mubr.bf16.gmra.mrb[0].mxu0 %v624
        %v1358 = vpop.f32.mrb[0].mxu0
        %v1359 = vadd.f32 %v1102, %v1358
        %v1360 = vpop.f32.mrb[0].mxu0
        %v1361 = vpop.f32.mrb[0].mxu0
        %v1362 = vadd.f32 %v1105, %v1361
        %v1363 = vpop.f32.mrb[0].mxu0
        %1364 = vmatprep.mubr.bf16.mxu0 %v452
        %1365 = vmatmul.mubr.bf16.gmra.mrb[0].mxu0 %v625
        %v1366 = vpop.f32.mrb[0].mxu0
        %v1367 = vadd.f32 %v1110, %v1366
        %v1368 = vpop.f32.mrb[0].mxu0
        %v1369 = vpop.f32.mrb[0].mxu0
        %v1370 = vadd.f32 %v1113, %v1369
        %v1371 = vpop.f32.mrb[0].mxu0
        %1372 = vmatprep.mubr.bf16.mxu0 %v453
        %1373 = vmatmul.mubr.bf16.gmra.mrb[0].mxu0 %v626
        %v1374 = vpop.f32.mrb[0].mxu0
        %v1375 = vadd.f32 %v1118, %v1374
        %v1376 = vpop.f32.mrb[0].mxu0
        %v1377 = vpop.f32.mrb[0].mxu0
        %v1378 = vadd.f32 %v1121, %v1377
        %v1379 = vpop.f32.mrb[0].mxu0
        %1380 = vmatprep.mubr.bf16.mxu0 %v454
        %1381 = vmatmul.mubr.bf16.gmra.mrb[0].mxu0 %v627
        %v1382 = vpop.f32.mrb[0].mxu0
        %v1383 = vadd.f32 %v1126, %v1382
        %v1384 = vpop.f32.mrb[0].mxu0
        %v1385 = vpop.f32.mrb[0].mxu0
        %v1386 = vadd.f32 %v1129, %v1385
        %v1387 = vpop.f32.mrb[0].mxu0
        %1388 = vmatprep.mubr.bf16.mxu0 %v455
        %1389 = vmatmul.mubr.bf16.gmra.mrb[0].mxu0 %v628
        %v1390 = vpop.f32.mrb[0].mxu0
        %v1391 = vadd.f32 %v1134, %v1390
        %v1392 = vpop.f32.mrb[0].mxu0
        %v1393 = vpop.f32.mrb[0].mxu0
        %v1394 = vadd.f32 %v1137, %v1393
        %v1395 = vpop.f32.mrb[0].mxu0
        %1396 = vdwg.mxu0
        %1397 = vmatprep.subr.bf16.mxu0 0
        %1398 = vmatpush1.bf16.msra.mxu0 %v1252
        %1399 = vmatprep.subr.bf16.mxu0 0
        %1400 = vmatpush1.bf16.msra.mxu0 %v1253
        %1401 = vmatprep.subr.bf16.mxu0 0
        %1402 = vmatpush1.bf16.msra.mxu0 %v1254
        %1403 = vmatprep.subr.bf16.mxu0 0
        %1404 = vmatpush1.bf16.msra.mxu0 %v1255
        %1405 = vmatprep.subr.bf16.mxu0 0
        %1406 = vmatpush1.bf16.msra.mxu0 %v1256
        %1407 = vmatprep.subr.bf16.mxu0 0
        %1408 = vmatpush1.bf16.msra.mxu0 %v1257
        %1409 = vmatprep.subr.bf16.mxu0 0
        %1410 = vmatpush1.bf16.msra.mxu0 %v1258
        %1411 = vmatprep.subr.bf16.mxu0 0
        %1412 = vmatpush1.bf16.msra.mxu0 %v1259
        %1413 = vmatprep.subr.bf16.mxu0 0
        %1414 = vmatpush1.bf16.msra.mxu0 0
        %1415 = vmatprep.subr.bf16.mxu0 0
        %1416 = vmatpush1.bf16.msra.mxu0 0
        %1417 = vmatprep.subr.bf16.mxu0 0
        %1418 = vmatpush1.bf16.msra.mxu0 0
        %1419 = vmatprep.subr.bf16.mxu0 0
        %1420 = vmatpush1.bf16.msra.mxu0 0
        %1421 = vmatprep.subr.bf16.mxu0 0
        %1422 = vmatpush1.bf16.msra.mxu0 0
        %1423 = vmatprep.subr.bf16.mxu0 0
        %1424 = vmatpush1.bf16.msra.mxu0 0
        %1425 = vmatprep.subr.bf16.mxu0 0
        %1426 = vmatpush1.bf16.msra.mxu0 0
        %1427 = vmatprep.subr.bf16.mxu0 0
        %1428 = vmatpush1.bf16.msra.mxu0 0
        %1429 = vmatprep.mubr.bf16.mxu0 0
        %1430 = vmatmul.mubr.bf16.gmra.mrb[0].mxu0 %v661
        %v1431 = vpop.f32.mrb[0].mxu0
        %v1432 = vadd.f32 %v1319, %v1431
        %v1433 = vpop.f32.mrb[0].mxu0
        %v1434 = vpop.f32.mrb[0].mxu0
        %v1435 = vadd.f32 %v1322, %v1434
        %v1436 = vpop.f32.mrb[0].mxu0
        %1437 = vmatprep.mubr.bf16.mxu0 0
        %1438 = vmatmul.mubr.bf16.gmra.mrb[0].mxu0 %v662
        %v1439 = vpop.f32.mrb[0].mxu0
        %v1440 = vadd.f32 %v1327, %v1439
        %v1441 = vpop.f32.mrb[0].mxu0
        %v1442 = vpop.f32.mrb[0].mxu0
        %v1443 = vadd.f32 %v1330, %v1442
        %v1444 = vpop.f32.mrb[0].mxu0
        %1445 = vmatprep.mubr.bf16.mxu0 0
        %1446 = vmatmul.mubr.bf16.gmra.mrb[0].mxu0 %v663
        %v1447 = vpop.f32.mrb[0].mxu0
        %v1448 = vadd.f32 %v1335, %v1447
        %v1449 = vpop.f32.mrb[0].mxu0
        %v1450 = vpop.f32.mrb[0].mxu0
        %v1451 = vadd.f32 %v1338, %v1450
        %v1452 = vpop.f32.mrb[0].mxu0
        %1453 = vmatprep.mubr.bf16.mxu0 0
        %1454 = vmatmul.mubr.bf16.gmra.mrb[0].mxu0 %v664
        %v1455 = vpop.f32.mrb[0].mxu0
        %v1456 = vadd.f32 %v1343, %v1455
        %v1457 = vpop.f32.mrb[0].mxu0
        %v1458 = vpop.f32.mrb[0].mxu0
        %v1459 = vadd.f32 %v1346, %v1458
        %v1460 = vpop.f32.mrb[0].mxu0
        %1461 = vmatprep.mubr.bf16.mxu0 0
        %1462 = vmatmul.mubr.bf16.gmra.mrb[0].mxu0 %v665
        %v1463 = vpop.f32.mrb[0].mxu0
        %v1464 = vadd.f32 %v1351, %v1463
        %v1465 = vpop.f32.mrb[0].mxu0
        %v1466 = vpop.f32.mrb[0].mxu0
        %v1467 = vadd.f32 %v1354, %v1466
        %v1468 = vpop.f32.mrb[0].mxu0
        %1469 = vmatprep.mubr.bf16.mxu0 0
        %1470 = vmatmul.mubr.bf16.gmra.mrb[0].mxu0 %v666
        %v1471 = vpop.f32.mrb[0].mxu0
        %v1472 = vadd.f32 %v1359, %v1471
        %v1473 = vpop.f32.mrb[0].mxu0
        %v1474 = vpop.f32.mrb[0].mxu0
        %v1475 = vadd.f32 %v1362, %v1474
        %v1476 = vpop.f32.mrb[0].mxu0
        %1477 = vmatprep.mubr.bf16.mxu0 0
        %1478 = vmatmul.mubr.bf16.gmra.mrb[0].mxu0 %v667
        %v1479 = vpop.f32.mrb[0].mxu0
        %v1480 = vadd.f32 %v1367, %v1479
        %v1481 = vpop.f32.mrb[0].mxu0
        %v1482 = vpop.f32.mrb[0].mxu0
        %v1483 = vadd.f32 %v1370, %v1482
        %v1484 = vpop.f32.mrb[0].mxu0
        %1485 = vmatprep.mubr.bf16.mxu0 0
        %1486 = vmatmul.mubr.bf16.gmra.mrb[0].mxu0 %v668
        %v1487 = vpop.f32.mrb[0].mxu0
        %v1488 = vadd.f32 %v1375, %v1487
        %v1489 = vpop.f32.mrb[0].mxu0
        %v1490 = vpop.f32.mrb[0].mxu0
        %v1491 = vadd.f32 %v1378, %v1490
        %v1492 = vpop.f32.mrb[0].mxu0
        %1493 = vmatprep.mubr.bf16.mxu0 0
        %1494 = vmatmul.mubr.bf16.gmra.mrb[0].mxu0 %v669
        %v1495 = vpop.f32.mrb[0].mxu0
        %v1496 = vadd.f32 %v1383, %v1495
        %v1497 = vpop.f32.mrb[0].mxu0
        %v1498 = vpop.f32.mrb[0].mxu0
        %v1499 = vadd.f32 %v1386, %v1498
        %v1500 = vpop.f32.mrb[0].mxu0
        %1501 = vmatprep.mubr.bf16.mxu0 0
        %1502 = vmatmul.mubr.bf16.gmra.mrb[0].mxu0 %v670
        %v1503 = vpop.f32.mrb[0].mxu0
        %v1504 = vadd.f32 %v1391, %v1503
        %v1505 = vpop.f32.mrb[0].mxu0
        %v1506 = vpop.f32.mrb[0].mxu0
        %v1507 = vadd.f32 %v1394, %v1506
        %v1508 = vpop.f32.mrb[0].mxu0
        %1509 = vdwg.mxu0
        %s1510 = scalar_lea.vmem [#allocation7], 384
        %v1511 = vld [vmem:[%s1510] sm:$0xf]
        %v1512 = vld [vmem:[%s1510 + $0x4] sm:$0xf]
        %v1513 = vld [vmem:[%s1510 + $0x8] sm:$0xf]
        %v1514 = vld [vmem:[%s1510 + $0xc] sm:$0xf]
        %v1515 = vld [vmem:[%s1510 + $0x10] sm:$0xf]
        %v1516 = vld [vmem:[%s1510 + $0x14] sm:$0xf]
        %v1517 = vld [vmem:[%s1510 + $0x18] sm:$0xf]
        %v1518 = vld [vmem:[%s1510 + $0x1c] sm:$0xf]
        %v1519 = vld [vmem:[%s1510 + $0x20] sm:$0xf]
        %v1520 = vld [vmem:[%s1510 + $0x24] sm:$0xf]
        %v1521 = vld [vmem:[%s1510 + $0x28] sm:$0xf]
        %v1522 = vld [vmem:[%s1510 + $0x2c] sm:$0xf]
        %v1523 = vld [vmem:[%s1510 + $0x30] sm:$0xf]
        %v1524 = vld [vmem:[%s1510 + $0x34] sm:$0xf]
        %v1525 = vld [vmem:[%s1510 + $0x38] sm:$0xf]
        %v1526 = vld [vmem:[%s1510 + $0x3c] sm:$0xf]
        %v1527 = vld [vmem:[%s1510 + $0x40] sm:$0xf]
        %v1528 = vld [vmem:[%s1510 + $0x44] sm:$0xf]
        %v1529 = vld [vmem:[%s1510 + $0x48] sm:$0xf]
        %v1530 = vld [vmem:[%s1510 + $0x4c] sm:$0xf]
        %v1531 = vld [vmem:[%s1510 + $0x50] sm:$0xf]
        %v1532 = vld [vmem:[%s1510 + $0x54] sm:$0xf]
        %v1533 = vld [vmem:[%s1510 + $0x58] sm:$0xf]
        %v1534 = vld [vmem:[%s1510 + $0x5c] sm:$0xf]
        %v1535 = vld [vmem:[%s1510 + $0x60] sm:$0xf]
        %v1536 = vld [vmem:[%s1510 + $0x64] sm:$0xf]
        %v1537 = vld [vmem:[%s1510 + $0x68] sm:$0xf]
        %v1538 = vld [vmem:[%s1510 + $0x6c] sm:$0xf]
        %v1539 = vld [vmem:[%s1510 + $0x70] sm:$0xf]
        %v1540 = vld [vmem:[%s1510 + $0x74] sm:$0xf]
        %v1541 = vld [vmem:[%s1510 + $0x78] sm:$0xf]
        %v1542 = vld [vmem:[%s1510 + $0x7c] sm:$0xf]
        %v1543 = vld [vmem:[%s1510 + $0x80] sm:$0xf]
        %v1544 = vld [vmem:[%s1510 + $0x84] sm:$0xf]
        %v1545 = vld [vmem:[%s1510 + $0x88] sm:$0xf]
        %v1546 = vld [vmem:[%s1510 + $0x8c] sm:$0xf]
        %v1547 = vld [vmem:[%s1510 + $0x90] sm:$0xf]
        %v1548 = vld [vmem:[%s1510 + $0x94] sm:$0xf]
        %v1549 = vld [vmem:[%s1510 + $0x98] sm:$0xf]
        %v1550 = vld [vmem:[%s1510 + $0x9c] sm:$0xf]
        %v1551 = vld [vmem:[%s1510 + $0xa0] sm:$0xf]
        %v1552 = vld [vmem:[%s1510 + $0xa4] sm:$0xf]
        %v1553 = vld [vmem:[%s1510 + $0xa8] sm:$0xf]
        %v1554 = vld [vmem:[%s1510 + $0xac] sm:$0xf]
        %v1555 = vld [vmem:[%s1510 + $0xb0] sm:$0xf]
        %v1556 = vld [vmem:[%s1510 + $0xb4] sm:$0xf]
        %v1557 = vld [vmem:[%s1510 + $0xb8] sm:$0xf]
        %v1558 = vld [vmem:[%s1510 + $0xbc] sm:$0xf]
        %v1607 = vunpack.c.l.b16 %v1511
        %v1608 = vunpack.c.l.b16 %v1512
        %v1609 = vunpack.c.l.b16 %v1513
        %v1610 = vunpack.c.l.b16 %v1514
        %v1611 = vunpack.c.l.b16 %v1515
        %v1612 = vunpack.c.l.b16 %v1516
        %v1613 = vunpack.c.l.b16 %v1517
        %v1614 = vunpack.c.l.b16 %v1518
        %v1615 = vunpack.c.l.b16 %v1519
        %v1616 = vunpack.c.l.b16 %v1520
        %v1617 = vunpack.c.l.b16 %v1521
        %v1618 = vunpack.c.l.b16 %v1522
        %v1619 = vunpack.c.l.b16 %v1523
        %v1620 = vunpack.c.l.b16 %v1524
        %v1621 = vunpack.c.l.b16 %v1525
        %v1622 = vunpack.c.l.b16 %v1526
        %v1623 = vunpack.c.l.b16 %v1527
        %v1624 = vunpack.c.l.b16 %v1528
        %v1625 = vunpack.c.l.b16 %v1529
        %v1626 = vunpack.c.l.b16 %v1530
        %v1627 = vunpack.c.l.b16 %v1531
        %v1628 = vunpack.c.l.b16 %v1532
        %v1629 = vunpack.c.l.b16 %v1533
        %v1630 = vunpack.c.l.b16 %v1534
        %v1631 = vunpack.c.l.b16 %v1535
        %v1632 = vunpack.c.l.b16 %v1536
        %v1633 = vunpack.c.l.b16 %v1537
        %v1634 = vunpack.c.l.b16 %v1538
        %v1635 = vunpack.c.l.b16 %v1539
        %v1636 = vunpack.c.l.b16 %v1540
        %v1637 = vunpack.c.l.b16 %v1541
        %v1638 = vunpack.c.l.b16 %v1542
        %v1639 = vunpack.c.l.b16 %v1543
        %v1640 = vunpack.c.l.b16 %v1544
        %v1641 = vunpack.c.l.b16 %v1545
        %v1642 = vunpack.c.l.b16 %v1546
        %v1643 = vunpack.c.l.b16 %v1547
        %v1644 = vunpack.c.l.b16 %v1548
        %v1645 = vunpack.c.l.b16 %v1549
        %v1646 = vunpack.c.l.b16 %v1550
        %v1647 = vunpack.c.l.b16 %v1551
        %v1648 = vunpack.c.l.b16 %v1552
        %v1649 = vunpack.c.l.b16 %v1553
        %v1650 = vunpack.c.l.b16 %v1554
        %v1651 = vunpack.c.l.b16 %v1555
        %v1652 = vunpack.c.l.b16 %v1556
        %v1653 = vunpack.c.l.b16 %v1557
        %v1654 = vunpack.c.l.b16 %v1558
        %v1655 = vpack.c.b16 %v1608, %v1607
        %v1656 = vpack.c.b16 %v1610, %v1609
        %v1657 = vpack.c.b16 %v1612, %v1611
        %v1658 = vpack.c.b16 %v1614, %v1613
        %v1659 = vpack.c.b16 %v1616, %v1615
        %v1660 = vpack.c.b16 %v1618, %v1617
        %v1661 = vpack.c.b16 %v1620, %v1619
        %v1662 = vpack.c.b16 %v1622, %v1621
        %v1663 = vpack.c.b16 %v1624, %v1623
        %v1664 = vpack.c.b16 %v1626, %v1625
        %v1665 = vpack.c.b16 %v1628, %v1627
        %v1666 = vpack.c.b16 %v1630, %v1629
        %v1667 = vpack.c.b16 %v1632, %v1631
        %v1668 = vpack.c.b16 %v1634, %v1633
        %v1669 = vpack.c.b16 %v1636, %v1635
        %v1670 = vpack.c.b16 %v1638, %v1637
        %v1671 = vpack.c.b16 %v1640, %v1639
        %v1672 = vpack.c.b16 %v1642, %v1641
        %v1673 = vpack.c.b16 %v1644, %v1643
        %v1674 = vpack.c.b16 %v1646, %v1645
        %v1675 = vpack.c.b16 %v1648, %v1647
        %v1676 = vpack.c.b16 %v1650, %v1649
        %v1677 = vpack.c.b16 %v1652, %v1651
        %v1678 = vpack.c.b16 %v1654, %v1653
        %1703 = vmatprep.subr.bf16.mxu0 0
        %1704 = vmatpush1.bf16.msra.mxu0 %v1655
        %1705 = vmatprep.subr.bf16.mxu0 0
        %1706 = vmatpush1.bf16.msra.mxu0 %v1656
        %1707 = vmatprep.subr.bf16.mxu0 0
        %1708 = vmatpush1.bf16.msra.mxu0 %v1657
        %1709 = vmatprep.subr.bf16.mxu0 0
        %1710 = vmatpush1.bf16.msra.mxu0 %v1658
        %1711 = vmatprep.subr.bf16.mxu0 0
        %1712 = vmatpush1.bf16.msra.mxu0 %v1659
        %1713 = vmatprep.subr.bf16.mxu0 0
        %1714 = vmatpush1.bf16.msra.mxu0 %v1660
        %1715 = vmatprep.subr.bf16.mxu0 0
        %1716 = vmatpush1.bf16.msra.mxu0 %v1661
        %1717 = vmatprep.subr.bf16.mxu0 0
        %1718 = vmatpush1.bf16.msra.mxu0 %v1662
        %1719 = vmatprep.subr.bf16.mxu0 0
        %1720 = vmatpush1.bf16.msra.mxu0 %v1663
        %1721 = vmatprep.subr.bf16.mxu0 0
        %1722 = vmatpush1.bf16.msra.mxu0 %v1664
        %1723 = vmatprep.subr.bf16.mxu0 0
        %1724 = vmatpush1.bf16.msra.mxu0 %v1665
        %1725 = vmatprep.subr.bf16.mxu0 0
        %1726 = vmatpush1.bf16.msra.mxu0 %v1666
        %1727 = vmatprep.subr.bf16.mxu0 0
        %1728 = vmatpush1.bf16.msra.mxu0 %v1667
        %1729 = vmatprep.subr.bf16.mxu0 0
        %1730 = vmatpush1.bf16.msra.mxu0 %v1668
        %1731 = vmatprep.subr.bf16.mxu0 0
        %1732 = vmatpush1.bf16.msra.mxu0 %v1669
        %1733 = vmatprep.subr.bf16.mxu0 0
        %1734 = vmatpush1.bf16.msra.mxu0 %v1670
        %1735 = vmatprep.mubr.bf16.mxu0 %v448
        %1736 = vmatmul.mubr.bf16.gmra.mrb[0].mxu0 %v621
        %v1737 = vpop.f32.mrb[0].mxu0
        %v1738 = vadd.f32 0.0, %v1737
        %v1739 = vpop.f32.mrb[0].mxu0
        %v1740 = vpop.f32.mrb[0].mxu0
        %v1741 = vadd.f32 0.0, %v1740
        %v1742 = vpop.f32.mrb[0].mxu0
        %1743 = vmatprep.mubr.bf16.mxu0 %v449
        %1744 = vmatmul.mubr.bf16.gmra.mrb[0].mxu0 %v622
        %v1745 = vpop.f32.mrb[0].mxu0
        %v1746 = vadd.f32 0.0, %v1745
        %v1747 = vpop.f32.mrb[0].mxu0
        %v1748 = vpop.f32.mrb[0].mxu0
        %v1749 = vadd.f32 0.0, %v1748
        %v1750 = vpop.f32.mrb[0].mxu0
        %1751 = vmatprep.mubr.bf16.mxu0 %v450
        %1752 = vmatmul.mubr.bf16.gmra.mrb[0].mxu0 %v623
        %v1753 = vpop.f32.mrb[0].mxu0
        %v1754 = vadd.f32 0.0, %v1753
        %v1755 = vpop.f32.mrb[0].mxu0
        %v1756 = vpop.f32.mrb[0].mxu0
        %v1757 = vadd.f32 0.0, %v1756
        %v1758 = vpop.f32.mrb[0].mxu0
        %1759 = vmatprep.mubr.bf16.mxu0 %v451
        %1760 = vmatmul.mubr.bf16.gmra.mrb[0].mxu0 %v624
        %v1761 = vpop.f32.mrb[0].mxu0
        %v1762 = vadd.f32 0.0, %v1761
        %v1763 = vpop.f32.mrb[0].mxu0
        %v1764 = vpop.f32.mrb[0].mxu0
        %v1765 = vadd.f32 0.0, %v1764
        %v1766 = vpop.f32.mrb[0].mxu0
        %1767 = vmatprep.mubr.bf16.mxu0 %v452
        %1768 = vmatmul.mubr.bf16.gmra.mrb[0].mxu0 %v625
        %v1769 = vpop.f32.mrb[0].mxu0
        %v1770 = vadd.f32 0.0, %v1769
        %v1771 = vpop.f32.mrb[0].mxu0
        %v1772 = vpop.f32.mrb[0].mxu0
        %v1773 = vadd.f32 0.0, %v1772
        %v1774 = vpop.f32.mrb[0].mxu0
        %1775 = vmatprep.mubr.bf16.mxu0 %v453
        %1776 = vmatmul.mubr.bf16.gmra.mrb[0].mxu0 %v626
        %v1777 = vpop.f32.mrb[0].mxu0
        %v1778 = vadd.f32 0.0, %v1777
        %v1779 = vpop.f32.mrb[0].mxu0
        %v1780 = vpop.f32.mrb[0].mxu0
        %v1781 = vadd.f32 0.0, %v1780
        %v1782 = vpop.f32.mrb[0].mxu0
        %1783 = vmatprep.mubr.bf16.mxu0 %v454
        %1784 = vmatmul.mubr.bf16.gmra.mrb[0].mxu0 %v627
        %v1785 = vpop.f32.mrb[0].mxu0
        %v1786 = vadd.f32 0.0, %v1785
        %v1787 = vpop.f32.mrb[0].mxu0
        %v1788 = vpop.f32.mrb[0].mxu0
        %v1789 = vadd.f32 0.0, %v1788
        %v1790 = vpop.f32.mrb[0].mxu0
        %1791 = vmatprep.mubr.bf16.mxu0 %v455
        %1792 = vmatmul.mubr.bf16.gmra.mrb[0].mxu0 %v628
        %v1793 = vpop.f32.mrb[0].mxu0
        %v1794 = vadd.f32 0.0, %v1793
        %v1795 = vpop.f32.mrb[0].mxu0
        %v1796 = vpop.f32.mrb[0].mxu0
        %v1797 = vadd.f32 0.0, %v1796
        %v1798 = vpop.f32.mrb[0].mxu0
        %1799 = vmatprep.mubr.bf16.mxu0 %v414
        %1800 = vmatmul.mubr.bf16.gmra.mrb[0].mxu0 %v629
        %v1801 = vpop.f32.mrb[0].mxu0
        %v1802 = vadd.f32 0.0, %v1801
        %v1803 = vpop.f32.mrb[0].mxu0
        %v1804 = vpop.f32.mrb[0].mxu0
        %v1805 = vadd.f32 0.0, %v1804
        %v1806 = vpop.f32.mrb[0].mxu0
        %1807 = vmatprep.mubr.bf16.mxu0 %v415
        %1808 = vmatmul.mubr.bf16.gmra.mrb[0].mxu0 %v630
        %v1809 = vpop.f32.mrb[0].mxu0
        %v1810 = vadd.f32 0.0, %v1809
        %v1811 = vpop.f32.mrb[0].mxu0
        %v1812 = vpop.f32.mrb[0].mxu0
        %v1813 = vadd.f32 0.0, %v1812
        %v1814 = vpop.f32.mrb[0].mxu0
        %1815 = vdwg.mxu0
        %1816 = vmatprep.subr.bf16.mxu0 0
        %1817 = vmatpush1.bf16.msra.mxu0 %v1671
        %1818 = vmatprep.subr.bf16.mxu0 0
        %1819 = vmatpush1.bf16.msra.mxu0 %v1672
        %1820 = vmatprep.subr.bf16.mxu0 0
        %1821 = vmatpush1.bf16.msra.mxu0 %v1673
        %1822 = vmatprep.subr.bf16.mxu0 0
        %1823 = vmatpush1.bf16.msra.mxu0 %v1674
        %1824 = vmatprep.subr.bf16.mxu0 0
        %1825 = vmatpush1.bf16.msra.mxu0 %v1675
        %1826 = vmatprep.subr.bf16.mxu0 0
        %1827 = vmatpush1.bf16.msra.mxu0 %v1676
        %1828 = vmatprep.subr.bf16.mxu0 0
        %1829 = vmatpush1.bf16.msra.mxu0 %v1677
        %1830 = vmatprep.subr.bf16.mxu0 0
        %1831 = vmatpush1.bf16.msra.mxu0 %v1678
        %1832 = vmatprep.subr.bf16.mxu0 0
        %1833 = vmatpush1.bf16.msra.mxu0 0
        %1834 = vmatprep.subr.bf16.mxu0 0
        %1835 = vmatpush1.bf16.msra.mxu0 0
        %1836 = vmatprep.subr.bf16.mxu0 0
        %1837 = vmatpush1.bf16.msra.mxu0 0
        %1838 = vmatprep.subr.bf16.mxu0 0
        %1839 = vmatpush1.bf16.msra.mxu0 0
        %1840 = vmatprep.subr.bf16.mxu0 0
        %1841 = vmatpush1.bf16.msra.mxu0 0
        %1842 = vmatprep.subr.bf16.mxu0 0
        %1843 = vmatpush1.bf16.msra.mxu0 0
        %1844 = vmatprep.subr.bf16.mxu0 0
        %1845 = vmatpush1.bf16.msra.mxu0 0
        %1846 = vmatprep.subr.bf16.mxu0 0
        %1847 = vmatpush1.bf16.msra.mxu0 0
        %1848 = vmatprep.mubr.bf16.mxu0 0
        %1849 = vmatmul.mubr.bf16.gmra.mrb[0].mxu0 %v663
        %v1850 = vpop.f32.mrb[0].mxu0
        %v1851 = vadd.f32 %v1738, %v1850
        %v1852 = vpop.f32.mrb[0].mxu0
        %v1853 = vpop.f32.mrb[0].mxu0
        %v1854 = vadd.f32 %v1741, %v1853
        %v1855 = vpop.f32.mrb[0].mxu0
        %1856 = vmatprep.mubr.bf16.mxu0 0
        %1857 = vmatmul.mubr.bf16.gmra.mrb[0].mxu0 %v664
        %v1858 = vpop.f32.mrb[0].mxu0
        %v1859 = vadd.f32 %v1746, %v1858
        %v1860 = vpop.f32.mrb[0].mxu0
        %v1861 = vpop.f32.mrb[0].mxu0
        %v1862 = vadd.f32 %v1749, %v1861
        %v1863 = vpop.f32.mrb[0].mxu0
        %1864 = vmatprep.mubr.bf16.mxu0 0
        %1865 = vmatmul.mubr.bf16.gmra.mrb[0].mxu0 %v665
        %v1866 = vpop.f32.mrb[0].mxu0
        %v1867 = vadd.f32 %v1754, %v1866
        %v1868 = vpop.f32.mrb[0].mxu0
        %v1869 = vpop.f32.mrb[0].mxu0
        %v1870 = vadd.f32 %v1757, %v1869
        %v1871 = vpop.f32.mrb[0].mxu0
        %1872 = vmatprep.mubr.bf16.mxu0 0
        %1873 = vmatmul.mubr.bf16.gmra.mrb[0].mxu0 %v666
        %v1874 = vpop.f32.mrb[0].mxu0
        %v1875 = vadd.f32 %v1762, %v1874
        %v1876 = vpop.f32.mrb[0].mxu0
        %v1877 = vpop.f32.mrb[0].mxu0
        %v1878 = vadd.f32 %v1765, %v1877
        %v1879 = vpop.f32.mrb[0].mxu0
        %1880 = vmatprep.mubr.bf16.mxu0 0
        %1881 = vmatmul.mubr.bf16.gmra.mrb[0].mxu0 %v667
        %v1882 = vpop.f32.mrb[0].mxu0
        %v1883 = vadd.f32 %v1770, %v1882
        %v1884 = vpop.f32.mrb[0].mxu0
        %v1885 = vpop.f32.mrb[0].mxu0
        %v1886 = vadd.f32 %v1773, %v1885
        %v1887 = vpop.f32.mrb[0].mxu0
        %1888 = vmatprep.mubr.bf16.mxu0 0
        %1889 = vmatmul.mubr.bf16.gmra.mrb[0].mxu0 %v668
        %v1890 = vpop.f32.mrb[0].mxu0
        %v1891 = vadd.f32 %v1778, %v1890
        %v1892 = vpop.f32.mrb[0].mxu0
        %v1893 = vpop.f32.mrb[0].mxu0
        %v1894 = vadd.f32 %v1781, %v1893
        %v1895 = vpop.f32.mrb[0].mxu0
        %1896 = vmatprep.mubr.bf16.mxu0 0
        %1897 = vmatmul.mubr.bf16.gmra.mrb[0].mxu0 %v669
        %v1898 = vpop.f32.mrb[0].mxu0
        %v1899 = vadd.f32 %v1786, %v1898
        %v1900 = vpop.f32.mrb[0].mxu0
        %v1901 = vpop.f32.mrb[0].mxu0
        %v1902 = vadd.f32 %v1789, %v1901
        %v1903 = vpop.f32.mrb[0].mxu0
        %1904 = vmatprep.mubr.bf16.mxu0 0
        %1905 = vmatmul.mubr.bf16.gmra.mrb[0].mxu0 %v670
        %v1906 = vpop.f32.mrb[0].mxu0
        %v1907 = vadd.f32 %v1794, %v1906
        %v1908 = vpop.f32.mrb[0].mxu0
        %v1909 = vpop.f32.mrb[0].mxu0
        %v1910 = vadd.f32 %v1797, %v1909
        %v1911 = vpop.f32.mrb[0].mxu0
        %1912 = vmatprep.mubr.bf16.mxu0 0
        %1913 = vmatmul.mubr.bf16.gmra.mrb[0].mxu0 %v671
        %v1914 = vpop.f32.mrb[0].mxu0
        %v1915 = vadd.f32 %v1802, %v1914
        %v1916 = vpop.f32.mrb[0].mxu0
        %v1917 = vpop.f32.mrb[0].mxu0
        %v1918 = vadd.f32 %v1805, %v1917
        %v1919 = vpop.f32.mrb[0].mxu0
        %1920 = vmatprep.mubr.bf16.mxu0 0
        %1921 = vmatmul.mubr.bf16.gmra.mrb[0].mxu0 %v672
        %v1922 = vpop.f32.mrb[0].mxu0
        %v1923 = vadd.f32 %v1810, %v1922
        %v1924 = vpop.f32.mrb[0].mxu0
        %v1925 = vpop.f32.mrb[0].mxu0
        %v1926 = vadd.f32 %v1813, %v1925
        %v1927 = vpop.f32.mrb[0].mxu0
        %1928 = vdwg.mxu0
        %v1929 = vadd.f32 %v1432, %v1851
        %v1930 = vadd.f32 %v1435, %v1854
        %v1931 = vadd.f32 %v1440, %v1859
        %v1932 = vadd.f32 %v1443, %v1862
        %v1933 = vadd.f32 %v1448, %v1867
        %v1934 = vadd.f32 %v1451, %v1870
        %v1935 = vadd.f32 %v1456, %v1875
        %v1936 = vadd.f32 %v1459, %v1878
        %v1937 = vadd.f32 %v1464, %v1883
        %v1938 = vadd.f32 %v1467, %v1886
        %v1939 = vadd.f32 %v1472, %v1891
        %v1940 = vadd.f32 %v1475, %v1894
        %v1941 = vadd.f32 %v1480, %v1899
        %v1942 = vadd.f32 %v1483, %v1902
        %v1943 = vadd.f32 %v1488, %v1907
        %v1944 = vadd.f32 %v1491, %v1910
        %v1945 = vadd.f32 %v1496, %v1915
        %v1946 = vadd.f32 %v1499, %v1918
        %v1947 = vadd.f32 %v1504, %v1923
        %v1948 = vadd.f32 %v1507, %v1926
        %v1949 = vld [vmem:[#allocation9] sm:$0x1]
        %v1951 = vlaneseq
        %v1952 = vshrl.u32 %v1951, 7
        %v1953 = vsub.s32 0, %v1952
        %v1954 = vrot.slane %v1949, %v1953
        %v1956 = vadd.f32 %v1929, %v1954
        %v1957 = vadd.f32 %v1930, %v1954
        %v1958 = vadd.f32 %v1931, %v1954
        %v1959 = vadd.f32 %v1932, %v1954
        %v1960 = vadd.f32 %v1933, %v1954
        %v1961 = vadd.f32 %v1934, %v1954
        %v1962 = vadd.f32 %v1935, %v1954
        %v1963 = vadd.f32 %v1936, %v1954
        %v1964 = vadd.f32 %v1937, %v1954
        %v1965 = vadd.f32 %v1938, %v1954
        %v1966 = vadd.f32 %v1939, %v1954
        %v1967 = vadd.f32 %v1940, %v1954
        %v1968 = vadd.f32 %v1941, %v1954
        %v1969 = vadd.f32 %v1942, %v1954
        %v1970 = vadd.f32 %v1943, %v1954
        %v1971 = vadd.f32 %v1944, %v1954
        %v1972 = vadd.f32 %v1945, %v1954
        %v1973 = vadd.f32 %v1946, %v1954
        %v1974 = vadd.f32 %v1947, %v1954
        %v1975 = vadd.f32 %v1948, %v1954
        %v1976 = vmax.f32 %v1956, 0.0
        %v1977 = vmax.f32 %v1957, 0.0
        %v1978 = vmax.f32 %v1958, 0.0
        %v1979 = vmax.f32 %v1959, 0.0
        %v1980 = vmax.f32 %v1960, 0.0
        %v1981 = vmax.f32 %v1961, 0.0
        %v1982 = vmax.f32 %v1962, 0.0
        %v1983 = vmax.f32 %v1963, 0.0
        %v1984 = vmax.f32 %v1964, 0.0
        %v1985 = vmax.f32 %v1965, 0.0
        %v1986 = vmax.f32 %v1966, 0.0
        %v1987 = vmax.f32 %v1967, 0.0
        %v1988 = vmax.f32 %v1968, 0.0
        %v1989 = vmax.f32 %v1969, 0.0
        %v1990 = vmax.f32 %v1970, 0.0
        %v1991 = vmax.f32 %v1971, 0.0
        %v1992 = vmax.f32 %v1972, 0.0
        %v1993 = vmax.f32 %v1973, 0.0
        %v1994 = vmax.f32 %v1974, 0.0
        %v1995 = vmax.f32 %v1975, 0.0
        %s1996 = scalar_select %p342, 1, 0
        %v1997 = vstv %s1996
        %vm1998 = vcmp.eq.s32.totalorder %v1997, 1
        %s1999 = scalar_select %p371, 1, 0
        %v2000 = vstv %s1999
        %vm2001 = vcmp.eq.s32.totalorder %v2000, 1
        %v2002 = vsel %vm1998, 1, 0
        %v2003 = vsel %vm2001, 1, 0
        %vm2004 = vcmp.eq.s32.totalorder %v2002, 1
        %vm2005 = vcmp.eq.s32.totalorder %v2003, 1
        %v2006 = vsel %vm2004, 0.0, %v1976
        %v2007 = vsel %vm2004, 0.0, %v1977
        %v2008 = vsel 0, 0.0, %v1978
        %v2009 = vsel 0, 0.0, %v1979
        %v2010 = vsel 0, 0.0, %v1980
        %v2011 = vsel 0, 0.0, %v1981
        %v2012 = vsel 0, 0.0, %v1982
        %v2013 = vsel 0, 0.0, %v1983
        %v2014 = vsel 0, 0.0, %v1984
        %v2015 = vsel 0, 0.0, %v1985
        %v2016 = vsel 0, 0.0, %v1986
        %v2017 = vsel 0, 0.0, %v1987
        %v2018 = vsel 0, 0.0, %v1988
        %v2019 = vsel 0, 0.0, %v1989
        %v2020 = vsel 0, 0.0, %v1990
        %v2021 = vsel 0, 0.0, %v1991
        %v2022 = vsel 0, 0.0, %v1992
        %v2023 = vsel 0, 0.0, %v1993
        %v2024 = vsel %vm2005, 0.0, %v1994
        %v2025 = vsel %vm2005, 0.0, %v1995
        %v2026 = vpack.c.bf16 %v2007, %v2006
        %v2027 = vpack.c.bf16 %v2009, %v2008
        %v2028 = vpack.c.bf16 %v2011, %v2010
        %v2029 = vpack.c.bf16 %v2013, %v2012
        %v2030 = vpack.c.bf16 %v2015, %v2014
        %v2031 = vpack.c.bf16 %v2017, %v2016
        %v2032 = vpack.c.bf16 %v2019, %v2018
        %v2033 = vpack.c.bf16 %v2021, %v2020
        %v2034 = vpack.c.bf16 %v2023, %v2022
        %v2035 = vpack.c.bf16 %v2025, %v2024
        %v2036 = vunpack.c.l.bf16 %v2026
        %v2037 = vunpack.c.h.bf16 %v2026
        %v2038 = vunpack.c.l.bf16 %v2027
        %v2039 = vunpack.c.h.bf16 %v2027
        %v2040 = vunpack.c.l.bf16 %v2028
        %v2041 = vunpack.c.h.bf16 %v2028
        %v2042 = vunpack.c.l.bf16 %v2029
        %v2043 = vunpack.c.h.bf16 %v2029
        %v2044 = vunpack.c.l.bf16 %v2030
        %v2045 = vunpack.c.h.bf16 %v2030
        %v2046 = vunpack.c.l.bf16 %v2031
        %v2047 = vunpack.c.h.bf16 %v2031
        %v2048 = vunpack.c.l.bf16 %v2032
        %v2049 = vunpack.c.h.bf16 %v2032
        %v2050 = vunpack.c.l.bf16 %v2033
        %v2051 = vunpack.c.h.bf16 %v2033
        %v2052 = vunpack.c.l.bf16 %v2034
        %v2053 = vunpack.c.h.bf16 %v2034
        %v2054 = vunpack.c.l.bf16 %v2035
        %v2055 = vunpack.c.h.bf16 %v2035
        %v2056 = vrot.slane %v2036, 7
        %v2057 = vrot.slane %v2037, 7
        %v2058 = vrot.slane %v2038, 7
        %v2059 = vrot.slane %v2039, 7
        %v2060 = vrot.slane %v2040, 7
        %v2061 = vrot.slane %v2041, 7
        %v2062 = vrot.slane %v2042, 7
        %v2063 = vrot.slane %v2043, 7
        %v2064 = vrot.slane %v2044, 7
        %v2065 = vrot.slane %v2045, 7
        %v2066 = vrot.slane %v2046, 7
        %v2067 = vrot.slane %v2047, 7
        %v2068 = vrot.slane %v2048, 7
        %v2069 = vrot.slane %v2049, 7
        %v2070 = vrot.slane %v2050, 7
        %v2071 = vrot.slane %v2051, 7
        %v2072 = vrot.slane %v2052, 7
        %v2073 = vrot.slane %v2053, 7
        %v2074 = vrot.slane %v2054, 7
        %v2075 = vrot.slane %v2055, 7
        %v2076 = vsel %vm514, %v2074, %v2075
        %v2077 = vsel %vm514, %v2073, %v2074
        %v2078 = vsel %vm514, %v2072, %v2073
        %v2079 = vsel %vm514, %v2071, %v2072
        %v2080 = vsel %vm514, %v2070, %v2071
        %v2081 = vsel %vm514, %v2069, %v2070
        %v2082 = vsel %vm514, %v2068, %v2069
        %v2083 = vsel %vm514, %v2067, %v2068
        %v2084 = vsel %vm514, %v2066, %v2067
        %v2085 = vsel %vm514, %v2065, %v2066
        %v2086 = vsel %vm514, %v2064, %v2065
        %v2087 = vsel %vm514, %v2063, %v2064
        %v2088 = vsel %vm514, %v2062, %v2063
        %v2089 = vsel %vm514, %v2061, %v2062
        %v2090 = vsel %vm514, %v2060, %v2061
        %v2091 = vsel %vm514, %v2059, %v2060
        %v2092 = vsel %vm514, %v2058, %v2059
        %v2093 = vsel %vm514, %v2057, %v2058
        %v2094 = vsel %vm514, %v2056, %v2057
        %v2095 = vsel %vm514, %v2075, %v2056
        %v2096 = vrot.slane %v2036, 1
        %v2097 = vrot.slane %v2037, 1
        %v2098 = vrot.slane %v2038, 1
        %v2099 = vrot.slane %v2039, 1
        %v2100 = vrot.slane %v2040, 1
        %v2101 = vrot.slane %v2041, 1
        %v2102 = vrot.slane %v2042, 1
        %v2103 = vrot.slane %v2043, 1
        %v2104 = vrot.slane %v2044, 1
        %v2105 = vrot.slane %v2045, 1
        %v2106 = vrot.slane %v2046, 1
        %v2107 = vrot.slane %v2047, 1
        %v2108 = vrot.slane %v2048, 1
        %v2109 = vrot.slane %v2049, 1
        %v2110 = vrot.slane %v2050, 1
        %v2111 = vrot.slane %v2051, 1
        %v2112 = vrot.slane %v2052, 1
        %v2113 = vrot.slane %v2053, 1
        %v2114 = vrot.slane %v2054, 1
        %v2115 = vrot.slane %v2055, 1
        %v2116 = vsel %vm563, %v2114, %v2115
        %v2117 = vsel %vm563, %v2113, %v2114
        %v2118 = vsel %vm563, %v2112, %v2113
        %v2119 = vsel %vm563, %v2111, %v2112
        %v2120 = vsel %vm563, %v2110, %v2111
        %v2121 = vsel %vm563, %v2109, %v2110
        %v2122 = vsel %vm563, %v2108, %v2109
        %v2123 = vsel %vm563, %v2107, %v2108
        %v2124 = vsel %vm563, %v2106, %v2107
        %v2125 = vsel %vm563, %v2105, %v2106
        %v2126 = vsel %vm563, %v2104, %v2105
        %v2127 = vsel %vm563, %v2103, %v2104
        %v2128 = vsel %vm563, %v2102, %v2103
        %v2129 = vsel %vm563, %v2101, %v2102
        %v2130 = vsel %vm563, %v2100, %v2101
        %v2131 = vsel %vm563, %v2099, %v2100
        %v2132 = vsel %vm563, %v2098, %v2099
        %v2133 = vsel %vm563, %v2097, %v2098
        %v2134 = vsel %vm563, %v2096, %v2097
        %v2135 = vsel %vm563, %v2115, %v2096
        %v2136 = vsel %vm593, 0.0, %v2095
        %v2137 = vsel %vm594, 0.0, %v2094
        %v2138 = vsel %vm593, 0.0, %v2093
        %v2139 = vsel %vm594, 0.0, %v2092
        %v2140 = vsel %vm593, 0.0, %v2091
        %v2141 = vsel %vm594, 0.0, %v2090
        %v2142 = vsel %vm593, 0.0, %v2089
        %v2143 = vsel %vm594, 0.0, %v2088
        %v2144 = vsel %vm593, 0.0, %v2087
        %v2145 = vsel %vm594, 0.0, %v2086
        %v2146 = vsel %vm593, 0.0, %v2085
        %v2147 = vsel %vm594, 0.0, %v2084
        %v2148 = vsel %vm593, 0.0, %v2083
        %v2149 = vsel %vm594, 0.0, %v2082
        %v2150 = vsel %vm593, 0.0, %v2081
        %v2151 = vsel %vm594, 0.0, %v2080
        %v2152 = vsel %vm593, 0.0, %v2079
        %v2153 = vsel %vm594, 0.0, %v2078
        %v2154 = vsel %vm593, 0.0, %v2077
        %v2155 = vsel %vm594, 0.0, %v2076
        %v2156 = vpack.c.bf16 %v2137, %v2136
        %v2157 = vpack.c.bf16 %v2139, %v2138
        %v2158 = vpack.c.bf16 %v2141, %v2140
        %v2159 = vpack.c.bf16 %v2143, %v2142
        %v2160 = vpack.c.bf16 %v2145, %v2144
        %v2161 = vpack.c.bf16 %v2147, %v2146
        %v2162 = vpack.c.bf16 %v2149, %v2148
        %v2163 = vpack.c.bf16 %v2151, %v2150
        %v2164 = vpack.c.bf16 %v2153, %v2152
        %v2165 = vpack.c.bf16 %v2155, %v2154
        %v2166 = vsel %vm635, 0.0, %v2134
        %v2167 = vsel %vm636, 0.0, %v2133
        %v2168 = vsel %vm635, 0.0, %v2132
        %v2169 = vsel %vm636, 0.0, %v2131
        %v2170 = vsel %vm635, 0.0, %v2130
        %v2171 = vsel %vm636, 0.0, %v2129
        %v2172 = vsel %vm635, 0.0, %v2128
        %v2173 = vsel %vm636, 0.0, %v2127
        %v2174 = vsel %vm635, 0.0, %v2126
        %v2175 = vsel %vm636, 0.0, %v2125
        %v2176 = vsel %vm635, 0.0, %v2124
        %v2177 = vsel %vm636, 0.0, %v2123
        %v2178 = vsel %vm635, 0.0, %v2122
        %v2179 = vsel %vm636, 0.0, %v2121
        %v2180 = vsel %vm635, 0.0, %v2120
        %v2181 = vsel %vm636, 0.0, %v2119
        %v2182 = vsel %vm635, 0.0, %v2118
        %v2183 = vsel %vm636, 0.0, %v2117
        %v2184 = vsel %vm635, 0.0, %v2116
        %v2185 = vsel %vm636, 0.0, %v2135
        %v2186 = vpack.c.bf16 %v2167, %v2166
        %v2187 = vpack.c.bf16 %v2169, %v2168
        %v2188 = vpack.c.bf16 %v2171, %v2170
        %v2189 = vpack.c.bf16 %v2173, %v2172
        %v2190 = vpack.c.bf16 %v2175, %v2174
        %v2191 = vpack.c.bf16 %v2177, %v2176
        %v2192 = vpack.c.bf16 %v2179, %v2178
        %v2193 = vpack.c.bf16 %v2181, %v2180
        %v2194 = vpack.c.bf16 %v2183, %v2182
        %v2195 = vpack.c.bf16 %v2185, %v2184
        %v2196 = vld [vmem:[#allocation10] sm:$0xf]
        %v2197 = vld [vmem:[#allocation10 + $0x4] sm:$0xf]
        %v2198 = vld [vmem:[#allocation10 + $0x8] sm:$0xf]
        %v2199 = vld [vmem:[#allocation10 + $0xc] sm:$0xf]
        %v2200 = vld [vmem:[#allocation10 + $0x10] sm:$0xf]
        %v2201 = vld [vmem:[#allocation10 + $0x14] sm:$0xf]
        %v2202 = vld [vmem:[#allocation10 + $0x18] sm:$0xf]
        %v2203 = vld [vmem:[#allocation10 + $0x1c] sm:$0xf]
        %v2204 = vld [vmem:[#allocation10 + $0x20] sm:$0xf]
        %v2205 = vld [vmem:[#allocation10 + $0x24] sm:$0xf]
        %v2206 = vld [vmem:[#allocation10 + $0x28] sm:$0xf]
        %v2207 = vld [vmem:[#allocation10 + $0x2c] sm:$0xf]
        %v2208 = vld [vmem:[#allocation10 + $0x30] sm:$0xf]
        %v2209 = vld [vmem:[#allocation10 + $0x34] sm:$0xf]
        %v2210 = vld [vmem:[#allocation10 + $0x38] sm:$0xf]
        %v2211 = vld [vmem:[#allocation10 + $0x3c] sm:$0xf]
        %v2212 = vld [vmem:[#allocation10 + $0x40] sm:$0xf]
        %v2213 = vld [vmem:[#allocation10 + $0x44] sm:$0xf]
        %v2214 = vld [vmem:[#allocation10 + $0x48] sm:$0xf]
        %v2215 = vld [vmem:[#allocation10 + $0x4c] sm:$0xf]
        %v2216 = vld [vmem:[#allocation10 + $0x50] sm:$0xf]
        %v2217 = vld [vmem:[#allocation10 + $0x54] sm:$0xf]
        %v2218 = vld [vmem:[#allocation10 + $0x58] sm:$0xf]
        %v2219 = vld [vmem:[#allocation10 + $0x5c] sm:$0xf]
        %v2220 = vld [vmem:[#allocation10 + $0x60] sm:$0xf]
        %v2221 = vld [vmem:[#allocation10 + $0x64] sm:$0xf]
        %v2222 = vld [vmem:[#allocation10 + $0x68] sm:$0xf]
        %v2223 = vld [vmem:[#allocation10 + $0x6c] sm:$0xf]
        %v2224 = vld [vmem:[#allocation10 + $0x70] sm:$0xf]
        %v2225 = vld [vmem:[#allocation10 + $0x74] sm:$0xf]
        %v2226 = vld [vmem:[#allocation10 + $0x78] sm:$0xf]
        %v2227 = vld [vmem:[#allocation10 + $0x7c] sm:$0xf]
        %v2228 = vld [vmem:[#allocation10 + $0x80] sm:$0xf]
        %v2229 = vld [vmem:[#allocation10 + $0x84] sm:$0xf]
        %v2230 = vld [vmem:[#allocation10 + $0x88] sm:$0xf]
        %v2231 = vld [vmem:[#allocation10 + $0x8c] sm:$0xf]
        %v2232 = vld [vmem:[#allocation10 + $0x90] sm:$0xf]
        %v2233 = vld [vmem:[#allocation10 + $0x94] sm:$0xf]
        %v2234 = vld [vmem:[#allocation10 + $0x98] sm:$0xf]
        %v2235 = vld [vmem:[#allocation10 + $0x9c] sm:$0xf]
        %v2236 = vld [vmem:[#allocation10 + $0xa0] sm:$0xf]
        %v2237 = vld [vmem:[#allocation10 + $0xa4] sm:$0xf]
        %v2238 = vld [vmem:[#allocation10 + $0xa8] sm:$0xf]
        %v2239 = vld [vmem:[#allocation10 + $0xac] sm:$0xf]
        %v2240 = vld [vmem:[#allocation10 + $0xb0] sm:$0xf]
        %v2241 = vld [vmem:[#allocation10 + $0xb4] sm:$0xf]
        %v2242 = vld [vmem:[#allocation10 + $0xb8] sm:$0xf]
        %v2243 = vld [vmem:[#allocation10 + $0xbc] sm:$0xf]
        %s2244 = scalar_lea.vmem [#allocation10], 192
        %v2245 = vld [vmem:[%s2244] sm:$0xf]
        %v2246 = vld [vmem:[%s2244 + $0x4] sm:$0xf]
        %v2247 = vld [vmem:[%s2244 + $0x8] sm:$0xf]
        %v2248 = vld [vmem:[%s2244 + $0xc] sm:$0xf]
        %v2249 = vld [vmem:[%s2244 + $0x10] sm:$0xf]
        %v2250 = vld [vmem:[%s2244 + $0x14] sm:$0xf]
        %v2251 = vld [vmem:[%s2244 + $0x18] sm:$0xf]
        %v2252 = vld [vmem:[%s2244 + $0x1c] sm:$0xf]
        %v2253 = vld [vmem:[%s2244 + $0x20] sm:$0xf]
        %v2254 = vld [vmem:[%s2244 + $0x24] sm:$0xf]
        %v2255 = vld [vmem:[%s2244 + $0x28] sm:$0xf]
        %v2256 = vld [vmem:[%s2244 + $0x2c] sm:$0xf]
        %v2257 = vld [vmem:[%s2244 + $0x30] sm:$0xf]
        %v2258 = vld [vmem:[%s2244 + $0x34] sm:$0xf]
        %v2259 = vld [vmem:[%s2244 + $0x38] sm:$0xf]
        %v2260 = vld [vmem:[%s2244 + $0x3c] sm:$0xf]
        %v2261 = vld [vmem:[%s2244 + $0x40] sm:$0xf]
        %v2262 = vld [vmem:[%s2244 + $0x44] sm:$0xf]
        %v2263 = vld [vmem:[%s2244 + $0x48] sm:$0xf]
        %v2264 = vld [vmem:[%s2244 + $0x4c] sm:$0xf]
        %v2265 = vld [vmem:[%s2244 + $0x50] sm:$0xf]
        %v2266 = vld [vmem:[%s2244 + $0x54] sm:$0xf]
        %v2267 = vld [vmem:[%s2244 + $0x58] sm:$0xf]
        %v2268 = vld [vmem:[%s2244 + $0x5c] sm:$0xf]
        %v2269 = vld [vmem:[%s2244 + $0x60] sm:$0xf]
        %v2270 = vld [vmem:[%s2244 + $0x64] sm:$0xf]
        %v2271 = vld [vmem:[%s2244 + $0x68] sm:$0xf]
        %v2272 = vld [vmem:[%s2244 + $0x6c] sm:$0xf]
        %v2273 = vld [vmem:[%s2244 + $0x70] sm:$0xf]
        %v2274 = vld [vmem:[%s2244 + $0x74] sm:$0xf]
        %v2275 = vld [vmem:[%s2244 + $0x78] sm:$0xf]
        %v2276 = vld [vmem:[%s2244 + $0x7c] sm:$0xf]
        %v2277 = vld [vmem:[%s2244 + $0x80] sm:$0xf]
        %v2278 = vld [vmem:[%s2244 + $0x84] sm:$0xf]
        %v2279 = vld [vmem:[%s2244 + $0x88] sm:$0xf]
        %v2280 = vld [vmem:[%s2244 + $0x8c] sm:$0xf]
        %v2281 = vld [vmem:[%s2244 + $0x90] sm:$0xf]
        %v2282 = vld [vmem:[%s2244 + $0x94] sm:$0xf]
        %v2283 = vld [vmem:[%s2244 + $0x98] sm:$0xf]
        %v2284 = vld [vmem:[%s2244 + $0x9c] sm:$0xf]
        %v2285 = vld [vmem:[%s2244 + $0xa0] sm:$0xf]
        %v2286 = vld [vmem:[%s2244 + $0xa4] sm:$0xf]
        %v2287 = vld [vmem:[%s2244 + $0xa8] sm:$0xf]
        %v2288 = vld [vmem:[%s2244 + $0xac] sm:$0xf]
        %v2289 = vld [vmem:[%s2244 + $0xb0] sm:$0xf]
        %v2290 = vld [vmem:[%s2244 + $0xb4] sm:$0xf]
        %v2291 = vld [vmem:[%s2244 + $0xb8] sm:$0xf]
        %v2292 = vld [vmem:[%s2244 + $0xbc] sm:$0xf]
        %v2341 = vunpack.c.l.b16 %v2245
        %v2342 = vunpack.c.l.b16 %v2246
        %v2343 = vunpack.c.l.b16 %v2247
        %v2344 = vunpack.c.l.b16 %v2248
        %v2345 = vunpack.c.l.b16 %v2249
        %v2346 = vunpack.c.l.b16 %v2250
        %v2347 = vunpack.c.l.b16 %v2251
        %v2348 = vunpack.c.l.b16 %v2252
        %v2349 = vunpack.c.l.b16 %v2253
        %v2350 = vunpack.c.l.b16 %v2254
        %v2351 = vunpack.c.l.b16 %v2255
        %v2352 = vunpack.c.l.b16 %v2256
        %v2353 = vunpack.c.l.b16 %v2257
        %v2354 = vunpack.c.l.b16 %v2258
        %v2355 = vunpack.c.l.b16 %v2259
        %v2356 = vunpack.c.l.b16 %v2260
        %v2357 = vunpack.c.l.b16 %v2261
        %v2358 = vunpack.c.l.b16 %v2262
        %v2359 = vunpack.c.l.b16 %v2263
        %v2360 = vunpack.c.l.b16 %v2264
        %v2361 = vunpack.c.l.b16 %v2265
        %v2362 = vunpack.c.l.b16 %v2266
        %v2363 = vunpack.c.l.b16 %v2267
        %v2364 = vunpack.c.l.b16 %v2268
        %v2365 = vunpack.c.l.b16 %v2269
        %v2366 = vunpack.c.l.b16 %v2270
        %v2367 = vunpack.c.l.b16 %v2271
        %v2368 = vunpack.c.l.b16 %v2272
        %v2369 = vunpack.c.l.b16 %v2273
        %v2370 = vunpack.c.l.b16 %v2274
        %v2371 = vunpack.c.l.b16 %v2275
        %v2372 = vunpack.c.l.b16 %v2276
        %v2373 = vunpack.c.l.b16 %v2277
        %v2374 = vunpack.c.l.b16 %v2278
        %v2375 = vunpack.c.l.b16 %v2279
        %v2376 = vunpack.c.l.b16 %v2280
        %v2377 = vunpack.c.l.b16 %v2281
        %v2378 = vunpack.c.l.b16 %v2282
        %v2379 = vunpack.c.l.b16 %v2283
        %v2380 = vunpack.c.l.b16 %v2284
        %v2381 = vunpack.c.l.b16 %v2285
        %v2382 = vunpack.c.l.b16 %v2286
        %v2383 = vunpack.c.l.b16 %v2287
        %v2384 = vunpack.c.l.b16 %v2288
        %v2385 = vunpack.c.l.b16 %v2289
        %v2386 = vunpack.c.l.b16 %v2290
        %v2387 = vunpack.c.l.b16 %v2291
        %v2388 = vunpack.c.l.b16 %v2292
        %v2389 = vpack.c.b16 %v2342, %v2341
        %v2390 = vpack.c.b16 %v2344, %v2343
        %v2391 = vpack.c.b16 %v2346, %v2345
        %v2392 = vpack.c.b16 %v2348, %v2347
        %v2393 = vpack.c.b16 %v2350, %v2349
        %v2394 = vpack.c.b16 %v2352, %v2351
        %v2395 = vpack.c.b16 %v2354, %v2353
        %v2396 = vpack.c.b16 %v2356, %v2355
        %v2397 = vpack.c.b16 %v2358, %v2357
        %v2398 = vpack.c.b16 %v2360, %v2359
        %v2399 = vpack.c.b16 %v2362, %v2361
        %v2400 = vpack.c.b16 %v2364, %v2363
        %v2401 = vpack.c.b16 %v2366, %v2365
        %v2402 = vpack.c.b16 %v2368, %v2367
        %v2403 = vpack.c.b16 %v2370, %v2369
        %v2404 = vpack.c.b16 %v2372, %v2371
        %v2405 = vpack.c.b16 %v2374, %v2373
        %v2406 = vpack.c.b16 %v2376, %v2375
        %v2407 = vpack.c.b16 %v2378, %v2377
        %v2408 = vpack.c.b16 %v2380, %v2379
        %v2409 = vpack.c.b16 %v2382, %v2381
        %v2410 = vpack.c.b16 %v2384, %v2383
        %v2411 = vpack.c.b16 %v2386, %v2385
        %v2412 = vpack.c.b16 %v2388, %v2387
        %2437 = vmatprep.subr.bf16.mxu0 0
        %2438 = vmatpush1.bf16.msra.mxu0 %v2389
        %2439 = vmatprep.subr.bf16.mxu0 0
        %2440 = vmatpush1.bf16.msra.mxu0 %v2390
        %2441 = vmatprep.subr.bf16.mxu0 0
        %2442 = vmatpush1.bf16.msra.mxu0 %v2391
        %2443 = vmatprep.subr.bf16.mxu0 0
        %2444 = vmatpush1.bf16.msra.mxu0 %v2392
        %2445 = vmatprep.subr.bf16.mxu0 0
        %2446 = vmatpush1.bf16.msra.mxu0 %v2393
        %2447 = vmatprep.subr.bf16.mxu0 0
        %2448 = vmatpush1.bf16.msra.mxu0 %v2394
        %2449 = vmatprep.subr.bf16.mxu0 0
        %2450 = vmatpush1.bf16.msra.mxu0 %v2395
        %2451 = vmatprep.subr.bf16.mxu0 0
        %2452 = vmatpush1.bf16.msra.mxu0 %v2396
        %2453 = vmatprep.subr.bf16.mxu0 0
        %2454 = vmatpush1.bf16.msra.mxu0 %v2397
        %2455 = vmatprep.subr.bf16.mxu0 0
        %2456 = vmatpush1.bf16.msra.mxu0 %v2398
        %2457 = vmatprep.subr.bf16.mxu0 0
        %2458 = vmatpush1.bf16.msra.mxu0 %v2399
        %2459 = vmatprep.subr.bf16.mxu0 0
        %2460 = vmatpush1.bf16.msra.mxu0 %v2400
        %2461 = vmatprep.subr.bf16.mxu0 0
        %2462 = vmatpush1.bf16.msra.mxu0 %v2401
        %2463 = vmatprep.subr.bf16.mxu0 0
        %2464 = vmatpush1.bf16.msra.mxu0 %v2402
        %2465 = vmatprep.subr.bf16.mxu0 0
        %2466 = vmatpush1.bf16.msra.mxu0 %v2403
        %2467 = vmatprep.subr.bf16.mxu0 0
        %2468 = vmatpush1.bf16.msra.mxu0 %v2404
        %2469 = vmatprep.mubr.bf16.mxu0 %v2027
        %2470 = vmatmul.mubr.bf16.gmra.mrb[0].mxu0 %v2157
        %v2471 = vpop.f32.mrb[0].mxu0
        %v2472 = vadd.f32 0.0, %v2471
        %v2473 = vpop.f32.mrb[0].mxu0
        %v2474 = vpop.f32.mrb[0].mxu0
        %v2475 = vadd.f32 0.0, %v2474
        %v2476 = vpop.f32.mrb[0].mxu0
        %2477 = vmatprep.mubr.bf16.mxu0 %v2028
        %2478 = vmatmul.mubr.bf16.gmra.mrb[0].mxu0 %v2158
        %v2479 = vpop.f32.mrb[0].mxu0
        %v2480 = vadd.f32 0.0, %v2479
        %v2481 = vpop.f32.mrb[0].mxu0
        %v2482 = vpop.f32.mrb[0].mxu0
        %v2483 = vadd.f32 0.0, %v2482
        %v2484 = vpop.f32.mrb[0].mxu0
        %2485 = vmatprep.mubr.bf16.mxu0 %v2029
        %2486 = vmatmul.mubr.bf16.gmra.mrb[0].mxu0 %v2159
        %v2487 = vpop.f32.mrb[0].mxu0
        %v2488 = vadd.f32 0.0, %v2487
        %v2489 = vpop.f32.mrb[0].mxu0
        %v2490 = vpop.f32.mrb[0].mxu0
        %v2491 = vadd.f32 0.0, %v2490
        %v2492 = vpop.f32.mrb[0].mxu0
        %2493 = vmatprep.mubr.bf16.mxu0 %v2030
        %2494 = vmatmul.mubr.bf16.gmra.mrb[0].mxu0 %v2160
        %v2495 = vpop.f32.mrb[0].mxu0
        %v2496 = vadd.f32 0.0, %v2495
        %v2497 = vpop.f32.mrb[0].mxu0
        %v2498 = vpop.f32.mrb[0].mxu0
        %v2499 = vadd.f32 0.0, %v2498
        %v2500 = vpop.f32.mrb[0].mxu0
        %2501 = vmatprep.mubr.bf16.mxu0 %v2031
        %2502 = vmatmul.mubr.bf16.gmra.mrb[0].mxu0 %v2161
        %v2503 = vpop.f32.mrb[0].mxu0
        %v2504 = vadd.f32 0.0, %v2503
        %v2505 = vpop.f32.mrb[0].mxu0
        %v2506 = vpop.f32.mrb[0].mxu0
        %v2507 = vadd.f32 0.0, %v2506
        %v2508 = vpop.f32.mrb[0].mxu0
        %2509 = vmatprep.mubr.bf16.mxu0 %v2032
        %2510 = vmatmul.mubr.bf16.gmra.mrb[0].mxu0 %v2162
        %v2511 = vpop.f32.mrb[0].mxu0
        %v2512 = vadd.f32 0.0, %v2511
        %v2513 = vpop.f32.mrb[0].mxu0
        %v2514 = vpop.f32.mrb[0].mxu0
        %v2515 = vadd.f32 0.0, %v2514
        %v2516 = vpop.f32.mrb[0].mxu0
        %2517 = vmatprep.mubr.bf16.mxu0 %v2033
        %2518 = vmatmul.mubr.bf16.gmra.mrb[0].mxu0 %v2163
        %v2519 = vpop.f32.mrb[0].mxu0
        %v2520 = vadd.f32 0.0, %v2519
        %v2521 = vpop.f32.mrb[0].mxu0
        %v2522 = vpop.f32.mrb[0].mxu0
        %v2523 = vadd.f32 0.0, %v2522
        %v2524 = vpop.f32.mrb[0].mxu0
        %2525 = vmatprep.mubr.bf16.mxu0 %v2034
        %2526 = vmatmul.mubr.bf16.gmra.mrb[0].mxu0 %v2164
        %v2527 = vpop.f32.mrb[0].mxu0
        %v2528 = vadd.f32 0.0, %v2527
        %v2529 = vpop.f32.mrb[0].mxu0
        %v2530 = vpop.f32.mrb[0].mxu0
        %v2531 = vadd.f32 0.0, %v2530
        %v2532 = vpop.f32.mrb[0].mxu0
        %2533 = vdwg.mxu0
        %2534 = vmatprep.subr.bf16.mxu0 0
        %2535 = vmatpush1.bf16.msra.mxu0 %v2405
        %2536 = vmatprep.subr.bf16.mxu0 0
        %2537 = vmatpush1.bf16.msra.mxu0 %v2406
        %2538 = vmatprep.subr.bf16.mxu0 0
        %2539 = vmatpush1.bf16.msra.mxu0 %v2407
        %2540 = vmatprep.subr.bf16.mxu0 0
        %2541 = vmatpush1.bf16.msra.mxu0 %v2408
        %2542 = vmatprep.subr.bf16.mxu0 0
        %2543 = vmatpush1.bf16.msra.mxu0 %v2409
        %2544 = vmatprep.subr.bf16.mxu0 0
        %2545 = vmatpush1.bf16.msra.mxu0 %v2410
        %2546 = vmatprep.subr.bf16.mxu0 0
        %2547 = vmatpush1.bf16.msra.mxu0 %v2411
        %2548 = vmatprep.subr.bf16.mxu0 0
        %2549 = vmatpush1.bf16.msra.mxu0 %v2412
        %2550 = vmatprep.subr.bf16.mxu0 0
        %2551 = vmatpush1.bf16.msra.mxu0 0
        %2552 = vmatprep.subr.bf16.mxu0 0
        %2553 = vmatpush1.bf16.msra.mxu0 0
        %2554 = vmatprep.subr.bf16.mxu0 0
        %2555 = vmatpush1.bf16.msra.mxu0 0
        %2556 = vmatprep.subr.bf16.mxu0 0
        %2557 = vmatpush1.bf16.msra.mxu0 0
        %2558 = vmatprep.subr.bf16.mxu0 0
        %2559 = vmatpush1.bf16.msra.mxu0 0
        %2560 = vmatprep.subr.bf16.mxu0 0
        %2561 = vmatpush1.bf16.msra.mxu0 0
        %2562 = vmatprep.subr.bf16.mxu0 0
        %2563 = vmatpush1.bf16.msra.mxu0 0
        %2564 = vmatprep.subr.bf16.mxu0 0
        %2565 = vmatpush1.bf16.msra.mxu0 0
        %2566 = vmatprep.mubr.bf16.mxu0 0
        %2567 = vmatmul.mubr.bf16.gmra.mrb[0].mxu0 %v2187
        %v2568 = vpop.f32.mrb[0].mxu0
        %v2569 = vadd.f32 %v2472, %v2568
        %v2570 = vpop.f32.mrb[0].mxu0
        %v2571 = vpop.f32.mrb[0].mxu0
        %v2572 = vadd.f32 %v2475, %v2571
        %v2573 = vpop.f32.mrb[0].mxu0
        %2574 = vmatprep.mubr.bf16.mxu0 0
        %2575 = vmatmul.mubr.bf16.gmra.mrb[0].mxu0 %v2188
        %v2576 = vpop.f32.mrb[0].mxu0
        %v2577 = vadd.f32 %v2480, %v2576
        %v2578 = vpop.f32.mrb[0].mxu0
        %v2579 = vpop.f32.mrb[0].mxu0
        %v2580 = vadd.f32 %v2483, %v2579
        %v2581 = vpop.f32.mrb[0].mxu0
        %2582 = vmatprep.mubr.bf16.mxu0 0
        %2583 = vmatmul.mubr.bf16.gmra.mrb[0].mxu0 %v2189
        %v2584 = vpop.f32.mrb[0].mxu0
        %v2585 = vadd.f32 %v2488, %v2584
        %v2586 = vpop.f32.mrb[0].mxu0
        %v2587 = vpop.f32.mrb[0].mxu0
        %v2588 = vadd.f32 %v2491, %v2587
        %v2589 = vpop.f32.mrb[0].mxu0
        %2590 = vmatprep.mubr.bf16.mxu0 0
        %2591 = vmatmul.mubr.bf16.gmra.mrb[0].mxu0 %v2190
        %v2592 = vpop.f32.mrb[0].mxu0
        %v2593 = vadd.f32 %v2496, %v2592
        %v2594 = vpop.f32.mrb[0].mxu0
        %v2595 = vpop.f32.mrb[0].mxu0
        %v2596 = vadd.f32 %v2499, %v2595
        %v2597 = vpop.f32.mrb[0].mxu0
        %2598 = vmatprep.mubr.bf16.mxu0 0
        %2599 = vmatmul.mubr.bf16.gmra.mrb[0].mxu0 %v2191
        %v2600 = vpop.f32.mrb[0].mxu0
        %v2601 = vadd.f32 %v2504, %v2600
        %v2602 = vpop.f32.mrb[0].mxu0
        %v2603 = vpop.f32.mrb[0].mxu0
        %v2604 = vadd.f32 %v2507, %v2603
        %v2605 = vpop.f32.mrb[0].mxu0
        %2606 = vmatprep.mubr.bf16.mxu0 0
        %2607 = vmatmul.mubr.bf16.gmra.mrb[0].mxu0 %v2192
        %v2608 = vpop.f32.mrb[0].mxu0
        %v2609 = vadd.f32 %v2512, %v2608
        %v2610 = vpop.f32.mrb[0].mxu0
        %v2611 = vpop.f32.mrb[0].mxu0
        %v2612 = vadd.f32 %v2515, %v2611
        %v2613 = vpop.f32.mrb[0].mxu0
        %2614 = vmatprep.mubr.bf16.mxu0 0
        %2615 = vmatmul.mubr.bf16.gmra.mrb[0].mxu0 %v2193
        %v2616 = vpop.f32.mrb[0].mxu0
        %v2617 = vadd.f32 %v2520, %v2616
        %v2618 = vpop.f32.mrb[0].mxu0
        %v2619 = vpop.f32.mrb[0].mxu0
        %v2620 = vadd.f32 %v2523, %v2619
        %v2621 = vpop.f32.mrb[0].mxu0
        %2622 = vmatprep.mubr.bf16.mxu0 0
        %2623 = vmatmul.mubr.bf16.gmra.mrb[0].mxu0 %v2194
        %v2624 = vpop.f32.mrb[0].mxu0
        %v2625 = vadd.f32 %v2528, %v2624
        %v2626 = vpop.f32.mrb[0].mxu0
        %v2627 = vpop.f32.mrb[0].mxu0
        %v2628 = vadd.f32 %v2531, %v2627
        %v2629 = vpop.f32.mrb[0].mxu0
        %2630 = vdwg.mxu0
        %v2679 = vunpack.c.l.b16 %v2196
        %v2680 = vunpack.c.l.b16 %v2197
        %v2681 = vunpack.c.l.b16 %v2198
        %v2682 = vunpack.c.l.b16 %v2199
        %v2683 = vunpack.c.l.b16 %v2200
        %v2684 = vunpack.c.l.b16 %v2201
        %v2685 = vunpack.c.l.b16 %v2202
        %v2686 = vunpack.c.l.b16 %v2203
        %v2687 = vunpack.c.l.b16 %v2204
        %v2688 = vunpack.c.l.b16 %v2205
        %v2689 = vunpack.c.l.b16 %v2206
        %v2690 = vunpack.c.l.b16 %v2207
        %v2691 = vunpack.c.l.b16 %v2208
        %v2692 = vunpack.c.l.b16 %v2209
        %v2693 = vunpack.c.l.b16 %v2210
        %v2694 = vunpack.c.l.b16 %v2211
        %v2695 = vunpack.c.l.b16 %v2212
        %v2696 = vunpack.c.l.b16 %v2213
        %v2697 = vunpack.c.l.b16 %v2214
        %v2698 = vunpack.c.l.b16 %v2215
        %v2699 = vunpack.c.l.b16 %v2216
        %v2700 = vunpack.c.l.b16 %v2217
        %v2701 = vunpack.c.l.b16 %v2218
        %v2702 = vunpack.c.l.b16 %v2219
        %v2703 = vunpack.c.l.b16 %v2220
        %v2704 = vunpack.c.l.b16 %v2221
        %v2705 = vunpack.c.l.b16 %v2222
        %v2706 = vunpack.c.l.b16 %v2223
        %v2707 = vunpack.c.l.b16 %v2224
        %v2708 = vunpack.c.l.b16 %v2225
        %v2709 = vunpack.c.l.b16 %v2226
        %v2710 = vunpack.c.l.b16 %v2227
        %v2711 = vunpack.c.l.b16 %v2228
        %v2712 = vunpack.c.l.b16 %v2229
        %v2713 = vunpack.c.l.b16 %v2230
        %v2714 = vunpack.c.l.b16 %v2231
        %v2715 = vunpack.c.l.b16 %v2232
        %v2716 = vunpack.c.l.b16 %v2233
        %v2717 = vunpack.c.l.b16 %v2234
        %v2718 = vunpack.c.l.b16 %v2235
        %v2719 = vunpack.c.l.b16 %v2236
        %v2720 = vunpack.c.l.b16 %v2237
        %v2721 = vunpack.c.l.b16 %v2238
        %v2722 = vunpack.c.l.b16 %v2239
        %v2723 = vunpack.c.l.b16 %v2240
        %v2724 = vunpack.c.l.b16 %v2241
        %v2725 = vunpack.c.l.b16 %v2242
        %v2726 = vunpack.c.l.b16 %v2243
        %v2727 = vpack.c.b16 %v2680, %v2679
        %v2728 = vpack.c.b16 %v2682, %v2681
        %v2729 = vpack.c.b16 %v2684, %v2683
        %v2730 = vpack.c.b16 %v2686, %v2685
        %v2731 = vpack.c.b16 %v2688, %v2687
        %v2732 = vpack.c.b16 %v2690, %v2689
        %v2733 = vpack.c.b16 %v2692, %v2691
        %v2734 = vpack.c.b16 %v2694, %v2693
        %v2735 = vpack.c.b16 %v2696, %v2695
        %v2736 = vpack.c.b16 %v2698, %v2697
        %v2737 = vpack.c.b16 %v2700, %v2699
        %v2738 = vpack.c.b16 %v2702, %v2701
        %v2739 = vpack.c.b16 %v2704, %v2703
        %v2740 = vpack.c.b16 %v2706, %v2705
        %v2741 = vpack.c.b16 %v2708, %v2707
        %v2742 = vpack.c.b16 %v2710, %v2709
        %v2743 = vpack.c.b16 %v2712, %v2711
        %v2744 = vpack.c.b16 %v2714, %v2713
        %v2745 = vpack.c.b16 %v2716, %v2715
        %v2746 = vpack.c.b16 %v2718, %v2717
        %v2747 = vpack.c.b16 %v2720, %v2719
        %v2748 = vpack.c.b16 %v2722, %v2721
        %v2749 = vpack.c.b16 %v2724, %v2723
        %v2750 = vpack.c.b16 %v2726, %v2725
        %2775 = vmatprep.subr.bf16.mxu0 0
        %2776 = vmatpush1.bf16.msra.mxu0 %v2727
        %2777 = vmatprep.subr.bf16.mxu0 0
        %2778 = vmatpush1.bf16.msra.mxu0 %v2728
        %2779 = vmatprep.subr.bf16.mxu0 0
        %2780 = vmatpush1.bf16.msra.mxu0 %v2729
        %2781 = vmatprep.subr.bf16.mxu0 0
        %2782 = vmatpush1.bf16.msra.mxu0 %v2730
        %2783 = vmatprep.subr.bf16.mxu0 0
        %2784 = vmatpush1.bf16.msra.mxu0 %v2731
        %2785 = vmatprep.subr.bf16.mxu0 0
        %2786 = vmatpush1.bf16.msra.mxu0 %v2732
        %2787 = vmatprep.subr.bf16.mxu0 0
        %2788 = vmatpush1.bf16.msra.mxu0 %v2733
        %2789 = vmatprep.subr.bf16.mxu0 0
        %2790 = vmatpush1.bf16.msra.mxu0 %v2734
        %2791 = vmatprep.subr.bf16.mxu0 0
        %2792 = vmatpush1.bf16.msra.mxu0 %v2735
        %2793 = vmatprep.subr.bf16.mxu0 0
        %2794 = vmatpush1.bf16.msra.mxu0 %v2736
        %2795 = vmatprep.subr.bf16.mxu0 0
        %2796 = vmatpush1.bf16.msra.mxu0 %v2737
        %2797 = vmatprep.subr.bf16.mxu0 0
        %2798 = vmatpush1.bf16.msra.mxu0 %v2738
        %2799 = vmatprep.subr.bf16.mxu0 0
        %2800 = vmatpush1.bf16.msra.mxu0 %v2739
        %2801 = vmatprep.subr.bf16.mxu0 0
        %2802 = vmatpush1.bf16.msra.mxu0 %v2740
        %2803 = vmatprep.subr.bf16.mxu0 0
        %2804 = vmatpush1.bf16.msra.mxu0 %v2741
        %2805 = vmatprep.subr.bf16.mxu0 0
        %2806 = vmatpush1.bf16.msra.mxu0 %v2742
        %2807 = vmatprep.mubr.bf16.mxu0 %v2026
        %2808 = vmatmul.mubr.bf16.gmra.mrb[0].mxu0 %v2156
        %v2809 = vpop.f32.mrb[0].mxu0
        %v2810 = vadd.f32 %v2569, %v2809
        %v2811 = vpop.f32.mrb[0].mxu0
        %v2812 = vpop.f32.mrb[0].mxu0
        %v2813 = vadd.f32 %v2572, %v2812
        %v2814 = vpop.f32.mrb[0].mxu0
        %2815 = vmatprep.mubr.bf16.mxu0 %v2027
        %2816 = vmatmul.mubr.bf16.gmra.mrb[0].mxu0 %v2157
        %v2817 = vpop.f32.mrb[0].mxu0
        %v2818 = vadd.f32 %v2577, %v2817
        %v2819 = vpop.f32.mrb[0].mxu0
        %v2820 = vpop.f32.mrb[0].mxu0
        %v2821 = vadd.f32 %v2580, %v2820
        %v2822 = vpop.f32.mrb[0].mxu0
        %2823 = vmatprep.mubr.bf16.mxu0 %v2028
        %2824 = vmatmul.mubr.bf16.gmra.mrb[0].mxu0 %v2158
        %v2825 = vpop.f32.mrb[0].mxu0
        %v2826 = vadd.f32 %v2585, %v2825
        %v2827 = vpop.f32.mrb[0].mxu0
        %v2828 = vpop.f32.mrb[0].mxu0
        %v2829 = vadd.f32 %v2588, %v2828
        %v2830 = vpop.f32.mrb[0].mxu0
        %2831 = vmatprep.mubr.bf16.mxu0 %v2029
        %2832 = vmatmul.mubr.bf16.gmra.mrb[0].mxu0 %v2159
        %v2833 = vpop.f32.mrb[0].mxu0
        %v2834 = vadd.f32 %v2593, %v2833
        %v2835 = vpop.f32.mrb[0].mxu0
        %v2836 = vpop.f32.mrb[0].mxu0
        %v2837 = vadd.f32 %v2596, %v2836
        %v2838 = vpop.f32.mrb[0].mxu0
        %2839 = vmatprep.mubr.bf16.mxu0 %v2030
        %2840 = vmatmul.mubr.bf16.gmra.mrb[0].mxu0 %v2160
        %v2841 = vpop.f32.mrb[0].mxu0
        %v2842 = vadd.f32 %v2601, %v2841
        %v2843 = vpop.f32.mrb[0].mxu0
        %v2844 = vpop.f32.mrb[0].mxu0
        %v2845 = vadd.f32 %v2604, %v2844
        %v2846 = vpop.f32.mrb[0].mxu0
        %2847 = vmatprep.mubr.bf16.mxu0 %v2031
        %2848 = vmatmul.mubr.bf16.gmra.mrb[0].mxu0 %v2161
        %v2849 = vpop.f32.mrb[0].mxu0
        %v2850 = vadd.f32 %v2609, %v2849
        %v2851 = vpop.f32.mrb[0].mxu0
        %v2852 = vpop.f32.mrb[0].mxu0
        %v2853 = vadd.f32 %v2612, %v2852
        %v2854 = vpop.f32.mrb[0].mxu0
        %2855 = vmatprep.mubr.bf16.mxu0 %v2032
        %2856 = vmatmul.mubr.bf16.gmra.mrb[0].mxu0 %v2162
        %v2857 = vpop.f32.mrb[0].mxu0
        %v2858 = vadd.f32 %v2617, %v2857
        %v2859 = vpop.f32.mrb[0].mxu0
        %v2860 = vpop.f32.mrb[0].mxu0
        %v2861 = vadd.f32 %v2620, %v2860
        %v2862 = vpop.f32.mrb[0].mxu0
        %2863 = vmatprep.mubr.bf16.mxu0 %v2033
        %2864 = vmatmul.mubr.bf16.gmra.mrb[0].mxu0 %v2163
        %v2865 = vpop.f32.mrb[0].mxu0
        %v2866 = vadd.f32 %v2625, %v2865
        %v2867 = vpop.f32.mrb[0].mxu0
        %v2868 = vpop.f32.mrb[0].mxu0
        %v2869 = vadd.f32 %v2628, %v2868
        %v2870 = vpop.f32.mrb[0].mxu0
        %2871 = vdwg.mxu0
        %2872 = vmatprep.subr.bf16.mxu0 0
        %2873 = vmatpush1.bf16.msra.mxu0 %v2743
        %2874 = vmatprep.subr.bf16.mxu0 0
        %2875 = vmatpush1.bf16.msra.mxu0 %v2744
        %2876 = vmatprep.subr.bf16.mxu0 0
        %2877 = vmatpush1.bf16.msra.mxu0 %v2745
        %2878 = vmatprep.subr.bf16.mxu0 0
        %2879 = vmatpush1.bf16.msra.mxu0 %v2746
        %2880 = vmatprep.subr.bf16.mxu0 0
        %2881 = vmatpush1.bf16.msra.mxu0 %v2747
        %2882 = vmatprep.subr.bf16.mxu0 0
        %2883 = vmatpush1.bf16.msra.mxu0 %v2748
        %2884 = vmatprep.subr.bf16.mxu0 0
        %2885 = vmatpush1.bf16.msra.mxu0 %v2749
        %2886 = vmatprep.subr.bf16.mxu0 0
        %2887 = vmatpush1.bf16.msra.mxu0 %v2750
        %2888 = vmatprep.subr.bf16.mxu0 0
        %2889 = vmatpush1.bf16.msra.mxu0 0
        %2890 = vmatprep.subr.bf16.mxu0 0
        %2891 = vmatpush1.bf16.msra.mxu0 0
        %2892 = vmatprep.subr.bf16.mxu0 0
        %2893 = vmatpush1.bf16.msra.mxu0 0
        %2894 = vmatprep.subr.bf16.mxu0 0
        %2895 = vmatpush1.bf16.msra.mxu0 0
        %2896 = vmatprep.subr.bf16.mxu0 0
        %2897 = vmatpush1.bf16.msra.mxu0 0
        %2898 = vmatprep.subr.bf16.mxu0 0
        %2899 = vmatpush1.bf16.msra.mxu0 0
        %2900 = vmatprep.subr.bf16.mxu0 0
        %2901 = vmatpush1.bf16.msra.mxu0 0
        %2902 = vmatprep.subr.bf16.mxu0 0
        %2903 = vmatpush1.bf16.msra.mxu0 0
        %2904 = vmatprep.mubr.bf16.mxu0 0
        %2905 = vmatmul.mubr.bf16.gmra.mrb[0].mxu0 %v2186
        %v2906 = vpop.f32.mrb[0].mxu0
        %v2907 = vadd.f32 %v2810, %v2906
        %v2908 = vpop.f32.mrb[0].mxu0
        %v2909 = vpop.f32.mrb[0].mxu0
        %v2910 = vadd.f32 %v2813, %v2909
        %v2911 = vpop.f32.mrb[0].mxu0
        %2912 = vmatprep.mubr.bf16.mxu0 0
        %2913 = vmatmul.mubr.bf16.gmra.mrb[0].mxu0 %v2187
        %v2914 = vpop.f32.mrb[0].mxu0
        %v2915 = vadd.f32 %v2818, %v2914
        %v2916 = vpop.f32.mrb[0].mxu0
        %v2917 = vpop.f32.mrb[0].mxu0
        %v2918 = vadd.f32 %v2821, %v2917
        %v2919 = vpop.f32.mrb[0].mxu0
        %2920 = vmatprep.mubr.bf16.mxu0 0
        %2921 = vmatmul.mubr.bf16.gmra.mrb[0].mxu0 %v2188
        %v2922 = vpop.f32.mrb[0].mxu0
        %v2923 = vadd.f32 %v2826, %v2922
        %v2924 = vpop.f32.mrb[0].mxu0
        %v2925 = vpop.f32.mrb[0].mxu0
        %v2926 = vadd.f32 %v2829, %v2925
        %v2927 = vpop.f32.mrb[0].mxu0
        %2928 = vmatprep.mubr.bf16.mxu0 0
        %2929 = vmatmul.mubr.bf16.gmra.mrb[0].mxu0 %v2189
        %v2930 = vpop.f32.mrb[0].mxu0
        %v2931 = vadd.f32 %v2834, %v2930
        %v2932 = vpop.f32.mrb[0].mxu0
        %v2933 = vpop.f32.mrb[0].mxu0
        %v2934 = vadd.f32 %v2837, %v2933
        %v2935 = vpop.f32.mrb[0].mxu0
        %2936 = vmatprep.mubr.bf16.mxu0 0
        %2937 = vmatmul.mubr.bf16.gmra.mrb[0].mxu0 %v2190
        %v2938 = vpop.f32.mrb[0].mxu0
        %v2939 = vadd.f32 %v2842, %v2938
        %v2940 = vpop.f32.mrb[0].mxu0
        %v2941 = vpop.f32.mrb[0].mxu0
        %v2942 = vadd.f32 %v2845, %v2941
        %v2943 = vpop.f32.mrb[0].mxu0
        %2944 = vmatprep.mubr.bf16.mxu0 0
        %2945 = vmatmul.mubr.bf16.gmra.mrb[0].mxu0 %v2191
        %v2946 = vpop.f32.mrb[0].mxu0
        %v2947 = vadd.f32 %v2850, %v2946
        %v2948 = vpop.f32.mrb[0].mxu0
        %v2949 = vpop.f32.mrb[0].mxu0
        %v2950 = vadd.f32 %v2853, %v2949
        %v2951 = vpop.f32.mrb[0].mxu0
        %2952 = vmatprep.mubr.bf16.mxu0 0
        %2953 = vmatmul.mubr.bf16.gmra.mrb[0].mxu0 %v2192
        %v2954 = vpop.f32.mrb[0].mxu0
        %v2955 = vadd.f32 %v2858, %v2954
        %v2956 = vpop.f32.mrb[0].mxu0
        %v2957 = vpop.f32.mrb[0].mxu0
        %v2958 = vadd.f32 %v2861, %v2957
        %v2959 = vpop.f32.mrb[0].mxu0
        %2960 = vmatprep.mubr.bf16.mxu0 0
        %2961 = vmatmul.mubr.bf16.gmra.mrb[0].mxu0 %v2193
        %v2962 = vpop.f32.mrb[0].mxu0
        %v2963 = vadd.f32 %v2866, %v2962
        %v2964 = vpop.f32.mrb[0].mxu0
        %v2965 = vpop.f32.mrb[0].mxu0
        %v2966 = vadd.f32 %v2869, %v2965
        %v2967 = vpop.f32.mrb[0].mxu0
        %2968 = vdwg.mxu0
        %s2969 = scalar_lea.vmem [#allocation10], 384
        %v2970 = vld [vmem:[%s2969] sm:$0xf]
        %v2971 = vld [vmem:[%s2969 + $0x4] sm:$0xf]
        %v2972 = vld [vmem:[%s2969 + $0x8] sm:$0xf]
        %v2973 = vld [vmem:[%s2969 + $0xc] sm:$0xf]
        %v2974 = vld [vmem:[%s2969 + $0x10] sm:$0xf]
        %v2975 = vld [vmem:[%s2969 + $0x14] sm:$0xf]
        %v2976 = vld [vmem:[%s2969 + $0x18] sm:$0xf]
        %v2977 = vld [vmem:[%s2969 + $0x1c] sm:$0xf]
        %v2978 = vld [vmem:[%s2969 + $0x20] sm:$0xf]
        %v2979 = vld [vmem:[%s2969 + $0x24] sm:$0xf]
        %v2980 = vld [vmem:[%s2969 + $0x28] sm:$0xf]
        %v2981 = vld [vmem:[%s2969 + $0x2c] sm:$0xf]
        %v2982 = vld [vmem:[%s2969 + $0x30] sm:$0xf]
        %v2983 = vld [vmem:[%s2969 + $0x34] sm:$0xf]
        %v2984 = vld [vmem:[%s2969 + $0x38] sm:$0xf]
        %v2985 = vld [vmem:[%s2969 + $0x3c] sm:$0xf]
        %v2986 = vld [vmem:[%s2969 + $0x40] sm:$0xf]
        %v2987 = vld [vmem:[%s2969 + $0x44] sm:$0xf]
        %v2988 = vld [vmem:[%s2969 + $0x48] sm:$0xf]
        %v2989 = vld [vmem:[%s2969 + $0x4c] sm:$0xf]
        %v2990 = vld [vmem:[%s2969 + $0x50] sm:$0xf]
        %v2991 = vld [vmem:[%s2969 + $0x54] sm:$0xf]
        %v2992 = vld [vmem:[%s2969 + $0x58] sm:$0xf]
        %v2993 = vld [vmem:[%s2969 + $0x5c] sm:$0xf]
        %v2994 = vld [vmem:[%s2969 + $0x60] sm:$0xf]
        %v2995 = vld [vmem:[%s2969 + $0x64] sm:$0xf]
        %v2996 = vld [vmem:[%s2969 + $0x68] sm:$0xf]
        %v2997 = vld [vmem:[%s2969 + $0x6c] sm:$0xf]
        %v2998 = vld [vmem:[%s2969 + $0x70] sm:$0xf]
        %v2999 = vld [vmem:[%s2969 + $0x74] sm:$0xf]
        %v3000 = vld [vmem:[%s2969 + $0x78] sm:$0xf]
        %v3001 = vld [vmem:[%s2969 + $0x7c] sm:$0xf]
        %v3002 = vld [vmem:[%s2969 + $0x80] sm:$0xf]
        %v3003 = vld [vmem:[%s2969 + $0x84] sm:$0xf]
        %v3004 = vld [vmem:[%s2969 + $0x88] sm:$0xf]
        %v3005 = vld [vmem:[%s2969 + $0x8c] sm:$0xf]
        %v3006 = vld [vmem:[%s2969 + $0x90] sm:$0xf]
        %v3007 = vld [vmem:[%s2969 + $0x94] sm:$0xf]
        %v3008 = vld [vmem:[%s2969 + $0x98] sm:$0xf]
        %v3009 = vld [vmem:[%s2969 + $0x9c] sm:$0xf]
        %v3010 = vld [vmem:[%s2969 + $0xa0] sm:$0xf]
        %v3011 = vld [vmem:[%s2969 + $0xa4] sm:$0xf]
        %v3012 = vld [vmem:[%s2969 + $0xa8] sm:$0xf]
        %v3013 = vld [vmem:[%s2969 + $0xac] sm:$0xf]
        %v3014 = vld [vmem:[%s2969 + $0xb0] sm:$0xf]
        %v3015 = vld [vmem:[%s2969 + $0xb4] sm:$0xf]
        %v3016 = vld [vmem:[%s2969 + $0xb8] sm:$0xf]
        %v3017 = vld [vmem:[%s2969 + $0xbc] sm:$0xf]
        %v3066 = vunpack.c.l.b16 %v2970
        %v3067 = vunpack.c.l.b16 %v2971
        %v3068 = vunpack.c.l.b16 %v2972
        %v3069 = vunpack.c.l.b16 %v2973
        %v3070 = vunpack.c.l.b16 %v2974
        %v3071 = vunpack.c.l.b16 %v2975
        %v3072 = vunpack.c.l.b16 %v2976
        %v3073 = vunpack.c.l.b16 %v2977
        %v3074 = vunpack.c.l.b16 %v2978
        %v3075 = vunpack.c.l.b16 %v2979
        %v3076 = vunpack.c.l.b16 %v2980
        %v3077 = vunpack.c.l.b16 %v2981
        %v3078 = vunpack.c.l.b16 %v2982
        %v3079 = vunpack.c.l.b16 %v2983
        %v3080 = vunpack.c.l.b16 %v2984
        %v3081 = vunpack.c.l.b16 %v2985
        %v3082 = vunpack.c.l.b16 %v2986
        %v3083 = vunpack.c.l.b16 %v2987
        %v3084 = vunpack.c.l.b16 %v2988
        %v3085 = vunpack.c.l.b16 %v2989
        %v3086 = vunpack.c.l.b16 %v2990
        %v3087 = vunpack.c.l.b16 %v2991
        %v3088 = vunpack.c.l.b16 %v2992
        %v3089 = vunpack.c.l.b16 %v2993
        %v3090 = vunpack.c.l.b16 %v2994
        %v3091 = vunpack.c.l.b16 %v2995
        %v3092 = vunpack.c.l.b16 %v2996
        %v3093 = vunpack.c.l.b16 %v2997
        %v3094 = vunpack.c.l.b16 %v2998
        %v3095 = vunpack.c.l.b16 %v2999
        %v3096 = vunpack.c.l.b16 %v3000
        %v3097 = vunpack.c.l.b16 %v3001
        %v3098 = vunpack.c.l.b16 %v3002
        %v3099 = vunpack.c.l.b16 %v3003
        %v3100 = vunpack.c.l.b16 %v3004
        %v3101 = vunpack.c.l.b16 %v3005
        %v3102 = vunpack.c.l.b16 %v3006
        %v3103 = vunpack.c.l.b16 %v3007
        %v3104 = vunpack.c.l.b16 %v3008
        %v3105 = vunpack.c.l.b16 %v3009
        %v3106 = vunpack.c.l.b16 %v3010
        %v3107 = vunpack.c.l.b16 %v3011
        %v3108 = vunpack.c.l.b16 %v3012
        %v3109 = vunpack.c.l.b16 %v3013
        %v3110 = vunpack.c.l.b16 %v3014
        %v3111 = vunpack.c.l.b16 %v3015
        %v3112 = vunpack.c.l.b16 %v3016
        %v3113 = vunpack.c.l.b16 %v3017
        %v3114 = vpack.c.b16 %v3067, %v3066
        %v3115 = vpack.c.b16 %v3069, %v3068
        %v3116 = vpack.c.b16 %v3071, %v3070
        %v3117 = vpack.c.b16 %v3073, %v3072
        %v3118 = vpack.c.b16 %v3075, %v3074
        %v3119 = vpack.c.b16 %v3077, %v3076
        %v3120 = vpack.c.b16 %v3079, %v3078
        %v3121 = vpack.c.b16 %v3081, %v3080
        %v3122 = vpack.c.b16 %v3083, %v3082
        %v3123 = vpack.c.b16 %v3085, %v3084
        %v3124 = vpack.c.b16 %v3087, %v3086
        %v3125 = vpack.c.b16 %v3089, %v3088
        %v3126 = vpack.c.b16 %v3091, %v3090
        %v3127 = vpack.c.b16 %v3093, %v3092
        %v3128 = vpack.c.b16 %v3095, %v3094
        %v3129 = vpack.c.b16 %v3097, %v3096
        %v3130 = vpack.c.b16 %v3099, %v3098
        %v3131 = vpack.c.b16 %v3101, %v3100
        %v3132 = vpack.c.b16 %v3103, %v3102
        %v3133 = vpack.c.b16 %v3105, %v3104
        %v3134 = vpack.c.b16 %v3107, %v3106
        %v3135 = vpack.c.b16 %v3109, %v3108
        %v3136 = vpack.c.b16 %v3111, %v3110
        %v3137 = vpack.c.b16 %v3113, %v3112
        %3162 = vmatprep.subr.bf16.mxu0 0
        %3163 = vmatpush1.bf16.msra.mxu0 %v3114
        %3164 = vmatprep.subr.bf16.mxu0 0
        %3165 = vmatpush1.bf16.msra.mxu0 %v3115
        %3166 = vmatprep.subr.bf16.mxu0 0
        %3167 = vmatpush1.bf16.msra.mxu0 %v3116
        %3168 = vmatprep.subr.bf16.mxu0 0
        %3169 = vmatpush1.bf16.msra.mxu0 %v3117
        %3170 = vmatprep.subr.bf16.mxu0 0
        %3171 = vmatpush1.bf16.msra.mxu0 %v3118
        %3172 = vmatprep.subr.bf16.mxu0 0
        %3173 = vmatpush1.bf16.msra.mxu0 %v3119
        %3174 = vmatprep.subr.bf16.mxu0 0
        %3175 = vmatpush1.bf16.msra.mxu0 %v3120
        %3176 = vmatprep.subr.bf16.mxu0 0
        %3177 = vmatpush1.bf16.msra.mxu0 %v3121
        %3178 = vmatprep.subr.bf16.mxu0 0
        %3179 = vmatpush1.bf16.msra.mxu0 %v3122
        %3180 = vmatprep.subr.bf16.mxu0 0
        %3181 = vmatpush1.bf16.msra.mxu0 %v3123
        %3182 = vmatprep.subr.bf16.mxu0 0
        %3183 = vmatpush1.bf16.msra.mxu0 %v3124
        %3184 = vmatprep.subr.bf16.mxu0 0
        %3185 = vmatpush1.bf16.msra.mxu0 %v3125
        %3186 = vmatprep.subr.bf16.mxu0 0
        %3187 = vmatpush1.bf16.msra.mxu0 %v3126
        %3188 = vmatprep.subr.bf16.mxu0 0
        %3189 = vmatpush1.bf16.msra.mxu0 %v3127
        %3190 = vmatprep.subr.bf16.mxu0 0
        %3191 = vmatpush1.bf16.msra.mxu0 %v3128
        %3192 = vmatprep.subr.bf16.mxu0 0
        %3193 = vmatpush1.bf16.msra.mxu0 %v3129
        %3194 = vmatprep.mubr.bf16.mxu0 %v2028
        %3195 = vmatmul.mubr.bf16.gmra.mrb[0].mxu0 %v2158
        %v3196 = vpop.f32.mrb[0].mxu0
        %v3197 = vadd.f32 0.0, %v3196
        %v3198 = vpop.f32.mrb[0].mxu0
        %v3199 = vpop.f32.mrb[0].mxu0
        %v3200 = vadd.f32 0.0, %v3199
        %v3201 = vpop.f32.mrb[0].mxu0
        %3202 = vmatprep.mubr.bf16.mxu0 %v2029
        %3203 = vmatmul.mubr.bf16.gmra.mrb[0].mxu0 %v2159
        %v3204 = vpop.f32.mrb[0].mxu0
        %v3205 = vadd.f32 0.0, %v3204
        %v3206 = vpop.f32.mrb[0].mxu0
        %v3207 = vpop.f32.mrb[0].mxu0
        %v3208 = vadd.f32 0.0, %v3207
        %v3209 = vpop.f32.mrb[0].mxu0
        %3210 = vmatprep.mubr.bf16.mxu0 %v2030
        %3211 = vmatmul.mubr.bf16.gmra.mrb[0].mxu0 %v2160
        %v3212 = vpop.f32.mrb[0].mxu0
        %v3213 = vadd.f32 0.0, %v3212
        %v3214 = vpop.f32.mrb[0].mxu0
        %v3215 = vpop.f32.mrb[0].mxu0
        %v3216 = vadd.f32 0.0, %v3215
        %v3217 = vpop.f32.mrb[0].mxu0
        %3218 = vmatprep.mubr.bf16.mxu0 %v2031
        %3219 = vmatmul.mubr.bf16.gmra.mrb[0].mxu0 %v2161
        %v3220 = vpop.f32.mrb[0].mxu0
        %v3221 = vadd.f32 0.0, %v3220
        %v3222 = vpop.f32.mrb[0].mxu0
        %v3223 = vpop.f32.mrb[0].mxu0
        %v3224 = vadd.f32 0.0, %v3223
        %v3225 = vpop.f32.mrb[0].mxu0
        %3226 = vmatprep.mubr.bf16.mxu0 %v2032
        %3227 = vmatmul.mubr.bf16.gmra.mrb[0].mxu0 %v2162
        %v3228 = vpop.f32.mrb[0].mxu0
        %v3229 = vadd.f32 0.0, %v3228
        %v3230 = vpop.f32.mrb[0].mxu0
        %v3231 = vpop.f32.mrb[0].mxu0
        %v3232 = vadd.f32 0.0, %v3231
        %v3233 = vpop.f32.mrb[0].mxu0
        %3234 = vmatprep.mubr.bf16.mxu0 %v2033
        %3235 = vmatmul.mubr.bf16.gmra.mrb[0].mxu0 %v2163
        %v3236 = vpop.f32.mrb[0].mxu0
        %v3237 = vadd.f32 0.0, %v3236
        %v3238 = vpop.f32.mrb[0].mxu0
        %v3239 = vpop.f32.mrb[0].mxu0
        %v3240 = vadd.f32 0.0, %v3239
        %v3241 = vpop.f32.mrb[0].mxu0
        %3242 = vmatprep.mubr.bf16.mxu0 %v2034
        %3243 = vmatmul.mubr.bf16.gmra.mrb[0].mxu0 %v2164
        %v3244 = vpop.f32.mrb[0].mxu0
        %v3245 = vadd.f32 0.0, %v3244
        %v3246 = vpop.f32.mrb[0].mxu0
        %v3247 = vpop.f32.mrb[0].mxu0
        %v3248 = vadd.f32 0.0, %v3247
        %v3249 = vpop.f32.mrb[0].mxu0
        %3250 = vmatprep.mubr.bf16.mxu0 %v2035
        %3251 = vmatmul.mubr.bf16.gmra.mrb[0].mxu0 %v2165
        %v3252 = vpop.f32.mrb[0].mxu0
        %v3253 = vadd.f32 0.0, %v3252
        %v3254 = vpop.f32.mrb[0].mxu0
        %v3255 = vpop.f32.mrb[0].mxu0
        %v3256 = vadd.f32 0.0, %v3255
        %v3257 = vpop.f32.mrb[0].mxu0
        %3258 = vdwg.mxu0
        %3259 = vmatprep.subr.bf16.mxu0 0
        %3260 = vmatpush1.bf16.msra.mxu0 %v3130
        %3261 = vmatprep.subr.bf16.mxu0 0
        %3262 = vmatpush1.bf16.msra.mxu0 %v3131
        %3263 = vmatprep.subr.bf16.mxu0 0
        %3264 = vmatpush1.bf16.msra.mxu0 %v3132
        %3265 = vmatprep.subr.bf16.mxu0 0
        %3266 = vmatpush1.bf16.msra.mxu0 %v3133
        %3267 = vmatprep.subr.bf16.mxu0 0
        %3268 = vmatpush1.bf16.msra.mxu0 %v3134
        %3269 = vmatprep.subr.bf16.mxu0 0
        %3270 = vmatpush1.bf16.msra.mxu0 %v3135
        %3271 = vmatprep.subr.bf16.mxu0 0
        %3272 = vmatpush1.bf16.msra.mxu0 %v3136
        %3273 = vmatprep.subr.bf16.mxu0 0
        %3274 = vmatpush1.bf16.msra.mxu0 %v3137
        %3275 = vmatprep.subr.bf16.mxu0 0
        %3276 = vmatpush1.bf16.msra.mxu0 0
        %3277 = vmatprep.subr.bf16.mxu0 0
        %3278 = vmatpush1.bf16.msra.mxu0 0
        %3279 = vmatprep.subr.bf16.mxu0 0
        %3280 = vmatpush1.bf16.msra.mxu0 0
        %3281 = vmatprep.subr.bf16.mxu0 0
        %3282 = vmatpush1.bf16.msra.mxu0 0
        %3283 = vmatprep.subr.bf16.mxu0 0
        %3284 = vmatpush1.bf16.msra.mxu0 0
        %3285 = vmatprep.subr.bf16.mxu0 0
        %3286 = vmatpush1.bf16.msra.mxu0 0
        %3287 = vmatprep.subr.bf16.mxu0 0
        %3288 = vmatpush1.bf16.msra.mxu0 0
        %3289 = vmatprep.subr.bf16.mxu0 0
        %3290 = vmatpush1.bf16.msra.mxu0 0
        %3291 = vmatprep.mubr.bf16.mxu0 0
        %3292 = vmatmul.mubr.bf16.gmra.mrb[0].mxu0 %v2188
        %v3293 = vpop.f32.mrb[0].mxu0
        %v3294 = vadd.f32 %v3197, %v3293
        %v3295 = vpop.f32.mrb[0].mxu0
        %v3296 = vpop.f32.mrb[0].mxu0
        %v3297 = vadd.f32 %v3200, %v3296
        %v3298 = vpop.f32.mrb[0].mxu0
        %3299 = vmatprep.mubr.bf16.mxu0 0
        %3300 = vmatmul.mubr.bf16.gmra.mrb[0].mxu0 %v2189
        %v3301 = vpop.f32.mrb[0].mxu0
        %v3302 = vadd.f32 %v3205, %v3301
        %v3303 = vpop.f32.mrb[0].mxu0
        %v3304 = vpop.f32.mrb[0].mxu0
        %v3305 = vadd.f32 %v3208, %v3304
        %v3306 = vpop.f32.mrb[0].mxu0
        %3307 = vmatprep.mubr.bf16.mxu0 0
        %3308 = vmatmul.mubr.bf16.gmra.mrb[0].mxu0 %v2190
        %v3309 = vpop.f32.mrb[0].mxu0
        %v3310 = vadd.f32 %v3213, %v3309
        %v3311 = vpop.f32.mrb[0].mxu0
        %v3312 = vpop.f32.mrb[0].mxu0
        %v3313 = vadd.f32 %v3216, %v3312
        %v3314 = vpop.f32.mrb[0].mxu0
        %3315 = vmatprep.mubr.bf16.mxu0 0
        %3316 = vmatmul.mubr.bf16.gmra.mrb[0].mxu0 %v2191
        %v3317 = vpop.f32.mrb[0].mxu0
        %v3318 = vadd.f32 %v3221, %v3317
        %v3319 = vpop.f32.mrb[0].mxu0
        %v3320 = vpop.f32.mrb[0].mxu0
        %v3321 = vadd.f32 %v3224, %v3320
        %v3322 = vpop.f32.mrb[0].mxu0
        %3323 = vmatprep.mubr.bf16.mxu0 0
        %3324 = vmatmul.mubr.bf16.gmra.mrb[0].mxu0 %v2192
        %v3325 = vpop.f32.mrb[0].mxu0
        %v3326 = vadd.f32 %v3229, %v3325
        %v3327 = vpop.f32.mrb[0].mxu0
        %v3328 = vpop.f32.mrb[0].mxu0
        %v3329 = vadd.f32 %v3232, %v3328
        %v3330 = vpop.f32.mrb[0].mxu0
        %3331 = vmatprep.mubr.bf16.mxu0 0
        %3332 = vmatmul.mubr.bf16.gmra.mrb[0].mxu0 %v2193
        %v3333 = vpop.f32.mrb[0].mxu0
        %v3334 = vadd.f32 %v3237, %v3333
        %v3335 = vpop.f32.mrb[0].mxu0
        %v3336 = vpop.f32.mrb[0].mxu0
        %v3337 = vadd.f32 %v3240, %v3336
        %v3338 = vpop.f32.mrb[0].mxu0
        %3339 = vmatprep.mubr.bf16.mxu0 0
        %3340 = vmatmul.mubr.bf16.gmra.mrb[0].mxu0 %v2194
        %v3341 = vpop.f32.mrb[0].mxu0
        %v3342 = vadd.f32 %v3245, %v3341
        %v3343 = vpop.f32.mrb[0].mxu0
        %v3344 = vpop.f32.mrb[0].mxu0
        %v3345 = vadd.f32 %v3248, %v3344
        %v3346 = vpop.f32.mrb[0].mxu0
        %3347 = vmatprep.mubr.bf16.mxu0 0
        %3348 = vmatmul.mubr.bf16.gmra.mrb[0].mxu0 %v2195
        %v3349 = vpop.f32.mrb[0].mxu0
        %v3350 = vadd.f32 %v3253, %v3349
        %v3351 = vpop.f32.mrb[0].mxu0
        %v3352 = vpop.f32.mrb[0].mxu0
        %v3353 = vadd.f32 %v3256, %v3352
        %v3354 = vpop.f32.mrb[0].mxu0
        %3355 = vdwg.mxu0
        %v3356 = vadd.f32 %v2907, %v3294
        %v3357 = vadd.f32 %v2910, %v3297
        %v3358 = vadd.f32 %v2915, %v3302
        %v3359 = vadd.f32 %v2918, %v3305
        %v3360 = vadd.f32 %v2923, %v3310
        %v3361 = vadd.f32 %v2926, %v3313
        %v3362 = vadd.f32 %v2931, %v3318
        %v3363 = vadd.f32 %v2934, %v3321
        %v3364 = vadd.f32 %v2939, %v3326
        %v3365 = vadd.f32 %v2942, %v3329
        %v3366 = vadd.f32 %v2947, %v3334
        %v3367 = vadd.f32 %v2950, %v3337
        %v3368 = vadd.f32 %v2955, %v3342
        %v3369 = vadd.f32 %v2958, %v3345
        %v3370 = vadd.f32 %v2963, %v3350
        %v3371 = vadd.f32 %v2966, %v3353
        %v3372 = vld [vmem:[#allocation12] sm:$0x1]
        %v3374 = vlaneseq
        %v3375 = vshrl.u32 %v3374, 7
        %v3376 = vsub.s32 0, %v3375
        %v3377 = vrot.slane %v3372, %v3376
        %v3379 = vadd.f32 %v3356, %v3377
        %v3380 = vadd.f32 %v3357, %v3377
        %v3381 = vadd.f32 %v3358, %v3377
        %v3382 = vadd.f32 %v3359, %v3377
        %v3383 = vadd.f32 %v3360, %v3377
        %v3384 = vadd.f32 %v3361, %v3377
        %v3385 = vadd.f32 %v3362, %v3377
        %v3386 = vadd.f32 %v3363, %v3377
        %v3387 = vadd.f32 %v3364, %v3377
        %v3388 = vadd.f32 %v3365, %v3377
        %v3389 = vadd.f32 %v3366, %v3377
        %v3390 = vadd.f32 %v3367, %v3377
        %v3391 = vadd.f32 %v3368, %v3377
        %v3392 = vadd.f32 %v3369, %v3377
        %v3393 = vadd.f32 %v3370, %v3377
        %v3394 = vadd.f32 %v3371, %v3377
        %v3395 = vunpack.c.l.bf16 %v397
        %v3396 = vunpack.c.l.bf16 %v398
        %v3397 = vunpack.c.l.bf16 %v399
        %v3398 = vunpack.c.l.bf16 %v400
        %v3399 = vunpack.c.l.bf16 %v401
        %v3400 = vunpack.c.l.bf16 %v402
        %v3401 = vunpack.c.l.bf16 %v403
        %v3402 = vunpack.c.l.bf16 %v404
        %v3403 = vunpack.c.l.bf16 %v405
        %v3404 = vunpack.c.l.bf16 %v406
        %v3405 = vunpack.c.l.bf16 %v407
        %v3406 = vunpack.c.l.bf16 %v408
        %v3407 = vunpack.c.l.bf16 %v409
        %v3408 = vunpack.c.l.bf16 %v410
        %v3409 = vunpack.c.l.bf16 %v411
        %v3410 = vunpack.c.l.bf16 %v412
        %v3411 = vadd.f32 %v3379, %v3395
        %v3412 = vadd.f32 %v3380, %v3396
        %v3413 = vadd.f32 %v3381, %v3397
        %v3414 = vadd.f32 %v3382, %v3398
        %v3415 = vadd.f32 %v3383, %v3399
        %v3416 = vadd.f32 %v3384, %v3400
        %v3417 = vadd.f32 %v3385, %v3401
        %v3418 = vadd.f32 %v3386, %v3402
        %v3419 = vadd.f32 %v3387, %v3403
        %v3420 = vadd.f32 %v3388, %v3404
        %v3421 = vadd.f32 %v3389, %v3405
        %v3422 = vadd.f32 %v3390, %v3406
        %v3423 = vadd.f32 %v3391, %v3407
        %v3424 = vadd.f32 %v3392, %v3408
        %v3425 = vadd.f32 %v3393, %v3409
        %v3426 = vadd.f32 %v3394, %v3410
        %v3427 = vpack.c.bf16 %v3412, %v3411
        %v3428 = vpack.c.bf16 %v3414, %v3413
        %v3429 = vpack.c.bf16 %v3416, %v3415
        %v3430 = vpack.c.bf16 %v3418, %v3417
        %v3431 = vpack.c.bf16 %v3420, %v3419
        %v3432 = vpack.c.bf16 %v3422, %v3421
        %v3433 = vpack.c.bf16 %v3424, %v3423
        %v3434 = vpack.c.bf16 %v3426, %v3425
        %v3443 = vunpack.c.l.b16 %v3427
        %v3444 = vunpack.c.h.b16 %v3427
        %v3445 = vunpack.c.l.b16 %v3428
        %v3446 = vunpack.c.h.b16 %v3428
        %v3447 = vunpack.c.l.b16 %v3429
        %v3448 = vunpack.c.h.b16 %v3429
        %v3449 = vunpack.c.l.b16 %v3430
        %v3450 = vunpack.c.h.b16 %v3430
        %v3451 = vunpack.c.l.b16 %v3431
        %v3452 = vunpack.c.h.b16 %v3431
        %v3453 = vunpack.c.l.b16 %v3432
        %v3454 = vunpack.c.h.b16 %v3432
        %v3455 = vunpack.c.l.b16 %v3433
        %v3456 = vunpack.c.h.b16 %v3433
        %v3457 = vunpack.c.l.b16 %v3434
        %v3458 = vunpack.c.h.b16 %v3434
        %v3459 = vpack.c.b16 %v3443, %v3443
        %v3460 = vpack.c.b16 %v3444, %v3444
        %v3461 = vpack.c.b16 %v3445, %v3445
        %v3462 = vpack.c.b16 %v3446, %v3446
        %v3463 = vpack.c.b16 %v3447, %v3447
        %v3464 = vpack.c.b16 %v3448, %v3448
        %v3465 = vpack.c.b16 %v3449, %v3449
        %v3466 = vpack.c.b16 %v3450, %v3450
        %v3467 = vpack.c.b16 %v3451, %v3451
        %v3468 = vpack.c.b16 %v3452, %v3452
        %v3469 = vpack.c.b16 %v3453, %v3453
        %v3470 = vpack.c.b16 %v3454, %v3454
        %v3471 = vpack.c.b16 %v3455, %v3455
        %v3472 = vpack.c.b16 %v3456, %v3456
        %v3473 = vpack.c.b16 %v3457, %v3457
        %v3474 = vpack.c.b16 %v3458, %v3458
        %3491 = vst [vmem:[%s316] sm:$0xf] %v3459
        %3492 = vst [vmem:[%s316 + $0x4] sm:$0xf] %v3460
        %3493 = vst [vmem:[%s316 + $0x8] sm:$0xf] %v3461
        %3494 = vst [vmem:[%s316 + $0xc] sm:$0xf] %v3462
        %3495 = vst [vmem:[%s316 + $0x10] sm:$0xf] %v3463
        %3496 = vst [vmem:[%s316 + $0x14] sm:$0xf] %v3464
        %3497 = vst [vmem:[%s316 + $0x18] sm:$0xf] %v3465
        %3498 = vst [vmem:[%s316 + $0x1c] sm:$0xf] %v3466
        %3499 = vst [vmem:[%s316 + $0x20] sm:$0xf] %v3467
        %3500 = vst [vmem:[%s316 + $0x24] sm:$0xf] %v3468
        %3501 = vst [vmem:[%s316 + $0x28] sm:$0xf] %v3469
        %3502 = vst [vmem:[%s316 + $0x2c] sm:$0xf] %v3470
        %3503 = vst [vmem:[%s316 + $0x30] sm:$0xf] %v3471
        %3504 = vst [vmem:[%s316 + $0x34] sm:$0xf] %v3472
        %3505 = vst [vmem:[%s316 + $0x38] sm:$0xf] %v3473
        %3506 = vst [vmem:[%s316 + $0x3c] sm:$0xf] %v3474
        %s3507 = sand.u32 %s159, 1
        %s3508 = scalar_lea.sflag [#allocation6], %s3507
        %s3509 = sand.u32 %s159, 1
        %s3510 = smul.addr %s3509, 64
        %s3511 = scalar_lea.vmem [#allocation13], %s3510
        // Predicated region
        $region93: #{edsr_forward.6} parent=39 // pred_check
          %p3512 = pneg %p169
        $region94: #{edsr_forward.6} parent=39 // pred_check_branch
          %3514 = sbr.rel (%p3512) target = $region96
        $region95: #{edsr_forward.6} parent=39 // pred_region
          %s3515 = smul.u32 8, %s30
          %s3517 = ssub.s32 1024, 1024
          %3518 = vsyncadd %s3508, %s3517
          %s3519 = smul.addr %s3515, 2
          %s3520 = smul.addr %s29, 32
          %s3521 = sadd.s32 %s3519, %s3520
          %s3522 = smul.addr %s3521, 64
          %s3523 = scalar_lea.hbm %s6, %s3522
          %s3524 = sshll.u32 %s3511, 4
          %s3525 = int_to_ptr.vmem [resolvable:$true] %s3524
          %3530 = dma.vmem_to_hbm [thread:$0]  %s3525, 1024, %s3523, %s3508, 64, 64, 4
        $region96: #{edsr_forward.6} parent=39 // pred_fallthru
          _
      $region40: #{edsr_forward.6} parent=5 // pred_fallthru
        _
      %p3531 = scmp.le.s32.totalorder 2, %s20
      // Predicated region
      $region97: #{edsr_forward.6} parent=5 // pred_check
        %p3532 = pneg %p3531
      $region98: #{edsr_forward.6} parent=5 // pred_check_branch
        %3534 = sbr.rel (%p3532) target = $region100
      $region99: #{edsr_forward.6} parent=5 // pred_region
        %s3535 = ssub.s32 %s20, 2
        // Predicated region
        $region101: #{edsr_forward.6} parent=99 // pred_check
          %p3536 = pneg %p175
        $region102: #{edsr_forward.6} parent=99 // pred_check_branch
          %3538 = sbr.rel (%p3536) target = $region104
        $region103: #{edsr_forward.6} parent=99 // pred_region
          %s3539 = sand.u32 %s160, 1
          %s3540 = scalar_lea.sflag [#allocation6], %s3539
          %s3541 = sand.u32 %s160, 1
          %s3542 = smul.addr %s3541, 64
          %s3543 = scalar_lea.vmem [#allocation13], %s3542
          %3544 = dma.done %s3540, 1024
        $region104: #{edsr_forward.6} parent=99 // pred_fallthru
          _
      $region100: #{edsr_forward.6} parent=5 // pred_fallthru
        _
    $region6: #{edsr_forward.6} parent=1 // loop_footer
      %s24 = sadd.s32 1, %s20
    $region7: #{edsr_forward.6} parent=1 // loop_footer_branch
      %19 = sbr.rel target = $region3
    $region8: #{edsr_forward.6} parent=1 // loop_exit
      _
    %3545 = vsyncpa [#allocation5], 1
    %s3546 = scalar_lea.sflag [#allocation5], 1
    %3547 = vsyncpa %s3546, 1
    %3548 = vsyncpa [#allocation8], 1
    %3549 = vsyncpa [#allocation11], 1
    %3550 = vsyncpa [#allocation6], 1
    %s3551 = scalar_lea.sflag [#allocation6], 1
    %3552 = vsyncpa %s3551, 1
  %3553 = vsyncmov [#allocation3]
  %s3554 = vpop.sfrf %3553
  %p3555 = scmp.eq.s32.totalorder %s3554, 0
  %p3556 = pneg %p3555
  %3558 = shalt.err (%p3556)
  %s3559 = scalar_lea.sflag [#allocation3], 1
  %3560 = vsyncmov %s3559
  %s3561 = vpop.sfrf %3560
  %p3562 = scmp.eq.s32.totalorder %s3561, 0
  %p3563 = pneg %p3562
  %3565 = shalt.err (%p3563)

</llo_original>
